<compile_context>
chip_gen: v7x
topology: tpu7x:2x2x1
jax: 0.10.0
libtpu: 0.0.40
codegen_flags: <defaults>
</compile_context>

<pallas_src>
import functools

import jax
import jax.numpy as jnp
from jax.experimental import pallas as pl
from jax.experimental.pallas import tpu as pltpu


def _round_up(x, m):
    return ((x + m - 1) // m) * m


# ---------------------------------------------------------------------------
# Fused kernel: conv1 -> relu -> conv2 -> relu -> global avg pool -> MLP
# One batch tile (Bt images) per grid step.
# ---------------------------------------------------------------------------
def _custom_net_kernel(xcol_ref, w1_ref, b1_ref, w2_ref, b2_ref,
                       wf1_ref, bf1_ref, wf2_ref, bf2_ref,
                       o_ref, h1pad_ref, col2_ref, *, Bt, H, W):
    HW = H * W
    K1 = w1_ref.shape[0]          # 32  (padded from 3*3*3 = 27)
    C1 = w1_ref.shape[-1]         # 64

    # ---- conv1: single im2col matmul (bf16 operands, f32 accumulate) ----
    xcol = xcol_ref[...].reshape(Bt * HW, K1)
    h1 = jnp.dot(xcol, w1_ref[...], preferred_element_type=jnp.float32)
    h1 = jnp.maximum(h1 + b1_ref[...], 0.0)                       # (Bt*HW, 64) f32

    # ---- zero only the 1-pixel halo strips (interior overwritten below) ----
    zdt = h1pad_ref.dtype
    h1pad_ref[:, 0:1, :, :] = jnp.zeros((Bt, 1, W + 2, C1), zdt)          # top
    h1pad_ref[:, H + 1:H + 2, :, :] = jnp.zeros((Bt, 1, W + 2, C1), zdt)  # bottom
    h1pad_ref[:, 1:H + 1, 0:1, :] = jnp.zeros((Bt, H, 1, C1), zdt)        # left
    h1pad_ref[:, 1:H + 1, W + 1:W + 2, :] = jnp.zeros((Bt, H, 1, C1), zdt)  # right

    # ---- stage conv1 output in the zero-haloed VMEM scratch ("same" pad) ----
    h1pad_ref[:, 1:H + 1, 1:W + 1, :] = (
        h1.astype(zdt).reshape(Bt, H, W, C1))

    # ---- conv2 im2col slab (4-D, lane-dense paired-tap stores) ----
    # taps t = kh*3+kw, tap-major / cin-minor columns; pairs give 128-lane stores.
    for tp in range(4):
        t0 = 2 * tp
        kh0, kw0 = divmod(t0, 3)
        kh1, kw1 = divmod(t0 + 1, 3)
        pair = jnp.concatenate(
            [h1pad_ref[:, kh0:kh0 + H, kw0:kw0 + W, :],
             h1pad_ref[:, kh1:kh1 + H, kw1:kw1 + W, :]], axis=-1)
        col2_ref[:, :, :, t0 * C1:(t0 + 2) * C1] = pair
    # last tap (kh=2, kw=2) is the lone 64-lane store
    col2_ref[:, :, :, 8 * C1:9 * C1] = h1pad_ref[:, 2:2 + H, 2:2 + W, :]

    # ---- conv2: one big-K (576) MXU matmul, bias + ReLU in f32 ----
    col2 = col2_ref[...].reshape(Bt * HW, 9 * C1)
    h2 = jnp.dot(col2, w2_ref[...], preferred_element_type=jnp.float32)
    h2 = jnp.maximum(h2 + b2_ref[...], 0.0)                       # (Bt*HW, 128) f32

    # ---- global average pool over H*W (f32) ----
    pooled = jnp.sum(h2.reshape(Bt, HW, -1), axis=1) * (1.0 / HW)  # (Bt, 128)

    # ---- MLP: Linear(128,256) -> ReLU -> Linear(256, 256[padded from 200]) ----
    z = jnp.dot(pooled.astype(jnp.bfloat16), wf1_ref[...],
                preferred_element_type=jnp.float32) + bf1_ref[...]
    z = jnp.maximum(z, 0.0)
    out = jnp.dot(z.astype(jnp.bfloat16), wf2_ref[...],
                  preferred_element_type=jnp.float32) + bf2_ref[...]
    o_ref[...] = out.reshape(Bt, 1, -1).astype(o_ref.dtype)


# ---------------------------------------------------------------------------
# VMEM budgeting / batch-tile selection (generation aware)
# ---------------------------------------------------------------------------
def _vmem_capacity_bytes():
    cap = 64 * 1024 * 1024                    # conservative default (v7x per-TC)
    try:
        info = pltpu.get_tpu_info()
        v = getattr(info, "vmem_capacity_bytes", None)
        if v:
            cap = int(v)
    except Exception:
        pass
    return cap


def _tile_vmem_bytes(bt, H, W):
    """Rough per-grid-step VMEM footprint (bytes), incl. lane/sublane padding."""
    hw = H * W
    bf16, f32 = 2, 4
    h1pad = bt * (H + 2) * _round_up(W + 2, 16) * 128 * bf16        # (bt,H+2,W+2,64)
    col2 = bt * H * _round_up(W, 16) * _round_up(576, 128) * bf16   # (bt,H,W,576)
    xcol = 2 * bt * _round_up(hw, 16) * 128 * bf16                  # dbl-buffered in
    outb = 2 * bt * 256 * f32                                       # dbl-buffered out
    wts = 2 * (32 * 128 + 576 * 128 + 128 * 256 + 256 * 256 + 4 * 256) * bf16
    tmp = bt * hw * 128 * f32 * 2 + bt * hw * 128 * bf16            # h1/h2 f32 + concat
    return h1pad + col2 + xcol + outb + wts + tmp


def _choose_bt(batch, H, W, budget_bytes, max_bt=64):
    """Pick batch tile: as big as the VMEM budget allows (up to max_bt)."""
    cap = max(1, min(batch, max_bt))
    bt_fit = 1
    for bt in range(1, cap + 1):
        if _tile_vmem_bytes(bt, H, W) <= budget_bytes:
            bt_fit = bt
    if bt_fit >= batch:
        return batch, 0                       # one big tile, grid = 1
    # prefer a divisor of batch (no padded work) unless it wastes >25% of tile
    best_div = 1
    for bt in range(bt_fit, 0, -1):
        if batch % bt == 0:
            best_div = bt
            break
    if best_div * 4 >= bt_fit * 3:
        return best_div, 0
    return bt_fit, (-batch) % bt_fit


# ---------------------------------------------------------------------------
# pallas_call wrapper
# ---------------------------------------------------------------------------
def fused_custom_net(x_col, w1, b1, w2, b2, wf1, bf1, wf2, bf2, *, H, W):
    B, HW, K1 = x_col.shape
    C1 = w1.shape[-1]              # 64
    K2, C2 = w2.shape              # 576, 128
    D1 = wf1.shape[-1]             # 256
    D2 = wf2.shape[-1]             # 256 (padded from 200)

    cap = _vmem_capacity_bytes()
    Bt, pad = _choose_bt(B, H, W, int(cap * 0.55))
    if pad:
        x_col = jnp.pad(x_col, ((0, pad), (0, 0), (0, 0)))
    Bp = B + pad

    est = _tile_vmem_bytes(Bt, H, W)
    vmem_limit = min(int(cap * 0.9), max(32 * 1024 * 1024, int(est * 1.6)))

    kernel = functools.partial(_custom_net_kernel, Bt=Bt, H=H, W=W)

    out = pl.pallas_call(
        kernel,
        out_shape=jax.ShapeDtypeStruct((Bp, 1, D2), jnp.float32),
        grid=(Bp // Bt,),
        in_specs=[
            pl.BlockSpec((Bt, HW, K1), lambda i: (i, 0, 0)),   # conv1 im2col input
            pl.BlockSpec((K1, C1), lambda i: (0, 0)),          # w_conv1 (32,64)
            pl.BlockSpec((1, C1), lambda i: (0, 0)),           # b_conv1
            pl.BlockSpec((K2, C2), lambda i: (0, 0)),          # w_conv2 (576,128)
            pl.BlockSpec((1, C2), lambda i: (0, 0)),           # b_conv2
            pl.BlockSpec((C2, D1), lambda i: (0, 0)),          # w_fc1 (128,256)
            pl.BlockSpec((1, D1), lambda i: (0, 0)),           # b_fc1
            pl.BlockSpec((D1, D2), lambda i: (0, 0)),          # w_fc2 (256,256)
            pl.BlockSpec((1, D2), lambda i: (0, 0)),           # b_fc2
        ],
        out_specs=pl.BlockSpec((Bt, 1, D2), lambda i: (i, 0, 0)),
        scratch_shapes=[
            pltpu.VMEM((Bt, H + 2, W + 2, C1), jnp.bfloat16),  # conv1 out + halo
            pltpu.VMEM((Bt, H, W, K2), jnp.bfloat16),          # conv2 im2col slab
        ],
        compiler_params=pltpu.CompilerParams(
            dimension_semantics=("parallel",),
            vmem_limit_bytes=vmem_limit,
        ),
    )(x_col, w1, b1, w2, b2, wf1, bf1, wf2, bf2)
    return out[:B, 0, :]            # (B, D2)


# ---------------------------------------------------------------------------
# Wrapper-side packing (cheap XLA ops on the tiny network inputs / weights)
# ---------------------------------------------------------------------------
def _im2col_3x3(x_nhwc, k_pad):
    """(B,H,W,C) -> (B, H*W, k_pad), zero 'same' padding, tap-major (kh,kw,c)."""
    B, H, W, C = x_nhwc.shape
    xp = jnp.pad(x_nhwc, ((0, 0), (1, 1), (1, 1), (0, 0)))
    taps = [xp[:, kh:kh + H, kw:kw + W, :] for kh in range(3) for kw in range(3)]
    col = jnp.concatenate(taps, axis=-1).reshape(B, H * W, 9 * C)
    if k_pad > 9 * C:
        col = jnp.pad(col, ((0, 0), (0, 0), (0, k_pad - 9 * C)))
    return col


@jax.jit
def custom_net_forward(params, x_nchw):
    x = jnp.transpose(x_nchw, (0, 2, 3, 1))                  # NCHW -> NHWC
    B, H, W, Cin = x.shape
    K1 = _round_up(9 * Cin, 32)                              # 27 -> 32 (lane friendly)
    x_col = _im2col_3x3(x, K1).astype(jnp.bfloat16)          # (B, H*W, 32)

    w1 = params["w_conv1"].reshape(9 * Cin, -1)              # (27, 64)
    w1 = jnp.pad(w1, ((0, K1 - 9 * Cin), (0, 0))).astype(jnp.bfloat16)
    b1 = params["b_conv1"].reshape(1, -1)
    w2 = params["w_conv2"].reshape(9 * 64, -1).astype(jnp.bfloat16)    # (576, 128)
    b2 = params["b_conv2"].reshape(1, -1)
    wf1 = params["w_fc1"].astype(jnp.bfloat16)                         # (128, 256)
    bf1 = params["b_fc1"].reshape(1, -1)

    d_out = params["w_fc2"].shape[1]                                   # 200
    d_pad = _round_up(d_out, 128)                                      # 256
    wf2 = jnp.pad(params["w_fc2"], ((0, 0), (0, d_pad - d_out))).astype(jnp.bfloat16)
    bf2 = jnp.pad(params["b_fc2"], (0, d_pad - d_out)).reshape(1, -1)

    out = fused_custom_net(x_col, w1, b1, w2, b2, wf1, bf1, wf2, bf2, H=H, W=W)
    return out[:, :d_out]                                              # (B, 200)


# ---------------------------------------------------------------------------
# Parameter init (deterministic, shapes match the PyTorch module)
# ---------------------------------------------------------------------------
def init_params(key):
    ks = jax.random.split(key, 8)

    def uniform(k, shape, fan_in):
        bound = 1.0 / jnp.sqrt(fan_in)
        return jax.random.uniform(k, shape, jnp.float32, -bound, bound)

    return {
        # conv weights stored as (kh, kw, Cin, Cout)
        "w_conv1": uniform(ks[0], (3, 3, 3, 64), 3 * 3 * 3),
        "b_conv1": uniform(ks[1], (64,), 3 * 3 * 3),
        "w_conv2": uniform(ks[2], (3, 3, 64, 128), 3 * 3 * 64),
        "b_conv2": uniform(ks[3], (128,), 3 * 3 * 64),
        # linear weights stored as (in, out)
        "w_fc1": uniform(ks[4], (128, 256), 128),
        "b_fc1": uniform(ks[5], (256,), 128),
        "w_fc2": uniform(ks[6], (256, 200), 256),
        "b_fc2": uniform(ks[7], (200,), 256),
    }


# ---------------------------------------------------------------------------
# Pure-JAX reference (f32) for a sanity check
# ---------------------------------------------------------------------------
def reference_forward(params, x_nchw):
    x = jnp.transpose(x_nchw, (0, 2, 3, 1))
    dn1 = jax.lax.conv_dimension_numbers(x.shape, params["w_conv1"].shape,
                                         ("NHWC", "HWIO", "NHWC"))
    h = jax.lax.conv_general_dilated(x, params["w_conv1"], (1, 1), "SAME",
                                     dimension_numbers=dn1,
                                     precision=jax.lax.Precision.HIGHEST)
    h = jnp.maximum(h + params["b_conv1"], 0.0)
    dn2 = jax.lax.conv_dimension_numbers(h.shape, params["w_conv2"].shape,
                                         ("NHWC", "HWIO", "NHWC"))
    h = jax.lax.conv_general_dilated(h, params["w_conv2"], (1, 1), "SAME",
                                     dimension_numbers=dn2,
                                     precision=jax.lax.Precision.HIGHEST)
    h = jnp.maximum(h + params["b_conv2"], 0.0)
    p = jnp.mean(h, axis=(1, 2))
    z = jnp.maximum(
        jnp.dot(p, params["w_fc1"], precision=jax.lax.Precision.HIGHEST)
        + params["b_fc1"], 0.0)
    return (jnp.dot(z, params["w_fc2"], precision=jax.lax.Precision.HIGHEST)
            + params["b_fc2"])


if __name__ == "__main__":
    key = jax.random.PRNGKey(0)
    pkey, xkey = jax.random.split(key)
    params = init_params(pkey)

    # Small but shape-consistent input: batch=2, 3 channels, 16x16 spatial (NCHW).
    x = jax.random.normal(xkey, (2, 3, 16, 16), dtype=jnp.float32)

    out = custom_net_forward(params, x)
    jax.block_until_ready(out)
    assert out.shape == (2, 200), out.shape

    ref = reference_forward(params, x)
    max_err = float(jnp.max(jnp.abs(out - ref)))
    assert max_err < 5e-2, f"max abs error vs reference too large: {max_err}"

    print("KERNEL_OK")
</pallas_src>

<mosaic_0001>
module attributes {stable_mosaic.version = 11 : i64} {
  func.func @_custom_net_kernel(%arg0: i32, %arg1: memref<2x256x32xbf16, #tpu.memory_space<vmem>>, %arg2: memref<32x64xbf16, #tpu.memory_space<vmem>>, %arg3: memref<1x64xf32, #tpu.memory_space<vmem>>, %arg4: memref<576x128xbf16, #tpu.memory_space<vmem>>, %arg5: memref<1x128xf32, #tpu.memory_space<vmem>>, %arg6: memref<128x256xbf16, #tpu.memory_space<vmem>>, %arg7: memref<1x256xf32, #tpu.memory_space<vmem>>, %arg8: memref<256x256xbf16, #tpu.memory_space<vmem>>, %arg9: memref<1x256xf32, #tpu.memory_space<vmem>>, %arg10: memref<2x1x256xf32, #tpu.memory_space<vmem>>, %arg11: memref<2x18x18x64xbf16, #tpu.memory_space<vmem>>, %arg12: memref<2x16x16x576xbf16, #tpu.memory_space<vmem>>) attributes {dimension_semantics = [#tpu.dimension_semantics<parallel>], iteration_bounds = array<i64: 1>, scalar_prefetch = 0 : i64, scratch_operands = 2 : i64, tpu.core_type = #tpu.core_type<tc>, window_params = [{transform_indices = @transform_0, window_bounds = array<i64: 2, 256, 32>}, {pipeline_mode = #tpu.pipeline_mode<synchronous>, transform_indices = @transform_1, window_bounds = array<i64: 32, 64>}, {pipeline_mode = #tpu.pipeline_mode<synchronous>, transform_indices = @transform_2, window_bounds = array<i64: 1, 64>}, {pipeline_mode = #tpu.pipeline_mode<synchronous>, transform_indices = @transform_3, window_bounds = array<i64: 576, 128>}, {pipeline_mode = #tpu.pipeline_mode<synchronous>, transform_indices = @transform_4, window_bounds = array<i64: 1, 128>}, {pipeline_mode = #tpu.pipeline_mode<synchronous>, transform_indices = @transform_5, window_bounds = array<i64: 128, 256>}, {pipeline_mode = #tpu.pipeline_mode<synchronous>, transform_indices = @transform_6, window_bounds = array<i64: 1, 256>}, {pipeline_mode = #tpu.pipeline_mode<synchronous>, transform_indices = @transform_7, window_bounds = array<i64: 256, 256>}, {pipeline_mode = #tpu.pipeline_mode<synchronous>, transform_indices = @transform_8, window_bounds = array<i64: 1, 256>}, {transform_indices = @transform_9, window_bounds = array<i64: 2, 1, 256>}]} {
    %c0 = arith.constant 0 : index
    %c0_0 = arith.constant 0 : index
    %c0_1 = arith.constant 0 : index
    %0 = vector.load %arg1[%c0, %c0_0, %c0_1] : memref<2x256x32xbf16, #tpu.memory_space<vmem>>, vector<2x256x32xbf16>
    %1 = vector.shape_cast %0 : vector<2x256x32xbf16> to vector<512x32xbf16>
    %c0_2 = arith.constant 0 : index
    %c0_3 = arith.constant 0 : index
    %2 = vector.load %arg2[%c0_2, %c0_3] : memref<32x64xbf16, #tpu.memory_space<vmem>>, vector<32x64xbf16>
    %cst = arith.constant dense<0.000000e+00> : vector<512x64xf32>
    %3 = tpu.matmul %1, %2, %cst {dimension_numbers = #tpu.dot_dimension_numbers<[1], [0], [0], [1], [0, 0, 1, 1], [], []>} : vector<512x32xbf16>, vector<32x64xbf16>, vector<512x64xf32> -> vector<512x64xf32>
    %c0_4 = arith.constant 0 : index
    %c0_5 = arith.constant 0 : index
    %4 = vector.load %arg3[%c0_4, %c0_5] : memref<1x64xf32, #tpu.memory_space<vmem>>, vector<1x64xf32>
    %5 = vector.broadcast %4 : vector<1x64xf32> to vector<512x64xf32>
    %6 = arith.addf %3, %5 : vector<512x64xf32>
    %cst_6 = arith.constant 0.000000e+00 : f32
    %7 = vector.broadcast %cst_6 : f32 to vector<512x64xf32>
    %8 = arith.maximumf %6, %7 : vector<512x64xf32>
    %cst_7 = arith.constant 0.000000e+00 : bf16
    %9 = vector.broadcast %cst_7 : bf16 to vector<2x1x18x64xbf16>
    %c0_8 = arith.constant 0 : index
    %c0_9 = arith.constant 0 : index
    %c0_10 = arith.constant 0 : index
    %c0_11 = arith.constant 0 : index
    %10 = vector.load %arg11[%c0_8, %c0_9, %c0_10, %c0_11] : memref<2x18x18x64xbf16, #tpu.memory_space<vmem>>, vector<2x1x18x64xbf16>
    tpu.vector_store %arg11[%c0_8, %c0_9, %c0_10, %c0_11], %9 {strides = array<i32>} : memref<2x18x18x64xbf16, #tpu.memory_space<vmem>>, vector<2x1x18x64xbf16>,
    %cst_12 = arith.constant 0.000000e+00 : bf16
    %11 = vector.broadcast %cst_12 : bf16 to vector<2x1x18x64xbf16>
    %c0_13 = arith.constant 0 : index
    %c17 = arith.constant 17 : index
    %c0_14 = arith.constant 0 : index
    %c0_15 = arith.constant 0 : index
    %12 = vector.load %arg11[%c0_13, %c17, %c0_14, %c0_15] : memref<2x18x18x64xbf16, #tpu.memory_space<vmem>>, vector<2x1x18x64xbf16>
    tpu.vector_store %arg11[%c0_13, %c17, %c0_14, %c0_15], %11 {strides = array<i32>} : memref<2x18x18x64xbf16, #tpu.memory_space<vmem>>, vector<2x1x18x64xbf16>,
    %cst_16 = arith.constant 0.000000e+00 : bf16
    %13 = vector.broadcast %cst_16 : bf16 to vector<2x16x1x64xbf16>
    %c0_17 = arith.constant 0 : index
    %c1 = arith.constant 1 : index
    %c0_18 = arith.constant 0 : index
    %c0_19 = arith.constant 0 : index
    %14 = vector.load %arg11[%c0_17, %c1, %c0_18, %c0_19] : memref<2x18x18x64xbf16, #tpu.memory_space<vmem>>, vector<2x16x1x64xbf16>
    tpu.vector_store %arg11[%c0_17, %c1, %c0_18, %c0_19], %13 {strides = array<i32>} : memref<2x18x18x64xbf16, #tpu.memory_space<vmem>>, vector<2x16x1x64xbf16>,
    %cst_20 = arith.constant 0.000000e+00 : bf16
    %15 = vector.broadcast %cst_20 : bf16 to vector<2x16x1x64xbf16>
    %c0_21 = arith.constant 0 : index
    %c1_22 = arith.constant 1 : index
    %c17_23 = arith.constant 17 : index
    %c0_24 = arith.constant 0 : index
    %16 = vector.load %arg11[%c0_21, %c1_22, %c17_23, %c0_24] : memref<2x18x18x64xbf16, #tpu.memory_space<vmem>>, vector<2x16x1x64xbf16>
    tpu.vector_store %arg11[%c0_21, %c1_22, %c17_23, %c0_24], %15 {strides = array<i32>} : memref<2x18x18x64xbf16, #tpu.memory_space<vmem>>, vector<2x16x1x64xbf16>,
    %17 = arith.truncf %8 : vector<512x64xf32> to vector<512x64xbf16>
    %18 = vector.shape_cast %17 : vector<512x64xbf16> to vector<2x16x16x64xbf16>
    %c0_25 = arith.constant 0 : index
    %c1_26 = arith.constant 1 : index
    %c1_27 = arith.constant 1 : index
    %c0_28 = arith.constant 0 : index
    %19 = vector.load %arg11[%c0_25, %c1_26, %c1_27, %c0_28] : memref<2x18x18x64xbf16, #tpu.memory_space<vmem>>, vector<2x16x16x64xbf16>
    tpu.vector_store %arg11[%c0_25, %c1_26, %c1_27, %c0_28], %18 {strides = array<i32>} : memref<2x18x18x64xbf16, #tpu.memory_space<vmem>>, vector<2x16x16x64xbf16>,
    %c0_29 = arith.constant 0 : index
    %c0_30 = arith.constant 0 : index
    %c0_31 = arith.constant 0 : index
    %c0_32 = arith.constant 0 : index
    %20 = vector.load %arg11[%c0_29, %c0_30, %c0_31, %c0_32] : memref<2x18x18x64xbf16, #tpu.memory_space<vmem>>, vector<2x16x16x64xbf16>
    %c0_33 = arith.constant 0 : index
    %c0_34 = arith.constant 0 : index
    %c1_35 = arith.constant 1 : index
    %c0_36 = arith.constant 0 : index
    %21 = vector.load %arg11[%c0_33, %c0_34, %c1_35, %c0_36] : memref<2x18x18x64xbf16, #tpu.memory_space<vmem>>, vector<2x16x16x64xbf16>
    %22 = tpu.concatenate %20, %21 in 3 : vector<2x16x16x64xbf16>, vector<2x16x16x64xbf16> -> vector<2x16x16x128xbf16>
    %c0_37 = arith.constant 0 : index
    %c0_38 = arith.constant 0 : index
    %c0_39 = arith.constant 0 : index
    %c0_40 = arith.constant 0 : index
    %23 = vector.load %arg12[%c0_37, %c0_38, %c0_39, %c0_40] : memref<2x16x16x576xbf16, #tpu.memory_space<vmem>>, vector<2x16x16x128xbf16>
    tpu.vector_store %arg12[%c0_37, %c0_38, %c0_39, %c0_40], %22 {strides = array<i32>} : memref<2x16x16x576xbf16, #tpu.memory_space<vmem>>, vector<2x16x16x128xbf16>,
    %c0_41 = arith.constant 0 : index
    %c0_42 = arith.constant 0 : index
    %c2 = arith.constant 2 : index
    %c0_43 = arith.constant 0 : index
    %24 = vector.load %arg11[%c0_41, %c0_42, %c2, %c0_43] : memref<2x18x18x64xbf16, #tpu.memory_space<vmem>>, vector<2x16x16x64xbf16>
    %c0_44 = arith.constant 0 : index
    %c1_45 = arith.constant 1 : index
    %c0_46 = arith.constant 0 : index
    %c0_47 = arith.constant 0 : index
    %25 = vector.load %arg11[%c0_44, %c1_45, %c0_46, %c0_47] : memref<2x18x18x64xbf16, #tpu.memory_space<vmem>>, vector<2x16x16x64xbf16>
    %26 = tpu.concatenate %24, %25 in 3 : vector<2x16x16x64xbf16>, vector<2x16x16x64xbf16> -> vector<2x16x16x128xbf16>
    %c0_48 = arith.constant 0 : index
    %c0_49 = arith.constant 0 : index
    %c0_50 = arith.constant 0 : index
    %c128 = arith.constant 128 : index
    %27 = vector.load %arg12[%c0_48, %c0_49, %c0_50, %c128] : memref<2x16x16x576xbf16, #tpu.memory_space<vmem>>, vector<2x16x16x128xbf16>
    tpu.vector_store %arg12[%c0_48, %c0_49, %c0_50, %c128], %26 {strides = array<i32>} : memref<2x16x16x576xbf16, #tpu.memory_space<vmem>>, vector<2x16x16x128xbf16>,
    %c0_51 = arith.constant 0 : index
    %c1_52 = arith.constant 1 : index
    %c1_53 = arith.constant 1 : index
    %c0_54 = arith.constant 0 : index
    %28 = vector.load %arg11[%c0_51, %c1_52, %c1_53, %c0_54] : memref<2x18x18x64xbf16, #tpu.memory_space<vmem>>, vector<2x16x16x64xbf16>
    %c0_55 = arith.constant 0 : index
    %c1_56 = arith.constant 1 : index
    %c2_57 = arith.constant 2 : index
    %c0_58 = arith.constant 0 : index
    %29 = vector.load %arg11[%c0_55, %c1_56, %c2_57, %c0_58] : memref<2x18x18x64xbf16, #tpu.memory_space<vmem>>, vector<2x16x16x64xbf16>
    %30 = tpu.concatenate %28, %29 in 3 : vector<2x16x16x64xbf16>, vector<2x16x16x64xbf16> -> vector<2x16x16x128xbf16>
    %c0_59 = arith.constant 0 : index
    %c0_60 = arith.constant 0 : index
    %c0_61 = arith.constant 0 : index
    %c256 = arith.constant 256 : index
    %31 = vector.load %arg12[%c0_59, %c0_60, %c0_61, %c256] : memref<2x16x16x576xbf16, #tpu.memory_space<vmem>>, vector<2x16x16x128xbf16>
    tpu.vector_store %arg12[%c0_59, %c0_60, %c0_61, %c256], %30 {strides = array<i32>} : memref<2x16x16x576xbf16, #tpu.memory_space<vmem>>, vector<2x16x16x128xbf16>,
    %c0_62 = arith.constant 0 : index
    %c2_63 = arith.constant 2 : index
    %c0_64 = arith.constant 0 : index
    %c0_65 = arith.constant 0 : index
    %32 = vector.load %arg11[%c0_62, %c2_63, %c0_64, %c0_65] : memref<2x18x18x64xbf16, #tpu.memory_space<vmem>>, vector<2x16x16x64xbf16>
    %c0_66 = arith.constant 0 : index
    %c2_67 = arith.constant 2 : index
    %c1_68 = arith.constant 1 : index
    %c0_69 = arith.constant 0 : index
    %33 = vector.load %arg11[%c0_66, %c2_67, %c1_68, %c0_69] : memref<2x18x18x64xbf16, #tpu.memory_space<vmem>>, vector<2x16x16x64xbf16>
    %34 = tpu.concatenate %32, %33 in 3 : vector<2x16x16x64xbf16>, vector<2x16x16x64xbf16> -> vector<2x16x16x128xbf16>
    %c0_70 = arith.constant 0 : index
    %c0_71 = arith.constant 0 : index
    %c0_72 = arith.constant 0 : index
    %c384 = arith.constant 384 : index
    %35 = vector.load %arg12[%c0_70, %c0_71, %c0_72, %c384] : memref<2x16x16x576xbf16, #tpu.memory_space<vmem>>, vector<2x16x16x128xbf16>
    tpu.vector_store %arg12[%c0_70, %c0_71, %c0_72, %c384], %34 {strides = array<i32>} : memref<2x16x16x576xbf16, #tpu.memory_space<vmem>>, vector<2x16x16x128xbf16>,
    %c0_73 = arith.constant 0 : index
    %c2_74 = arith.constant 2 : index
    %c2_75 = arith.constant 2 : index
    %c0_76 = arith.constant 0 : index
    %36 = vector.load %arg11[%c0_73, %c2_74, %c2_75, %c0_76] : memref<2x18x18x64xbf16, #tpu.memory_space<vmem>>, vector<2x16x16x64xbf16>
    %c0_77 = arith.constant 0 : index
    %c0_78 = arith.constant 0 : index
    %c0_79 = arith.constant 0 : index
    %c512 = arith.constant 512 : index
    %37 = vector.load %arg12[%c0_77, %c0_78, %c0_79, %c512] : memref<2x16x16x576xbf16, #tpu.memory_space<vmem>>, vector<2x16x16x64xbf16>
    tpu.vector_store %arg12[%c0_77, %c0_78, %c0_79, %c512], %36 {strides = array<i32>} : memref<2x16x16x576xbf16, #tpu.memory_space<vmem>>, vector<2x16x16x64xbf16>,
    %c0_80 = arith.constant 0 : index
    %c0_81 = arith.constant 0 : index
    %c0_82 = arith.constant 0 : index
    %c0_83 = arith.constant 0 : index
    %38 = vector.load %arg12[%c0_80, %c0_81, %c0_82, %c0_83] : memref<2x16x16x576xbf16, #tpu.memory_space<vmem>>, vector<2x16x16x576xbf16>
    %39 = vector.shape_cast %38 : vector<2x16x16x576xbf16> to vector<512x576xbf16>
    %c0_84 = arith.constant 0 : index
    %c0_85 = arith.constant 0 : index
    %40 = vector.load %arg4[%c0_84, %c0_85] : memref<576x128xbf16, #tpu.memory_space<vmem>>, vector<576x128xbf16>
    %cst_86 = arith.constant dense<0.000000e+00> : vector<512x128xf32>
    %41 = tpu.matmul %39, %40, %cst_86 {dimension_numbers = #tpu.dot_dimension_numbers<[1], [0], [0], [1], [0, 0, 1, 1], [], []>} : vector<512x576xbf16>, vector<576x128xbf16>, vector<512x128xf32> -> vector<512x128xf32>
    %c0_87 = arith.constant 0 : index
    %c0_88 = arith.constant 0 : index
    %42 = vector.load %arg5[%c0_87, %c0_88] : memref<1x128xf32, #tpu.memory_space<vmem>>, vector<1x128xf32>
    %43 = vector.broadcast %42 : vector<1x128xf32> to vector<512x128xf32>
    %44 = arith.addf %41, %43 : vector<512x128xf32>
    %cst_89 = arith.constant 0.000000e+00 : f32
    %45 = vector.broadcast %cst_89 : f32 to vector<512x128xf32>
    %46 = arith.maximumf %44, %45 : vector<512x128xf32>
    %47 = vector.shape_cast %46 : vector<512x128xf32> to vector<2x256x128xf32>
    %cst_90 = arith.constant dense<0.000000e+00> : vector<2x128xf32>
    %48 = vector.multi_reduction <add>, %47, %cst_90 [1] : vector<2x256x128xf32> to vector<2x128xf32>
    %cst_91 = arith.constant 3.906250e-03 : f32
    %49 = vector.broadcast %cst_91 : f32 to vector<2x128xf32>
    %50 = arith.mulf %48, %49 : vector<2x128xf32>
    %51 = arith.truncf %50 : vector<2x128xf32> to vector<2x128xbf16>
    %c0_92 = arith.constant 0 : index
    %c0_93 = arith.constant 0 : index
    %52 = vector.load %arg6[%c0_92, %c0_93] : memref<128x256xbf16, #tpu.memory_space<vmem>>, vector<128x256xbf16>
    %cst_94 = arith.constant dense<0.000000e+00> : vector<2x256xf32>
    %53 = tpu.matmul %51, %52, %cst_94 {dimension_numbers = #tpu.dot_dimension_numbers<[1], [0], [0], [1], [0, 0, 1, 1], [], []>} : vector<2x128xbf16>, vector<128x256xbf16>, vector<2x256xf32> -> vector<2x256xf32>
    %c0_95 = arith.constant 0 : index
    %c0_96 = arith.constant 0 : index
    %54 = vector.load %arg7[%c0_95, %c0_96] : memref<1x256xf32, #tpu.memory_space<vmem>>, vector<1x256xf32>
    %55 = vector.broadcast %54 : vector<1x256xf32> to vector<2x256xf32>
    %56 = arith.addf %53, %55 : vector<2x256xf32>
    %cst_97 = arith.constant 0.000000e+00 : f32
    %57 = vector.broadcast %cst_97 : f32 to vector<2x256xf32>
    %58 = arith.maximumf %56, %57 : vector<2x256xf32>
    %59 = arith.truncf %58 : vector<2x256xf32> to vector<2x256xbf16>
    %c0_98 = arith.constant 0 : index
    %c0_99 = arith.constant 0 : index
    %60 = vector.load %arg8[%c0_98, %c0_99] : memref<256x256xbf16, #tpu.memory_space<vmem>>, vector<256x256xbf16>
    %cst_100 = arith.constant dense<0.000000e+00> : vector<2x256xf32>
    %61 = tpu.matmul %59, %60, %cst_100 {dimension_numbers = #tpu.dot_dimension_numbers<[1], [0], [0], [1], [0, 0, 1, 1], [], []>} : vector<2x256xbf16>, vector<256x256xbf16>, vector<2x256xf32> -> vector<2x256xf32>
    %c0_101 = arith.constant 0 : index
    %c0_102 = arith.constant 0 : index
    %62 = vector.load %arg9[%c0_101, %c0_102] : memref<1x256xf32, #tpu.memory_space<vmem>>, vector<1x256xf32>
    %63 = vector.broadcast %62 : vector<1x256xf32> to vector<2x256xf32>
    %64 = arith.addf %61, %63 : vector<2x256xf32>
    %65 = vector.shape_cast %64 : vector<2x256xf32> to vector<2x1x256xf32>
    %c0_103 = arith.constant 0 : index
    %c0_104 = arith.constant 0 : index
    %c0_105 = arith.constant 0 : index
    %66 = vector.load %arg10[%c0_103, %c0_104, %c0_105] : memref<2x1x256xf32, #tpu.memory_space<vmem>>, vector<2x1x256xf32>
    tpu.vector_store %arg10[%c0_103, %c0_104, %c0_105], %65 {strides = array<i32>} : memref<2x1x256xf32, #tpu.memory_space<vmem>>, vector<2x1x256xf32>,
    return
  }
  func.func @transform_0(%arg0: i32) -> (i32, i32, i32) {
    %c0_i32 = arith.constant 0 : i32
    %c0_i32_0 = arith.constant 0 : i32
    %c0_i32_1 = arith.constant 0 : i32
    return %arg0, %c0_i32, %c0_i32_0 : i32, i32, i32
  }
  func.func @transform_1(%arg0: i32) -> (i32, i32) {
    %c0_i32 = arith.constant 0 : i32
    %c0_i32_0 = arith.constant 0 : i32
    %c0_i32_1 = arith.constant 0 : i32
    return %c0_i32, %c0_i32_0 : i32, i32
  }
  func.func @transform_2(%arg0: i32) -> (i32, i32) {
    %c0_i32 = arith.constant 0 : i32
    %c0_i32_0 = arith.constant 0 : i32
    %c0_i32_1 = arith.constant 0 : i32
    return %c0_i32, %c0_i32_0 : i32, i32
  }
  func.func @transform_3(%arg0: i32) -> (i32, i32) {
    %c0_i32 = arith.constant 0 : i32
    %c0_i32_0 = arith.constant 0 : i32
    %c0_i32_1 = arith.constant 0 : i32
    return %c0_i32, %c0_i32_0 : i32, i32
  }
  func.func @transform_4(%arg0: i32) -> (i32, i32) {
    %c0_i32 = arith.constant 0 : i32
    %c0_i32_0 = arith.constant 0 : i32
    %c0_i32_1 = arith.constant 0 : i32
    return %c0_i32, %c0_i32_0 : i32, i32
  }
  func.func @transform_5(%arg0: i32) -> (i32, i32) {
    %c0_i32 = arith.constant 0 : i32
    %c0_i32_0 = arith.constant 0 : i32
    %c0_i32_1 = arith.constant 0 : i32
    return %c0_i32, %c0_i32_0 : i32, i32
  }
  func.func @transform_6(%arg0: i32) -> (i32, i32) {
    %c0_i32 = arith.constant 0 : i32
    %c0_i32_0 = arith.constant 0 : i32
    %c0_i32_1 = arith.constant 0 : i32
    return %c0_i32, %c0_i32_0 : i32, i32
  }
  func.func @transform_7(%arg0: i32) -> (i32, i32) {
    %c0_i32 = arith.constant 0 : i32
    %c0_i32_0 = arith.constant 0 : i32
    %c0_i32_1 = arith.constant 0 : i32
    return %c0_i32, %c0_i32_0 : i32, i32
  }
  func.func @transform_8(%arg0: i32) -> (i32, i32) {
    %c0_i32 = arith.constant 0 : i32
    %c0_i32_0 = arith.constant 0 : i32
    %c0_i32_1 = arith.constant 0 : i32
    return %c0_i32, %c0_i32_0 : i32, i32
  }
  func.func @transform_9(%arg0: i32) -> (i32, i32, i32) {
    %c0_i32 = arith.constant 0 : i32
    %c0_i32_0 = arith.constant 0 : i32
    %c0_i32_1 = arith.constant 0 : i32
    return %arg0, %c0_i32, %c0_i32_0 : i32, i32, i32
  }
}

</mosaic_0001>

<llo_original>
// kernel: custom_net_forward.1
$region0: #{custom_net_forward.1}
  #allocation0 [shape = 'u32[]', space=smem, size = 0x4, offset = 0x4, fixed_abs, tag = 'smem constant byte address 0x4 - core index']
  #allocation1 [shape = 'u32[144,128]{1,0:T(1,128)}', space=vmem, size = 0x12000, scoped, tag = 'internal scratch']
  #allocation2 [shape = 'bf16[2,18,18,64]{3,2,1,0:T(8,128)(2,1)}', space=vmem, size = 0x36000, scoped, tag = 'scratch operand']
  #allocation3 [shape = 'bf16[2,16,16,576]{3,2,1,0:T(16,128)(2,1)}', space=vmem, size = 0xa0000, scoped, tag = 'scratch operand']
  %s0 = inlined_call_operand.vmem [shape: bf16[2,256,32], index: 0, kind: input, shape index: {}]
  %s1 = inlined_call_operand.vmem [shape: bf16[32,64], index: 1, kind: input, shape index: {}]
  %s2 = inlined_call_operand.vmem [shape: f32[1,64], index: 2, kind: input, shape index: {}]
  %s3 = inlined_call_operand.vmem [shape: bf16[576,128], index: 3, kind: input, shape index: {}]
  %s4 = inlined_call_operand.vmem [shape: f32[1,128], index: 4, kind: input, shape index: {}]
  %s5 = inlined_call_operand.vmem [shape: bf16[128,256], index: 5, kind: input, shape index: {}]
  %s6 = inlined_call_operand.vmem [shape: f32[1,256], index: 6, kind: input, shape index: {}]
  %s7 = inlined_call_operand.vmem [shape: bf16[256,256], index: 7, kind: input, shape index: {}]
  %s8 = inlined_call_operand.vmem [shape: f32[1,256], index: 8, kind: input, shape index: {}]
  %s9 = inlined_call_operand.vmem [shape: f32[2,1,256], index: 9, kind: output, shape index: {}]
  %s10 = sld [smem:[#allocation0]]
  $region46: #{custom_net_forward.1} parent=0
    _
  %s12 = ssub.s32 1, %s10
  %s13 = scalar_select 0, %s12, %s10
  // Predicated region
  $region2: #{custom_net_forward.1} parent=0 // pred_check
    _
  $region3: #{custom_net_forward.1} parent=0 // pred_check_branch
    %15 = sbr.rel (0) target = $region5
  $region4: #{custom_net_forward.1} parent=0 // pred_region
    _
  $region5: #{custom_net_forward.1} parent=0 // pred_fallthru
    _
  // Predicated region
  $region6: #{custom_net_forward.1} parent=0 // pred_check
    _
  $region7: #{custom_net_forward.1} parent=0 // pred_check_branch
    %17 = sbr.rel (0) target = $region9
  $region8: #{custom_net_forward.1} parent=0 // pred_region
    _
  $region9: #{custom_net_forward.1} parent=0 // pred_fallthru
    _
  // Predicated region
  $region10: #{custom_net_forward.1} parent=0 // pred_check
    _
  $region11: #{custom_net_forward.1} parent=0 // pred_check_branch
    %19 = sbr.rel (0) target = $region13
  $region12: #{custom_net_forward.1} parent=0 // pred_region
    _
  $region13: #{custom_net_forward.1} parent=0 // pred_fallthru
    _
  // Predicated region
  $region14: #{custom_net_forward.1} parent=0 // pred_check
    _
  $region15: #{custom_net_forward.1} parent=0 // pred_check_branch
    %21 = sbr.rel (0) target = $region17
  $region16: #{custom_net_forward.1} parent=0 // pred_region
    _
  $region17: #{custom_net_forward.1} parent=0 // pred_fallthru
    _
  // Predicated region
  $region18: #{custom_net_forward.1} parent=0 // pred_check
    _
  $region19: #{custom_net_forward.1} parent=0 // pred_check_branch
    %23 = sbr.rel (0) target = $region21
  $region20: #{custom_net_forward.1} parent=0 // pred_region
    _
  $region21: #{custom_net_forward.1} parent=0 // pred_fallthru
    _
  // Predicated region
  $region22: #{custom_net_forward.1} parent=0 // pred_check
    _
  $region23: #{custom_net_forward.1} parent=0 // pred_check_branch
    %25 = sbr.rel (0) target = $region25
  $region24: #{custom_net_forward.1} parent=0 // pred_region
    _
  $region25: #{custom_net_forward.1} parent=0 // pred_fallthru
    _
  // Predicated region
  $region26: #{custom_net_forward.1} parent=0 // pred_check
    _
  $region27: #{custom_net_forward.1} parent=0 // pred_check_branch
    %27 = sbr.rel (0) target = $region29
  $region28: #{custom_net_forward.1} parent=0 // pred_region
    _
  $region29: #{custom_net_forward.1} parent=0 // pred_fallthru
    _
  // Predicated region
  $region30: #{custom_net_forward.1} parent=0 // pred_check
    _
  $region31: #{custom_net_forward.1} parent=0 // pred_check_branch
    %29 = sbr.rel (0) target = $region33
  $region32: #{custom_net_forward.1} parent=0 // pred_region
    _
  $region33: #{custom_net_forward.1} parent=0 // pred_fallthru
    _
  // Predicated region
  $region34: #{custom_net_forward.1} parent=0 // pred_check
    _
  $region35: #{custom_net_forward.1} parent=0 // pred_check_branch
    %31 = sbr.rel (0) target = $region37
  $region36: #{custom_net_forward.1} parent=0 // pred_region
    _
  $region37: #{custom_net_forward.1} parent=0 // pred_fallthru
    _
  %v33 = vld [vmem:[%s0] sm:$0xf]
  %v34 = vld [vmem:[%s0 + $0x4] sm:$0xf]
  %v35 = vld [vmem:[%s0 + $0x8] sm:$0xf]
  %v36 = vld [vmem:[%s0 + $0xc] sm:$0xf]
  %v37 = vld [vmem:[%s0 + $0x10] sm:$0xf]
  %v38 = vld [vmem:[%s0 + $0x14] sm:$0xf]
  %v39 = vld [vmem:[%s0 + $0x18] sm:$0xf]
  %v40 = vld [vmem:[%s0 + $0x1c] sm:$0xf]
  %v41 = vld [vmem:[%s0 + $0x20] sm:$0xf]
  %v42 = vld [vmem:[%s0 + $0x24] sm:$0xf]
  %v43 = vld [vmem:[%s0 + $0x28] sm:$0xf]
  %v44 = vld [vmem:[%s0 + $0x2c] sm:$0xf]
  %v45 = vld [vmem:[%s0 + $0x30] sm:$0xf]
  %v46 = vld [vmem:[%s0 + $0x34] sm:$0xf]
  %v47 = vld [vmem:[%s0 + $0x38] sm:$0xf]
  %v48 = vld [vmem:[%s0 + $0x3c] sm:$0xf]
  %v49 = vld [vmem:[%s0 + $0x40] sm:$0xf]
  %v50 = vld [vmem:[%s0 + $0x44] sm:$0xf]
  %v51 = vld [vmem:[%s0 + $0x48] sm:$0xf]
  %v52 = vld [vmem:[%s0 + $0x4c] sm:$0xf]
  %v53 = vld [vmem:[%s0 + $0x50] sm:$0xf]
  %v54 = vld [vmem:[%s0 + $0x54] sm:$0xf]
  %v55 = vld [vmem:[%s0 + $0x58] sm:$0xf]
  %v56 = vld [vmem:[%s0 + $0x5c] sm:$0xf]
  %v57 = vld [vmem:[%s0 + $0x60] sm:$0xf]
  %v58 = vld [vmem:[%s0 + $0x64] sm:$0xf]
  %v59 = vld [vmem:[%s0 + $0x68] sm:$0xf]
  %v60 = vld [vmem:[%s0 + $0x6c] sm:$0xf]
  %v61 = vld [vmem:[%s0 + $0x70] sm:$0xf]
  %v62 = vld [vmem:[%s0 + $0x74] sm:$0xf]
  %v63 = vld [vmem:[%s0 + $0x78] sm:$0xf]
  %v64 = vld [vmem:[%s0 + $0x7c] sm:$0xf]
  %v65 = vld [vmem:[%s0 + $0x80] sm:$0xf]
  %v66 = vld [vmem:[%s0 + $0x84] sm:$0xf]
  %v67 = vld [vmem:[%s0 + $0x88] sm:$0xf]
  %v68 = vld [vmem:[%s0 + $0x8c] sm:$0xf]
  %v69 = vld [vmem:[%s0 + $0x90] sm:$0xf]
  %v70 = vld [vmem:[%s0 + $0x94] sm:$0xf]
  %v71 = vld [vmem:[%s0 + $0x98] sm:$0xf]
  %v72 = vld [vmem:[%s0 + $0x9c] sm:$0xf]
  %v73 = vld [vmem:[%s0 + $0xa0] sm:$0xf]
  %v74 = vld [vmem:[%s0 + $0xa4] sm:$0xf]
  %v75 = vld [vmem:[%s0 + $0xa8] sm:$0xf]
  %v76 = vld [vmem:[%s0 + $0xac] sm:$0xf]
  %v77 = vld [vmem:[%s0 + $0xb0] sm:$0xf]
  %v78 = vld [vmem:[%s0 + $0xb4] sm:$0xf]
  %v79 = vld [vmem:[%s0 + $0xb8] sm:$0xf]
  %v80 = vld [vmem:[%s0 + $0xbc] sm:$0xf]
  %v81 = vld [vmem:[%s0 + $0xc0] sm:$0xf]
  %v82 = vld [vmem:[%s0 + $0xc4] sm:$0xf]
  %v83 = vld [vmem:[%s0 + $0xc8] sm:$0xf]
  %v84 = vld [vmem:[%s0 + $0xcc] sm:$0xf]
  %v85 = vld [vmem:[%s0 + $0xd0] sm:$0xf]
  %v86 = vld [vmem:[%s0 + $0xd4] sm:$0xf]
  %v87 = vld [vmem:[%s0 + $0xd8] sm:$0xf]
  %v88 = vld [vmem:[%s0 + $0xdc] sm:$0xf]
  %v89 = vld [vmem:[%s0 + $0xe0] sm:$0xf]
  %v90 = vld [vmem:[%s0 + $0xe4] sm:$0xf]
  %v91 = vld [vmem:[%s0 + $0xe8] sm:$0xf]
  %v92 = vld [vmem:[%s0 + $0xec] sm:$0xf]
  %v93 = vld [vmem:[%s0 + $0xf0] sm:$0xf]
  %v94 = vld [vmem:[%s0 + $0xf4] sm:$0xf]
  %v95 = vld [vmem:[%s0 + $0xf8] sm:$0xf]
  %v96 = vld [vmem:[%s0 + $0xfc] sm:$0xf]
  %v97 = vld [vmem:[%s1] sm:$0xf]
  %v98 = vld [vmem:[%s1 + $0x4] sm:$0xf]
  %v99 = vld [vmem:[%s1 + $0x8] sm:$0xf]
  %v100 = vld [vmem:[%s1 + $0xc] sm:$0xf]
  %v101 = vld [vmem:[%s2] sm:$0x1]
  %v103 = vlaneseq
  %v104 = vshrl.u32 %v103, 7
  %v105 = vsub.s32 0, %v104
  %v106 = vrot.slane %v101, %v105
  %v172 = vunpack.c.l.b16 %v33
  %v173 = vunpack.c.l.b16 %v34
  %v174 = vunpack.c.l.b16 %v35
  %v175 = vunpack.c.l.b16 %v36
  %v176 = vunpack.c.l.b16 %v37
  %v177 = vunpack.c.l.b16 %v38
  %v178 = vunpack.c.l.b16 %v39
  %v179 = vunpack.c.l.b16 %v40
  %v180 = vunpack.c.l.b16 %v41
  %v181 = vunpack.c.l.b16 %v42
  %v182 = vunpack.c.l.b16 %v43
  %v183 = vunpack.c.l.b16 %v44
  %v184 = vunpack.c.l.b16 %v45
  %v185 = vunpack.c.l.b16 %v46
  %v186 = vunpack.c.l.b16 %v47
  %v187 = vunpack.c.l.b16 %v48
  %v188 = vunpack.c.l.b16 %v49
  %v189 = vunpack.c.l.b16 %v50
  %v190 = vunpack.c.l.b16 %v51
  %v191 = vunpack.c.l.b16 %v52
  %v192 = vunpack.c.l.b16 %v53
  %v193 = vunpack.c.l.b16 %v54
  %v194 = vunpack.c.l.b16 %v55
  %v195 = vunpack.c.l.b16 %v56
  %v196 = vunpack.c.l.b16 %v57
  %v197 = vunpack.c.l.b16 %v58
  %v198 = vunpack.c.l.b16 %v59
  %v199 = vunpack.c.l.b16 %v60
  %v200 = vunpack.c.l.b16 %v61
  %v201 = vunpack.c.l.b16 %v62
  %v202 = vunpack.c.l.b16 %v63
  %v203 = vunpack.c.l.b16 %v64
  %v204 = vunpack.c.l.b16 %v65
  %v205 = vunpack.c.l.b16 %v66
  %v206 = vunpack.c.l.b16 %v67
  %v207 = vunpack.c.l.b16 %v68
  %v208 = vunpack.c.l.b16 %v69
  %v209 = vunpack.c.l.b16 %v70
  %v210 = vunpack.c.l.b16 %v71
  %v211 = vunpack.c.l.b16 %v72
  %v212 = vunpack.c.l.b16 %v73
  %v213 = vunpack.c.l.b16 %v74
  %v214 = vunpack.c.l.b16 %v75
  %v215 = vunpack.c.l.b16 %v76
  %v216 = vunpack.c.l.b16 %v77
  %v217 = vunpack.c.l.b16 %v78
  %v218 = vunpack.c.l.b16 %v79
  %v219 = vunpack.c.l.b16 %v80
  %v220 = vunpack.c.l.b16 %v81
  %v221 = vunpack.c.l.b16 %v82
  %v222 = vunpack.c.l.b16 %v83
  %v223 = vunpack.c.l.b16 %v84
  %v224 = vunpack.c.l.b16 %v85
  %v225 = vunpack.c.l.b16 %v86
  %v226 = vunpack.c.l.b16 %v87
  %v227 = vunpack.c.l.b16 %v88
  %v228 = vunpack.c.l.b16 %v89
  %v229 = vunpack.c.l.b16 %v90
  %v230 = vunpack.c.l.b16 %v91
  %v231 = vunpack.c.l.b16 %v92
  %v232 = vunpack.c.l.b16 %v93
  %v233 = vunpack.c.l.b16 %v94
  %v234 = vunpack.c.l.b16 %v95
  %v235 = vunpack.c.l.b16 %v96
  %v236 = vpack.c.b16 %v173, %v172
  %v237 = vpack.c.b16 %v175, %v174
  %v238 = vpack.c.b16 %v177, %v176
  %v239 = vpack.c.b16 %v179, %v178
  %v240 = vpack.c.b16 %v181, %v180
  %v241 = vpack.c.b16 %v183, %v182
  %v242 = vpack.c.b16 %v185, %v184
  %v243 = vpack.c.b16 %v187, %v186
  %v244 = vpack.c.b16 %v189, %v188
  %v245 = vpack.c.b16 %v191, %v190
  %v246 = vpack.c.b16 %v193, %v192
  %v247 = vpack.c.b16 %v195, %v194
  %v248 = vpack.c.b16 %v197, %v196
  %v249 = vpack.c.b16 %v199, %v198
  %v250 = vpack.c.b16 %v201, %v200
  %v251 = vpack.c.b16 %v203, %v202
  %v252 = vpack.c.b16 %v205, %v204
  %v253 = vpack.c.b16 %v207, %v206
  %v254 = vpack.c.b16 %v209, %v208
  %v255 = vpack.c.b16 %v211, %v210
  %v256 = vpack.c.b16 %v213, %v212
  %v257 = vpack.c.b16 %v215, %v214
  %v258 = vpack.c.b16 %v217, %v216
  %v259 = vpack.c.b16 %v219, %v218
  %v260 = vpack.c.b16 %v221, %v220
  %v261 = vpack.c.b16 %v223, %v222
  %v262 = vpack.c.b16 %v225, %v224
  %v263 = vpack.c.b16 %v227, %v226
  %v264 = vpack.c.b16 %v229, %v228
  %v265 = vpack.c.b16 %v231, %v230
  %v266 = vpack.c.b16 %v233, %v232
  %v267 = vpack.c.b16 %v235, %v234
  %v272 = vunpack.c.l.b16 %v97
  %v273 = vunpack.c.l.b16 %v98
  %v274 = vunpack.c.l.b16 %v99
  %v275 = vunpack.c.l.b16 %v100
  %v276 = vpack.c.b16 %v273, %v272
  %v277 = vpack.c.b16 %v275, %v274
  %vm280 = vcmask 261120
  %v282 = vsel %vm280, %v236, 0
  %v285 = vsel %vm280, %v237, 0
  %v288 = vsel %vm280, %v238, 0
  %v291 = vsel %vm280, %v239, 0
  %v294 = vsel %vm280, %v240, 0
  %v297 = vsel %vm280, %v241, 0
  %v300 = vsel %vm280, %v242, 0
  %v303 = vsel %vm280, %v243, 0
  %v306 = vsel %vm280, %v244, 0
  %v309 = vsel %vm280, %v245, 0
  %v312 = vsel %vm280, %v246, 0
  %v315 = vsel %vm280, %v247, 0
  %v318 = vsel %vm280, %v248, 0
  %v321 = vsel %vm280, %v249, 0
  %v324 = vsel %vm280, %v250, 0
  %v327 = vsel %vm280, %v251, 0
  %v330 = vsel %vm280, %v252, 0
  %v333 = vsel %vm280, %v253, 0
  %v336 = vsel %vm280, %v254, 0
  %v339 = vsel %vm280, %v255, 0
  %v342 = vsel %vm280, %v256, 0
  %v345 = vsel %vm280, %v257, 0
  %v348 = vsel %vm280, %v258, 0
  %v351 = vsel %vm280, %v259, 0
  %v354 = vsel %vm280, %v260, 0
  %v357 = vsel %vm280, %v261, 0
  %v360 = vsel %vm280, %v262, 0
  %v363 = vsel %vm280, %v263, 0
  %v366 = vsel %vm280, %v264, 0
  %v369 = vsel %vm280, %v265, 0
  %v372 = vsel %vm280, %v266, 0
  %v375 = vsel %vm280, %v267, 0
  %377 = vmatprep.subr.bf16.mxu0 0
  %378 = vmatpush1.bf16.msra.mxu0 %v276
  %379 = vmatprep.subr.bf16.mxu0 0
  %380 = vmatpush1.bf16.msra.mxu0 %v277
  %381 = vmatprep.subr.bf16.mxu0 0
  %382 = vmatpush1.bf16.msra.mxu0 0
  %383 = vmatprep.subr.bf16.mxu0 0
  %384 = vmatpush1.bf16.msra.mxu0 0
  %385 = vmatprep.subr.bf16.mxu0 0
  %386 = vmatpush1.bf16.msra.mxu0 0
  %387 = vmatprep.subr.bf16.mxu0 0
  %388 = vmatpush1.bf16.msra.mxu0 0
  %389 = vmatprep.subr.bf16.mxu0 0
  %390 = vmatpush1.bf16.msra.mxu0 0
  %391 = vmatprep.subr.bf16.mxu0 0
  %392 = vmatpush1.bf16.msra.mxu0 0
  %393 = vmatprep.subr.bf16.mxu0 0
  %394 = vmatpush1.bf16.msra.mxu0 0
  %395 = vmatprep.subr.bf16.mxu0 0
  %396 = vmatpush1.bf16.msra.mxu0 0
  %397 = vmatprep.subr.bf16.mxu0 0
  %398 = vmatpush1.bf16.msra.mxu0 0
  %399 = vmatprep.subr.bf16.mxu0 0
  %400 = vmatpush1.bf16.msra.mxu0 0
  %401 = vmatprep.subr.bf16.mxu0 0
  %402 = vmatpush1.bf16.msra.mxu0 0
  %403 = vmatprep.subr.bf16.mxu0 0
  %404 = vmatpush1.bf16.msra.mxu0 0
  %405 = vmatprep.subr.bf16.mxu0 0
  %406 = vmatpush1.bf16.msra.mxu0 0
  %407 = vmatprep.subr.bf16.mxu0 0
  %408 = vmatpush1.bf16.msra.mxu0 0
  %409 = vmatprep.mubr.bf16.mxu0 0
  %410 = vmatmul.mubr.bf16.gmra.mrb[0].mxu0 %v282
  %v411 = vpop.f32.mrb[0].mxu0
  %v412 = vadd.f32 %v106, %v411
  %v413 = vpop.f32.mrb[0].mxu0
  %v414 = vpop.f32.mrb[0].mxu0
  %v415 = vadd.f32 %v106, %v414
  %v416 = vpop.f32.mrb[0].mxu0
  %417 = vmatprep.mubr.bf16.mxu0 0
  %418 = vmatmul.mubr.bf16.gmra.mrb[0].mxu0 %v285
  %v419 = vpop.f32.mrb[0].mxu0
  %v420 = vadd.f32 %v106, %v419
  %v421 = vpop.f32.mrb[0].mxu0
  %v422 = vpop.f32.mrb[0].mxu0
  %v423 = vadd.f32 %v106, %v422
  %v424 = vpop.f32.mrb[0].mxu0
  %425 = vmatprep.mubr.bf16.mxu0 0
  %426 = vmatmul.mubr.bf16.gmra.mrb[0].mxu0 %v288
  %v427 = vpop.f32.mrb[0].mxu0
  %v428 = vadd.f32 %v106, %v427
  %v429 = vpop.f32.mrb[0].mxu0
  %v430 = vpop.f32.mrb[0].mxu0
  %v431 = vadd.f32 %v106, %v430
  %v432 = vpop.f32.mrb[0].mxu0
  %433 = vmatprep.mubr.bf16.mxu0 0
  %434 = vmatmul.mubr.bf16.gmra.mrb[0].mxu0 %v291
  %v435 = vpop.f32.mrb[0].mxu0
  %v436 = vadd.f32 %v106, %v435
  %v437 = vpop.f32.mrb[0].mxu0
  %v438 = vpop.f32.mrb[0].mxu0
  %v439 = vadd.f32 %v106, %v438
  %v440 = vpop.f32.mrb[0].mxu0
  %441 = vmatprep.mubr.bf16.mxu0 0
  %442 = vmatmul.mubr.bf16.gmra.mrb[0].mxu0 %v294
  %v443 = vpop.f32.mrb[0].mxu0
  %v444 = vadd.f32 %v106, %v443
  %v445 = vpop.f32.mrb[0].mxu0
  %v446 = vpop.f32.mrb[0].mxu0
  %v447 = vadd.f32 %v106, %v446
  %v448 = vpop.f32.mrb[0].mxu0
  %449 = vmatprep.mubr.bf16.mxu0 0
  %450 = vmatmul.mubr.bf16.gmra.mrb[0].mxu0 %v297
  %v451 = vpop.f32.mrb[0].mxu0
  %v452 = vadd.f32 %v106, %v451
  %v453 = vpop.f32.mrb[0].mxu0
  %v454 = vpop.f32.mrb[0].mxu0
  %v455 = vadd.f32 %v106, %v454
  %v456 = vpop.f32.mrb[0].mxu0
  %457 = vmatprep.mubr.bf16.mxu0 0
  %458 = vmatmul.mubr.bf16.gmra.mrb[0].mxu0 %v300
  %v459 = vpop.f32.mrb[0].mxu0
  %v460 = vadd.f32 %v106, %v459
  %v461 = vpop.f32.mrb[0].mxu0
  %v462 = vpop.f32.mrb[0].mxu0
  %v463 = vadd.f32 %v106, %v462
  %v464 = vpop.f32.mrb[0].mxu0
  %465 = vmatprep.mubr.bf16.mxu0 0
  %466 = vmatmul.mubr.bf16.gmra.mrb[0].mxu0 %v303
  %v467 = vpop.f32.mrb[0].mxu0
  %v468 = vadd.f32 %v106, %v467
  %v469 = vpop.f32.mrb[0].mxu0
  %v470 = vpop.f32.mrb[0].mxu0
  %v471 = vadd.f32 %v106, %v470
  %v472 = vpop.f32.mrb[0].mxu0
  %473 = vmatprep.mubr.bf16.mxu0 0
  %474 = vmatmul.mubr.bf16.gmra.mrb[0].mxu0 %v306
  %v475 = vpop.f32.mrb[0].mxu0
  %v476 = vadd.f32 %v106, %v475
  %v477 = vpop.f32.mrb[0].mxu0
  %v478 = vpop.f32.mrb[0].mxu0
  %v479 = vadd.f32 %v106, %v478
  %v480 = vpop.f32.mrb[0].mxu0
  %481 = vmatprep.mubr.bf16.mxu0 0
  %482 = vmatmul.mubr.bf16.gmra.mrb[0].mxu0 %v309
  %v483 = vpop.f32.mrb[0].mxu0
  %v484 = vadd.f32 %v106, %v483
  %v485 = vpop.f32.mrb[0].mxu0
  %v486 = vpop.f32.mrb[0].mxu0
  %v487 = vadd.f32 %v106, %v486
  %v488 = vpop.f32.mrb[0].mxu0
  %489 = vmatprep.mubr.bf16.mxu0 0
  %490 = vmatmul.mubr.bf16.gmra.mrb[0].mxu0 %v312
  %v491 = vpop.f32.mrb[0].mxu0
  %v492 = vadd.f32 %v106, %v491
  %v493 = vpop.f32.mrb[0].mxu0
  %v494 = vpop.f32.mrb[0].mxu0
  %v495 = vadd.f32 %v106, %v494
  %v496 = vpop.f32.mrb[0].mxu0
  %497 = vmatprep.mubr.bf16.mxu0 0
  %498 = vmatmul.mubr.bf16.gmra.mrb[0].mxu0 %v315
  %v499 = vpop.f32.mrb[0].mxu0
  %v500 = vadd.f32 %v106, %v499
  %v501 = vpop.f32.mrb[0].mxu0
  %v502 = vpop.f32.mrb[0].mxu0
  %v503 = vadd.f32 %v106, %v502
  %v504 = vpop.f32.mrb[0].mxu0
  %505 = vmatprep.mubr.bf16.mxu0 0
  %506 = vmatmul.mubr.bf16.gmra.mrb[0].mxu0 %v318
  %v507 = vpop.f32.mrb[0].mxu0
  %v508 = vadd.f32 %v106, %v507
  %v509 = vpop.f32.mrb[0].mxu0
  %v510 = vpop.f32.mrb[0].mxu0
  %v511 = vadd.f32 %v106, %v510
  %v512 = vpop.f32.mrb[0].mxu0
  %513 = vmatprep.mubr.bf16.mxu0 0
  %514 = vmatmul.mubr.bf16.gmra.mrb[0].mxu0 %v321
  %v515 = vpop.f32.mrb[0].mxu0
  %v516 = vadd.f32 %v106, %v515
  %v517 = vpop.f32.mrb[0].mxu0
  %v518 = vpop.f32.mrb[0].mxu0
  %v519 = vadd.f32 %v106, %v518
  %v520 = vpop.f32.mrb[0].mxu0
  %521 = vmatprep.mubr.bf16.mxu0 0
  %522 = vmatmul.mubr.bf16.gmra.mrb[0].mxu0 %v324
  %v523 = vpop.f32.mrb[0].mxu0
  %v524 = vadd.f32 %v106, %v523
  %v525 = vpop.f32.mrb[0].mxu0
  %v526 = vpop.f32.mrb[0].mxu0
  %v527 = vadd.f32 %v106, %v526
  %v528 = vpop.f32.mrb[0].mxu0
  %529 = vmatprep.mubr.bf16.mxu0 0
  %530 = vmatmul.mubr.bf16.gmra.mrb[0].mxu0 %v327
  %v531 = vpop.f32.mrb[0].mxu0
  %v532 = vadd.f32 %v106, %v531
  %v533 = vpop.f32.mrb[0].mxu0
  %v534 = vpop.f32.mrb[0].mxu0
  %v535 = vadd.f32 %v106, %v534
  %v536 = vpop.f32.mrb[0].mxu0
  %537 = vmatprep.mubr.bf16.mxu0 0
  %538 = vmatmul.mubr.bf16.gmra.mrb[0].mxu0 %v330
  %v539 = vpop.f32.mrb[0].mxu0
  %v540 = vadd.f32 %v106, %v539
  %v541 = vpop.f32.mrb[0].mxu0
  %v542 = vpop.f32.mrb[0].mxu0
  %v543 = vadd.f32 %v106, %v542
  %v544 = vpop.f32.mrb[0].mxu0
  %545 = vmatprep.mubr.bf16.mxu0 0
  %546 = vmatmul.mubr.bf16.gmra.mrb[0].mxu0 %v333
  %v547 = vpop.f32.mrb[0].mxu0
  %v548 = vadd.f32 %v106, %v547
  %v549 = vpop.f32.mrb[0].mxu0
  %v550 = vpop.f32.mrb[0].mxu0
  %v551 = vadd.f32 %v106, %v550
  %v552 = vpop.f32.mrb[0].mxu0
  %553 = vmatprep.mubr.bf16.mxu0 0
  %554 = vmatmul.mubr.bf16.gmra.mrb[0].mxu0 %v336
  %v555 = vpop.f32.mrb[0].mxu0
  %v556 = vadd.f32 %v106, %v555
  %v557 = vpop.f32.mrb[0].mxu0
  %v558 = vpop.f32.mrb[0].mxu0
  %v559 = vadd.f32 %v106, %v558
  %v560 = vpop.f32.mrb[0].mxu0
  %561 = vmatprep.mubr.bf16.mxu0 0
  %562 = vmatmul.mubr.bf16.gmra.mrb[0].mxu0 %v339
  %v563 = vpop.f32.mrb[0].mxu0
  %v564 = vadd.f32 %v106, %v563
  %v565 = vpop.f32.mrb[0].mxu0
  %v566 = vpop.f32.mrb[0].mxu0
  %v567 = vadd.f32 %v106, %v566
  %v568 = vpop.f32.mrb[0].mxu0
  %569 = vmatprep.mubr.bf16.mxu0 0
  %570 = vmatmul.mubr.bf16.gmra.mrb[0].mxu0 %v342
  %v571 = vpop.f32.mrb[0].mxu0
  %v572 = vadd.f32 %v106, %v571
  %v573 = vpop.f32.mrb[0].mxu0
  %v574 = vpop.f32.mrb[0].mxu0
  %v575 = vadd.f32 %v106, %v574
  %v576 = vpop.f32.mrb[0].mxu0
  %577 = vmatprep.mubr.bf16.mxu0 0
  %578 = vmatmul.mubr.bf16.gmra.mrb[0].mxu0 %v345
  %v579 = vpop.f32.mrb[0].mxu0
  %v580 = vadd.f32 %v106, %v579
  %v581 = vpop.f32.mrb[0].mxu0
  %v582 = vpop.f32.mrb[0].mxu0
  %v583 = vadd.f32 %v106, %v582
  %v584 = vpop.f32.mrb[0].mxu0
  %585 = vmatprep.mubr.bf16.mxu0 0
  %586 = vmatmul.mubr.bf16.gmra.mrb[0].mxu0 %v348
  %v587 = vpop.f32.mrb[0].mxu0
  %v588 = vadd.f32 %v106, %v587
  %v589 = vpop.f32.mrb[0].mxu0
  %v590 = vpop.f32.mrb[0].mxu0
  %v591 = vadd.f32 %v106, %v590
  %v592 = vpop.f32.mrb[0].mxu0
  %593 = vmatprep.mubr.bf16.mxu0 0
  %594 = vmatmul.mubr.bf16.gmra.mrb[0].mxu0 %v351
  %v595 = vpop.f32.mrb[0].mxu0
  %v596 = vadd.f32 %v106, %v595
  %v597 = vpop.f32.mrb[0].mxu0
  %v598 = vpop.f32.mrb[0].mxu0
  %v599 = vadd.f32 %v106, %v598
  %v600 = vpop.f32.mrb[0].mxu0
  %601 = vmatprep.mubr.bf16.mxu0 0
  %602 = vmatmul.mubr.bf16.gmra.mrb[0].mxu0 %v354
  %v603 = vpop.f32.mrb[0].mxu0
  %v604 = vadd.f32 %v106, %v603
  %v605 = vpop.f32.mrb[0].mxu0
  %v606 = vpop.f32.mrb[0].mxu0
  %v607 = vadd.f32 %v106, %v606
  %v608 = vpop.f32.mrb[0].mxu0
  %609 = vmatprep.mubr.bf16.mxu0 0
  %610 = vmatmul.mubr.bf16.gmra.mrb[0].mxu0 %v357
  %v611 = vpop.f32.mrb[0].mxu0
  %v612 = vadd.f32 %v106, %v611
  %v613 = vpop.f32.mrb[0].mxu0
  %v614 = vpop.f32.mrb[0].mxu0
  %v615 = vadd.f32 %v106, %v614
  %v616 = vpop.f32.mrb[0].mxu0
  %617 = vmatprep.mubr.bf16.mxu0 0
  %618 = vmatmul.mubr.bf16.gmra.mrb[0].mxu0 %v360
  %v619 = vpop.f32.mrb[0].mxu0
  %v620 = vadd.f32 %v106, %v619
  %v621 = vpop.f32.mrb[0].mxu0
  %v622 = vpop.f32.mrb[0].mxu0
  %v623 = vadd.f32 %v106, %v622
  %v624 = vpop.f32.mrb[0].mxu0
  %625 = vmatprep.mubr.bf16.mxu0 0
  %626 = vmatmul.mubr.bf16.gmra.mrb[0].mxu0 %v363
  %v627 = vpop.f32.mrb[0].mxu0
  %v628 = vadd.f32 %v106, %v627
  %v629 = vpop.f32.mrb[0].mxu0
  %v630 = vpop.f32.mrb[0].mxu0
  %v631 = vadd.f32 %v106, %v630
  %v632 = vpop.f32.mrb[0].mxu0
  %633 = vmatprep.mubr.bf16.mxu0 0
  %634 = vmatmul.mubr.bf16.gmra.mrb[0].mxu0 %v366
  %v635 = vpop.f32.mrb[0].mxu0
  %v636 = vadd.f32 %v106, %v635
  %v637 = vpop.f32.mrb[0].mxu0
  %v638 = vpop.f32.mrb[0].mxu0
  %v639 = vadd.f32 %v106, %v638
  %v640 = vpop.f32.mrb[0].mxu0
  %641 = vmatprep.mubr.bf16.mxu0 0
  %642 = vmatmul.mubr.bf16.gmra.mrb[0].mxu0 %v369
  %v643 = vpop.f32.mrb[0].mxu0
  %v644 = vadd.f32 %v106, %v643
  %v645 = vpop.f32.mrb[0].mxu0
  %v646 = vpop.f32.mrb[0].mxu0
  %v647 = vadd.f32 %v106, %v646
  %v648 = vpop.f32.mrb[0].mxu0
  %649 = vmatprep.mubr.bf16.mxu0 0
  %650 = vmatmul.mubr.bf16.gmra.mrb[0].mxu0 %v372
  %v651 = vpop.f32.mrb[0].mxu0
  %v652 = vadd.f32 %v106, %v651
  %v653 = vpop.f32.mrb[0].mxu0
  %v654 = vpop.f32.mrb[0].mxu0
  %v655 = vadd.f32 %v106, %v654
  %v656 = vpop.f32.mrb[0].mxu0
  %657 = vmatprep.mubr.bf16.mxu0 0
  %658 = vmatmul.mubr.bf16.gmra.mrb[0].mxu0 %v375
  %v659 = vpop.f32.mrb[0].mxu0
  %v660 = vadd.f32 %v106, %v659
  %v661 = vpop.f32.mrb[0].mxu0
  %v662 = vpop.f32.mrb[0].mxu0
  %v663 = vadd.f32 %v106, %v662
  %v664 = vpop.f32.mrb[0].mxu0
  %665 = vdwg.mxu0
  %v666 = vmax.f32 %v412, 0.0
  %v667 = vmax.f32 %v415, 0.0
  %v668 = vmax.f32 %v420, 0.0
  %v669 = vmax.f32 %v423, 0.0
  %v670 = vmax.f32 %v428, 0.0
  %v671 = vmax.f32 %v431, 0.0
  %v672 = vmax.f32 %v436, 0.0
  %v673 = vmax.f32 %v439, 0.0
  %v674 = vmax.f32 %v444, 0.0
  %v675 = vmax.f32 %v447, 0.0
  %v676 = vmax.f32 %v452, 0.0
  %v677 = vmax.f32 %v455, 0.0
  %v678 = vmax.f32 %v460, 0.0
  %v679 = vmax.f32 %v463, 0.0
  %v680 = vmax.f32 %v468, 0.0
  %v681 = vmax.f32 %v471, 0.0
  %v682 = vmax.f32 %v476, 0.0
  %v683 = vmax.f32 %v479, 0.0
  %v684 = vmax.f32 %v484, 0.0
  %v685 = vmax.f32 %v487, 0.0
  %v686 = vmax.f32 %v492, 0.0
  %v687 = vmax.f32 %v495, 0.0
  %v688 = vmax.f32 %v500, 0.0
  %v689 = vmax.f32 %v503, 0.0
  %v690 = vmax.f32 %v508, 0.0
  %v691 = vmax.f32 %v511, 0.0
  %v692 = vmax.f32 %v516, 0.0
  %v693 = vmax.f32 %v519, 0.0
  %v694 = vmax.f32 %v524, 0.0
  %v695 = vmax.f32 %v527, 0.0
  %v696 = vmax.f32 %v532, 0.0
  %v697 = vmax.f32 %v535, 0.0
  %v698 = vmax.f32 %v540, 0.0
  %v699 = vmax.f32 %v543, 0.0
  %v700 = vmax.f32 %v548, 0.0
  %v701 = vmax.f32 %v551, 0.0
  %v702 = vmax.f32 %v556, 0.0
  %v703 = vmax.f32 %v559, 0.0
  %v704 = vmax.f32 %v564, 0.0
  %v705 = vmax.f32 %v567, 0.0
  %v706 = vmax.f32 %v572, 0.0
  %v707 = vmax.f32 %v575, 0.0
  %v708 = vmax.f32 %v580, 0.0
  %v709 = vmax.f32 %v583, 0.0
  %v710 = vmax.f32 %v588, 0.0
  %v711 = vmax.f32 %v591, 0.0
  %v712 = vmax.f32 %v596, 0.0
  %v713 = vmax.f32 %v599, 0.0
  %v714 = vmax.f32 %v604, 0.0
  %v715 = vmax.f32 %v607, 0.0
  %v716 = vmax.f32 %v612, 0.0
  %v717 = vmax.f32 %v615, 0.0
  %v718 = vmax.f32 %v620, 0.0
  %v719 = vmax.f32 %v623, 0.0
  %v720 = vmax.f32 %v628, 0.0
  %v721 = vmax.f32 %v631, 0.0
  %v722 = vmax.f32 %v636, 0.0
  %v723 = vmax.f32 %v639, 0.0
  %v724 = vmax.f32 %v644, 0.0
  %v725 = vmax.f32 %v647, 0.0
  %v726 = vmax.f32 %v652, 0.0
  %v727 = vmax.f32 %v655, 0.0
  %v728 = vmax.f32 %v660, 0.0
  %v729 = vmax.f32 %v663, 0.0
  %vm730 = vcmask 519168
  %731 = vst.msk [vmem:[#allocation2] sm:$0xf] %vm730, 0
  %732 = vst.msk [vmem:[#allocation2 + $0x4] sm:$0xf] %vm730, 0
  %vm733 = vcmask 516096
  %734 = vst.msk [vmem:[#allocation2 + $0x8] sm:$0x1] %vm733, 0
  %735 = vst.msk [vmem:[#allocation2 + $0xd8] sm:$0xf] %vm730, 0
  %736 = vst.msk [vmem:[#allocation2 + $0xdc] sm:$0xf] %vm730, 0
  %737 = vst.msk [vmem:[#allocation2 + $0xe0] sm:$0x1] %vm733, 0
  %s738 = scalar_lea.vmem [#allocation2], 204
  %739 = vst.msk [vmem:[%s738] sm:$0xf] %vm730, 0
  %740 = vst.msk [vmem:[%s738 + $0x4] sm:$0xf] %vm730, 0
  %741 = vst.msk [vmem:[%s738 + $0x8] sm:$0x1] %vm733, 0
  %742 = vst.msk [vmem:[%s738 + $0xd8] sm:$0xf] %vm730, 0
  %743 = vst.msk [vmem:[%s738 + $0xdc] sm:$0xf] %vm730, 0
  %744 = vst.msk [vmem:[%s738 + $0xe0] sm:$0x1] %vm733, 0
  %s745 = scalar_lea.vmem [#allocation2], 12
  %vm746 = vcmask 516096
  %vm747 = vsmask.f32 256
  %vm748 = vmand %vm746, %vm747
  %v749 = vld [vmem:[%s745] sm:$0x1]
  %v750 = vsel %vm748, 0, %v749
  %751 = vst [vmem:[%s745] sm:$0x1] %v750
  %v752 = vld [vmem:[%s745 + $0xc] sm:$0x1]
  %v753 = vsel %vm748, 0, %v752
  %754 = vst [vmem:[%s745 + $0xc] sm:$0x1] %v753
  %v755 = vld [vmem:[%s745 + $0x18] sm:$0x1]
  %v756 = vsel %vm748, 0, %v755
  %757 = vst [vmem:[%s745 + $0x18] sm:$0x1] %v756
  %v758 = vld [vmem:[%s745 + $0x24] sm:$0x1]
  %v759 = vsel %vm748, 0, %v758
  %760 = vst [vmem:[%s745 + $0x24] sm:$0x1] %v759
  %v761 = vld [vmem:[%s745 + $0x30] sm:$0x1]
  %v762 = vsel %vm748, 0, %v761
  %763 = vst [vmem:[%s745 + $0x30] sm:$0x1] %v762
  %v764 = vld [vmem:[%s745 + $0x3c] sm:$0x1]
  %v765 = vsel %vm748, 0, %v764
  %766 = vst [vmem:[%s745 + $0x3c] sm:$0x1] %v765
  %v767 = vld [vmem:[%s745 + $0x48] sm:$0x1]
  %v768 = vsel %vm748, 0, %v767
  %769 = vst [vmem:[%s745 + $0x48] sm:$0x1] %v768
  %v770 = vld [vmem:[%s745 + $0x54] sm:$0x1]
  %v771 = vsel %vm748, 0, %v770
  %772 = vst [vmem:[%s745 + $0x54] sm:$0x1] %v771
  %v773 = vld [vmem:[%s745 + $0x60] sm:$0x1]
  %v774 = vsel %vm748, 0, %v773
  %775 = vst [vmem:[%s745 + $0x60] sm:$0x1] %v774
  %v776 = vld [vmem:[%s745 + $0x6c] sm:$0x1]
  %v777 = vsel %vm748, 0, %v776
  %778 = vst [vmem:[%s745 + $0x6c] sm:$0x1] %v777
  %v779 = vld [vmem:[%s745 + $0x78] sm:$0x1]
  %v780 = vsel %vm748, 0, %v779
  %781 = vst [vmem:[%s745 + $0x78] sm:$0x1] %v780
  %v782 = vld [vmem:[%s745 + $0x84] sm:$0x1]
  %v783 = vsel %vm748, 0, %v782
  %784 = vst [vmem:[%s745 + $0x84] sm:$0x1] %v783
  %v785 = vld [vmem:[%s745 + $0x90] sm:$0x1]
  %v786 = vsel %vm748, 0, %v785
  %787 = vst [vmem:[%s745 + $0x90] sm:$0x1] %v786
  %v788 = vld [vmem:[%s745 + $0x9c] sm:$0x1]
  %v789 = vsel %vm748, 0, %v788
  %790 = vst [vmem:[%s745 + $0x9c] sm:$0x1] %v789
  %v791 = vld [vmem:[%s745 + $0xa8] sm:$0x1]
  %v792 = vsel %vm748, 0, %v791
  %793 = vst [vmem:[%s745 + $0xa8] sm:$0x1] %v792
  %v794 = vld [vmem:[%s745 + $0xb4] sm:$0x1]
  %v795 = vsel %vm748, 0, %v794
  %796 = vst [vmem:[%s745 + $0xb4] sm:$0x1] %v795
  %v797 = vld [vmem:[%s745 + $0xd8] sm:$0x1]
  %v798 = vsel %vm748, 0, %v797
  %799 = vst [vmem:[%s745 + $0xd8] sm:$0x1] %v798
  %v800 = vld [vmem:[%s745 + $0xe4] sm:$0x1]
  %v801 = vsel %vm748, 0, %v800
  %802 = vst [vmem:[%s745 + $0xe4] sm:$0x1] %v801
  %v803 = vld [vmem:[%s745 + $0xf0] sm:$0x1]
  %v804 = vsel %vm748, 0, %v803
  %805 = vst [vmem:[%s745 + $0xf0] sm:$0x1] %v804
  %v806 = vld [vmem:[%s745 + $0xfc] sm:$0x1]
  %v807 = vsel %vm748, 0, %v806
  %808 = vst [vmem:[%s745 + $0xfc] sm:$0x1] %v807
  %v809 = vld [vmem:[%s745 + $0x108] sm:$0x1]
  %v810 = vsel %vm748, 0, %v809
  %811 = vst [vmem:[%s745 + $0x108] sm:$0x1] %v810
  %v812 = vld [vmem:[%s745 + $0x114] sm:$0x1]
  %v813 = vsel %vm748, 0, %v812
  %814 = vst [vmem:[%s745 + $0x114] sm:$0x1] %v813
  %v815 = vld [vmem:[%s745 + $0x120] sm:$0x1]
  %v816 = vsel %vm748, 0, %v815
  %817 = vst [vmem:[%s745 + $0x120] sm:$0x1] %v816
  %v818 = vld [vmem:[%s745 + $0x12c] sm:$0x1]
  %v819 = vsel %vm748, 0, %v818
  %820 = vst [vmem:[%s745 + $0x12c] sm:$0x1] %v819
  %v821 = vld [vmem:[%s745 + $0x138] sm:$0x1]
  %v822 = vsel %vm748, 0, %v821
  %823 = vst [vmem:[%s745 + $0x138] sm:$0x1] %v822
  %v824 = vld [vmem:[%s745 + $0x144] sm:$0x1]
  %v825 = vsel %vm748, 0, %v824
  %826 = vst [vmem:[%s745 + $0x144] sm:$0x1] %v825
  %v827 = vld [vmem:[%s745 + $0x150] sm:$0x1]
  %v828 = vsel %vm748, 0, %v827
  %829 = vst [vmem:[%s745 + $0x150] sm:$0x1] %v828
  %v830 = vld [vmem:[%s745 + $0x15c] sm:$0x1]
  %v831 = vsel %vm748, 0, %v830
  %832 = vst [vmem:[%s745 + $0x15c] sm:$0x1] %v831
  %v833 = vld [vmem:[%s745 + $0x168] sm:$0x1]
  %v834 = vsel %vm748, 0, %v833
  %835 = vst [vmem:[%s745 + $0x168] sm:$0x1] %v834
  %v836 = vld [vmem:[%s745 + $0x174] sm:$0x1]
  %v837 = vsel %vm748, 0, %v836
  %838 = vst [vmem:[%s745 + $0x174] sm:$0x1] %v837
  %v839 = vld [vmem:[%s745 + $0x180] sm:$0x1]
  %v840 = vsel %vm748, 0, %v839
  %841 = vst [vmem:[%s745 + $0x180] sm:$0x1] %v840
  %v842 = vld [vmem:[%s745 + $0x18c] sm:$0x1]
  %v843 = vsel %vm748, 0, %v842
  %844 = vst [vmem:[%s745 + $0x18c] sm:$0x1] %v843
  %vm845 = vsmask.f32 7938
  %vm846 = vmand %vm746, %vm845
  %v847 = vld [vmem:[%s745 + $0x8] sm:$0x1]
  %v848 = vsel %vm846, 0, %v847
  %849 = vst [vmem:[%s745 + $0x8] sm:$0x1] %v848
  %v850 = vld [vmem:[%s745 + $0x14] sm:$0x1]
  %v851 = vsel %vm846, 0, %v850
  %852 = vst [vmem:[%s745 + $0x14] sm:$0x1] %v851
  %v853 = vld [vmem:[%s745 + $0x20] sm:$0x1]
  %v854 = vsel %vm846, 0, %v853
  %855 = vst [vmem:[%s745 + $0x20] sm:$0x1] %v854
  %v856 = vld [vmem:[%s745 + $0x2c] sm:$0x1]
  %v857 = vsel %vm846, 0, %v856
  %858 = vst [vmem:[%s745 + $0x2c] sm:$0x1] %v857
  %v859 = vld [vmem:[%s745 + $0x38] sm:$0x1]
  %v860 = vsel %vm846, 0, %v859
  %861 = vst [vmem:[%s745 + $0x38] sm:$0x1] %v860
  %v862 = vld [vmem:[%s745 + $0x44] sm:$0x1]
  %v863 = vsel %vm846, 0, %v862
  %864 = vst [vmem:[%s745 + $0x44] sm:$0x1] %v863
  %v865 = vld [vmem:[%s745 + $0x50] sm:$0x1]
  %v866 = vsel %vm846, 0, %v865
  %867 = vst [vmem:[%s745 + $0x50] sm:$0x1] %v866
  %v868 = vld [vmem:[%s745 + $0x5c] sm:$0x1]
  %v869 = vsel %vm846, 0, %v868
  %870 = vst [vmem:[%s745 + $0x5c] sm:$0x1] %v869
  %v871 = vld [vmem:[%s745 + $0x68] sm:$0x1]
  %v872 = vsel %vm846, 0, %v871
  %873 = vst [vmem:[%s745 + $0x68] sm:$0x1] %v872
  %v874 = vld [vmem:[%s745 + $0x74] sm:$0x1]
  %v875 = vsel %vm846, 0, %v874
  %876 = vst [vmem:[%s745 + $0x74] sm:$0x1] %v875
  %v877 = vld [vmem:[%s745 + $0x80] sm:$0x1]
  %v878 = vsel %vm846, 0, %v877
  %879 = vst [vmem:[%s745 + $0x80] sm:$0x1] %v878
  %v880 = vld [vmem:[%s745 + $0x8c] sm:$0x1]
  %v881 = vsel %vm846, 0, %v880
  %882 = vst [vmem:[%s745 + $0x8c] sm:$0x1] %v881
  %v883 = vld [vmem:[%s745 + $0x98] sm:$0x1]
  %v884 = vsel %vm846, 0, %v883
  %885 = vst [vmem:[%s745 + $0x98] sm:$0x1] %v884
  %v886 = vld [vmem:[%s745 + $0xa4] sm:$0x1]
  %v887 = vsel %vm846, 0, %v886
  %888 = vst [vmem:[%s745 + $0xa4] sm:$0x1] %v887
  %v889 = vld [vmem:[%s745 + $0xb0] sm:$0x1]
  %v890 = vsel %vm846, 0, %v889
  %891 = vst [vmem:[%s745 + $0xb0] sm:$0x1] %v890
  %v892 = vld [vmem:[%s745 + $0xbc] sm:$0x1]
  %v893 = vsel %vm846, 0, %v892
  %894 = vst [vmem:[%s745 + $0xbc] sm:$0x1] %v893
  %v895 = vld [vmem:[%s745 + $0xe0] sm:$0x1]
  %v896 = vsel %vm846, 0, %v895
  %897 = vst [vmem:[%s745 + $0xe0] sm:$0x1] %v896
  %v898 = vld [vmem:[%s745 + $0xec] sm:$0x1]
  %v899 = vsel %vm846, 0, %v898
  %900 = vst [vmem:[%s745 + $0xec] sm:$0x1] %v899
  %v901 = vld [vmem:[%s745 + $0xf8] sm:$0x1]
  %v902 = vsel %vm846, 0, %v901
  %903 = vst [vmem:[%s745 + $0xf8] sm:$0x1] %v902
  %v904 = vld [vmem:[%s745 + $0x104] sm:$0x1]
  %v905 = vsel %vm846, 0, %v904
  %906 = vst [vmem:[%s745 + $0x104] sm:$0x1] %v905
  %v907 = vld [vmem:[%s745 + $0x110] sm:$0x1]
  %v908 = vsel %vm846, 0, %v907
  %909 = vst [vmem:[%s745 + $0x110] sm:$0x1] %v908
  %v910 = vld [vmem:[%s745 + $0x11c] sm:$0x1]
  %v911 = vsel %vm846, 0, %v910
  %912 = vst [vmem:[%s745 + $0x11c] sm:$0x1] %v911
  %v913 = vld [vmem:[%s745 + $0x128] sm:$0x1]
  %v914 = vsel %vm846, 0, %v913
  %915 = vst [vmem:[%s745 + $0x128] sm:$0x1] %v914
  %v916 = vld [vmem:[%s745 + $0x134] sm:$0x1]
  %v917 = vsel %vm846, 0, %v916
  %918 = vst [vmem:[%s745 + $0x134] sm:$0x1] %v917
  %v919 = vld [vmem:[%s745 + $0x140] sm:$0x1]
  %v920 = vsel %vm846, 0, %v919
  %921 = vst [vmem:[%s745 + $0x140] sm:$0x1] %v920
  %v922 = vld [vmem:[%s745 + $0x14c] sm:$0x1]
  %v923 = vsel %vm846, 0, %v922
  %924 = vst [vmem:[%s745 + $0x14c] sm:$0x1] %v923
  %v925 = vld [vmem:[%s745 + $0x158] sm:$0x1]
  %v926 = vsel %vm846, 0, %v925
  %927 = vst [vmem:[%s745 + $0x158] sm:$0x1] %v926
  %v928 = vld [vmem:[%s745 + $0x164] sm:$0x1]
  %v929 = vsel %vm846, 0, %v928
  %930 = vst [vmem:[%s745 + $0x164] sm:$0x1] %v929
  %v931 = vld [vmem:[%s745 + $0x170] sm:$0x1]
  %v932 = vsel %vm846, 0, %v931
  %933 = vst [vmem:[%s745 + $0x170] sm:$0x1] %v932
  %v934 = vld [vmem:[%s745 + $0x17c] sm:$0x1]
  %v935 = vsel %vm846, 0, %v934
  %936 = vst [vmem:[%s745 + $0x17c] sm:$0x1] %v935
  %v937 = vld [vmem:[%s745 + $0x188] sm:$0x1]
  %v938 = vsel %vm846, 0, %v937
  %939 = vst [vmem:[%s745 + $0x188] sm:$0x1] %v938
  %v940 = vld [vmem:[%s745 + $0x194] sm:$0x1]
  %v941 = vsel %vm846, 0, %v940
  %942 = vst [vmem:[%s745 + $0x194] sm:$0x1] %v941
  %v943 = vpack.c.bf16 %v667, %v666
  %v944 = vpack.c.bf16 %v669, %v668
  %v945 = vpack.c.bf16 %v671, %v670
  %v946 = vpack.c.bf16 %v673, %v672
  %v947 = vpack.c.bf16 %v675, %v674
  %v948 = vpack.c.bf16 %v677, %v676
  %v949 = vpack.c.bf16 %v679, %v678
  %v950 = vpack.c.bf16 %v681, %v680
  %v951 = vpack.c.bf16 %v683, %v682
  %v952 = vpack.c.bf16 %v685, %v684
  %v953 = vpack.c.bf16 %v687, %v686
  %v954 = vpack.c.bf16 %v689, %v688
  %v955 = vpack.c.bf16 %v691, %v690
  %v956 = vpack.c.bf16 %v693, %v692
  %v957 = vpack.c.bf16 %v695, %v694
  %v958 = vpack.c.bf16 %v697, %v696
  %v959 = vpack.c.bf16 %v699, %v698
  %v960 = vpack.c.bf16 %v701, %v700
  %v961 = vpack.c.bf16 %v703, %v702
  %v962 = vpack.c.bf16 %v705, %v704
  %v963 = vpack.c.bf16 %v707, %v706
  %v964 = vpack.c.bf16 %v709, %v708
  %v965 = vpack.c.bf16 %v711, %v710
  %v966 = vpack.c.bf16 %v713, %v712
  %v967 = vpack.c.bf16 %v715, %v714
  %v968 = vpack.c.bf16 %v717, %v716
  %v969 = vpack.c.bf16 %v719, %v718
  %v970 = vpack.c.bf16 %v721, %v720
  %v971 = vpack.c.bf16 %v723, %v722
  %v972 = vpack.c.bf16 %v725, %v724
  %v973 = vpack.c.bf16 %v727, %v726
  %v974 = vpack.c.bf16 %v729, %v728
  %v1007 = vunpack.c.l.b16 %v943
  %v1008 = vunpack.c.h.b16 %v943
  %v1009 = vunpack.c.l.b16 %v944
  %v1010 = vunpack.c.h.b16 %v944
  %v1011 = vunpack.c.l.b16 %v945
  %v1012 = vunpack.c.h.b16 %v945
  %v1013 = vunpack.c.l.b16 %v946
  %v1014 = vunpack.c.h.b16 %v946
  %v1015 = vunpack.c.l.b16 %v947
  %v1016 = vunpack.c.h.b16 %v947
  %v1017 = vunpack.c.l.b16 %v948
  %v1018 = vunpack.c.h.b16 %v948
  %v1019 = vunpack.c.l.b16 %v949
  %v1020 = vunpack.c.h.b16 %v949
  %v1021 = vunpack.c.l.b16 %v950
  %v1022 = vunpack.c.h.b16 %v950
  %v1023 = vunpack.c.l.b16 %v951
  %v1024 = vunpack.c.h.b16 %v951
  %v1025 = vunpack.c.l.b16 %v952
  %v1026 = vunpack.c.h.b16 %v952
  %v1027 = vunpack.c.l.b16 %v953
  %v1028 = vunpack.c.h.b16 %v953
  %v1029 = vunpack.c.l.b16 %v954
  %v1030 = vunpack.c.h.b16 %v954
  %v1031 = vunpack.c.l.b16 %v955
  %v1032 = vunpack.c.h.b16 %v955
  %v1033 = vunpack.c.l.b16 %v956
  %v1034 = vunpack.c.h.b16 %v956
  %v1035 = vunpack.c.l.b16 %v957
  %v1036 = vunpack.c.h.b16 %v957
  %v1037 = vunpack.c.l.b16 %v958
  %v1038 = vunpack.c.h.b16 %v958
  %v1039 = vunpack.c.l.b16 %v959
  %v1040 = vunpack.c.h.b16 %v959
  %v1041 = vunpack.c.l.b16 %v960
  %v1042 = vunpack.c.h.b16 %v960
  %v1043 = vunpack.c.l.b16 %v961
  %v1044 = vunpack.c.h.b16 %v961
  %v1045 = vunpack.c.l.b16 %v962
  %v1046 = vunpack.c.h.b16 %v962
  %v1047 = vunpack.c.l.b16 %v963
  %v1048 = vunpack.c.h.b16 %v963
  %v1049 = vunpack.c.l.b16 %v964
  %v1050 = vunpack.c.h.b16 %v964
  %v1051 = vunpack.c.l.b16 %v965
  %v1052 = vunpack.c.h.b16 %v965
  %v1053 = vunpack.c.l.b16 %v966
  %v1054 = vunpack.c.h.b16 %v966
  %v1055 = vunpack.c.l.b16 %v967
  %v1056 = vunpack.c.h.b16 %v967
  %v1057 = vunpack.c.l.b16 %v968
  %v1058 = vunpack.c.h.b16 %v968
  %v1059 = vunpack.c.l.b16 %v969
  %v1060 = vunpack.c.h.b16 %v969
  %v1061 = vunpack.c.l.b16 %v970
  %v1062 = vunpack.c.h.b16 %v970
  %v1063 = vunpack.c.l.b16 %v971
  %v1064 = vunpack.c.h.b16 %v971
  %v1065 = vunpack.c.l.b16 %v972
  %v1066 = vunpack.c.h.b16 %v972
  %v1067 = vunpack.c.l.b16 %v973
  %v1068 = vunpack.c.h.b16 %v973
  %v1069 = vunpack.c.l.b16 %v974
  %v1070 = vunpack.c.h.b16 %v974
  %v1071 = vpack.c.b16 %v1007, %v1007
  %v1072 = vpack.c.b16 %v1008, %v1008
  %v1073 = vpack.c.b16 %v1009, %v1009
  %v1074 = vpack.c.b16 %v1010, %v1010
  %v1075 = vpack.c.b16 %v1011, %v1011
  %v1076 = vpack.c.b16 %v1012, %v1012
  %v1077 = vpack.c.b16 %v1013, %v1013
  %v1078 = vpack.c.b16 %v1014, %v1014
  %v1079 = vpack.c.b16 %v1015, %v1015
  %v1080 = vpack.c.b16 %v1016, %v1016
  %v1081 = vpack.c.b16 %v1017, %v1017
  %v1082 = vpack.c.b16 %v1018, %v1018
  %v1083 = vpack.c.b16 %v1019, %v1019
  %v1084 = vpack.c.b16 %v1020, %v1020
  %v1085 = vpack.c.b16 %v1021, %v1021
  %v1086 = vpack.c.b16 %v1022, %v1022
  %v1087 = vpack.c.b16 %v1023, %v1023
  %v1088 = vpack.c.b16 %v1024, %v1024
  %v1089 = vpack.c.b16 %v1025, %v1025
  %v1090 = vpack.c.b16 %v1026, %v1026
  %v1091 = vpack.c.b16 %v1027, %v1027
  %v1092 = vpack.c.b16 %v1028, %v1028
  %v1093 = vpack.c.b16 %v1029, %v1029
  %v1094 = vpack.c.b16 %v1030, %v1030
  %v1095 = vpack.c.b16 %v1031, %v1031
  %v1096 = vpack.c.b16 %v1032, %v1032
  %v1097 = vpack.c.b16 %v1033, %v1033
  %v1098 = vpack.c.b16 %v1034, %v1034
  %v1099 = vpack.c.b16 %v1035, %v1035
  %v1100 = vpack.c.b16 %v1036, %v1036
  %v1101 = vpack.c.b16 %v1037, %v1037
  %v1102 = vpack.c.b16 %v1038, %v1038
  %v1103 = vpack.c.b16 %v1039, %v1039
  %v1104 = vpack.c.b16 %v1040, %v1040
  %v1105 = vpack.c.b16 %v1041, %v1041
  %v1106 = vpack.c.b16 %v1042, %v1042
  %v1107 = vpack.c.b16 %v1043, %v1043
  %v1108 = vpack.c.b16 %v1044, %v1044
  %v1109 = vpack.c.b16 %v1045, %v1045
  %v1110 = vpack.c.b16 %v1046, %v1046
  %v1111 = vpack.c.b16 %v1047, %v1047
  %v1112 = vpack.c.b16 %v1048, %v1048
  %v1113 = vpack.c.b16 %v1049, %v1049
  %v1114 = vpack.c.b16 %v1050, %v1050
  %v1115 = vpack.c.b16 %v1051, %v1051
  %v1116 = vpack.c.b16 %v1052, %v1052
  %v1117 = vpack.c.b16 %v1053, %v1053
  %v1118 = vpack.c.b16 %v1054, %v1054
  %v1119 = vpack.c.b16 %v1055, %v1055
  %v1120 = vpack.c.b16 %v1056, %v1056
  %v1121 = vpack.c.b16 %v1057, %v1057
  %v1122 = vpack.c.b16 %v1058, %v1058
  %v1123 = vpack.c.b16 %v1059, %v1059
  %v1124 = vpack.c.b16 %v1060, %v1060
  %v1125 = vpack.c.b16 %v1061, %v1061
  %v1126 = vpack.c.b16 %v1062, %v1062
  %v1127 = vpack.c.b16 %v1063, %v1063
  %v1128 = vpack.c.b16 %v1064, %v1064
  %v1129 = vpack.c.b16 %v1065, %v1065
  %v1130 = vpack.c.b16 %v1066, %v1066
  %v1131 = vpack.c.b16 %v1067, %v1067
  %v1132 = vpack.c.b16 %v1068, %v1068
  %v1133 = vpack.c.b16 %v1069, %v1069
  %v1134 = vpack.c.b16 %v1070, %v1070
  %vm1135 = vsmask.f32 4368
  %vm1136 = vmor %vm747, %vm1135
  %v1138 = vshrl.u32 %v1071, 16
  %v1140 = vrot.slane %v1138, 7
  %v1141 = vshll.u32 %v1071, 16
  %v1143 = vor.u32 %v1140, %v1141
  %v1144 = vrot.slane %v1140, 4
  %v1146 = vshrl.u32 %v1072, 16
  %v1148 = vrot.slane %v1146, 7
  %v1149 = vshll.u32 %v1072, 16
  %v1151 = vor.u32 %v1148, %v1149
  %v1152 = vsel %vm1136, %v1144, %v1151
  %v1153 = vrot.slane %v1148, 4
  %v1155 = vshrl.u32 %v1073, 16
  %v1157 = vrot.slane %v1155, 7
  %v1158 = vshll.u32 %v1073, 16
  %v1160 = vor.u32 %v1157, %v1158
  %v1161 = vrot.slane %v1157, 4
  %v1163 = vshrl.u32 %v1074, 16
  %v1165 = vrot.slane %v1163, 7
  %v1166 = vshll.u32 %v1074, 16
  %v1168 = vor.u32 %v1165, %v1166
  %v1169 = vsel %vm1136, %v1161, %v1168
  %v1170 = vrot.slane %v1165, 4
  %v1172 = vshrl.u32 %v1075, 16
  %v1174 = vrot.slane %v1172, 7
  %v1175 = vshll.u32 %v1075, 16
  %v1177 = vor.u32 %v1174, %v1175
  %v1178 = vrot.slane %v1174, 4
  %v1180 = vshrl.u32 %v1076, 16
  %v1182 = vrot.slane %v1180, 7
  %v1183 = vshll.u32 %v1076, 16
  %v1185 = vor.u32 %v1182, %v1183
  %v1186 = vsel %vm1136, %v1178, %v1185
  %v1187 = vrot.slane %v1182, 4
  %v1189 = vshrl.u32 %v1077, 16
  %v1191 = vrot.slane %v1189, 7
  %v1192 = vshll.u32 %v1077, 16
  %v1194 = vor.u32 %v1191, %v1192
  %v1195 = vrot.slane %v1191, 4
  %v1197 = vshrl.u32 %v1078, 16
  %v1199 = vrot.slane %v1197, 7
  %v1200 = vshll.u32 %v1078, 16
  %v1202 = vor.u32 %v1199, %v1200
  %v1203 = vsel %vm1136, %v1195, %v1202
  %v1204 = vrot.slane %v1199, 4
  %v1206 = vshrl.u32 %v1079, 16
  %v1208 = vrot.slane %v1206, 7
  %v1209 = vshll.u32 %v1079, 16
  %v1211 = vor.u32 %v1208, %v1209
  %v1212 = vrot.slane %v1208, 4
  %v1214 = vshrl.u32 %v1080, 16
  %v1216 = vrot.slane %v1214, 7
  %v1217 = vshll.u32 %v1080, 16
  %v1219 = vor.u32 %v1216, %v1217
  %v1220 = vsel %vm1136, %v1212, %v1219
  %v1221 = vrot.slane %v1216, 4
  %v1223 = vshrl.u32 %v1081, 16
  %v1225 = vrot.slane %v1223, 7
  %v1226 = vshll.u32 %v1081, 16
  %v1228 = vor.u32 %v1225, %v1226
  %v1229 = vrot.slane %v1225, 4
  %v1231 = vshrl.u32 %v1082, 16
  %v1233 = vrot.slane %v1231, 7
  %v1234 = vshll.u32 %v1082, 16
  %v1236 = vor.u32 %v1233, %v1234
  %v1237 = vsel %vm1136, %v1229, %v1236
  %v1238 = vrot.slane %v1233, 4
  %v1240 = vshrl.u32 %v1083, 16
  %v1242 = vrot.slane %v1240, 7
  %v1243 = vshll.u32 %v1083, 16
  %v1245 = vor.u32 %v1242, %v1243
  %v1246 = vrot.slane %v1242, 4
  %v1248 = vshrl.u32 %v1084, 16
  %v1250 = vrot.slane %v1248, 7
  %v1251 = vshll.u32 %v1084, 16
  %v1253 = vor.u32 %v1250, %v1251
  %v1254 = vsel %vm1136, %v1246, %v1253
  %v1255 = vrot.slane %v1250, 4
  %v1257 = vshrl.u32 %v1085, 16
  %v1259 = vrot.slane %v1257, 7
  %v1260 = vshll.u32 %v1085, 16
  %v1262 = vor.u32 %v1259, %v1260
  %v1263 = vrot.slane %v1259, 4
  %v1265 = vshrl.u32 %v1086, 16
  %v1267 = vrot.slane %v1265, 7
  %v1268 = vshll.u32 %v1086, 16
  %v1270 = vor.u32 %v1267, %v1268
  %v1271 = vsel %vm1136, %v1263, %v1270
  %v1272 = vrot.slane %v1267, 4
  %v1274 = vshrl.u32 %v1087, 16
  %v1276 = vrot.slane %v1274, 7
  %v1277 = vshll.u32 %v1087, 16
  %v1279 = vor.u32 %v1276, %v1277
  %v1280 = vrot.slane %v1276, 4
  %v1282 = vshrl.u32 %v1088, 16
  %v1284 = vrot.slane %v1282, 7
  %v1285 = vshll.u32 %v1088, 16
  %v1287 = vor.u32 %v1284, %v1285
  %v1288 = vsel %vm1136, %v1280, %v1287
  %v1289 = vrot.slane %v1284, 4
  %v1291 = vshrl.u32 %v1089, 16
  %v1293 = vrot.slane %v1291, 7
  %v1294 = vshll.u32 %v1089, 16
  %v1296 = vor.u32 %v1293, %v1294
  %v1297 = vrot.slane %v1293, 4
  %v1299 = vshrl.u32 %v1090, 16
  %v1301 = vrot.slane %v1299, 7
  %v1302 = vshll.u32 %v1090, 16
  %v1304 = vor.u32 %v1301, %v1302
  %v1305 = vsel %vm1136, %v1297, %v1304
  %v1306 = vrot.slane %v1301, 4
  %v1308 = vshrl.u32 %v1091, 16
  %v1310 = vrot.slane %v1308, 7
  %v1311 = vshll.u32 %v1091, 16
  %v1313 = vor.u32 %v1310, %v1311
  %v1314 = vrot.slane %v1310, 4
  %v1316 = vshrl.u32 %v1092, 16
  %v1318 = vrot.slane %v1316, 7
  %v1319 = vshll.u32 %v1092, 16
  %v1321 = vor.u32 %v1318, %v1319
  %v1322 = vsel %vm1136, %v1314, %v1321
  %v1323 = vrot.slane %v1318, 4
  %v1325 = vshrl.u32 %v1093, 16
  %v1327 = vrot.slane %v1325, 7
  %v1328 = vshll.u32 %v1093, 16
  %v1330 = vor.u32 %v1327, %v1328
  %v1331 = vrot.slane %v1327, 4
  %v1333 = vshrl.u32 %v1094, 16
  %v1335 = vrot.slane %v1333, 7
  %v1336 = vshll.u32 %v1094, 16
  %v1338 = vor.u32 %v1335, %v1336
  %v1339 = vsel %vm1136, %v1331, %v1338
  %v1340 = vrot.slane %v1335, 4
  %v1342 = vshrl.u32 %v1095, 16
  %v1344 = vrot.slane %v1342, 7
  %v1345 = vshll.u32 %v1095, 16
  %v1347 = vor.u32 %v1344, %v1345
  %v1348 = vrot.slane %v1344, 4
  %v1350 = vshrl.u32 %v1096, 16
  %v1352 = vrot.slane %v1350, 7
  %v1353 = vshll.u32 %v1096, 16
  %v1355 = vor.u32 %v1352, %v1353
  %v1356 = vsel %vm1136, %v1348, %v1355
  %v1357 = vrot.slane %v1352, 4
  %v1359 = vshrl.u32 %v1097, 16
  %v1361 = vrot.slane %v1359, 7
  %v1362 = vshll.u32 %v1097, 16
  %v1364 = vor.u32 %v1361, %v1362
  %v1365 = vrot.slane %v1361, 4
  %v1367 = vshrl.u32 %v1098, 16
  %v1369 = vrot.slane %v1367, 7
  %v1370 = vshll.u32 %v1098, 16
  %v1372 = vor.u32 %v1369, %v1370
  %v1373 = vsel %vm1136, %v1365, %v1372
  %v1374 = vrot.slane %v1369, 4
  %v1376 = vshrl.u32 %v1099, 16
  %v1378 = vrot.slane %v1376, 7
  %v1379 = vshll.u32 %v1099, 16
  %v1381 = vor.u32 %v1378, %v1379
  %v1382 = vrot.slane %v1378, 4
  %v1384 = vshrl.u32 %v1100, 16
  %v1386 = vrot.slane %v1384, 7
  %v1387 = vshll.u32 %v1100, 16
  %v1389 = vor.u32 %v1386, %v1387
  %v1390 = vsel %vm1136, %v1382, %v1389
  %v1391 = vrot.slane %v1386, 4
  %v1393 = vshrl.u32 %v1101, 16
  %v1395 = vrot.slane %v1393, 7
  %v1396 = vshll.u32 %v1101, 16
  %v1398 = vor.u32 %v1395, %v1396
  %v1399 = vrot.slane %v1395, 4
  %v1401 = vshrl.u32 %v1102, 16
  %v1403 = vrot.slane %v1401, 7
  %v1404 = vshll.u32 %v1102, 16
  %v1406 = vor.u32 %v1403, %v1404
  %v1407 = vsel %vm1136, %v1399, %v1406
  %v1408 = vrot.slane %v1403, 4
  %v1410 = vshrl.u32 %v1103, 16
  %v1412 = vrot.slane %v1410, 7
  %v1413 = vshll.u32 %v1103, 16
  %v1415 = vor.u32 %v1412, %v1413
  %v1416 = vrot.slane %v1412, 4
  %v1418 = vshrl.u32 %v1104, 16
  %v1420 = vrot.slane %v1418, 7
  %v1421 = vshll.u32 %v1104, 16
  %v1423 = vor.u32 %v1420, %v1421
  %v1424 = vsel %vm1136, %v1416, %v1423
  %v1425 = vrot.slane %v1420, 4
  %v1427 = vshrl.u32 %v1105, 16
  %v1429 = vrot.slane %v1427, 7
  %v1430 = vshll.u32 %v1105, 16
  %v1432 = vor.u32 %v1429, %v1430
  %v1433 = vrot.slane %v1429, 4
  %v1435 = vshrl.u32 %v1106, 16
  %v1437 = vrot.slane %v1435, 7
  %v1438 = vshll.u32 %v1106, 16
  %v1440 = vor.u32 %v1437, %v1438
  %v1441 = vsel %vm1136, %v1433, %v1440
  %v1442 = vrot.slane %v1437, 4
  %v1444 = vshrl.u32 %v1107, 16
  %v1446 = vrot.slane %v1444, 7
  %v1447 = vshll.u32 %v1107, 16
  %v1449 = vor.u32 %v1446, %v1447
  %v1450 = vrot.slane %v1446, 4
  %v1452 = vshrl.u32 %v1108, 16
  %v1454 = vrot.slane %v1452, 7
  %v1455 = vshll.u32 %v1108, 16
  %v1457 = vor.u32 %v1454, %v1455
  %v1458 = vsel %vm1136, %v1450, %v1457
  %v1459 = vrot.slane %v1454, 4
  %v1461 = vshrl.u32 %v1109, 16
  %v1463 = vrot.slane %v1461, 7
  %v1464 = vshll.u32 %v1109, 16
  %v1466 = vor.u32 %v1463, %v1464
  %v1467 = vrot.slane %v1463, 4
  %v1469 = vshrl.u32 %v1110, 16
  %v1471 = vrot.slane %v1469, 7
  %v1472 = vshll.u32 %v1110, 16
  %v1474 = vor.u32 %v1471, %v1472
  %v1475 = vsel %vm1136, %v1467, %v1474
  %v1476 = vrot.slane %v1471, 4
  %v1478 = vshrl.u32 %v1111, 16
  %v1480 = vrot.slane %v1478, 7
  %v1481 = vshll.u32 %v1111, 16
  %v1483 = vor.u32 %v1480, %v1481
  %v1484 = vrot.slane %v1480, 4
  %v1486 = vshrl.u32 %v1112, 16
  %v1488 = vrot.slane %v1486, 7
  %v1489 = vshll.u32 %v1112, 16
  %v1491 = vor.u32 %v1488, %v1489
  %v1492 = vsel %vm1136, %v1484, %v1491
  %v1493 = vrot.slane %v1488, 4
  %v1495 = vshrl.u32 %v1113, 16
  %v1497 = vrot.slane %v1495, 7
  %v1498 = vshll.u32 %v1113, 16
  %v1500 = vor.u32 %v1497, %v1498
  %v1501 = vrot.slane %v1497, 4
  %v1503 = vshrl.u32 %v1114, 16
  %v1505 = vrot.slane %v1503, 7
  %v1506 = vshll.u32 %v1114, 16
  %v1508 = vor.u32 %v1505, %v1506
  %v1509 = vsel %vm1136, %v1501, %v1508
  %v1510 = vrot.slane %v1505, 4
  %v1512 = vshrl.u32 %v1115, 16
  %v1514 = vrot.slane %v1512, 7
  %v1515 = vshll.u32 %v1115, 16
  %v1517 = vor.u32 %v1514, %v1515
  %v1518 = vrot.slane %v1514, 4
  %v1520 = vshrl.u32 %v1116, 16
  %v1522 = vrot.slane %v1520, 7
  %v1523 = vshll.u32 %v1116, 16
  %v1525 = vor.u32 %v1522, %v1523
  %v1526 = vsel %vm1136, %v1518, %v1525
  %v1527 = vrot.slane %v1522, 4
  %v1529 = vshrl.u32 %v1117, 16
  %v1531 = vrot.slane %v1529, 7
  %v1532 = vshll.u32 %v1117, 16
  %v1534 = vor.u32 %v1531, %v1532
  %v1535 = vrot.slane %v1531, 4
  %v1537 = vshrl.u32 %v1118, 16
  %v1539 = vrot.slane %v1537, 7
  %v1540 = vshll.u32 %v1118, 16
  %v1542 = vor.u32 %v1539, %v1540
  %v1543 = vsel %vm1136, %v1535, %v1542
  %v1544 = vrot.slane %v1539, 4
  %v1546 = vshrl.u32 %v1119, 16
  %v1548 = vrot.slane %v1546, 7
  %v1549 = vshll.u32 %v1119, 16
  %v1551 = vor.u32 %v1548, %v1549
  %v1552 = vrot.slane %v1548, 4
  %v1554 = vshrl.u32 %v1120, 16
  %v1556 = vrot.slane %v1554, 7
  %v1557 = vshll.u32 %v1120, 16
  %v1559 = vor.u32 %v1556, %v1557
  %v1560 = vsel %vm1136, %v1552, %v1559
  %v1561 = vrot.slane %v1556, 4
  %v1563 = vshrl.u32 %v1121, 16
  %v1565 = vrot.slane %v1563, 7
  %v1566 = vshll.u32 %v1121, 16
  %v1568 = vor.u32 %v1565, %v1566
  %v1569 = vrot.slane %v1565, 4
  %v1571 = vshrl.u32 %v1122, 16
  %v1573 = vrot.slane %v1571, 7
  %v1574 = vshll.u32 %v1122, 16
  %v1576 = vor.u32 %v1573, %v1574
  %v1577 = vsel %vm1136, %v1569, %v1576
  %v1578 = vrot.slane %v1573, 4
  %v1580 = vshrl.u32 %v1123, 16
  %v1582 = vrot.slane %v1580, 7
  %v1583 = vshll.u32 %v1123, 16
  %v1585 = vor.u32 %v1582, %v1583
  %v1586 = vrot.slane %v1582, 4
  %v1588 = vshrl.u32 %v1124, 16
  %v1590 = vrot.slane %v1588, 7
  %v1591 = vshll.u32 %v1124, 16
  %v1593 = vor.u32 %v1590, %v1591
  %v1594 = vsel %vm1136, %v1586, %v1593
  %v1595 = vrot.slane %v1590, 4
  %v1597 = vshrl.u32 %v1125, 16
  %v1599 = vrot.slane %v1597, 7
  %v1600 = vshll.u32 %v1125, 16
  %v1602 = vor.u32 %v1599, %v1600
  %v1603 = vrot.slane %v1599, 4
  %v1605 = vshrl.u32 %v1126, 16
  %v1607 = vrot.slane %v1605, 7
  %v1608 = vshll.u32 %v1126, 16
  %v1610 = vor.u32 %v1607, %v1608
  %v1611 = vsel %vm1136, %v1603, %v1610
  %v1612 = vrot.slane %v1607, 4
  %v1614 = vshrl.u32 %v1127, 16
  %v1616 = vrot.slane %v1614, 7
  %v1617 = vshll.u32 %v1127, 16
  %v1619 = vor.u32 %v1616, %v1617
  %v1620 = vrot.slane %v1616, 4
  %v1622 = vshrl.u32 %v1128, 16
  %v1624 = vrot.slane %v1622, 7
  %v1625 = vshll.u32 %v1128, 16
  %v1627 = vor.u32 %v1624, %v1625
  %v1628 = vsel %vm1136, %v1620, %v1627
  %v1629 = vrot.slane %v1624, 4
  %v1631 = vshrl.u32 %v1129, 16
  %v1633 = vrot.slane %v1631, 7
  %v1634 = vshll.u32 %v1129, 16
  %v1636 = vor.u32 %v1633, %v1634
  %v1637 = vrot.slane %v1633, 4
  %v1639 = vshrl.u32 %v1130, 16
  %v1641 = vrot.slane %v1639, 7
  %v1642 = vshll.u32 %v1130, 16
  %v1644 = vor.u32 %v1641, %v1642
  %v1645 = vsel %vm1136, %v1637, %v1644
  %v1646 = vrot.slane %v1641, 4
  %v1648 = vshrl.u32 %v1131, 16
  %v1650 = vrot.slane %v1648, 7
  %v1651 = vshll.u32 %v1131, 16
  %v1653 = vor.u32 %v1650, %v1651
  %v1654 = vrot.slane %v1650, 4
  %v1656 = vshrl.u32 %v1132, 16
  %v1658 = vrot.slane %v1656, 7
  %v1659 = vshll.u32 %v1132, 16
  %v1661 = vor.u32 %v1658, %v1659
  %v1662 = vsel %vm1136, %v1654, %v1661
  %v1663 = vrot.slane %v1658, 4
  %v1665 = vshrl.u32 %v1133, 16
  %v1667 = vrot.slane %v1665, 7
  %v1668 = vshll.u32 %v1133, 16
  %v1670 = vor.u32 %v1667, %v1668
  %v1671 = vrot.slane %v1667, 4
  %v1673 = vshrl.u32 %v1134, 16
  %v1675 = vrot.slane %v1673, 7
  %v1676 = vshll.u32 %v1134, 16
  %v1678 = vor.u32 %v1675, %v1676
  %v1679 = vsel %vm1136, %v1671, %v1678
  %v1680 = vrot.slane %v1675, 4
  %vm1777 = vcmask 519168
  %vm1778 = vmand %vm1777, %vm845
  %v1779 = vld [vmem:[%s745] sm:$0xf]
  %v1780 = vsel %vm1778, %v1143, %v1779
  %1781 = vst [vmem:[%s745] sm:$0xf] %v1780
  %1782 = vst.msk [vmem:[%s745 + $0x4] sm:$0xf] %vm730, %v1152
  %v1783 = vld [vmem:[%s745 + $0x8] sm:$0x1]
  %v1784 = vsel %vm748, %v1153, %v1783
  %1785 = vst [vmem:[%s745 + $0x8] sm:$0x1] %v1784
  %v1786 = vld [vmem:[%s745 + $0xc] sm:$0xf]
  %v1787 = vsel %vm1778, %v1160, %v1786
  %1788 = vst [vmem:[%s745 + $0xc] sm:$0xf] %v1787
  %1789 = vst.msk [vmem:[%s745 + $0x10] sm:$0xf] %vm730, %v1169
  %v1790 = vld [vmem:[%s745 + $0x14] sm:$0x1]
  %v1791 = vsel %vm748, %v1170, %v1790
  %1792 = vst [vmem:[%s745 + $0x14] sm:$0x1] %v1791
  %v1793 = vld [vmem:[%s745 + $0x18] sm:$0xf]
  %v1794 = vsel %vm1778, %v1177, %v1793
  %1795 = vst [vmem:[%s745 + $0x18] sm:$0xf] %v1794
  %1796 = vst.msk [vmem:[%s745 + $0x1c] sm:$0xf] %vm730, %v1186
  %v1797 = vld [vmem:[%s745 + $0x20] sm:$0x1]
  %v1798 = vsel %vm748, %v1187, %v1797
  %1799 = vst [vmem:[%s745 + $0x20] sm:$0x1] %v1798
  %v1800 = vld [vmem:[%s745 + $0x24] sm:$0xf]
  %v1801 = vsel %vm1778, %v1194, %v1800
  %1802 = vst [vmem:[%s745 + $0x24] sm:$0xf] %v1801
  %1803 = vst.msk [vmem:[%s745 + $0x28] sm:$0xf] %vm730, %v1203
  %v1804 = vld [vmem:[%s745 + $0x2c] sm:$0x1]
  %v1805 = vsel %vm748, %v1204, %v1804
  %1806 = vst [vmem:[%s745 + $0x2c] sm:$0x1] %v1805
  %v1807 = vld [vmem:[%s745 + $0x30] sm:$0xf]
  %v1808 = vsel %vm1778, %v1211, %v1807
  %1809 = vst [vmem:[%s745 + $0x30] sm:$0xf] %v1808
  %1810 = vst.msk [vmem:[%s745 + $0x34] sm:$0xf] %vm730, %v1220
  %v1811 = vld [vmem:[%s745 + $0x38] sm:$0x1]
  %v1812 = vsel %vm748, %v1221, %v1811
  %1813 = vst [vmem:[%s745 + $0x38] sm:$0x1] %v1812
  %v1814 = vld [vmem:[%s745 + $0x3c] sm:$0xf]
  %v1815 = vsel %vm1778, %v1228, %v1814
  %1816 = vst [vmem:[%s745 + $0x3c] sm:$0xf] %v1815
  %1817 = vst.msk [vmem:[%s745 + $0x40] sm:$0xf] %vm730, %v1237
  %v1818 = vld [vmem:[%s745 + $0x44] sm:$0x1]
  %v1819 = vsel %vm748, %v1238, %v1818
  %1820 = vst [vmem:[%s745 + $0x44] sm:$0x1] %v1819
  %v1821 = vld [vmem:[%s745 + $0x48] sm:$0xf]
  %v1822 = vsel %vm1778, %v1245, %v1821
  %1823 = vst [vmem:[%s745 + $0x48] sm:$0xf] %v1822
  %1824 = vst.msk [vmem:[%s745 + $0x4c] sm:$0xf] %vm730, %v1254
  %v1825 = vld [vmem:[%s745 + $0x50] sm:$0x1]
  %v1826 = vsel %vm748, %v1255, %v1825
  %1827 = vst [vmem:[%s745 + $0x50] sm:$0x1] %v1826
  %v1828 = vld [vmem:[%s745 + $0x54] sm:$0xf]
  %v1829 = vsel %vm1778, %v1262, %v1828
  %1830 = vst [vmem:[%s745 + $0x54] sm:$0xf] %v1829
  %1831 = vst.msk [vmem:[%s745 + $0x58] sm:$0xf] %vm730, %v1271
  %v1832 = vld [vmem:[%s745 + $0x5c] sm:$0x1]
  %v1833 = vsel %vm748, %v1272, %v1832
  %1834 = vst [vmem:[%s745 + $0x5c] sm:$0x1] %v1833
  %v1835 = vld [vmem:[%s745 + $0x60] sm:$0xf]
  %v1836 = vsel %vm1778, %v1279, %v1835
  %1837 = vst [vmem:[%s745 + $0x60] sm:$0xf] %v1836
  %1838 = vst.msk [vmem:[%s745 + $0x64] sm:$0xf] %vm730, %v1288
  %v1839 = vld [vmem:[%s745 + $0x68] sm:$0x1]
  %v1840 = vsel %vm748, %v1289, %v1839
  %1841 = vst [vmem:[%s745 + $0x68] sm:$0x1] %v1840
  %v1842 = vld [vmem:[%s745 + $0x6c] sm:$0xf]
  %v1843 = vsel %vm1778, %v1296, %v1842
  %1844 = vst [vmem:[%s745 + $0x6c] sm:$0xf] %v1843
  %1845 = vst.msk [vmem:[%s745 + $0x70] sm:$0xf] %vm730, %v1305
  %v1846 = vld [vmem:[%s745 + $0x74] sm:$0x1]
  %v1847 = vsel %vm748, %v1306, %v1846
  %1848 = vst [vmem:[%s745 + $0x74] sm:$0x1] %v1847
  %v1849 = vld [vmem:[%s745 + $0x78] sm:$0xf]
  %v1850 = vsel %vm1778, %v1313, %v1849
  %1851 = vst [vmem:[%s745 + $0x78] sm:$0xf] %v1850
  %1852 = vst.msk [vmem:[%s745 + $0x7c] sm:$0xf] %vm730, %v1322
  %v1853 = vld [vmem:[%s745 + $0x80] sm:$0x1]
  %v1854 = vsel %vm748, %v1323, %v1853
  %1855 = vst [vmem:[%s745 + $0x80] sm:$0x1] %v1854
  %v1856 = vld [vmem:[%s745 + $0x84] sm:$0xf]
  %v1857 = vsel %vm1778, %v1330, %v1856
  %1858 = vst [vmem:[%s745 + $0x84] sm:$0xf] %v1857
  %1859 = vst.msk [vmem:[%s745 + $0x88] sm:$0xf] %vm730, %v1339
  %v1860 = vld [vmem:[%s745 + $0x8c] sm:$0x1]
  %v1861 = vsel %vm748, %v1340, %v1860
  %1862 = vst [vmem:[%s745 + $0x8c] sm:$0x1] %v1861
  %v1863 = vld [vmem:[%s745 + $0x90] sm:$0xf]
  %v1864 = vsel %vm1778, %v1347, %v1863
  %1865 = vst [vmem:[%s745 + $0x90] sm:$0xf] %v1864
  %1866 = vst.msk [vmem:[%s745 + $0x94] sm:$0xf] %vm730, %v1356
  %v1867 = vld [vmem:[%s745 + $0x98] sm:$0x1]
  %v1868 = vsel %vm748, %v1357, %v1867
  %1869 = vst [vmem:[%s745 + $0x98] sm:$0x1] %v1868
  %v1870 = vld [vmem:[%s745 + $0x9c] sm:$0xf]
  %v1871 = vsel %vm1778, %v1364, %v1870
  %1872 = vst [vmem:[%s745 + $0x9c] sm:$0xf] %v1871
  %1873 = vst.msk [vmem:[%s745 + $0xa0] sm:$0xf] %vm730, %v1373
  %v1874 = vld [vmem:[%s745 + $0xa4] sm:$0x1]
  %v1875 = vsel %vm748, %v1374, %v1874
  %1876 = vst [vmem:[%s745 + $0xa4] sm:$0x1] %v1875
  %v1877 = vld [vmem:[%s745 + $0xa8] sm:$0xf]
  %v1878 = vsel %vm1778, %v1381, %v1877
  %1879 = vst [vmem:[%s745 + $0xa8] sm:$0xf] %v1878
  %1880 = vst.msk [vmem:[%s745 + $0xac] sm:$0xf] %vm730, %v1390
  %v1881 = vld [vmem:[%s745 + $0xb0] sm:$0x1]
  %v1882 = vsel %vm748, %v1391, %v1881
  %1883 = vst [vmem:[%s745 + $0xb0] sm:$0x1] %v1882
  %v1884 = vld [vmem:[%s745 + $0xb4] sm:$0xf]
  %v1885 = vsel %vm1778, %v1398, %v1884
  %1886 = vst [vmem:[%s745 + $0xb4] sm:$0xf] %v1885
  %1887 = vst.msk [vmem:[%s745 + $0xb8] sm:$0xf] %vm730, %v1407
  %v1888 = vld [vmem:[%s745 + $0xbc] sm:$0x1]
  %v1889 = vsel %vm748, %v1408, %v1888
  %1890 = vst [vmem:[%s745 + $0xbc] sm:$0x1] %v1889
  %v1891 = vld [vmem:[%s745 + $0xd8] sm:$0xf]
  %v1892 = vsel %vm1778, %v1415, %v1891
  %1893 = vst [vmem:[%s745 + $0xd8] sm:$0xf] %v1892
  %1894 = vst.msk [vmem:[%s745 + $0xdc] sm:$0xf] %vm730, %v1424
  %v1895 = vld [vmem:[%s745 + $0xe0] sm:$0x1]
  %v1896 = vsel %vm748, %v1425, %v1895
  %1897 = vst [vmem:[%s745 + $0xe0] sm:$0x1] %v1896
  %v1898 = vld [vmem:[%s745 + $0xe4] sm:$0xf]
  %v1899 = vsel %vm1778, %v1432, %v1898
  %1900 = vst [vmem:[%s745 + $0xe4] sm:$0xf] %v1899
  %1901 = vst.msk [vmem:[%s745 + $0xe8] sm:$0xf] %vm730, %v1441
  %v1902 = vld [vmem:[%s745 + $0xec] sm:$0x1]
  %v1903 = vsel %vm748, %v1442, %v1902
  %1904 = vst [vmem:[%s745 + $0xec] sm:$0x1] %v1903
  %v1905 = vld [vmem:[%s745 + $0xf0] sm:$0xf]
  %v1906 = vsel %vm1778, %v1449, %v1905
  %1907 = vst [vmem:[%s745 + $0xf0] sm:$0xf] %v1906
  %1908 = vst.msk [vmem:[%s745 + $0xf4] sm:$0xf] %vm730, %v1458
  %v1909 = vld [vmem:[%s745 + $0xf8] sm:$0x1]
  %v1910 = vsel %vm748, %v1459, %v1909
  %1911 = vst [vmem:[%s745 + $0xf8] sm:$0x1] %v1910
  %v1912 = vld [vmem:[%s745 + $0xfc] sm:$0xf]
  %v1913 = vsel %vm1778, %v1466, %v1912
  %1914 = vst [vmem:[%s745 + $0xfc] sm:$0xf] %v1913
  %1915 = vst.msk [vmem:[%s745 + $0x100] sm:$0xf] %vm730, %v1475
  %v1916 = vld [vmem:[%s745 + $0x104] sm:$0x1]
  %v1917 = vsel %vm748, %v1476, %v1916
  %1918 = vst [vmem:[%s745 + $0x104] sm:$0x1] %v1917
  %v1919 = vld [vmem:[%s745 + $0x108] sm:$0xf]
  %v1920 = vsel %vm1778, %v1483, %v1919
  %1921 = vst [vmem:[%s745 + $0x108] sm:$0xf] %v1920
  %1922 = vst.msk [vmem:[%s745 + $0x10c] sm:$0xf] %vm730, %v1492
  %v1923 = vld [vmem:[%s745 + $0x110] sm:$0x1]
  %v1924 = vsel %vm748, %v1493, %v1923
  %1925 = vst [vmem:[%s745 + $0x110] sm:$0x1] %v1924
  %v1926 = vld [vmem:[%s745 + $0x114] sm:$0xf]
  %v1927 = vsel %vm1778, %v1500, %v1926
  %1928 = vst [vmem:[%s745 + $0x114] sm:$0xf] %v1927
  %1929 = vst.msk [vmem:[%s745 + $0x118] sm:$0xf] %vm730, %v1509
  %v1930 = vld [vmem:[%s745 + $0x11c] sm:$0x1]
  %v1931 = vsel %vm748, %v1510, %v1930
  %1932 = vst [vmem:[%s745 + $0x11c] sm:$0x1] %v1931
  %v1933 = vld [vmem:[%s745 + $0x120] sm:$0xf]
  %v1934 = vsel %vm1778, %v1517, %v1933
  %1935 = vst [vmem:[%s745 + $0x120] sm:$0xf] %v1934
  %1936 = vst.msk [vmem:[%s745 + $0x124] sm:$0xf] %vm730, %v1526
  %v1937 = vld [vmem:[%s745 + $0x128] sm:$0x1]
  %v1938 = vsel %vm748, %v1527, %v1937
  %1939 = vst [vmem:[%s745 + $0x128] sm:$0x1] %v1938
  %v1940 = vld [vmem:[%s745 + $0x12c] sm:$0xf]
  %v1941 = vsel %vm1778, %v1534, %v1940
  %1942 = vst [vmem:[%s745 + $0x12c] sm:$0xf] %v1941
  %1943 = vst.msk [vmem:[%s745 + $0x130] sm:$0xf] %vm730, %v1543
  %v1944 = vld [vmem:[%s745 + $0x134] sm:$0x1]
  %v1945 = vsel %vm748, %v1544, %v1944
  %1946 = vst [vmem:[%s745 + $0x134] sm:$0x1] %v1945
  %v1947 = vld [vmem:[%s745 + $0x138] sm:$0xf]
  %v1948 = vsel %vm1778, %v1551, %v1947
  %1949 = vst [vmem:[%s745 + $0x138] sm:$0xf] %v1948
  %1950 = vst.msk [vmem:[%s745 + $0x13c] sm:$0xf] %vm730, %v1560
  %v1951 = vld [vmem:[%s745 + $0x140] sm:$0x1]
  %v1952 = vsel %vm748, %v1561, %v1951
  %1953 = vst [vmem:[%s745 + $0x140] sm:$0x1] %v1952
  %v1954 = vld [vmem:[%s745 + $0x144] sm:$0xf]
  %v1955 = vsel %vm1778, %v1568, %v1954
  %1956 = vst [vmem:[%s745 + $0x144] sm:$0xf] %v1955
  %1957 = vst.msk [vmem:[%s745 + $0x148] sm:$0xf] %vm730, %v1577
  %v1958 = vld [vmem:[%s745 + $0x14c] sm:$0x1]
  %v1959 = vsel %vm748, %v1578, %v1958
  %1960 = vst [vmem:[%s745 + $0x14c] sm:$0x1] %v1959
  %v1961 = vld [vmem:[%s745 + $0x150] sm:$0xf]
  %v1962 = vsel %vm1778, %v1585, %v1961
  %1963 = vst [vmem:[%s745 + $0x150] sm:$0xf] %v1962
  %1964 = vst.msk [vmem:[%s745 + $0x154] sm:$0xf] %vm730, %v1594
  %v1965 = vld [vmem:[%s745 + $0x158] sm:$0x1]
  %v1966 = vsel %vm748, %v1595, %v1965
  %1967 = vst [vmem:[%s745 + $0x158] sm:$0x1] %v1966
  %v1968 = vld [vmem:[%s745 + $0x15c] sm:$0xf]
  %v1969 = vsel %vm1778, %v1602, %v1968
  %1970 = vst [vmem:[%s745 + $0x15c] sm:$0xf] %v1969
  %1971 = vst.msk [vmem:[%s745 + $0x160] sm:$0xf] %vm730, %v1611
  %v1972 = vld [vmem:[%s745 + $0x164] sm:$0x1]
  %v1973 = vsel %vm748, %v1612, %v1972
  %1974 = vst [vmem:[%s745 + $0x164] sm:$0x1] %v1973
  %v1975 = vld [vmem:[%s745 + $0x168] sm:$0xf]
  %v1976 = vsel %vm1778, %v1619, %v1975
  %1977 = vst [vmem:[%s745 + $0x168] sm:$0xf] %v1976
  %1978 = vst.msk [vmem:[%s745 + $0x16c] sm:$0xf] %vm730, %v1628
  %v1979 = vld [vmem:[%s745 + $0x170] sm:$0x1]
  %v1980 = vsel %vm748, %v1629, %v1979
  %1981 = vst [vmem:[%s745 + $0x170] sm:$0x1] %v1980
  %v1982 = vld [vmem:[%s745 + $0x174] sm:$0xf]
  %v1983 = vsel %vm1778, %v1636, %v1982
  %1984 = vst [vmem:[%s745 + $0x174] sm:$0xf] %v1983
  %1985 = vst.msk [vmem:[%s745 + $0x178] sm:$0xf] %vm730, %v1645
  %v1986 = vld [vmem:[%s745 + $0x17c] sm:$0x1]
  %v1987 = vsel %vm748, %v1646, %v1986
  %1988 = vst [vmem:[%s745 + $0x17c] sm:$0x1] %v1987
  %v1989 = vld [vmem:[%s745 + $0x180] sm:$0xf]
  %v1990 = vsel %vm1778, %v1653, %v1989
  %1991 = vst [vmem:[%s745 + $0x180] sm:$0xf] %v1990
  %1992 = vst.msk [vmem:[%s745 + $0x184] sm:$0xf] %vm730, %v1662
  %v1993 = vld [vmem:[%s745 + $0x188] sm:$0x1]
  %v1994 = vsel %vm748, %v1663, %v1993
  %1995 = vst [vmem:[%s745 + $0x188] sm:$0x1] %v1994
  %v1996 = vld [vmem:[%s745 + $0x18c] sm:$0xf]
  %v1997 = vsel %vm1778, %v1670, %v1996
  %1998 = vst [vmem:[%s745 + $0x18c] sm:$0xf] %v1997
  %1999 = vst.msk [vmem:[%s745 + $0x190] sm:$0xf] %vm730, %v1679
  %v2000 = vld [vmem:[%s745 + $0x194] sm:$0x1]
  %v2001 = vsel %vm748, %v1680, %v2000
  %2002 = vst [vmem:[%s745 + $0x194] sm:$0x1] %v2001
  %v2003 = vld [vmem:[#allocation2] sm:$0xf]
  %v2004 = vld [vmem:[#allocation2 + $0x4] sm:$0xf]
  %v2005 = vld [vmem:[#allocation2 + $0xc] sm:$0xf]
  %v2006 = vld [vmem:[#allocation2 + $0x10] sm:$0xf]
  %v2007 = vld [vmem:[#allocation2 + $0x18] sm:$0xf]
  %v2008 = vld [vmem:[#allocation2 + $0x1c] sm:$0xf]
  %v2009 = vld [vmem:[#allocation2 + $0x24] sm:$0xf]
  %v2010 = vld [vmem:[#allocation2 + $0x28] sm:$0xf]
  %v2011 = vld [vmem:[#allocation2 + $0x30] sm:$0xf]
  %v2012 = vld [vmem:[#allocation2 + $0x34] sm:$0xf]
  %v2013 = vld [vmem:[#allocation2 + $0x3c] sm:$0xf]
  %v2014 = vld [vmem:[#allocation2 + $0x40] sm:$0xf]
  %v2015 = vld [vmem:[#allocation2 + $0x48] sm:$0xf]
  %v2016 = vld [vmem:[#allocation2 + $0x4c] sm:$0xf]
  %v2017 = vld [vmem:[#allocation2 + $0x54] sm:$0xf]
  %v2018 = vld [vmem:[#allocation2 + $0x58] sm:$0xf]
  %v2019 = vld [vmem:[#allocation2 + $0x60] sm:$0xf]
  %v2020 = vld [vmem:[#allocation2 + $0x64] sm:$0xf]
  %v2021 = vld [vmem:[#allocation2 + $0x6c] sm:$0xf]
  %v2022 = vld [vmem:[#allocation2 + $0x70] sm:$0xf]
  %v2023 = vld [vmem:[#allocation2 + $0x78] sm:$0xf]
  %v2024 = vld [vmem:[#allocation2 + $0x7c] sm:$0xf]
  %v2025 = vld [vmem:[#allocation2 + $0x84] sm:$0xf]
  %v2026 = vld [vmem:[#allocation2 + $0x88] sm:$0xf]
  %v2027 = vld [vmem:[#allocation2 + $0x90] sm:$0xf]
  %v2028 = vld [vmem:[#allocation2 + $0x94] sm:$0xf]
  %v2029 = vld [vmem:[#allocation2 + $0x9c] sm:$0xf]
  %v2030 = vld [vmem:[#allocation2 + $0xa0] sm:$0xf]
  %v2031 = vld [vmem:[#allocation2 + $0xa8] sm:$0xf]
  %v2032 = vld [vmem:[#allocation2 + $0xac] sm:$0xf]
  %v2033 = vld [vmem:[#allocation2 + $0xb4] sm:$0xf]
  %v2034 = vld [vmem:[#allocation2 + $0xb8] sm:$0xf]
  %v2035 = vld [vmem:[#allocation2 + $0xd8] sm:$0xf]
  %v2036 = vld [vmem:[#allocation2 + $0xdc] sm:$0xf]
  %v2037 = vld [vmem:[#allocation2 + $0xe4] sm:$0xf]
  %v2038 = vld [vmem:[#allocation2 + $0xe8] sm:$0xf]
  %v2039 = vld [vmem:[#allocation2 + $0xf0] sm:$0xf]
  %v2040 = vld [vmem:[#allocation2 + $0xf4] sm:$0xf]
  %v2041 = vld [vmem:[#allocation2 + $0xfc] sm:$0xf]
  %v2042 = vld [vmem:[#allocation2 + $0x100] sm:$0xf]
  %v2043 = vld [vmem:[#allocation2 + $0x108] sm:$0xf]
  %v2044 = vld [vmem:[#allocation2 + $0x10c] sm:$0xf]
  %v2045 = vld [vmem:[#allocation2 + $0x114] sm:$0xf]
  %v2046 = vld [vmem:[#allocation2 + $0x118] sm:$0xf]
  %v2047 = vld [vmem:[#allocation2 + $0x120] sm:$0xf]
  %v2048 = vld [vmem:[#allocation2 + $0x124] sm:$0xf]
  %v2049 = vld [vmem:[#allocation2 + $0x12c] sm:$0xf]
  %v2050 = vld [vmem:[#allocation2 + $0x130] sm:$0xf]
  %v2051 = vld [vmem:[#allocation2 + $0x138] sm:$0xf]
  %v2052 = vld [vmem:[#allocation2 + $0x13c] sm:$0xf]
  %v2053 = vld [vmem:[#allocation2 + $0x144] sm:$0xf]
  %v2054 = vld [vmem:[#allocation2 + $0x148] sm:$0xf]
  %v2055 = vld [vmem:[#allocation2 + $0x150] sm:$0xf]
  %v2056 = vld [vmem:[#allocation2 + $0x154] sm:$0xf]
  %v2057 = vld [vmem:[#allocation2 + $0x15c] sm:$0xf]
  %v2058 = vld [vmem:[#allocation2 + $0x160] sm:$0xf]
  %v2059 = vld [vmem:[#allocation2 + $0x168] sm:$0xf]
  %v2060 = vld [vmem:[#allocation2 + $0x16c] sm:$0xf]
  %v2061 = vld [vmem:[#allocation2 + $0x174] sm:$0xf]
  %v2062 = vld [vmem:[#allocation2 + $0x178] sm:$0xf]
  %v2063 = vld [vmem:[#allocation2 + $0x180] sm:$0xf]
  %v2064 = vld [vmem:[#allocation2 + $0x184] sm:$0xf]
  %v2065 = vld [vmem:[#allocation2 + $0x18c] sm:$0xf]
  %v2066 = vld [vmem:[#allocation2 + $0x190] sm:$0xf]
  %v2067 = vld [vmem:[#allocation2 + $0x8] sm:$0x1]
  %v2068 = vld [vmem:[#allocation2 + $0x14] sm:$0x1]
  %v2069 = vld [vmem:[#allocation2 + $0x20] sm:$0x1]
  %v2070 = vld [vmem:[#allocation2 + $0x2c] sm:$0x1]
  %v2071 = vld [vmem:[#allocation2 + $0x38] sm:$0x1]
  %v2072 = vld [vmem:[#allocation2 + $0x44] sm:$0x1]
  %v2073 = vld [vmem:[#allocation2 + $0x50] sm:$0x1]
  %v2074 = vld [vmem:[#allocation2 + $0x5c] sm:$0x1]
  %v2075 = vld [vmem:[#allocation2 + $0x68] sm:$0x1]
  %v2076 = vld [vmem:[#allocation2 + $0x74] sm:$0x1]
  %v2077 = vld [vmem:[#allocation2 + $0x80] sm:$0x1]
  %v2078 = vld [vmem:[#allocation2 + $0x8c] sm:$0x1]
  %v2079 = vld [vmem:[#allocation2 + $0x98] sm:$0x1]
  %v2080 = vld [vmem:[#allocation2 + $0xa4] sm:$0x1]
  %v2081 = vld [vmem:[#allocation2 + $0xb0] sm:$0x1]
  %v2082 = vld [vmem:[#allocation2 + $0xbc] sm:$0x1]
  %v2083 = vld [vmem:[#allocation2 + $0xe0] sm:$0x1]
  %v2084 = vld [vmem:[#allocation2 + $0xec] sm:$0x1]
  %v2085 = vld [vmem:[#allocation2 + $0xf8] sm:$0x1]
  %v2086 = vld [vmem:[#allocation2 + $0x104] sm:$0x1]
  %v2087 = vld [vmem:[#allocation2 + $0x110] sm:$0x1]
  %v2088 = vld [vmem:[#allocation2 + $0x11c] sm:$0x1]
  %v2089 = vld [vmem:[#allocation2 + $0x128] sm:$0x1]
  %v2090 = vld [vmem:[#allocation2 + $0x134] sm:$0x1]
  %v2091 = vld [vmem:[#allocation2 + $0x140] sm:$0x1]
  %v2092 = vld [vmem:[#allocation2 + $0x14c] sm:$0x1]
  %v2093 = vld [vmem:[#allocation2 + $0x158] sm:$0x1]
  %v2094 = vld [vmem:[#allocation2 + $0x164] sm:$0x1]
  %v2095 = vld [vmem:[#allocation2 + $0x170] sm:$0x1]
  %v2096 = vld [vmem:[#allocation2 + $0x17c] sm:$0x1]
  %v2097 = vld [vmem:[#allocation2 + $0x188] sm:$0x1]
  %v2098 = vld [vmem:[#allocation2 + $0x194] sm:$0x1]
  %v2163 = vunpack.c.l.b16 %v2003
  %v2164 = vunpack.c.l.b16 %v2004
  %v2165 = vunpack.c.l.b16 %v2005
  %v2166 = vunpack.c.l.b16 %v2006
  %v2167 = vunpack.c.l.b16 %v2007
  %v2168 = vunpack.c.l.b16 %v2008
  %v2169 = vunpack.c.l.b16 %v2009
  %v2170 = vunpack.c.l.b16 %v2010
  %v2171 = vunpack.c.l.b16 %v2011
  %v2172 = vunpack.c.l.b16 %v2012
  %v2173 = vunpack.c.l.b16 %v2013
  %v2174 = vunpack.c.l.b16 %v2014
  %v2175 = vunpack.c.l.b16 %v2015
  %v2176 = vunpack.c.l.b16 %v2016
  %v2177 = vunpack.c.l.b16 %v2017
  %v2178 = vunpack.c.l.b16 %v2018
  %v2179 = vunpack.c.l.b16 %v2019
  %v2180 = vunpack.c.l.b16 %v2020
  %v2181 = vunpack.c.l.b16 %v2021
  %v2182 = vunpack.c.l.b16 %v2022
  %v2183 = vunpack.c.l.b16 %v2023
  %v2184 = vunpack.c.l.b16 %v2024
  %v2185 = vunpack.c.l.b16 %v2025
  %v2186 = vunpack.c.l.b16 %v2026
  %v2187 = vunpack.c.l.b16 %v2027
  %v2188 = vunpack.c.l.b16 %v2028
  %v2189 = vunpack.c.l.b16 %v2029
  %v2190 = vunpack.c.l.b16 %v2030
  %v2191 = vunpack.c.l.b16 %v2031
  %v2192 = vunpack.c.l.b16 %v2032
  %v2193 = vunpack.c.l.b16 %v2033
  %v2194 = vunpack.c.l.b16 %v2034
  %v2195 = vunpack.c.l.b16 %v2035
  %v2196 = vunpack.c.l.b16 %v2036
  %v2197 = vunpack.c.l.b16 %v2037
  %v2198 = vunpack.c.l.b16 %v2038
  %v2199 = vunpack.c.l.b16 %v2039
  %v2200 = vunpack.c.l.b16 %v2040
  %v2201 = vunpack.c.l.b16 %v2041
  %v2202 = vunpack.c.l.b16 %v2042
  %v2203 = vunpack.c.l.b16 %v2043
  %v2204 = vunpack.c.l.b16 %v2044
  %v2205 = vunpack.c.l.b16 %v2045
  %v2206 = vunpack.c.l.b16 %v2046
  %v2207 = vunpack.c.l.b16 %v2047
  %v2208 = vunpack.c.l.b16 %v2048
  %v2209 = vunpack.c.l.b16 %v2049
  %v2210 = vunpack.c.l.b16 %v2050
  %v2211 = vunpack.c.l.b16 %v2051
  %v2212 = vunpack.c.l.b16 %v2052
  %v2213 = vunpack.c.l.b16 %v2053
  %v2214 = vunpack.c.l.b16 %v2054
  %v2215 = vunpack.c.l.b16 %v2055
  %v2216 = vunpack.c.l.b16 %v2056
  %v2217 = vunpack.c.l.b16 %v2057
  %v2218 = vunpack.c.l.b16 %v2058
  %v2219 = vunpack.c.l.b16 %v2059
  %v2220 = vunpack.c.l.b16 %v2060
  %v2221 = vunpack.c.l.b16 %v2061
  %v2222 = vunpack.c.l.b16 %v2062
  %v2223 = vunpack.c.l.b16 %v2063
  %v2224 = vunpack.c.l.b16 %v2064
  %v2225 = vunpack.c.l.b16 %v2065
  %v2226 = vunpack.c.l.b16 %v2066
  %v2227 = vpack.c.b16 %v2164, %v2163
  %v2228 = vpack.c.b16 %v2166, %v2165
  %v2229 = vpack.c.b16 %v2168, %v2167
  %v2230 = vpack.c.b16 %v2170, %v2169
  %v2231 = vpack.c.b16 %v2172, %v2171
  %v2232 = vpack.c.b16 %v2174, %v2173
  %v2233 = vpack.c.b16 %v2176, %v2175
  %v2234 = vpack.c.b16 %v2178, %v2177
  %v2235 = vpack.c.b16 %v2180, %v2179
  %v2236 = vpack.c.b16 %v2182, %v2181
  %v2237 = vpack.c.b16 %v2184, %v2183
  %v2238 = vpack.c.b16 %v2186, %v2185
  %v2239 = vpack.c.b16 %v2188, %v2187
  %v2240 = vpack.c.b16 %v2190, %v2189
  %v2241 = vpack.c.b16 %v2192, %v2191
  %v2242 = vpack.c.b16 %v2194, %v2193
  %v2243 = vpack.c.b16 %v2196, %v2195
  %v2244 = vpack.c.b16 %v2198, %v2197
  %v2245 = vpack.c.b16 %v2200, %v2199
  %v2246 = vpack.c.b16 %v2202, %v2201
  %v2247 = vpack.c.b16 %v2204, %v2203
  %v2248 = vpack.c.b16 %v2206, %v2205
  %v2249 = vpack.c.b16 %v2208, %v2207
  %v2250 = vpack.c.b16 %v2210, %v2209
  %v2251 = vpack.c.b16 %v2212, %v2211
  %v2252 = vpack.c.b16 %v2214, %v2213
  %v2253 = vpack.c.b16 %v2216, %v2215
  %v2254 = vpack.c.b16 %v2218, %v2217
  %v2255 = vpack.c.b16 %v2220, %v2219
  %v2256 = vpack.c.b16 %v2222, %v2221
  %v2257 = vpack.c.b16 %v2224, %v2223
  %v2258 = vpack.c.b16 %v2226, %v2225
  %v2291 = vunpack.c.l.b16 %v2067
  %v2292 = vunpack.c.l.b16 %v2068
  %v2293 = vunpack.c.l.b16 %v2069
  %v2294 = vunpack.c.l.b16 %v2070
  %v2295 = vunpack.c.l.b16 %v2071
  %v2296 = vunpack.c.l.b16 %v2072
  %v2297 = vunpack.c.l.b16 %v2073
  %v2298 = vunpack.c.l.b16 %v2074
  %v2299 = vunpack.c.l.b16 %v2075
  %v2300 = vunpack.c.l.b16 %v2076
  %v2301 = vunpack.c.l.b16 %v2077
  %v2302 = vunpack.c.l.b16 %v2078
  %v2303 = vunpack.c.l.b16 %v2079
  %v2304 = vunpack.c.l.b16 %v2080
  %v2305 = vunpack.c.l.b16 %v2081
  %v2306 = vunpack.c.l.b16 %v2082
  %v2307 = vunpack.c.l.b16 %v2083
  %v2308 = vunpack.c.l.b16 %v2084
  %v2309 = vunpack.c.l.b16 %v2085
  %v2310 = vunpack.c.l.b16 %v2086
  %v2311 = vunpack.c.l.b16 %v2087
  %v2312 = vunpack.c.l.b16 %v2088
  %v2313 = vunpack.c.l.b16 %v2089
  %v2314 = vunpack.c.l.b16 %v2090
  %v2315 = vunpack.c.l.b16 %v2091
  %v2316 = vunpack.c.l.b16 %v2092
  %v2317 = vunpack.c.l.b16 %v2093
  %v2318 = vunpack.c.l.b16 %v2094
  %v2319 = vunpack.c.l.b16 %v2095
  %v2320 = vunpack.c.l.b16 %v2096
  %v2321 = vunpack.c.l.b16 %v2097
  %v2322 = vunpack.c.l.b16 %v2098
  %v2323 = vpack.c.b16 %v2291, %v2291
  %v2324 = vpack.c.b16 %v2292, %v2292
  %v2325 = vpack.c.b16 %v2293, %v2293
  %v2326 = vpack.c.b16 %v2294, %v2294
  %v2327 = vpack.c.b16 %v2295, %v2295
  %v2328 = vpack.c.b16 %v2296, %v2296
  %v2329 = vpack.c.b16 %v2297, %v2297
  %v2330 = vpack.c.b16 %v2298, %v2298
  %v2331 = vpack.c.b16 %v2299, %v2299
  %v2332 = vpack.c.b16 %v2300, %v2300
  %v2333 = vpack.c.b16 %v2301, %v2301
  %v2334 = vpack.c.b16 %v2302, %v2302
  %v2335 = vpack.c.b16 %v2303, %v2303
  %v2336 = vpack.c.b16 %v2304, %v2304
  %v2337 = vpack.c.b16 %v2305, %v2305
  %v2338 = vpack.c.b16 %v2306, %v2306
  %v2339 = vpack.c.b16 %v2307, %v2307
  %v2340 = vpack.c.b16 %v2308, %v2308
  %v2341 = vpack.c.b16 %v2309, %v2309
  %v2342 = vpack.c.b16 %v2310, %v2310
  %v2343 = vpack.c.b16 %v2311, %v2311
  %v2344 = vpack.c.b16 %v2312, %v2312
  %v2345 = vpack.c.b16 %v2313, %v2313
  %v2346 = vpack.c.b16 %v2314, %v2314
  %v2347 = vpack.c.b16 %v2315, %v2315
  %v2348 = vpack.c.b16 %v2316, %v2316
  %v2349 = vpack.c.b16 %v2317, %v2317
  %v2350 = vpack.c.b16 %v2318, %v2318
  %v2351 = vpack.c.b16 %v2319, %v2319
  %v2352 = vpack.c.b16 %v2320, %v2320
  %v2353 = vpack.c.b16 %v2321, %v2321
  %v2354 = vpack.c.b16 %v2322, %v2322
  %vm2355 = vsmask.f32 7424
  %v2357 = vshrl.u32 %v2227, 16
  %v2359 = vshll.u32 %v2227, 16
  %v2361 = vrot.slane %v2359, 1
  %v2362 = vor.u32 %v2357, %v2361
  %v2364 = vshll.u32 %v2323, 16
  %v2366 = vrot.slane %v2364, 1
  %v2367 = vsel %vm2355, %v2362, %v2366
  %v2369 = vshrl.u32 %v2228, 16
  %v2371 = vshll.u32 %v2228, 16
  %v2373 = vrot.slane %v2371, 1
  %v2374 = vor.u32 %v2369, %v2373
  %v2376 = vshll.u32 %v2324, 16
  %v2378 = vrot.slane %v2376, 1
  %v2379 = vsel %vm2355, %v2374, %v2378
  %v2381 = vshrl.u32 %v2229, 16
  %v2383 = vshll.u32 %v2229, 16
  %v2385 = vrot.slane %v2383, 1
  %v2386 = vor.u32 %v2381, %v2385
  %v2388 = vshll.u32 %v2325, 16
  %v2390 = vrot.slane %v2388, 1
  %v2391 = vsel %vm2355, %v2386, %v2390
  %v2393 = vshrl.u32 %v2230, 16
  %v2395 = vshll.u32 %v2230, 16
  %v2397 = vrot.slane %v2395, 1
  %v2398 = vor.u32 %v2393, %v2397
  %v2400 = vshll.u32 %v2326, 16
  %v2402 = vrot.slane %v2400, 1
  %v2403 = vsel %vm2355, %v2398, %v2402
  %v2405 = vshrl.u32 %v2231, 16
  %v2407 = vshll.u32 %v2231, 16
  %v2409 = vrot.slane %v2407, 1
  %v2410 = vor.u32 %v2405, %v2409
  %v2412 = vshll.u32 %v2327, 16
  %v2414 = vrot.slane %v2412, 1
  %v2415 = vsel %vm2355, %v2410, %v2414
  %v2417 = vshrl.u32 %v2232, 16
  %v2419 = vshll.u32 %v2232, 16
  %v2421 = vrot.slane %v2419, 1
  %v2422 = vor.u32 %v2417, %v2421
  %v2424 = vshll.u32 %v2328, 16
  %v2426 = vrot.slane %v2424, 1
  %v2427 = vsel %vm2355, %v2422, %v2426
  %v2429 = vshrl.u32 %v2233, 16
  %v2431 = vshll.u32 %v2233, 16
  %v2433 = vrot.slane %v2431, 1
  %v2434 = vor.u32 %v2429, %v2433
  %v2436 = vshll.u32 %v2329, 16
  %v2438 = vrot.slane %v2436, 1
  %v2439 = vsel %vm2355, %v2434, %v2438
  %v2441 = vshrl.u32 %v2234, 16
  %v2443 = vshll.u32 %v2234, 16
  %v2445 = vrot.slane %v2443, 1
  %v2446 = vor.u32 %v2441, %v2445
  %v2448 = vshll.u32 %v2330, 16
  %v2450 = vrot.slane %v2448, 1
  %v2451 = vsel %vm2355, %v2446, %v2450
  %v2453 = vshrl.u32 %v2235, 16
  %v2455 = vshll.u32 %v2235, 16
  %v2457 = vrot.slane %v2455, 1
  %v2458 = vor.u32 %v2453, %v2457
  %v2460 = vshll.u32 %v2331, 16
  %v2462 = vrot.slane %v2460, 1
  %v2463 = vsel %vm2355, %v2458, %v2462
  %v2465 = vshrl.u32 %v2236, 16
  %v2467 = vshll.u32 %v2236, 16
  %v2469 = vrot.slane %v2467, 1
  %v2470 = vor.u32 %v2465, %v2469
  %v2472 = vshll.u32 %v2332, 16
  %v2474 = vrot.slane %v2472, 1
  %v2475 = vsel %vm2355, %v2470, %v2474
  %v2477 = vshrl.u32 %v2237, 16
  %v2479 = vshll.u32 %v2237, 16
  %v2481 = vrot.slane %v2479, 1
  %v2482 = vor.u32 %v2477, %v2481
  %v2484 = vshll.u32 %v2333, 16
  %v2486 = vrot.slane %v2484, 1
  %v2487 = vsel %vm2355, %v2482, %v2486
  %v2489 = vshrl.u32 %v2238, 16
  %v2491 = vshll.u32 %v2238, 16
  %v2493 = vrot.slane %v2491, 1
  %v2494 = vor.u32 %v2489, %v2493
  %v2496 = vshll.u32 %v2334, 16
  %v2498 = vrot.slane %v2496, 1
  %v2499 = vsel %vm2355, %v2494, %v2498
  %v2501 = vshrl.u32 %v2239, 16
  %v2503 = vshll.u32 %v2239, 16
  %v2505 = vrot.slane %v2503, 1
  %v2506 = vor.u32 %v2501, %v2505
  %v2508 = vshll.u32 %v2335, 16
  %v2510 = vrot.slane %v2508, 1
  %v2511 = vsel %vm2355, %v2506, %v2510
  %v2513 = vshrl.u32 %v2240, 16
  %v2515 = vshll.u32 %v2240, 16
  %v2517 = vrot.slane %v2515, 1
  %v2518 = vor.u32 %v2513, %v2517
  %v2520 = vshll.u32 %v2336, 16
  %v2522 = vrot.slane %v2520, 1
  %v2523 = vsel %vm2355, %v2518, %v2522
  %v2525 = vshrl.u32 %v2241, 16
  %v2527 = vshll.u32 %v2241, 16
  %v2529 = vrot.slane %v2527, 1
  %v2530 = vor.u32 %v2525, %v2529
  %v2532 = vshll.u32 %v2337, 16
  %v2534 = vrot.slane %v2532, 1
  %v2535 = vsel %vm2355, %v2530, %v2534
  %v2537 = vshrl.u32 %v2242, 16
  %v2539 = vshll.u32 %v2242, 16
  %v2541 = vrot.slane %v2539, 1
  %v2542 = vor.u32 %v2537, %v2541
  %v2544 = vshll.u32 %v2338, 16
  %v2546 = vrot.slane %v2544, 1
  %v2547 = vsel %vm2355, %v2542, %v2546
  %v2549 = vshrl.u32 %v2243, 16
  %v2551 = vshll.u32 %v2243, 16
  %v2553 = vrot.slane %v2551, 1
  %v2554 = vor.u32 %v2549, %v2553
  %v2556 = vshll.u32 %v2339, 16
  %v2558 = vrot.slane %v2556, 1
  %v2559 = vsel %vm2355, %v2554, %v2558
  %v2561 = vshrl.u32 %v2244, 16
  %v2563 = vshll.u32 %v2244, 16
  %v2565 = vrot.slane %v2563, 1
  %v2566 = vor.u32 %v2561, %v2565
  %v2568 = vshll.u32 %v2340, 16
  %v2570 = vrot.slane %v2568, 1
  %v2571 = vsel %vm2355, %v2566, %v2570
  %v2573 = vshrl.u32 %v2245, 16
  %v2575 = vshll.u32 %v2245, 16
  %v2577 = vrot.slane %v2575, 1
  %v2578 = vor.u32 %v2573, %v2577
  %v2580 = vshll.u32 %v2341, 16
  %v2582 = vrot.slane %v2580, 1
  %v2583 = vsel %vm2355, %v2578, %v2582
  %v2585 = vshrl.u32 %v2246, 16
  %v2587 = vshll.u32 %v2246, 16
  %v2589 = vrot.slane %v2587, 1
  %v2590 = vor.u32 %v2585, %v2589
  %v2592 = vshll.u32 %v2342, 16
  %v2594 = vrot.slane %v2592, 1
  %v2595 = vsel %vm2355, %v2590, %v2594
  %v2597 = vshrl.u32 %v2247, 16
  %v2599 = vshll.u32 %v2247, 16
  %v2601 = vrot.slane %v2599, 1
  %v2602 = vor.u32 %v2597, %v2601
  %v2604 = vshll.u32 %v2343, 16
  %v2606 = vrot.slane %v2604, 1
  %v2607 = vsel %vm2355, %v2602, %v2606
  %v2609 = vshrl.u32 %v2248, 16
  %v2611 = vshll.u32 %v2248, 16
  %v2613 = vrot.slane %v2611, 1
  %v2614 = vor.u32 %v2609, %v2613
  %v2616 = vshll.u32 %v2344, 16
  %v2618 = vrot.slane %v2616, 1
  %v2619 = vsel %vm2355, %v2614, %v2618
  %v2621 = vshrl.u32 %v2249, 16
  %v2623 = vshll.u32 %v2249, 16
  %v2625 = vrot.slane %v2623, 1
  %v2626 = vor.u32 %v2621, %v2625
  %v2628 = vshll.u32 %v2345, 16
  %v2630 = vrot.slane %v2628, 1
  %v2631 = vsel %vm2355, %v2626, %v2630
  %v2633 = vshrl.u32 %v2250, 16
  %v2635 = vshll.u32 %v2250, 16
  %v2637 = vrot.slane %v2635, 1
  %v2638 = vor.u32 %v2633, %v2637
  %v2640 = vshll.u32 %v2346, 16
  %v2642 = vrot.slane %v2640, 1
  %v2643 = vsel %vm2355, %v2638, %v2642
  %v2645 = vshrl.u32 %v2251, 16
  %v2647 = vshll.u32 %v2251, 16
  %v2649 = vrot.slane %v2647, 1
  %v2650 = vor.u32 %v2645, %v2649
  %v2652 = vshll.u32 %v2347, 16
  %v2654 = vrot.slane %v2652, 1
  %v2655 = vsel %vm2355, %v2650, %v2654
  %v2657 = vshrl.u32 %v2252, 16
  %v2659 = vshll.u32 %v2252, 16
  %v2661 = vrot.slane %v2659, 1
  %v2662 = vor.u32 %v2657, %v2661
  %v2664 = vshll.u32 %v2348, 16
  %v2666 = vrot.slane %v2664, 1
  %v2667 = vsel %vm2355, %v2662, %v2666
  %v2669 = vshrl.u32 %v2253, 16
  %v2671 = vshll.u32 %v2253, 16
  %v2673 = vrot.slane %v2671, 1
  %v2674 = vor.u32 %v2669, %v2673
  %v2676 = vshll.u32 %v2349, 16
  %v2678 = vrot.slane %v2676, 1
  %v2679 = vsel %vm2355, %v2674, %v2678
  %v2681 = vshrl.u32 %v2254, 16
  %v2683 = vshll.u32 %v2254, 16
  %v2685 = vrot.slane %v2683, 1
  %v2686 = vor.u32 %v2681, %v2685
  %v2688 = vshll.u32 %v2350, 16
  %v2690 = vrot.slane %v2688, 1
  %v2691 = vsel %vm2355, %v2686, %v2690
  %v2693 = vshrl.u32 %v2255, 16
  %v2695 = vshll.u32 %v2255, 16
  %v2697 = vrot.slane %v2695, 1
  %v2698 = vor.u32 %v2693, %v2697
  %v2700 = vshll.u32 %v2351, 16
  %v2702 = vrot.slane %v2700, 1
  %v2703 = vsel %vm2355, %v2698, %v2702
  %v2705 = vshrl.u32 %v2256, 16
  %v2707 = vshll.u32 %v2256, 16
  %v2709 = vrot.slane %v2707, 1
  %v2710 = vor.u32 %v2705, %v2709
  %v2712 = vshll.u32 %v2352, 16
  %v2714 = vrot.slane %v2712, 1
  %v2715 = vsel %vm2355, %v2710, %v2714
  %v2717 = vshrl.u32 %v2257, 16
  %v2719 = vshll.u32 %v2257, 16
  %v2721 = vrot.slane %v2719, 1
  %v2722 = vor.u32 %v2717, %v2721
  %v2724 = vshll.u32 %v2353, 16
  %v2726 = vrot.slane %v2724, 1
  %v2727 = vsel %vm2355, %v2722, %v2726
  %v2729 = vshrl.u32 %v2258, 16
  %v2731 = vshll.u32 %v2258, 16
  %v2733 = vrot.slane %v2731, 1
  %v2734 = vor.u32 %v2729, %v2733
  %v2736 = vshll.u32 %v2354, 16
  %v2738 = vrot.slane %v2736, 1
  %v2739 = vsel %vm2355, %v2734, %v2738
  %2740 = vrot.lane.b32.xlu0 %v2367, 64
  %v2741 = vpop.permute.xlu0 %2740
  %2742 = vrot.lane.b32.xlu0 %v2379, 64
  %v2743 = vpop.permute.xlu0 %2742
  %2744 = vrot.lane.b32.xlu0 %v2391, 64
  %v2745 = vpop.permute.xlu0 %2744
  %2746 = vrot.lane.b32.xlu0 %v2403, 64
  %v2747 = vpop.permute.xlu0 %2746
  %2748 = vrot.lane.b32.xlu0 %v2415, 64
  %v2749 = vpop.permute.xlu0 %2748
  %2750 = vrot.lane.b32.xlu0 %v2427, 64
  %v2751 = vpop.permute.xlu0 %2750
  %2752 = vrot.lane.b32.xlu0 %v2439, 64
  %v2753 = vpop.permute.xlu0 %2752
  %2754 = vrot.lane.b32.xlu0 %v2451, 64
  %v2755 = vpop.permute.xlu0 %2754
  %2756 = vrot.lane.b32.xlu0 %v2463, 64
  %v2757 = vpop.permute.xlu0 %2756
  %2758 = vrot.lane.b32.xlu0 %v2475, 64
  %v2759 = vpop.permute.xlu0 %2758
  %2760 = vrot.lane.b32.xlu0 %v2487, 64
  %v2761 = vpop.permute.xlu0 %2760
  %2762 = vrot.lane.b32.xlu0 %v2499, 64
  %v2763 = vpop.permute.xlu0 %2762
  %2764 = vrot.lane.b32.xlu0 %v2511, 64
  %v2765 = vpop.permute.xlu0 %2764
  %2766 = vrot.lane.b32.xlu0 %v2523, 64
  %v2767 = vpop.permute.xlu0 %2766
  %2768 = vrot.lane.b32.xlu0 %v2535, 64
  %v2769 = vpop.permute.xlu0 %2768
  %2770 = vrot.lane.b32.xlu0 %v2547, 64
  %v2771 = vpop.permute.xlu0 %2770
  %2772 = vrot.lane.b32.xlu0 %v2559, 64
  %v2773 = vpop.permute.xlu0 %2772
  %2774 = vrot.lane.b32.xlu0 %v2571, 64
  %v2775 = vpop.permute.xlu0 %2774
  %2776 = vrot.lane.b32.xlu0 %v2583, 64
  %v2777 = vpop.permute.xlu0 %2776
  %2778 = vrot.lane.b32.xlu0 %v2595, 64
  %v2779 = vpop.permute.xlu0 %2778
  %2780 = vrot.lane.b32.xlu0 %v2607, 64
  %v2781 = vpop.permute.xlu0 %2780
  %2782 = vrot.lane.b32.xlu0 %v2619, 64
  %v2783 = vpop.permute.xlu0 %2782
  %2784 = vrot.lane.b32.xlu0 %v2631, 64
  %v2785 = vpop.permute.xlu0 %2784
  %2786 = vrot.lane.b32.xlu0 %v2643, 64
  %v2787 = vpop.permute.xlu0 %2786
  %2788 = vrot.lane.b32.xlu0 %v2655, 64
  %v2789 = vpop.permute.xlu0 %2788
  %2790 = vrot.lane.b32.xlu0 %v2667, 64
  %v2791 = vpop.permute.xlu0 %2790
  %2792 = vrot.lane.b32.xlu0 %v2679, 64
  %v2793 = vpop.permute.xlu0 %2792
  %2794 = vrot.lane.b32.xlu0 %v2691, 64
  %v2795 = vpop.permute.xlu0 %2794
  %2796 = vrot.lane.b32.xlu0 %v2703, 64
  %v2797 = vpop.permute.xlu0 %2796
  %2798 = vrot.lane.b32.xlu0 %v2715, 64
  %v2799 = vpop.permute.xlu0 %2798
  %2800 = vrot.lane.b32.xlu0 %v2727, 64
  %v2801 = vpop.permute.xlu0 %2800
  %2802 = vrot.lane.b32.xlu0 %v2739, 64
  %v2803 = vpop.permute.xlu0 %2802
  %vm2804 = vcmask 523264
  %v2806 = vsel %vm2804, %v2227, %v2741
  %v2809 = vsel %vm2804, %v2228, %v2743
  %v2812 = vsel %vm2804, %v2229, %v2745
  %v2815 = vsel %vm2804, %v2230, %v2747
  %v2818 = vsel %vm2804, %v2231, %v2749
  %v2821 = vsel %vm2804, %v2232, %v2751
  %v2824 = vsel %vm2804, %v2233, %v2753
  %v2827 = vsel %vm2804, %v2234, %v2755
  %v2830 = vsel %vm2804, %v2235, %v2757
  %v2833 = vsel %vm2804, %v2236, %v2759
  %v2836 = vsel %vm2804, %v2237, %v2761
  %v2839 = vsel %vm2804, %v2238, %v2763
  %v2842 = vsel %vm2804, %v2239, %v2765
  %v2845 = vsel %vm2804, %v2240, %v2767
  %v2848 = vsel %vm2804, %v2241, %v2769
  %v2851 = vsel %vm2804, %v2242, %v2771
  %v2854 = vsel %vm2804, %v2243, %v2773
  %v2857 = vsel %vm2804, %v2244, %v2775
  %v2860 = vsel %vm2804, %v2245, %v2777
  %v2863 = vsel %vm2804, %v2246, %v2779
  %v2866 = vsel %vm2804, %v2247, %v2781
  %v2869 = vsel %vm2804, %v2248, %v2783
  %v2872 = vsel %vm2804, %v2249, %v2785
  %v2875 = vsel %vm2804, %v2250, %v2787
  %v2878 = vsel %vm2804, %v2251, %v2789
  %v2881 = vsel %vm2804, %v2252, %v2791
  %v2884 = vsel %vm2804, %v2253, %v2793
  %v2887 = vsel %vm2804, %v2254, %v2795
  %v2890 = vsel %vm2804, %v2255, %v2797
  %v2893 = vsel %vm2804, %v2256, %v2799
  %v2896 = vsel %vm2804, %v2257, %v2801
  %v2899 = vsel %vm2804, %v2258, %v2803
  %2901 = vst [vmem:[#allocation3] sm:$0xff] %v2806
  %2902 = vst [vmem:[#allocation3 + $0x28] sm:$0xff] %v2809
  %2903 = vst [vmem:[#allocation3 + $0x50] sm:$0xff] %v2812
  %2904 = vst [vmem:[#allocation3 + $0x78] sm:$0xff] %v2815
  %2905 = vst [vmem:[#allocation3 + $0xa0] sm:$0xff] %v2818
  %2906 = vst [vmem:[#allocation3 + $0xc8] sm:$0xff] %v2821
  %2907 = vst [vmem:[#allocation3 + $0xf0] sm:$0xff] %v2824
  %2908 = vst [vmem:[#allocation3 + $0x118] sm:$0xff] %v2827
  %2909 = vst [vmem:[#allocation3 + $0x140] sm:$0xff] %v2830
  %2910 = vst [vmem:[#allocation3 + $0x168] sm:$0xff] %v2833
  %2911 = vst [vmem:[#allocation3 + $0x190] sm:$0xff] %v2836
  %2912 = vst [vmem:[#allocation3 + $0x1b8] sm:$0xff] %v2839
  %2913 = vst [vmem:[#allocation3 + $0x1e0] sm:$0xff] %v2842
  %2914 = vst [vmem:[#allocation3 + $0x208] sm:$0xff] %v2845
  %2915 = vst [vmem:[#allocation3 + $0x230] sm:$0xff] %v2848
  %2916 = vst [vmem:[#allocation3 + $0x258] sm:$0xff] %v2851
  %2917 = vst [vmem:[#allocation3 + $0x280] sm:$0xff] %v2854
  %2918 = vst [vmem:[#allocation3 + $0x2a8] sm:$0xff] %v2857
  %2919 = vst [vmem:[#allocation3 + $0x2d0] sm:$0xff] %v2860
  %2920 = vst [vmem:[#allocation3 + $0x2f8] sm:$0xff] %v2863
  %2921 = vst [vmem:[#allocation3 + $0x320] sm:$0xff] %v2866
  %2922 = vst [vmem:[#allocation3 + $0x348] sm:$0xff] %v2869
  %2923 = vst [vmem:[#allocation3 + $0x370] sm:$0xff] %v2872
  %2924 = vst [vmem:[#allocation3 + $0x398] sm:$0xff] %v2875
  %2925 = vst [vmem:[#allocation3 + $0x3c0] sm:$0xff] %v2878
  %2926 = vst [vmem:[#allocation3 + $0x3e8] sm:$0xff] %v2881
  %2927 = vst [vmem:[#allocation3 + $0x410] sm:$0xff] %v2884
  %2928 = vst [vmem:[#allocation3 + $0x438] sm:$0xff] %v2887
  %2929 = vst [vmem:[#allocation3 + $0x460] sm:$0xff] %v2890
  %2930 = vst [vmem:[#allocation3 + $0x488] sm:$0xff] %v2893
  %2931 = vst [vmem:[#allocation3 + $0x4b0] sm:$0xff] %v2896
  %2932 = vst [vmem:[#allocation3 + $0x4d8] sm:$0xff] %v2899
  %v2933 = vld [vmem:[#allocation2] sm:$0xe]
  %v2934 = vld [vmem:[#allocation2 + $0x4] sm:$0xf]
  %v2935 = vld [vmem:[#allocation2 + $0x8] sm:$0x1]
  %v2936 = vld [vmem:[#allocation2 + $0xc] sm:$0xe]
  %v2937 = vld [vmem:[#allocation2 + $0x10] sm:$0xf]
  %v2938 = vld [vmem:[#allocation2 + $0x14] sm:$0x1]
  %v2939 = vld [vmem:[#allocation2 + $0x18] sm:$0xe]
  %v2940 = vld [vmem:[#allocation2 + $0x1c] sm:$0xf]
  %v2941 = vld [vmem:[#allocation2 + $0x20] sm:$0x1]
  %v2942 = vld [vmem:[#allocation2 + $0x24] sm:$0xe]
  %v2943 = vld [vmem:[#allocation2 + $0x28] sm:$0xf]
  %v2944 = vld [vmem:[#allocation2 + $0x2c] sm:$0x1]
  %v2945 = vld [vmem:[#allocation2 + $0x30] sm:$0xe]
  %v2946 = vld [vmem:[#allocation2 + $0x34] sm:$0xf]
  %v2947 = vld [vmem:[#allocation2 + $0x38] sm:$0x1]
  %v2948 = vld [vmem:[#allocation2 + $0x3c] sm:$0xe]
  %v2949 = vld [vmem:[#allocation2 + $0x40] sm:$0xf]
  %v2950 = vld [vmem:[#allocation2 + $0x44] sm:$0x1]
  %v2951 = vld [vmem:[#allocation2 + $0x48] sm:$0xe]
  %v2952 = vld [vmem:[#allocation2 + $0x4c] sm:$0xf]
  %v2953 = vld [vmem:[#allocation2 + $0x50] sm:$0x1]
  %v2954 = vld [vmem:[#allocation2 + $0x54] sm:$0xe]
  %v2955 = vld [vmem:[#allocation2 + $0x58] sm:$0xf]
  %v2956 = vld [vmem:[#allocation2 + $0x5c] sm:$0x1]
  %v2957 = vld [vmem:[#allocation2 + $0x60] sm:$0xe]
  %v2958 = vld [vmem:[#allocation2 + $0x64] sm:$0xf]
  %v2959 = vld [vmem:[#allocation2 + $0x68] sm:$0x1]
  %v2960 = vld [vmem:[#allocation2 + $0x6c] sm:$0xe]
  %v2961 = vld [vmem:[#allocation2 + $0x70] sm:$0xf]
  %v2962 = vld [vmem:[#allocation2 + $0x74] sm:$0x1]
  %v2963 = vld [vmem:[#allocation2 + $0x78] sm:$0xe]
  %v2964 = vld [vmem:[#allocation2 + $0x7c] sm:$0xf]
  %v2965 = vld [vmem:[#allocation2 + $0x80] sm:$0x1]
  %v2966 = vld [vmem:[#allocation2 + $0x84] sm:$0xe]
  %v2967 = vld [vmem:[#allocation2 + $0x88] sm:$0xf]
  %v2968 = vld [vmem:[#allocation2 + $0x8c] sm:$0x1]
  %v2969 = vld [vmem:[#allocation2 + $0x90] sm:$0xe]
  %v2970 = vld [vmem:[#allocation2 + $0x94] sm:$0xf]
  %v2971 = vld [vmem:[#allocation2 + $0x98] sm:$0x1]
  %v2972 = vld [vmem:[#allocation2 + $0x9c] sm:$0xe]
  %v2973 = vld [vmem:[#allocation2 + $0xa0] sm:$0xf]
  %v2974 = vld [vmem:[#allocation2 + $0xa4] sm:$0x1]
  %v2975 = vld [vmem:[#allocation2 + $0xa8] sm:$0xe]
  %v2976 = vld [vmem:[#allocation2 + $0xac] sm:$0xf]
  %v2977 = vld [vmem:[#allocation2 + $0xb0] sm:$0x1]
  %v2978 = vld [vmem:[#allocation2 + $0xb4] sm:$0xe]
  %v2979 = vld [vmem:[#allocation2 + $0xb8] sm:$0xf]
  %v2980 = vld [vmem:[#allocation2 + $0xbc] sm:$0x1]
  %v2981 = vld [vmem:[#allocation2 + $0xd8] sm:$0xe]
  %v2982 = vld [vmem:[#allocation2 + $0xdc] sm:$0xf]
  %v2983 = vld [vmem:[#allocation2 + $0xe0] sm:$0x1]
  %v2984 = vld [vmem:[#allocation2 + $0xe4] sm:$0xe]
  %v2985 = vld [vmem:[#allocation2 + $0xe8] sm:$0xf]
  %v2986 = vld [vmem:[#allocation2 + $0xec] sm:$0x1]
  %v2987 = vld [vmem:[#allocation2 + $0xf0] sm:$0xe]
  %v2988 = vld [vmem:[#allocation2 + $0xf4] sm:$0xf]
  %v2989 = vld [vmem:[#allocation2 + $0xf8] sm:$0x1]
  %v2990 = vld [vmem:[#allocation2 + $0xfc] sm:$0xe]
  %v2991 = vld [vmem:[#allocation2 + $0x100] sm:$0xf]
  %v2992 = vld [vmem:[#allocation2 + $0x104] sm:$0x1]
  %v2993 = vld [vmem:[#allocation2 + $0x108] sm:$0xe]
  %v2994 = vld [vmem:[#allocation2 + $0x10c] sm:$0xf]
  %v2995 = vld [vmem:[#allocation2 + $0x110] sm:$0x1]
  %v2996 = vld [vmem:[#allocation2 + $0x114] sm:$0xe]
  %v2997 = vld [vmem:[#allocation2 + $0x118] sm:$0xf]
  %v2998 = vld [vmem:[#allocation2 + $0x11c] sm:$0x1]
  %v2999 = vld [vmem:[#allocation2 + $0x120] sm:$0xe]
  %v3000 = vld [vmem:[#allocation2 + $0x124] sm:$0xf]
  %v3001 = vld [vmem:[#allocation2 + $0x128] sm:$0x1]
  %v3002 = vld [vmem:[#allocation2 + $0x12c] sm:$0xe]
  %v3003 = vld [vmem:[#allocation2 + $0x130] sm:$0xf]
  %v3004 = vld [vmem:[#allocation2 + $0x134] sm:$0x1]
  %v3005 = vld [vmem:[#allocation2 + $0x138] sm:$0xe]
  %v3006 = vld [vmem:[#allocation2 + $0x13c] sm:$0xf]
  %v3007 = vld [vmem:[#allocation2 + $0x140] sm:$0x1]
  %v3008 = vld [vmem:[#allocation2 + $0x144] sm:$0xe]
  %v3009 = vld [vmem:[#allocation2 + $0x148] sm:$0xf]
  %v3010 = vld [vmem:[#allocation2 + $0x14c] sm:$0x1]
  %v3011 = vld [vmem:[#allocation2 + $0x150] sm:$0xe]
  %v3012 = vld [vmem:[#allocation2 + $0x154] sm:$0xf]
  %v3013 = vld [vmem:[#allocation2 + $0x158] sm:$0x1]
  %v3014 = vld [vmem:[#allocation2 + $0x15c] sm:$0xe]
  %v3015 = vld [vmem:[#allocation2 + $0x160] sm:$0xf]
  %v3016 = vld [vmem:[#allocation2 + $0x164] sm:$0x1]
  %v3017 = vld [vmem:[#allocation2 + $0x168] sm:$0xe]
  %v3018 = vld [vmem:[#allocation2 + $0x16c] sm:$0xf]
  %v3019 = vld [vmem:[#allocation2 + $0x170] sm:$0x1]
  %v3020 = vld [vmem:[#allocation2 + $0x174] sm:$0xe]
  %v3021 = vld [vmem:[#allocation2 + $0x178] sm:$0xf]
  %v3022 = vld [vmem:[#allocation2 + $0x17c] sm:$0x1]
  %v3023 = vld [vmem:[#allocation2 + $0x180] sm:$0xe]
  %v3024 = vld [vmem:[#allocation2 + $0x184] sm:$0xf]
  %v3025 = vld [vmem:[#allocation2 + $0x188] sm:$0x1]
  %v3026 = vld [vmem:[#allocation2 + $0x18c] sm:$0xe]
  %v3027 = vld [vmem:[#allocation2 + $0x190] sm:$0xf]
  %v3028 = vld [vmem:[#allocation2 + $0x194] sm:$0x1]
  %v3029 = vld [vmem:[%s745] sm:$0xf]
  %v3030 = vld [vmem:[%s745 + $0x4] sm:$0xf]
  %v3031 = vld [vmem:[%s745 + $0xc] sm:$0xf]
  %v3032 = vld [vmem:[%s745 + $0x10] sm:$0xf]
  %v3033 = vld [vmem:[%s745 + $0x18] sm:$0xf]
  %v3034 = vld [vmem:[%s745 + $0x1c] sm:$0xf]
  %v3035 = vld [vmem:[%s745 + $0x24] sm:$0xf]
  %v3036 = vld [vmem:[%s745 + $0x28] sm:$0xf]
  %v3037 = vld [vmem:[%s745 + $0x30] sm:$0xf]
  %v3038 = vld [vmem:[%s745 + $0x34] sm:$0xf]
  %v3039 = vld [vmem:[%s745 + $0x3c] sm:$0xf]
  %v3040 = vld [vmem:[%s745 + $0x40] sm:$0xf]
  %v3041 = vld [vmem:[%s745 + $0x48] sm:$0xf]
  %v3042 = vld [vmem:[%s745 + $0x4c] sm:$0xf]
  %v3043 = vld [vmem:[%s745 + $0x54] sm:$0xf]
  %v3044 = vld [vmem:[%s745 + $0x58] sm:$0xf]
  %v3045 = vld [vmem:[%s745 + $0x60] sm:$0xf]
  %v3046 = vld [vmem:[%s745 + $0x64] sm:$0xf]
  %v3047 = vld [vmem:[%s745 + $0x6c] sm:$0xf]
  %v3048 = vld [vmem:[%s745 + $0x70] sm:$0xf]
  %v3049 = vld [vmem:[%s745 + $0x78] sm:$0xf]
  %v3050 = vld [vmem:[%s745 + $0x7c] sm:$0xf]
  %v3051 = vld [vmem:[%s745 + $0x84] sm:$0xf]
  %v3052 = vld [vmem:[%s745 + $0x88] sm:$0xf]
  %v3053 = vld [vmem:[%s745 + $0x90] sm:$0xf]
  %v3054 = vld [vmem:[%s745 + $0x94] sm:$0xf]
  %v3055 = vld [vmem:[%s745 + $0x9c] sm:$0xf]
  %v3056 = vld [vmem:[%s745 + $0xa0] sm:$0xf]
  %v3057 = vld [vmem:[%s745 + $0xa8] sm:$0xf]
  %v3058 = vld [vmem:[%s745 + $0xac] sm:$0xf]
  %v3059 = vld [vmem:[%s745 + $0xb4] sm:$0xf]
  %v3060 = vld [vmem:[%s745 + $0xb8] sm:$0xf]
  %v3061 = vld [vmem:[%s745 + $0xd8] sm:$0xf]
  %v3062 = vld [vmem:[%s745 + $0xdc] sm:$0xf]
  %v3063 = vld [vmem:[%s745 + $0xe4] sm:$0xf]
  %v3064 = vld [vmem:[%s745 + $0xe8] sm:$0xf]
  %v3065 = vld [vmem:[%s745 + $0xf0] sm:$0xf]
  %v3066 = vld [vmem:[%s745 + $0xf4] sm:$0xf]
  %v3067 = vld [vmem:[%s745 + $0xfc] sm:$0xf]
  %v3068 = vld [vmem:[%s745 + $0x100] sm:$0xf]
  %v3069 = vld [vmem:[%s745 + $0x108] sm:$0xf]
  %v3070 = vld [vmem:[%s745 + $0x10c] sm:$0xf]
  %v3071 = vld [vmem:[%s745 + $0x114] sm:$0xf]
  %v3072 = vld [vmem:[%s745 + $0x118] sm:$0xf]
  %v3073 = vld [vmem:[%s745 + $0x120] sm:$0xf]
  %v3074 = vld [vmem:[%s745 + $0x124] sm:$0xf]
  %v3075 = vld [vmem:[%s745 + $0x12c] sm:$0xf]
  %v3076 = vld [vmem:[%s745 + $0x130] sm:$0xf]
  %v3077 = vld [vmem:[%s745 + $0x138] sm:$0xf]
  %v3078 = vld [vmem:[%s745 + $0x13c] sm:$0xf]
  %v3079 = vld [vmem:[%s745 + $0x144] sm:$0xf]
  %v3080 = vld [vmem:[%s745 + $0x148] sm:$0xf]
  %v3081 = vld [vmem:[%s745 + $0x150] sm:$0xf]
  %v3082 = vld [vmem:[%s745 + $0x154] sm:$0xf]
  %v3083 = vld [vmem:[%s745 + $0x15c] sm:$0xf]
  %v3084 = vld [vmem:[%s745 + $0x160] sm:$0xf]
  %v3085 = vld [vmem:[%s745 + $0x168] sm:$0xf]
  %v3086 = vld [vmem:[%s745 + $0x16c] sm:$0xf]
  %v3087 = vld [vmem:[%s745 + $0x174] sm:$0xf]
  %v3088 = vld [vmem:[%s745 + $0x178] sm:$0xf]
  %v3089 = vld [vmem:[%s745 + $0x180] sm:$0xf]
  %v3090 = vld [vmem:[%s745 + $0x184] sm:$0xf]
  %v3091 = vld [vmem:[%s745 + $0x18c] sm:$0xf]
  %v3092 = vld [vmem:[%s745 + $0x190] sm:$0xf]
  %v3189 = vunpack.c.l.b16 %v2933
  %v3190 = vunpack.c.l.b16 %v2934
  %v3191 = vunpack.c.l.b16 %v2935
  %v3192 = vunpack.c.l.b16 %v2936
  %v3193 = vunpack.c.l.b16 %v2937
  %v3194 = vunpack.c.l.b16 %v2938
  %v3195 = vunpack.c.l.b16 %v2939
  %v3196 = vunpack.c.l.b16 %v2940
  %v3197 = vunpack.c.l.b16 %v2941
  %v3198 = vunpack.c.l.b16 %v2942
  %v3199 = vunpack.c.l.b16 %v2943
  %v3200 = vunpack.c.l.b16 %v2944
  %v3201 = vunpack.c.l.b16 %v2945
  %v3202 = vunpack.c.l.b16 %v2946
  %v3203 = vunpack.c.l.b16 %v2947
  %v3204 = vunpack.c.l.b16 %v2948
  %v3205 = vunpack.c.l.b16 %v2949
  %v3206 = vunpack.c.l.b16 %v2950
  %v3207 = vunpack.c.l.b16 %v2951
  %v3208 = vunpack.c.l.b16 %v2952
  %v3209 = vunpack.c.l.b16 %v2953
  %v3210 = vunpack.c.l.b16 %v2954
  %v3211 = vunpack.c.l.b16 %v2955
  %v3212 = vunpack.c.l.b16 %v2956
  %v3213 = vunpack.c.l.b16 %v2957
  %v3214 = vunpack.c.l.b16 %v2958
  %v3215 = vunpack.c.l.b16 %v2959
  %v3216 = vunpack.c.l.b16 %v2960
  %v3217 = vunpack.c.l.b16 %v2961
  %v3218 = vunpack.c.l.b16 %v2962
  %v3219 = vunpack.c.l.b16 %v2963
  %v3220 = vunpack.c.l.b16 %v2964
  %v3221 = vunpack.c.l.b16 %v2965
  %v3222 = vunpack.c.l.b16 %v2966
  %v3223 = vunpack.c.l.b16 %v2967
  %v3224 = vunpack.c.l.b16 %v2968
  %v3225 = vunpack.c.l.b16 %v2969
  %v3226 = vunpack.c.l.b16 %v2970
  %v3227 = vunpack.c.l.b16 %v2971
  %v3228 = vunpack.c.l.b16 %v2972
  %v3229 = vunpack.c.l.b16 %v2973
  %v3230 = vunpack.c.l.b16 %v2974
  %v3231 = vunpack.c.l.b16 %v2975
  %v3232 = vunpack.c.l.b16 %v2976
  %v3233 = vunpack.c.l.b16 %v2977
  %v3234 = vunpack.c.l.b16 %v2978
  %v3235 = vunpack.c.l.b16 %v2979
  %v3236 = vunpack.c.l.b16 %v2980
  %v3237 = vunpack.c.l.b16 %v2981
  %v3238 = vunpack.c.l.b16 %v2982
  %v3239 = vunpack.c.l.b16 %v2983
  %v3240 = vunpack.c.l.b16 %v2984
  %v3241 = vunpack.c.l.b16 %v2985
  %v3242 = vunpack.c.l.b16 %v2986
  %v3243 = vunpack.c.l.b16 %v2987
  %v3244 = vunpack.c.l.b16 %v2988
  %v3245 = vunpack.c.l.b16 %v2989
  %v3246 = vunpack.c.l.b16 %v2990
  %v3247 = vunpack.c.l.b16 %v2991
  %v3248 = vunpack.c.l.b16 %v2992
  %v3249 = vunpack.c.l.b16 %v2993
  %v3250 = vunpack.c.l.b16 %v2994
  %v3251 = vunpack.c.l.b16 %v2995
  %v3252 = vunpack.c.l.b16 %v2996
  %v3253 = vunpack.c.l.b16 %v2997
  %v3254 = vunpack.c.l.b16 %v2998
  %v3255 = vunpack.c.l.b16 %v2999
  %v3256 = vunpack.c.l.b16 %v3000
  %v3257 = vunpack.c.l.b16 %v3001
  %v3258 = vunpack.c.l.b16 %v3002
  %v3259 = vunpack.c.l.b16 %v3003
  %v3260 = vunpack.c.l.b16 %v3004
  %v3261 = vunpack.c.l.b16 %v3005
  %v3262 = vunpack.c.l.b16 %v3006
  %v3263 = vunpack.c.l.b16 %v3007
  %v3264 = vunpack.c.l.b16 %v3008
  %v3265 = vunpack.c.l.b16 %v3009
  %v3266 = vunpack.c.l.b16 %v3010
  %v3267 = vunpack.c.l.b16 %v3011
  %v3268 = vunpack.c.l.b16 %v3012
  %v3269 = vunpack.c.l.b16 %v3013
  %v3270 = vunpack.c.l.b16 %v3014
  %v3271 = vunpack.c.l.b16 %v3015
  %v3272 = vunpack.c.l.b16 %v3016
  %v3273 = vunpack.c.l.b16 %v3017
  %v3274 = vunpack.c.l.b16 %v3018
  %v3275 = vunpack.c.l.b16 %v3019
  %v3276 = vunpack.c.l.b16 %v3020
  %v3277 = vunpack.c.l.b16 %v3021
  %v3278 = vunpack.c.l.b16 %v3022
  %v3279 = vunpack.c.l.b16 %v3023
  %v3280 = vunpack.c.l.b16 %v3024
  %v3281 = vunpack.c.l.b16 %v3025
  %v3282 = vunpack.c.l.b16 %v3026
  %v3283 = vunpack.c.l.b16 %v3027
  %v3284 = vunpack.c.l.b16 %v3028
  %v3285 = vpack.c.b16 %v3190, %v3189
  %v3286 = vpack.c.b16 %v3191, %v3191
  %v3287 = vpack.c.b16 %v3193, %v3192
  %v3288 = vpack.c.b16 %v3194, %v3194
  %v3289 = vpack.c.b16 %v3196, %v3195
  %v3290 = vpack.c.b16 %v3197, %v3197
  %v3291 = vpack.c.b16 %v3199, %v3198
  %v3292 = vpack.c.b16 %v3200, %v3200
  %v3293 = vpack.c.b16 %v3202, %v3201
  %v3294 = vpack.c.b16 %v3203, %v3203
  %v3295 = vpack.c.b16 %v3205, %v3204
  %v3296 = vpack.c.b16 %v3206, %v3206
  %v3297 = vpack.c.b16 %v3208, %v3207
  %v3298 = vpack.c.b16 %v3209, %v3209
  %v3299 = vpack.c.b16 %v3211, %v3210
  %v3300 = vpack.c.b16 %v3212, %v3212
  %v3301 = vpack.c.b16 %v3214, %v3213
  %v3302 = vpack.c.b16 %v3215, %v3215
  %v3303 = vpack.c.b16 %v3217, %v3216
  %v3304 = vpack.c.b16 %v3218, %v3218
  %v3305 = vpack.c.b16 %v3220, %v3219
  %v3306 = vpack.c.b16 %v3221, %v3221
  %v3307 = vpack.c.b16 %v3223, %v3222
  %v3308 = vpack.c.b16 %v3224, %v3224
  %v3309 = vpack.c.b16 %v3226, %v3225
  %v3310 = vpack.c.b16 %v3227, %v3227
  %v3311 = vpack.c.b16 %v3229, %v3228
  %v3312 = vpack.c.b16 %v3230, %v3230
  %v3313 = vpack.c.b16 %v3232, %v3231
  %v3314 = vpack.c.b16 %v3233, %v3233
  %v3315 = vpack.c.b16 %v3235, %v3234
  %v3316 = vpack.c.b16 %v3236, %v3236
  %v3317 = vpack.c.b16 %v3238, %v3237
  %v3318 = vpack.c.b16 %v3239, %v3239
  %v3319 = vpack.c.b16 %v3241, %v3240
  %v3320 = vpack.c.b16 %v3242, %v3242
  %v3321 = vpack.c.b16 %v3244, %v3243
  %v3322 = vpack.c.b16 %v3245, %v3245
  %v3323 = vpack.c.b16 %v3247, %v3246
  %v3324 = vpack.c.b16 %v3248, %v3248
  %v3325 = vpack.c.b16 %v3250, %v3249
  %v3326 = vpack.c.b16 %v3251, %v3251
  %v3327 = vpack.c.b16 %v3253, %v3252
  %v3328 = vpack.c.b16 %v3254, %v3254
  %v3329 = vpack.c.b16 %v3256, %v3255
  %v3330 = vpack.c.b16 %v3257, %v3257
  %v3331 = vpack.c.b16 %v3259, %v3258
  %v3332 = vpack.c.b16 %v3260, %v3260
  %v3333 = vpack.c.b16 %v3262, %v3261
  %v3334 = vpack.c.b16 %v3263, %v3263
  %v3335 = vpack.c.b16 %v3265, %v3264
  %v3336 = vpack.c.b16 %v3266, %v3266
  %v3337 = vpack.c.b16 %v3268, %v3267
  %v3338 = vpack.c.b16 %v3269, %v3269
  %v3339 = vpack.c.b16 %v3271, %v3270
  %v3340 = vpack.c.b16 %v3272, %v3272
  %v3341 = vpack.c.b16 %v3274, %v3273
  %v3342 = vpack.c.b16 %v3275, %v3275
  %v3343 = vpack.c.b16 %v3277, %v3276
  %v3344 = vpack.c.b16 %v3278, %v3278
  %v3345 = vpack.c.b16 %v3280, %v3279
  %v3346 = vpack.c.b16 %v3281, %v3281
  %v3347 = vpack.c.b16 %v3283, %v3282
  %v3348 = vpack.c.b16 %v3284, %v3284
  %v3413 = vunpack.c.l.b16 %v3029
  %v3414 = vunpack.c.l.b16 %v3030
  %v3415 = vunpack.c.l.b16 %v3031
  %v3416 = vunpack.c.l.b16 %v3032
  %v3417 = vunpack.c.l.b16 %v3033
  %v3418 = vunpack.c.l.b16 %v3034
  %v3419 = vunpack.c.l.b16 %v3035
  %v3420 = vunpack.c.l.b16 %v3036
  %v3421 = vunpack.c.l.b16 %v3037
  %v3422 = vunpack.c.l.b16 %v3038
  %v3423 = vunpack.c.l.b16 %v3039
  %v3424 = vunpack.c.l.b16 %v3040
  %v3425 = vunpack.c.l.b16 %v3041
  %v3426 = vunpack.c.l.b16 %v3042
  %v3427 = vunpack.c.l.b16 %v3043
  %v3428 = vunpack.c.l.b16 %v3044
  %v3429 = vunpack.c.l.b16 %v3045
  %v3430 = vunpack.c.l.b16 %v3046
  %v3431 = vunpack.c.l.b16 %v3047
  %v3432 = vunpack.c.l.b16 %v3048
  %v3433 = vunpack.c.l.b16 %v3049
  %v3434 = vunpack.c.l.b16 %v3050
  %v3435 = vunpack.c.l.b16 %v3051
  %v3436 = vunpack.c.l.b16 %v3052
  %v3437 = vunpack.c.l.b16 %v3053
  %v3438 = vunpack.c.l.b16 %v3054
  %v3439 = vunpack.c.l.b16 %v3055
  %v3440 = vunpack.c.l.b16 %v3056
  %v3441 = vunpack.c.l.b16 %v3057
  %v3442 = vunpack.c.l.b16 %v3058
  %v3443 = vunpack.c.l.b16 %v3059
  %v3444 = vunpack.c.l.b16 %v3060
  %v3445 = vunpack.c.l.b16 %v3061
  %v3446 = vunpack.c.l.b16 %v3062
  %v3447 = vunpack.c.l.b16 %v3063
  %v3448 = vunpack.c.l.b16 %v3064
  %v3449 = vunpack.c.l.b16 %v3065
  %v3450 = vunpack.c.l.b16 %v3066
  %v3451 = vunpack.c.l.b16 %v3067
  %v3452 = vunpack.c.l.b16 %v3068
  %v3453 = vunpack.c.l.b16 %v3069
  %v3454 = vunpack.c.l.b16 %v3070
  %v3455 = vunpack.c.l.b16 %v3071
  %v3456 = vunpack.c.l.b16 %v3072
  %v3457 = vunpack.c.l.b16 %v3073
  %v3458 = vunpack.c.l.b16 %v3074
  %v3459 = vunpack.c.l.b16 %v3075
  %v3460 = vunpack.c.l.b16 %v3076
  %v3461 = vunpack.c.l.b16 %v3077
  %v3462 = vunpack.c.l.b16 %v3078
  %v3463 = vunpack.c.l.b16 %v3079
  %v3464 = vunpack.c.l.b16 %v3080
  %v3465 = vunpack.c.l.b16 %v3081
  %v3466 = vunpack.c.l.b16 %v3082
  %v3467 = vunpack.c.l.b16 %v3083
  %v3468 = vunpack.c.l.b16 %v3084
  %v3469 = vunpack.c.l.b16 %v3085
  %v3470 = vunpack.c.l.b16 %v3086
  %v3471 = vunpack.c.l.b16 %v3087
  %v3472 = vunpack.c.l.b16 %v3088
  %v3473 = vunpack.c.l.b16 %v3089
  %v3474 = vunpack.c.l.b16 %v3090
  %v3475 = vunpack.c.l.b16 %v3091
  %v3476 = vunpack.c.l.b16 %v3092
  %v3477 = vpack.c.b16 %v3414, %v3413
  %v3478 = vpack.c.b16 %v3416, %v3415
  %v3479 = vpack.c.b16 %v3418, %v3417
  %v3480 = vpack.c.b16 %v3420, %v3419
  %v3481 = vpack.c.b16 %v3422, %v3421
  %v3482 = vpack.c.b16 %v3424, %v3423
  %v3483 = vpack.c.b16 %v3426, %v3425
  %v3484 = vpack.c.b16 %v3428, %v3427
  %v3485 = vpack.c.b16 %v3430, %v3429
  %v3486 = vpack.c.b16 %v3432, %v3431
  %v3487 = vpack.c.b16 %v3434, %v3433
  %v3488 = vpack.c.b16 %v3436, %v3435
  %v3489 = vpack.c.b16 %v3438, %v3437
  %v3490 = vpack.c.b16 %v3440, %v3439
  %v3491 = vpack.c.b16 %v3442, %v3441
  %v3492 = vpack.c.b16 %v3444, %v3443
  %v3493 = vpack.c.b16 %v3446, %v3445
  %v3494 = vpack.c.b16 %v3448, %v3447
  %v3495 = vpack.c.b16 %v3450, %v3449
  %v3496 = vpack.c.b16 %v3452, %v3451
  %v3497 = vpack.c.b16 %v3454, %v3453
  %v3498 = vpack.c.b16 %v3456, %v3455
  %v3499 = vpack.c.b16 %v3458, %v3457
  %v3500 = vpack.c.b16 %v3460, %v3459
  %v3501 = vpack.c.b16 %v3462, %v3461
  %v3502 = vpack.c.b16 %v3464, %v3463
  %v3503 = vpack.c.b16 %v3466, %v3465
  %v3504 = vpack.c.b16 %v3468, %v3467
  %v3505 = vpack.c.b16 %v3470, %v3469
  %v3506 = vpack.c.b16 %v3472, %v3471
  %v3507 = vpack.c.b16 %v3474, %v3473
  %v3508 = vpack.c.b16 %v3476, %v3475
  %v3509 = vrot.slane %v3477, 7
  %v3510 = vrot.slane %v3478, 7
  %v3511 = vrot.slane %v3479, 7
  %v3512 = vrot.slane %v3480, 7
  %v3513 = vrot.slane %v3481, 7
  %v3514 = vrot.slane %v3482, 7
  %v3515 = vrot.slane %v3483, 7
  %v3516 = vrot.slane %v3484, 7
  %v3517 = vrot.slane %v3485, 7
  %v3518 = vrot.slane %v3486, 7
  %v3519 = vrot.slane %v3487, 7
  %v3520 = vrot.slane %v3488, 7
  %v3521 = vrot.slane %v3489, 7
  %v3522 = vrot.slane %v3490, 7
  %v3523 = vrot.slane %v3491, 7
  %v3524 = vrot.slane %v3492, 7
  %v3525 = vrot.slane %v3493, 7
  %v3526 = vrot.slane %v3494, 7
  %v3527 = vrot.slane %v3495, 7
  %v3528 = vrot.slane %v3496, 7
  %v3529 = vrot.slane %v3497, 7
  %v3530 = vrot.slane %v3498, 7
  %v3531 = vrot.slane %v3499, 7
  %v3532 = vrot.slane %v3500, 7
  %v3533 = vrot.slane %v3501, 7
  %v3534 = vrot.slane %v3502, 7
  %v3535 = vrot.slane %v3503, 7
  %v3536 = vrot.slane %v3504, 7
  %v3537 = vrot.slane %v3505, 7
  %v3538 = vrot.slane %v3506, 7
  %v3539 = vrot.slane %v3507, 7
  %v3540 = vrot.slane %v3508, 7
  %3541 = vrot.lane.b32.xlu0 %v3509, 64
  %v3542 = vpop.permute.xlu0 %3541
  %3543 = vrot.lane.b32.xlu0 %v3510, 64
  %v3544 = vpop.permute.xlu0 %3543
  %3545 = vrot.lane.b32.xlu0 %v3511, 64
  %v3546 = vpop.permute.xlu0 %3545
  %3547 = vrot.lane.b32.xlu0 %v3512, 64
  %v3548 = vpop.permute.xlu0 %3547
  %3549 = vrot.lane.b32.xlu0 %v3513, 64
  %v3550 = vpop.permute.xlu0 %3549
  %3551 = vrot.lane.b32.xlu0 %v3514, 64
  %v3552 = vpop.permute.xlu0 %3551
  %3553 = vrot.lane.b32.xlu0 %v3515, 64
  %v3554 = vpop.permute.xlu0 %3553
  %3555 = vrot.lane.b32.xlu0 %v3516, 64
  %v3556 = vpop.permute.xlu0 %3555
  %3557 = vrot.lane.b32.xlu0 %v3517, 64
  %v3558 = vpop.permute.xlu0 %3557
  %3559 = vrot.lane.b32.xlu0 %v3518, 64
  %v3560 = vpop.permute.xlu0 %3559
  %3561 = vrot.lane.b32.xlu0 %v3519, 64
  %v3562 = vpop.permute.xlu0 %3561
  %3563 = vrot.lane.b32.xlu0 %v3520, 64
  %v3564 = vpop.permute.xlu0 %3563
  %3565 = vrot.lane.b32.xlu0 %v3521, 64
  %v3566 = vpop.permute.xlu0 %3565
  %3567 = vrot.lane.b32.xlu0 %v3522, 64
  %v3568 = vpop.permute.xlu0 %3567
  %3569 = vrot.lane.b32.xlu0 %v3523, 64
  %v3570 = vpop.permute.xlu0 %3569
  %3571 = vrot.lane.b32.xlu0 %v3524, 64
  %v3572 = vpop.permute.xlu0 %3571
  %3573 = vrot.lane.b32.xlu0 %v3525, 64
  %v3574 = vpop.permute.xlu0 %3573
  %3575 = vrot.lane.b32.xlu0 %v3526, 64
  %v3576 = vpop.permute.xlu0 %3575
  %3577 = vrot.lane.b32.xlu0 %v3527, 64
  %v3578 = vpop.permute.xlu0 %3577
  %3579 = vrot.lane.b32.xlu0 %v3528, 64
  %v3580 = vpop.permute.xlu0 %3579
  %3581 = vrot.lane.b32.xlu0 %v3529, 64
  %v3582 = vpop.permute.xlu0 %3581
  %3583 = vrot.lane.b32.xlu0 %v3530, 64
  %v3584 = vpop.permute.xlu0 %3583
  %3585 = vrot.lane.b32.xlu0 %v3531, 64
  %v3586 = vpop.permute.xlu0 %3585
  %3587 = vrot.lane.b32.xlu0 %v3532, 64
  %v3588 = vpop.permute.xlu0 %3587
  %3589 = vrot.lane.b32.xlu0 %v3533, 64
  %v3590 = vpop.permute.xlu0 %3589
  %3591 = vrot.lane.b32.xlu0 %v3534, 64
  %v3592 = vpop.permute.xlu0 %3591
  %3593 = vrot.lane.b32.xlu0 %v3535, 64
  %v3594 = vpop.permute.xlu0 %3593
  %3595 = vrot.lane.b32.xlu0 %v3536, 64
  %v3596 = vpop.permute.xlu0 %3595
  %3597 = vrot.lane.b32.xlu0 %v3537, 64
  %v3598 = vpop.permute.xlu0 %3597
  %3599 = vrot.lane.b32.xlu0 %v3538, 64
  %v3600 = vpop.permute.xlu0 %3599
  %3601 = vrot.lane.b32.xlu0 %v3539, 64
  %v3602 = vpop.permute.xlu0 %3601
  %3603 = vrot.lane.b32.xlu0 %v3540, 64
  %v3604 = vpop.permute.xlu0 %3603
  %v3607 = vsel %vm2804, %v3285, %v3542
  %v3609 = vsel %vm2804, %v3286, %v3542
  %v3612 = vsel %vm2804, %v3287, %v3544
  %v3614 = vsel %vm2804, %v3288, %v3544
  %v3617 = vsel %vm2804, %v3289, %v3546
  %v3619 = vsel %vm2804, %v3290, %v3546
  %v3622 = vsel %vm2804, %v3291, %v3548
  %v3624 = vsel %vm2804, %v3292, %v3548
  %v3627 = vsel %vm2804, %v3293, %v3550
  %v3629 = vsel %vm2804, %v3294, %v3550
  %v3632 = vsel %vm2804, %v3295, %v3552
  %v3634 = vsel %vm2804, %v3296, %v3552
  %v3637 = vsel %vm2804, %v3297, %v3554
  %v3639 = vsel %vm2804, %v3298, %v3554
  %v3642 = vsel %vm2804, %v3299, %v3556
  %v3644 = vsel %vm2804, %v3300, %v3556
  %v3647 = vsel %vm2804, %v3301, %v3558
  %v3649 = vsel %vm2804, %v3302, %v3558
  %v3652 = vsel %vm2804, %v3303, %v3560
  %v3654 = vsel %vm2804, %v3304, %v3560
  %v3657 = vsel %vm2804, %v3305, %v3562
  %v3659 = vsel %vm2804, %v3306, %v3562
  %v3662 = vsel %vm2804, %v3307, %v3564
  %v3664 = vsel %vm2804, %v3308, %v3564
  %v3667 = vsel %vm2804, %v3309, %v3566
  %v3669 = vsel %vm2804, %v3310, %v3566
  %v3672 = vsel %vm2804, %v3311, %v3568
  %v3674 = vsel %vm2804, %v3312, %v3568
  %v3677 = vsel %vm2804, %v3313, %v3570
  %v3679 = vsel %vm2804, %v3314, %v3570
  %v3682 = vsel %vm2804, %v3315, %v3572
  %v3684 = vsel %vm2804, %v3316, %v3572
  %v3687 = vsel %vm2804, %v3317, %v3574
  %v3689 = vsel %vm2804, %v3318, %v3574
  %v3692 = vsel %vm2804, %v3319, %v3576
  %v3694 = vsel %vm2804, %v3320, %v3576
  %v3697 = vsel %vm2804, %v3321, %v3578
  %v3699 = vsel %vm2804, %v3322, %v3578
  %v3702 = vsel %vm2804, %v3323, %v3580
  %v3704 = vsel %vm2804, %v3324, %v3580
  %v3707 = vsel %vm2804, %v3325, %v3582
  %v3709 = vsel %vm2804, %v3326, %v3582
  %v3712 = vsel %vm2804, %v3327, %v3584
  %v3714 = vsel %vm2804, %v3328, %v3584
  %v3717 = vsel %vm2804, %v3329, %v3586
  %v3719 = vsel %vm2804, %v3330, %v3586
  %v3722 = vsel %vm2804, %v3331, %v3588
  %v3724 = vsel %vm2804, %v3332, %v3588
  %v3727 = vsel %vm2804, %v3333, %v3590
  %v3729 = vsel %vm2804, %v3334, %v3590
  %v3732 = vsel %vm2804, %v3335, %v3592
  %v3734 = vsel %vm2804, %v3336, %v3592
  %v3737 = vsel %vm2804, %v3337, %v3594
  %v3739 = vsel %vm2804, %v3338, %v3594
  %v3742 = vsel %vm2804, %v3339, %v3596
  %v3744 = vsel %vm2804, %v3340, %v3596
  %v3747 = vsel %vm2804, %v3341, %v3598
  %v3749 = vsel %vm2804, %v3342, %v3598
  %v3752 = vsel %vm2804, %v3343, %v3600
  %v3754 = vsel %vm2804, %v3344, %v3600
  %v3757 = vsel %vm2804, %v3345, %v3602
  %v3759 = vsel %vm2804, %v3346, %v3602
  %v3762 = vsel %vm2804, %v3347, %v3604
  %v3764 = vsel %vm2804, %v3348, %v3604
  %vm3829 = vcmask 1046528
  %v3830 = vrot.slane %v3607, 1
  %v3831 = vrot.slane %v3609, 1
  %v3832 = vsel %vm3829, %v3830, %v3831
  %v3833 = vrot.slane %v3612, 1
  %v3834 = vrot.slane %v3614, 1
  %v3835 = vsel %vm3829, %v3833, %v3834
  %v3836 = vrot.slane %v3617, 1
  %v3837 = vrot.slane %v3619, 1
  %v3838 = vsel %vm3829, %v3836, %v3837
  %v3839 = vrot.slane %v3622, 1
  %v3840 = vrot.slane %v3624, 1
  %v3841 = vsel %vm3829, %v3839, %v3840
  %v3842 = vrot.slane %v3627, 1
  %v3843 = vrot.slane %v3629, 1
  %v3844 = vsel %vm3829, %v3842, %v3843
  %v3845 = vrot.slane %v3632, 1
  %v3846 = vrot.slane %v3634, 1
  %v3847 = vsel %vm3829, %v3845, %v3846
  %v3848 = vrot.slane %v3637, 1
  %v3849 = vrot.slane %v3639, 1
  %v3850 = vsel %vm3829, %v3848, %v3849
  %v3851 = vrot.slane %v3642, 1
  %v3852 = vrot.slane %v3644, 1
  %v3853 = vsel %vm3829, %v3851, %v3852
  %v3854 = vrot.slane %v3647, 1
  %v3855 = vrot.slane %v3649, 1
  %v3856 = vsel %vm3829, %v3854, %v3855
  %v3857 = vrot.slane %v3652, 1
  %v3858 = vrot.slane %v3654, 1
  %v3859 = vsel %vm3829, %v3857, %v3858
  %v3860 = vrot.slane %v3657, 1
  %v3861 = vrot.slane %v3659, 1
  %v3862 = vsel %vm3829, %v3860, %v3861
  %v3863 = vrot.slane %v3662, 1
  %v3864 = vrot.slane %v3664, 1
  %v3865 = vsel %vm3829, %v3863, %v3864
  %v3866 = vrot.slane %v3667, 1
  %v3867 = vrot.slane %v3669, 1
  %v3868 = vsel %vm3829, %v3866, %v3867
  %v3869 = vrot.slane %v3672, 1
  %v3870 = vrot.slane %v3674, 1
  %v3871 = vsel %vm3829, %v3869, %v3870
  %v3872 = vrot.slane %v3677, 1
  %v3873 = vrot.slane %v3679, 1
  %v3874 = vsel %vm3829, %v3872, %v3873
  %v3875 = vrot.slane %v3682, 1
  %v3876 = vrot.slane %v3684, 1
  %v3877 = vsel %vm3829, %v3875, %v3876
  %v3878 = vrot.slane %v3687, 1
  %v3879 = vrot.slane %v3689, 1
  %v3880 = vsel %vm3829, %v3878, %v3879
  %v3881 = vrot.slane %v3692, 1
  %v3882 = vrot.slane %v3694, 1
  %v3883 = vsel %vm3829, %v3881, %v3882
  %v3884 = vrot.slane %v3697, 1
  %v3885 = vrot.slane %v3699, 1
  %v3886 = vsel %vm3829, %v3884, %v3885
  %v3887 = vrot.slane %v3702, 1
  %v3888 = vrot.slane %v3704, 1
  %v3889 = vsel %vm3829, %v3887, %v3888
  %v3890 = vrot.slane %v3707, 1
  %v3891 = vrot.slane %v3709, 1
  %v3892 = vsel %vm3829, %v3890, %v3891
  %v3893 = vrot.slane %v3712, 1
  %v3894 = vrot.slane %v3714, 1
  %v3895 = vsel %vm3829, %v3893, %v3894
  %v3896 = vrot.slane %v3717, 1
  %v3897 = vrot.slane %v3719, 1
  %v3898 = vsel %vm3829, %v3896, %v3897
  %v3899 = vrot.slane %v3722, 1
  %v3900 = vrot.slane %v3724, 1
  %v3901 = vsel %vm3829, %v3899, %v3900
  %v3902 = vrot.slane %v3727, 1
  %v3903 = vrot.slane %v3729, 1
  %v3904 = vsel %vm3829, %v3902, %v3903
  %v3905 = vrot.slane %v3732, 1
  %v3906 = vrot.slane %v3734, 1
  %v3907 = vsel %vm3829, %v3905, %v3906
  %v3908 = vrot.slane %v3737, 1
  %v3909 = vrot.slane %v3739, 1
  %v3910 = vsel %vm3829, %v3908, %v3909
  %v3911 = vrot.slane %v3742, 1
  %v3912 = vrot.slane %v3744, 1
  %v3913 = vsel %vm3829, %v3911, %v3912
  %v3914 = vrot.slane %v3747, 1
  %v3915 = vrot.slane %v3749, 1
  %v3916 = vsel %vm3829, %v3914, %v3915
  %v3917 = vrot.slane %v3752, 1
  %v3918 = vrot.slane %v3754, 1
  %v3919 = vsel %vm3829, %v3917, %v3918
  %v3920 = vrot.slane %v3757, 1
  %v3921 = vrot.slane %v3759, 1
  %v3922 = vsel %vm3829, %v3920, %v3921
  %v3923 = vrot.slane %v3762, 1
  %v3924 = vrot.slane %v3764, 1
  %v3925 = vsel %vm3829, %v3923, %v3924
  %3958 = vst [vmem:[#allocation3 + $0x8] sm:$0xff] %v3832
  %3959 = vst [vmem:[#allocation3 + $0x30] sm:$0xff] %v3835
  %3960 = vst [vmem:[#allocation3 + $0x58] sm:$0xff] %v3838
  %3961 = vst [vmem:[#allocation3 + $0x80] sm:$0xff] %v3841
  %3962 = vst [vmem:[#allocation3 + $0xa8] sm:$0xff] %v3844
  %3963 = vst [vmem:[#allocation3 + $0xd0] sm:$0xff] %v3847
  %3964 = vst [vmem:[#allocation3 + $0xf8] sm:$0xff] %v3850
  %3965 = vst [vmem:[#allocation3 + $0x120] sm:$0xff] %v3853
  %3966 = vst [vmem:[#allocation3 + $0x148] sm:$0xff] %v3856
  %3967 = vst [vmem:[#allocation3 + $0x170] sm:$0xff] %v3859
  %3968 = vst [vmem:[#allocation3 + $0x198] sm:$0xff] %v3862
  %3969 = vst [vmem:[#allocation3 + $0x1c0] sm:$0xff] %v3865
  %3970 = vst [vmem:[#allocation3 + $0x1e8] sm:$0xff] %v3868
  %3971 = vst [vmem:[#allocation3 + $0x210] sm:$0xff] %v3871
  %3972 = vst [vmem:[#allocation3 + $0x238] sm:$0xff] %v3874
  %3973 = vst [vmem:[#allocation3 + $0x260] sm:$0xff] %v3877
  %3974 = vst [vmem:[#allocation3 + $0x288] sm:$0xff] %v3880
  %3975 = vst [vmem:[#allocation3 + $0x2b0] sm:$0xff] %v3883
  %3976 = vst [vmem:[#allocation3 + $0x2d8] sm:$0xff] %v3886
  %3977 = vst [vmem:[#allocation3 + $0x300] sm:$0xff] %v3889
  %3978 = vst [vmem:[#allocation3 + $0x328] sm:$0xff] %v3892
  %3979 = vst [vmem:[#allocation3 + $0x350] sm:$0xff] %v3895
  %3980 = vst [vmem:[#allocation3 + $0x378] sm:$0xff] %v3898
  %3981 = vst [vmem:[#allocation3 + $0x3a0] sm:$0xff] %v3901
  %3982 = vst [vmem:[#allocation3 + $0x3c8] sm:$0xff] %v3904
  %3983 = vst [vmem:[#allocation3 + $0x3f0] sm:$0xff] %v3907
  %3984 = vst [vmem:[#allocation3 + $0x418] sm:$0xff] %v3910
  %3985 = vst [vmem:[#allocation3 + $0x440] sm:$0xff] %v3913
  %3986 = vst [vmem:[#allocation3 + $0x468] sm:$0xff] %v3916
  %3987 = vst [vmem:[#allocation3 + $0x490] sm:$0xff] %v3919
  %3988 = vst [vmem:[#allocation3 + $0x4b8] sm:$0xff] %v3922
  %3989 = vst [vmem:[#allocation3 + $0x4e0] sm:$0xff] %v3925
  %v3990 = vld [vmem:[%s745] sm:$0xf]
  %v3991 = vld [vmem:[%s745 + $0x4] sm:$0xf]
  %v3992 = vld [vmem:[%s745 + $0x8] sm:$0x1]
  %v3993 = vld [vmem:[%s745 + $0xc] sm:$0xf]
  %v3994 = vld [vmem:[%s745 + $0x10] sm:$0xf]
  %v3995 = vld [vmem:[%s745 + $0x14] sm:$0x1]
  %v3996 = vld [vmem:[%s745 + $0x18] sm:$0xf]
  %v3997 = vld [vmem:[%s745 + $0x1c] sm:$0xf]
  %v3998 = vld [vmem:[%s745 + $0x20] sm:$0x1]
  %v3999 = vld [vmem:[%s745 + $0x24] sm:$0xf]
  %v4000 = vld [vmem:[%s745 + $0x28] sm:$0xf]
  %v4001 = vld [vmem:[%s745 + $0x2c] sm:$0x1]
  %v4002 = vld [vmem:[%s745 + $0x30] sm:$0xf]
  %v4003 = vld [vmem:[%s745 + $0x34] sm:$0xf]
  %v4004 = vld [vmem:[%s745 + $0x38] sm:$0x1]
  %v4005 = vld [vmem:[%s745 + $0x3c] sm:$0xf]
  %v4006 = vld [vmem:[%s745 + $0x40] sm:$0xf]
  %v4007 = vld [vmem:[%s745 + $0x44] sm:$0x1]
  %v4008 = vld [vmem:[%s745 + $0x48] sm:$0xf]
  %v4009 = vld [vmem:[%s745 + $0x4c] sm:$0xf]
  %v4010 = vld [vmem:[%s745 + $0x50] sm:$0x1]
  %v4011 = vld [vmem:[%s745 + $0x54] sm:$0xf]
  %v4012 = vld [vmem:[%s745 + $0x58] sm:$0xf]
  %v4013 = vld [vmem:[%s745 + $0x5c] sm:$0x1]
  %v4014 = vld [vmem:[%s745 + $0x60] sm:$0xf]
  %v4015 = vld [vmem:[%s745 + $0x64] sm:$0xf]
  %v4016 = vld [vmem:[%s745 + $0x68] sm:$0x1]
  %v4017 = vld [vmem:[%s745 + $0x6c] sm:$0xf]
  %v4018 = vld [vmem:[%s745 + $0x70] sm:$0xf]
  %v4019 = vld [vmem:[%s745 + $0x74] sm:$0x1]
  %v4020 = vld [vmem:[%s745 + $0x78] sm:$0xf]
  %v4021 = vld [vmem:[%s745 + $0x7c] sm:$0xf]
  %v4022 = vld [vmem:[%s745 + $0x80] sm:$0x1]
  %v4023 = vld [vmem:[%s745 + $0x84] sm:$0xf]
  %v4024 = vld [vmem:[%s745 + $0x88] sm:$0xf]
  %v4025 = vld [vmem:[%s745 + $0x8c] sm:$0x1]
  %v4026 = vld [vmem:[%s745 + $0x90] sm:$0xf]
  %v4027 = vld [vmem:[%s745 + $0x94] sm:$0xf]
  %v4028 = vld [vmem:[%s745 + $0x98] sm:$0x1]
  %v4029 = vld [vmem:[%s745 + $0x9c] sm:$0xf]
  %v4030 = vld [vmem:[%s745 + $0xa0] sm:$0xf]
  %v4031 = vld [vmem:[%s745 + $0xa4] sm:$0x1]
  %v4032 = vld [vmem:[%s745 + $0xa8] sm:$0xf]
  %v4033 = vld [vmem:[%s745 + $0xac] sm:$0xf]
  %v4034 = vld [vmem:[%s745 + $0xb0] sm:$0x1]
  %v4035 = vld [vmem:[%s745 + $0xb4] sm:$0xf]
  %v4036 = vld [vmem:[%s745 + $0xb8] sm:$0xf]
  %v4037 = vld [vmem:[%s745 + $0xbc] sm:$0x1]
  %v4038 = vld [vmem:[%s745 + $0xd8] sm:$0xf]
  %v4039 = vld [vmem:[%s745 + $0xdc] sm:$0xf]
  %v4040 = vld [vmem:[%s745 + $0xe0] sm:$0x1]
  %v4041 = vld [vmem:[%s745 + $0xe4] sm:$0xf]
  %v4042 = vld [vmem:[%s745 + $0xe8] sm:$0xf]
  %v4043 = vld [vmem:[%s745 + $0xec] sm:$0x1]
  %v4044 = vld [vmem:[%s745 + $0xf0] sm:$0xf]
  %v4045 = vld [vmem:[%s745 + $0xf4] sm:$0xf]
  %v4046 = vld [vmem:[%s745 + $0xf8] sm:$0x1]
  %v4047 = vld [vmem:[%s745 + $0xfc] sm:$0xf]
  %v4048 = vld [vmem:[%s745 + $0x100] sm:$0xf]
  %v4049 = vld [vmem:[%s745 + $0x104] sm:$0x1]
  %v4050 = vld [vmem:[%s745 + $0x108] sm:$0xf]
  %v4051 = vld [vmem:[%s745 + $0x10c] sm:$0xf]
  %v4052 = vld [vmem:[%s745 + $0x110] sm:$0x1]
  %v4053 = vld [vmem:[%s745 + $0x114] sm:$0xf]
  %v4054 = vld [vmem:[%s745 + $0x118] sm:$0xf]
  %v4055 = vld [vmem:[%s745 + $0x11c] sm:$0x1]
  %v4056 = vld [vmem:[%s745 + $0x120] sm:$0xf]
  %v4057 = vld [vmem:[%s745 + $0x124] sm:$0xf]
  %v4058 = vld [vmem:[%s745 + $0x128] sm:$0x1]
  %v4059 = vld [vmem:[%s745 + $0x12c] sm:$0xf]
  %v4060 = vld [vmem:[%s745 + $0x130] sm:$0xf]
  %v4061 = vld [vmem:[%s745 + $0x134] sm:$0x1]
  %v4062 = vld [vmem:[%s745 + $0x138] sm:$0xf]
  %v4063 = vld [vmem:[%s745 + $0x13c] sm:$0xf]
  %v4064 = vld [vmem:[%s745 + $0x140] sm:$0x1]
  %v4065 = vld [vmem:[%s745 + $0x144] sm:$0xf]
  %v4066 = vld [vmem:[%s745 + $0x148] sm:$0xf]
  %v4067 = vld [vmem:[%s745 + $0x14c] sm:$0x1]
  %v4068 = vld [vmem:[%s745 + $0x150] sm:$0xf]
  %v4069 = vld [vmem:[%s745 + $0x154] sm:$0xf]
  %v4070 = vld [vmem:[%s745 + $0x158] sm:$0x1]
  %v4071 = vld [vmem:[%s745 + $0x15c] sm:$0xf]
  %v4072 = vld [vmem:[%s745 + $0x160] sm:$0xf]
  %v4073 = vld [vmem:[%s745 + $0x164] sm:$0x1]
  %v4074 = vld [vmem:[%s745 + $0x168] sm:$0xf]
  %v4075 = vld [vmem:[%s745 + $0x16c] sm:$0xf]
  %v4076 = vld [vmem:[%s745 + $0x170] sm:$0x1]
  %v4077 = vld [vmem:[%s745 + $0x174] sm:$0xf]
  %v4078 = vld [vmem:[%s745 + $0x178] sm:$0xf]
  %v4079 = vld [vmem:[%s745 + $0x17c] sm:$0x1]
  %v4080 = vld [vmem:[%s745 + $0x180] sm:$0xf]
  %v4081 = vld [vmem:[%s745 + $0x184] sm:$0xf]
  %v4082 = vld [vmem:[%s745 + $0x188] sm:$0x1]
  %v4083 = vld [vmem:[%s745 + $0x18c] sm:$0xf]
  %v4084 = vld [vmem:[%s745 + $0x190] sm:$0xf]
  %v4085 = vld [vmem:[%s745 + $0x194] sm:$0x1]
  %v4086 = vld [vmem:[%s745] sm:$0xe]
  %v4087 = vld [vmem:[%s745 + $0xc] sm:$0xe]
  %v4088 = vld [vmem:[%s745 + $0x18] sm:$0xe]
  %v4089 = vld [vmem:[%s745 + $0x24] sm:$0xe]
  %v4090 = vld [vmem:[%s745 + $0x30] sm:$0xe]
  %v4091 = vld [vmem:[%s745 + $0x3c] sm:$0xe]
  %v4092 = vld [vmem:[%s745 + $0x48] sm:$0xe]
  %v4093 = vld [vmem:[%s745 + $0x54] sm:$0xe]
  %v4094 = vld [vmem:[%s745 + $0x60] sm:$0xe]
  %v4095 = vld [vmem:[%s745 + $0x6c] sm:$0xe]
  %v4096 = vld [vmem:[%s745 + $0x78] sm:$0xe]
  %v4097 = vld [vmem:[%s745 + $0x84] sm:$0xe]
  %v4098 = vld [vmem:[%s745 + $0x90] sm:$0xe]
  %v4099 = vld [vmem:[%s745 + $0x9c] sm:$0xe]
  %v4100 = vld [vmem:[%s745 + $0xa8] sm:$0xe]
  %v4101 = vld [vmem:[%s745 + $0xb4] sm:$0xe]
  %v4102 = vld [vmem:[%s745 + $0xd8] sm:$0xe]
  %v4103 = vld [vmem:[%s745 + $0xe4] sm:$0xe]
  %v4104 = vld [vmem:[%s745 + $0xf0] sm:$0xe]
  %v4105 = vld [vmem:[%s745 + $0xfc] sm:$0xe]
  %v4106 = vld [vmem:[%s745 + $0x108] sm:$0xe]
  %v4107 = vld [vmem:[%s745 + $0x114] sm:$0xe]
  %v4108 = vld [vmem:[%s745 + $0x120] sm:$0xe]
  %v4109 = vld [vmem:[%s745 + $0x12c] sm:$0xe]
  %v4110 = vld [vmem:[%s745 + $0x138] sm:$0xe]
  %v4111 = vld [vmem:[%s745 + $0x144] sm:$0xe]
  %v4112 = vld [vmem:[%s745 + $0x150] sm:$0xe]
  %v4113 = vld [vmem:[%s745 + $0x15c] sm:$0xe]
  %v4114 = vld [vmem:[%s745 + $0x168] sm:$0xe]
  %v4115 = vld [vmem:[%s745 + $0x174] sm:$0xe]
  %v4116 = vld [vmem:[%s745 + $0x180] sm:$0xe]
  %v4117 = vld [vmem:[%s745 + $0x18c] sm:$0xe]
  %v4214 = vunpack.c.l.b16 %v3990
  %v4215 = vunpack.c.l.b16 %v3991
  %v4216 = vunpack.c.l.b16 %v3992
  %v4217 = vunpack.c.l.b16 %v3993
  %v4218 = vunpack.c.l.b16 %v3994
  %v4219 = vunpack.c.l.b16 %v3995
  %v4220 = vunpack.c.l.b16 %v3996
  %v4221 = vunpack.c.l.b16 %v3997
  %v4222 = vunpack.c.l.b16 %v3998
  %v4223 = vunpack.c.l.b16 %v3999
  %v4224 = vunpack.c.l.b16 %v4000
  %v4225 = vunpack.c.l.b16 %v4001
  %v4226 = vunpack.c.l.b16 %v4002
  %v4227 = vunpack.c.l.b16 %v4003
  %v4228 = vunpack.c.l.b16 %v4004
  %v4229 = vunpack.c.l.b16 %v4005
  %v4230 = vunpack.c.l.b16 %v4006
  %v4231 = vunpack.c.l.b16 %v4007
  %v4232 = vunpack.c.l.b16 %v4008
  %v4233 = vunpack.c.l.b16 %v4009
  %v4234 = vunpack.c.l.b16 %v4010
  %v4235 = vunpack.c.l.b16 %v4011
  %v4236 = vunpack.c.l.b16 %v4012
  %v4237 = vunpack.c.l.b16 %v4013
  %v4238 = vunpack.c.l.b16 %v4014
  %v4239 = vunpack.c.l.b16 %v4015
  %v4240 = vunpack.c.l.b16 %v4016
  %v4241 = vunpack.c.l.b16 %v4017
  %v4242 = vunpack.c.l.b16 %v4018
  %v4243 = vunpack.c.l.b16 %v4019
  %v4244 = vunpack.c.l.b16 %v4020
  %v4245 = vunpack.c.l.b16 %v4021
  %v4246 = vunpack.c.l.b16 %v4022
  %v4247 = vunpack.c.l.b16 %v4023
  %v4248 = vunpack.c.l.b16 %v4024
  %v4249 = vunpack.c.l.b16 %v4025
  %v4250 = vunpack.c.l.b16 %v4026
  %v4251 = vunpack.c.l.b16 %v4027
  %v4252 = vunpack.c.l.b16 %v4028
  %v4253 = vunpack.c.l.b16 %v4029
  %v4254 = vunpack.c.l.b16 %v4030
  %v4255 = vunpack.c.l.b16 %v4031
  %v4256 = vunpack.c.l.b16 %v4032
  %v4257 = vunpack.c.l.b16 %v4033
  %v4258 = vunpack.c.l.b16 %v4034
  %v4259 = vunpack.c.l.b16 %v4035
  %v4260 = vunpack.c.l.b16 %v4036
  %v4261 = vunpack.c.l.b16 %v4037
  %v4262 = vunpack.c.l.b16 %v4038
  %v4263 = vunpack.c.l.b16 %v4039
  %v4264 = vunpack.c.l.b16 %v4040
  %v4265 = vunpack.c.l.b16 %v4041
  %v4266 = vunpack.c.l.b16 %v4042
  %v4267 = vunpack.c.l.b16 %v4043
  %v4268 = vunpack.c.l.b16 %v4044
  %v4269 = vunpack.c.l.b16 %v4045
  %v4270 = vunpack.c.l.b16 %v4046
  %v4271 = vunpack.c.l.b16 %v4047
  %v4272 = vunpack.c.l.b16 %v4048
  %v4273 = vunpack.c.l.b16 %v4049
  %v4274 = vunpack.c.l.b16 %v4050
  %v4275 = vunpack.c.l.b16 %v4051
  %v4276 = vunpack.c.l.b16 %v4052
  %v4277 = vunpack.c.l.b16 %v4053
  %v4278 = vunpack.c.l.b16 %v4054
  %v4279 = vunpack.c.l.b16 %v4055
  %v4280 = vunpack.c.l.b16 %v4056
  %v4281 = vunpack.c.l.b16 %v4057
  %v4282 = vunpack.c.l.b16 %v4058
  %v4283 = vunpack.c.l.b16 %v4059
  %v4284 = vunpack.c.l.b16 %v4060
  %v4285 = vunpack.c.l.b16 %v4061
  %v4286 = vunpack.c.l.b16 %v4062
  %v4287 = vunpack.c.l.b16 %v4063
  %v4288 = vunpack.c.l.b16 %v4064
  %v4289 = vunpack.c.l.b16 %v4065
  %v4290 = vunpack.c.l.b16 %v4066
  %v4291 = vunpack.c.l.b16 %v4067
  %v4292 = vunpack.c.l.b16 %v4068
  %v4293 = vunpack.c.l.b16 %v4069
  %v4294 = vunpack.c.l.b16 %v4070
  %v4295 = vunpack.c.l.b16 %v4071
  %v4296 = vunpack.c.l.b16 %v4072
  %v4297 = vunpack.c.l.b16 %v4073
  %v4298 = vunpack.c.l.b16 %v4074
  %v4299 = vunpack.c.l.b16 %v4075
  %v4300 = vunpack.c.l.b16 %v4076
  %v4301 = vunpack.c.l.b16 %v4077
  %v4302 = vunpack.c.l.b16 %v4078
  %v4303 = vunpack.c.l.b16 %v4079
  %v4304 = vunpack.c.l.b16 %v4080
  %v4305 = vunpack.c.l.b16 %v4081
  %v4306 = vunpack.c.l.b16 %v4082
  %v4307 = vunpack.c.l.b16 %v4083
  %v4308 = vunpack.c.l.b16 %v4084
  %v4309 = vunpack.c.l.b16 %v4085
  %v4310 = vpack.c.b16 %v4215, %v4214
  %v4311 = vpack.c.b16 %v4216, %v4216
  %v4312 = vpack.c.b16 %v4218, %v4217
  %v4313 = vpack.c.b16 %v4219, %v4219
  %v4314 = vpack.c.b16 %v4221, %v4220
  %v4315 = vpack.c.b16 %v4222, %v4222
  %v4316 = vpack.c.b16 %v4224, %v4223
  %v4317 = vpack.c.b16 %v4225, %v4225
  %v4318 = vpack.c.b16 %v4227, %v4226
  %v4319 = vpack.c.b16 %v4228, %v4228
  %v4320 = vpack.c.b16 %v4230, %v4229
  %v4321 = vpack.c.b16 %v4231, %v4231
  %v4322 = vpack.c.b16 %v4233, %v4232
  %v4323 = vpack.c.b16 %v4234, %v4234
  %v4324 = vpack.c.b16 %v4236, %v4235
  %v4325 = vpack.c.b16 %v4237, %v4237
  %v4326 = vpack.c.b16 %v4239, %v4238
  %v4327 = vpack.c.b16 %v4240, %v4240
  %v4328 = vpack.c.b16 %v4242, %v4241
  %v4329 = vpack.c.b16 %v4243, %v4243
  %v4330 = vpack.c.b16 %v4245, %v4244
  %v4331 = vpack.c.b16 %v4246, %v4246
  %v4332 = vpack.c.b16 %v4248, %v4247
  %v4333 = vpack.c.b16 %v4249, %v4249
  %v4334 = vpack.c.b16 %v4251, %v4250
  %v4335 = vpack.c.b16 %v4252, %v4252
  %v4336 = vpack.c.b16 %v4254, %v4253
  %v4337 = vpack.c.b16 %v4255, %v4255
  %v4338 = vpack.c.b16 %v4257, %v4256
  %v4339 = vpack.c.b16 %v4258, %v4258
  %v4340 = vpack.c.b16 %v4260, %v4259
  %v4341 = vpack.c.b16 %v4261, %v4261
  %v4342 = vpack.c.b16 %v4263, %v4262
  %v4343 = vpack.c.b16 %v4264, %v4264
  %v4344 = vpack.c.b16 %v4266, %v4265
  %v4345 = vpack.c.b16 %v4267, %v4267
  %v4346 = vpack.c.b16 %v4269, %v4268
  %v4347 = vpack.c.b16 %v4270, %v4270
  %v4348 = vpack.c.b16 %v4272, %v4271
  %v4349 = vpack.c.b16 %v4273, %v4273
  %v4350 = vpack.c.b16 %v4275, %v4274
  %v4351 = vpack.c.b16 %v4276, %v4276
  %v4352 = vpack.c.b16 %v4278, %v4277
  %v4353 = vpack.c.b16 %v4279, %v4279
  %v4354 = vpack.c.b16 %v4281, %v4280
  %v4355 = vpack.c.b16 %v4282, %v4282
  %v4356 = vpack.c.b16 %v4284, %v4283
  %v4357 = vpack.c.b16 %v4285, %v4285
  %v4358 = vpack.c.b16 %v4287, %v4286
  %v4359 = vpack.c.b16 %v4288, %v4288
  %v4360 = vpack.c.b16 %v4290, %v4289
  %v4361 = vpack.c.b16 %v4291, %v4291
  %v4362 = vpack.c.b16 %v4293, %v4292
  %v4363 = vpack.c.b16 %v4294, %v4294
  %v4364 = vpack.c.b16 %v4296, %v4295
  %v4365 = vpack.c.b16 %v4297, %v4297
  %v4366 = vpack.c.b16 %v4299, %v4298
  %v4367 = vpack.c.b16 %v4300, %v4300
  %v4368 = vpack.c.b16 %v4302, %v4301
  %v4369 = vpack.c.b16 %v4303, %v4303
  %v4370 = vpack.c.b16 %v4305, %v4304
  %v4371 = vpack.c.b16 %v4306, %v4306
  %v4372 = vpack.c.b16 %v4308, %v4307
  %v4373 = vpack.c.b16 %v4309, %v4309
  %v4406 = vunpack.c.l.b16 %v4086
  %v4407 = vunpack.c.l.b16 %v4087
  %v4408 = vunpack.c.l.b16 %v4088
  %v4409 = vunpack.c.l.b16 %v4089
  %v4410 = vunpack.c.l.b16 %v4090
  %v4411 = vunpack.c.l.b16 %v4091
  %v4412 = vunpack.c.l.b16 %v4092
  %v4413 = vunpack.c.l.b16 %v4093
  %v4414 = vunpack.c.l.b16 %v4094
  %v4415 = vunpack.c.l.b16 %v4095
  %v4416 = vunpack.c.l.b16 %v4096
  %v4417 = vunpack.c.l.b16 %v4097
  %v4418 = vunpack.c.l.b16 %v4098
  %v4419 = vunpack.c.l.b16 %v4099
  %v4420 = vunpack.c.l.b16 %v4100
  %v4421 = vunpack.c.l.b16 %v4101
  %v4422 = vunpack.c.l.b16 %v4102
  %v4423 = vunpack.c.l.b16 %v4103
  %v4424 = vunpack.c.l.b16 %v4104
  %v4425 = vunpack.c.l.b16 %v4105
  %v4426 = vunpack.c.l.b16 %v4106
  %v4427 = vunpack.c.l.b16 %v4107
  %v4428 = vunpack.c.l.b16 %v4108
  %v4429 = vunpack.c.l.b16 %v4109
  %v4430 = vunpack.c.l.b16 %v4110
  %v4431 = vunpack.c.l.b16 %v4111
  %v4432 = vunpack.c.l.b16 %v4112
  %v4433 = vunpack.c.l.b16 %v4113
  %v4434 = vunpack.c.l.b16 %v4114
  %v4435 = vunpack.c.l.b16 %v4115
  %v4436 = vunpack.c.l.b16 %v4116
  %v4437 = vunpack.c.l.b16 %v4117
  %v4438 = vpack.c.b16 %v4215, %v4406
  %v4439 = vpack.c.b16 %v4218, %v4407
  %v4440 = vpack.c.b16 %v4221, %v4408
  %v4441 = vpack.c.b16 %v4224, %v4409
  %v4442 = vpack.c.b16 %v4227, %v4410
  %v4443 = vpack.c.b16 %v4230, %v4411
  %v4444 = vpack.c.b16 %v4233, %v4412
  %v4445 = vpack.c.b16 %v4236, %v4413
  %v4446 = vpack.c.b16 %v4239, %v4414
  %v4447 = vpack.c.b16 %v4242, %v4415
  %v4448 = vpack.c.b16 %v4245, %v4416
  %v4449 = vpack.c.b16 %v4248, %v4417
  %v4450 = vpack.c.b16 %v4251, %v4418
  %v4451 = vpack.c.b16 %v4254, %v4419
  %v4452 = vpack.c.b16 %v4257, %v4420
  %v4453 = vpack.c.b16 %v4260, %v4421
  %v4454 = vpack.c.b16 %v4263, %v4422
  %v4455 = vpack.c.b16 %v4266, %v4423
  %v4456 = vpack.c.b16 %v4269, %v4424
  %v4457 = vpack.c.b16 %v4272, %v4425
  %v4458 = vpack.c.b16 %v4275, %v4426
  %v4459 = vpack.c.b16 %v4278, %v4427
  %v4460 = vpack.c.b16 %v4281, %v4428
  %v4461 = vpack.c.b16 %v4284, %v4429
  %v4462 = vpack.c.b16 %v4287, %v4430
  %v4463 = vpack.c.b16 %v4290, %v4431
  %v4464 = vpack.c.b16 %v4293, %v4432
  %v4465 = vpack.c.b16 %v4296, %v4433
  %v4466 = vpack.c.b16 %v4299, %v4434
  %v4467 = vpack.c.b16 %v4302, %v4435
  %v4468 = vpack.c.b16 %v4305, %v4436
  %v4469 = vpack.c.b16 %v4308, %v4437
  %v4471 = vshrl.u32 %v4438, 16
  %v4473 = vshll.u32 %v4438, 16
  %v4475 = vrot.slane %v4473, 1
  %v4476 = vor.u32 %v4471, %v4475
  %v4478 = vshll.u32 %v4311, 16
  %v4480 = vrot.slane %v4478, 1
  %v4481 = vsel %vm2355, %v4476, %v4480
  %v4482 = vshrl.u32 %v4311, 16
  %v4485 = vshrl.u32 %v4439, 16
  %v4487 = vshll.u32 %v4439, 16
  %v4489 = vrot.slane %v4487, 1
  %v4490 = vor.u32 %v4485, %v4489
  %v4492 = vshll.u32 %v4313, 16
  %v4494 = vrot.slane %v4492, 1
  %v4495 = vsel %vm2355, %v4490, %v4494
  %v4496 = vshrl.u32 %v4313, 16
  %v4499 = vshrl.u32 %v4440, 16
  %v4501 = vshll.u32 %v4440, 16
  %v4503 = vrot.slane %v4501, 1
  %v4504 = vor.u32 %v4499, %v4503
  %v4506 = vshll.u32 %v4315, 16
  %v4508 = vrot.slane %v4506, 1
  %v4509 = vsel %vm2355, %v4504, %v4508
  %v4510 = vshrl.u32 %v4315, 16
  %v4513 = vshrl.u32 %v4441, 16
  %v4515 = vshll.u32 %v4441, 16
  %v4517 = vrot.slane %v4515, 1
  %v4518 = vor.u32 %v4513, %v4517
  %v4520 = vshll.u32 %v4317, 16
  %v4522 = vrot.slane %v4520, 1
  %v4523 = vsel %vm2355, %v4518, %v4522
  %v4524 = vshrl.u32 %v4317, 16
  %v4527 = vshrl.u32 %v4442, 16
  %v4529 = vshll.u32 %v4442, 16
  %v4531 = vrot.slane %v4529, 1
  %v4532 = vor.u32 %v4527, %v4531
  %v4534 = vshll.u32 %v4319, 16
  %v4536 = vrot.slane %v4534, 1
  %v4537 = vsel %vm2355, %v4532, %v4536
  %v4538 = vshrl.u32 %v4319, 16
  %v4541 = vshrl.u32 %v4443, 16
  %v4543 = vshll.u32 %v4443, 16
  %v4545 = vrot.slane %v4543, 1
  %v4546 = vor.u32 %v4541, %v4545
  %v4548 = vshll.u32 %v4321, 16
  %v4550 = vrot.slane %v4548, 1
  %v4551 = vsel %vm2355, %v4546, %v4550
  %v4552 = vshrl.u32 %v4321, 16
  %v4555 = vshrl.u32 %v4444, 16
  %v4557 = vshll.u32 %v4444, 16
  %v4559 = vrot.slane %v4557, 1
  %v4560 = vor.u32 %v4555, %v4559
  %v4562 = vshll.u32 %v4323, 16
  %v4564 = vrot.slane %v4562, 1
  %v4565 = vsel %vm2355, %v4560, %v4564
  %v4566 = vshrl.u32 %v4323, 16
  %v4569 = vshrl.u32 %v4445, 16
  %v4571 = vshll.u32 %v4445, 16
  %v4573 = vrot.slane %v4571, 1
  %v4574 = vor.u32 %v4569, %v4573
  %v4576 = vshll.u32 %v4325, 16
  %v4578 = vrot.slane %v4576, 1
  %v4579 = vsel %vm2355, %v4574, %v4578
  %v4580 = vshrl.u32 %v4325, 16
  %v4583 = vshrl.u32 %v4446, 16
  %v4585 = vshll.u32 %v4446, 16
  %v4587 = vrot.slane %v4585, 1
  %v4588 = vor.u32 %v4583, %v4587
  %v4590 = vshll.u32 %v4327, 16
  %v4592 = vrot.slane %v4590, 1
  %v4593 = vsel %vm2355, %v4588, %v4592
  %v4594 = vshrl.u32 %v4327, 16
  %v4597 = vshrl.u32 %v4447, 16
  %v4599 = vshll.u32 %v4447, 16
  %v4601 = vrot.slane %v4599, 1
  %v4602 = vor.u32 %v4597, %v4601
  %v4604 = vshll.u32 %v4329, 16
  %v4606 = vrot.slane %v4604, 1
  %v4607 = vsel %vm2355, %v4602, %v4606
  %v4608 = vshrl.u32 %v4329, 16
  %v4611 = vshrl.u32 %v4448, 16
  %v4613 = vshll.u32 %v4448, 16
  %v4615 = vrot.slane %v4613, 1
  %v4616 = vor.u32 %v4611, %v4615
  %v4618 = vshll.u32 %v4331, 16
  %v4620 = vrot.slane %v4618, 1
  %v4621 = vsel %vm2355, %v4616, %v4620
  %v4622 = vshrl.u32 %v4331, 16
  %v4625 = vshrl.u32 %v4449, 16
  %v4627 = vshll.u32 %v4449, 16
  %v4629 = vrot.slane %v4627, 1
  %v4630 = vor.u32 %v4625, %v4629
  %v4632 = vshll.u32 %v4333, 16
  %v4634 = vrot.slane %v4632, 1
  %v4635 = vsel %vm2355, %v4630, %v4634
  %v4636 = vshrl.u32 %v4333, 16
  %v4639 = vshrl.u32 %v4450, 16
  %v4641 = vshll.u32 %v4450, 16
  %v4643 = vrot.slane %v4641, 1
  %v4644 = vor.u32 %v4639, %v4643
  %v4646 = vshll.u32 %v4335, 16
  %v4648 = vrot.slane %v4646, 1
  %v4649 = vsel %vm2355, %v4644, %v4648
  %v4650 = vshrl.u32 %v4335, 16
  %v4653 = vshrl.u32 %v4451, 16
  %v4655 = vshll.u32 %v4451, 16
  %v4657 = vrot.slane %v4655, 1
  %v4658 = vor.u32 %v4653, %v4657
  %v4660 = vshll.u32 %v4337, 16
  %v4662 = vrot.slane %v4660, 1
  %v4663 = vsel %vm2355, %v4658, %v4662
  %v4664 = vshrl.u32 %v4337, 16
  %v4667 = vshrl.u32 %v4452, 16
  %v4669 = vshll.u32 %v4452, 16
  %v4671 = vrot.slane %v4669, 1
  %v4672 = vor.u32 %v4667, %v4671
  %v4674 = vshll.u32 %v4339, 16
  %v4676 = vrot.slane %v4674, 1
  %v4677 = vsel %vm2355, %v4672, %v4676
  %v4678 = vshrl.u32 %v4339, 16
  %v4681 = vshrl.u32 %v4453, 16
  %v4683 = vshll.u32 %v4453, 16
  %v4685 = vrot.slane %v4683, 1
  %v4686 = vor.u32 %v4681, %v4685
  %v4688 = vshll.u32 %v4341, 16
  %v4690 = vrot.slane %v4688, 1
  %v4691 = vsel %vm2355, %v4686, %v4690
  %v4692 = vshrl.u32 %v4341, 16
  %v4695 = vshrl.u32 %v4454, 16
  %v4697 = vshll.u32 %v4454, 16
  %v4699 = vrot.slane %v4697, 1
  %v4700 = vor.u32 %v4695, %v4699
  %v4702 = vshll.u32 %v4343, 16
  %v4704 = vrot.slane %v4702, 1
  %v4705 = vsel %vm2355, %v4700, %v4704
  %v4706 = vshrl.u32 %v4343, 16
  %v4709 = vshrl.u32 %v4455, 16
  %v4711 = vshll.u32 %v4455, 16
  %v4713 = vrot.slane %v4711, 1
  %v4714 = vor.u32 %v4709, %v4713
  %v4716 = vshll.u32 %v4345, 16
  %v4718 = vrot.slane %v4716, 1
  %v4719 = vsel %vm2355, %v4714, %v4718
  %v4720 = vshrl.u32 %v4345, 16
  %v4723 = vshrl.u32 %v4456, 16
  %v4725 = vshll.u32 %v4456, 16
  %v4727 = vrot.slane %v4725, 1
  %v4728 = vor.u32 %v4723, %v4727
  %v4730 = vshll.u32 %v4347, 16
  %v4732 = vrot.slane %v4730, 1
  %v4733 = vsel %vm2355, %v4728, %v4732
  %v4734 = vshrl.u32 %v4347, 16
  %v4737 = vshrl.u32 %v4457, 16
  %v4739 = vshll.u32 %v4457, 16
  %v4741 = vrot.slane %v4739, 1
  %v4742 = vor.u32 %v4737, %v4741
  %v4744 = vshll.u32 %v4349, 16
  %v4746 = vrot.slane %v4744, 1
  %v4747 = vsel %vm2355, %v4742, %v4746
  %v4748 = vshrl.u32 %v4349, 16
  %v4751 = vshrl.u32 %v4458, 16
  %v4753 = vshll.u32 %v4458, 16
  %v4755 = vrot.slane %v4753, 1
  %v4756 = vor.u32 %v4751, %v4755
  %v4758 = vshll.u32 %v4351, 16
  %v4760 = vrot.slane %v4758, 1
  %v4761 = vsel %vm2355, %v4756, %v4760
  %v4762 = vshrl.u32 %v4351, 16
  %v4765 = vshrl.u32 %v4459, 16
  %v4767 = vshll.u32 %v4459, 16
  %v4769 = vrot.slane %v4767, 1
  %v4770 = vor.u32 %v4765, %v4769
  %v4772 = vshll.u32 %v4353, 16
  %v4774 = vrot.slane %v4772, 1
  %v4775 = vsel %vm2355, %v4770, %v4774
  %v4776 = vshrl.u32 %v4353, 16
  %v4779 = vshrl.u32 %v4460, 16
  %v4781 = vshll.u32 %v4460, 16
  %v4783 = vrot.slane %v4781, 1
  %v4784 = vor.u32 %v4779, %v4783
  %v4786 = vshll.u32 %v4355, 16
  %v4788 = vrot.slane %v4786, 1
  %v4789 = vsel %vm2355, %v4784, %v4788
  %v4790 = vshrl.u32 %v4355, 16
  %v4793 = vshrl.u32 %v4461, 16
  %v4795 = vshll.u32 %v4461, 16
  %v4797 = vrot.slane %v4795, 1
  %v4798 = vor.u32 %v4793, %v4797
  %v4800 = vshll.u32 %v4357, 16
  %v4802 = vrot.slane %v4800, 1
  %v4803 = vsel %vm2355, %v4798, %v4802
  %v4804 = vshrl.u32 %v4357, 16
  %v4807 = vshrl.u32 %v4462, 16
  %v4809 = vshll.u32 %v4462, 16
  %v4811 = vrot.slane %v4809, 1
  %v4812 = vor.u32 %v4807, %v4811
  %v4814 = vshll.u32 %v4359, 16
  %v4816 = vrot.slane %v4814, 1
  %v4817 = vsel %vm2355, %v4812, %v4816
  %v4818 = vshrl.u32 %v4359, 16
  %v4821 = vshrl.u32 %v4463, 16
  %v4823 = vshll.u32 %v4463, 16
  %v4825 = vrot.slane %v4823, 1
  %v4826 = vor.u32 %v4821, %v4825
  %v4828 = vshll.u32 %v4361, 16
  %v4830 = vrot.slane %v4828, 1
  %v4831 = vsel %vm2355, %v4826, %v4830
  %v4832 = vshrl.u32 %v4361, 16
  %v4835 = vshrl.u32 %v4464, 16
  %v4837 = vshll.u32 %v4464, 16
  %v4839 = vrot.slane %v4837, 1
  %v4840 = vor.u32 %v4835, %v4839
  %v4842 = vshll.u32 %v4363, 16
  %v4844 = vrot.slane %v4842, 1
  %v4845 = vsel %vm2355, %v4840, %v4844
  %v4846 = vshrl.u32 %v4363, 16
  %v4849 = vshrl.u32 %v4465, 16
  %v4851 = vshll.u32 %v4465, 16
  %v4853 = vrot.slane %v4851, 1
  %v4854 = vor.u32 %v4849, %v4853
  %v4856 = vshll.u32 %v4365, 16
  %v4858 = vrot.slane %v4856, 1
  %v4859 = vsel %vm2355, %v4854, %v4858
  %v4860 = vshrl.u32 %v4365, 16
  %v4863 = vshrl.u32 %v4466, 16
  %v4865 = vshll.u32 %v4466, 16
  %v4867 = vrot.slane %v4865, 1
  %v4868 = vor.u32 %v4863, %v4867
  %v4870 = vshll.u32 %v4367, 16
  %v4872 = vrot.slane %v4870, 1
  %v4873 = vsel %vm2355, %v4868, %v4872
  %v4874 = vshrl.u32 %v4367, 16
  %v4877 = vshrl.u32 %v4467, 16
  %v4879 = vshll.u32 %v4467, 16
  %v4881 = vrot.slane %v4879, 1
  %v4882 = vor.u32 %v4877, %v4881
  %v4884 = vshll.u32 %v4369, 16
  %v4886 = vrot.slane %v4884, 1
  %v4887 = vsel %vm2355, %v4882, %v4886
  %v4888 = vshrl.u32 %v4369, 16
  %v4891 = vshrl.u32 %v4468, 16
  %v4893 = vshll.u32 %v4468, 16
  %v4895 = vrot.slane %v4893, 1
  %v4896 = vor.u32 %v4891, %v4895
  %v4898 = vshll.u32 %v4371, 16
  %v4900 = vrot.slane %v4898, 1
  %v4901 = vsel %vm2355, %v4896, %v4900
  %v4902 = vshrl.u32 %v4371, 16
  %v4905 = vshrl.u32 %v4469, 16
  %v4907 = vshll.u32 %v4469, 16
  %v4909 = vrot.slane %v4907, 1
  %v4910 = vor.u32 %v4905, %v4909
  %v4912 = vshll.u32 %v4373, 16
  %v4914 = vrot.slane %v4912, 1
  %v4915 = vsel %vm2355, %v4910, %v4914
  %v4916 = vshrl.u32 %v4373, 16
  %4918 = vrot.lane.b32.xlu0 %v4481, 64
  %v4919 = vpop.permute.xlu0 %4918
  %4920 = vrot.lane.b32.xlu0 %v4482, 64
  %v4921 = vpop.permute.xlu0 %4920
  %4922 = vrot.lane.b32.xlu0 %v4495, 64
  %v4923 = vpop.permute.xlu0 %4922
  %4924 = vrot.lane.b32.xlu0 %v4496, 64
  %v4925 = vpop.permute.xlu0 %4924
  %4926 = vrot.lane.b32.xlu0 %v4509, 64
  %v4927 = vpop.permute.xlu0 %4926
  %4928 = vrot.lane.b32.xlu0 %v4510, 64
  %v4929 = vpop.permute.xlu0 %4928
  %4930 = vrot.lane.b32.xlu0 %v4523, 64
  %v4931 = vpop.permute.xlu0 %4930
  %4932 = vrot.lane.b32.xlu0 %v4524, 64
  %v4933 = vpop.permute.xlu0 %4932
  %4934 = vrot.lane.b32.xlu0 %v4537, 64
  %v4935 = vpop.permute.xlu0 %4934
  %4936 = vrot.lane.b32.xlu0 %v4538, 64
  %v4937 = vpop.permute.xlu0 %4936
  %4938 = vrot.lane.b32.xlu0 %v4551, 64
  %v4939 = vpop.permute.xlu0 %4938
  %4940 = vrot.lane.b32.xlu0 %v4552, 64
  %v4941 = vpop.permute.xlu0 %4940
  %4942 = vrot.lane.b32.xlu0 %v4565, 64
  %v4943 = vpop.permute.xlu0 %4942
  %4944 = vrot.lane.b32.xlu0 %v4566, 64
  %v4945 = vpop.permute.xlu0 %4944
  %4946 = vrot.lane.b32.xlu0 %v4579, 64
  %v4947 = vpop.permute.xlu0 %4946
  %4948 = vrot.lane.b32.xlu0 %v4580, 64
  %v4949 = vpop.permute.xlu0 %4948
  %4950 = vrot.lane.b32.xlu0 %v4593, 64
  %v4951 = vpop.permute.xlu0 %4950
  %4952 = vrot.lane.b32.xlu0 %v4594, 64
  %v4953 = vpop.permute.xlu0 %4952
  %4954 = vrot.lane.b32.xlu0 %v4607, 64
  %v4955 = vpop.permute.xlu0 %4954
  %4956 = vrot.lane.b32.xlu0 %v4608, 64
  %v4957 = vpop.permute.xlu0 %4956
  %4958 = vrot.lane.b32.xlu0 %v4621, 64
  %v4959 = vpop.permute.xlu0 %4958
  %4960 = vrot.lane.b32.xlu0 %v4622, 64
  %v4961 = vpop.permute.xlu0 %4960
  %4962 = vrot.lane.b32.xlu0 %v4635, 64
  %v4963 = vpop.permute.xlu0 %4962
  %4964 = vrot.lane.b32.xlu0 %v4636, 64
  %v4965 = vpop.permute.xlu0 %4964
  %4966 = vrot.lane.b32.xlu0 %v4649, 64
  %v4967 = vpop.permute.xlu0 %4966
  %4968 = vrot.lane.b32.xlu0 %v4650, 64
  %v4969 = vpop.permute.xlu0 %4968
  %4970 = vrot.lane.b32.xlu0 %v4663, 64
  %v4971 = vpop.permute.xlu0 %4970
  %4972 = vrot.lane.b32.xlu0 %v4664, 64
  %v4973 = vpop.permute.xlu0 %4972
  %4974 = vrot.lane.b32.xlu0 %v4677, 64
  %v4975 = vpop.permute.xlu0 %4974
  %4976 = vrot.lane.b32.xlu0 %v4678, 64
  %v4977 = vpop.permute.xlu0 %4976
  %4978 = vrot.lane.b32.xlu0 %v4691, 64
  %v4979 = vpop.permute.xlu0 %4978
  %4980 = vrot.lane.b32.xlu0 %v4692, 64
  %v4981 = vpop.permute.xlu0 %4980
  %4982 = vrot.lane.b32.xlu0 %v4705, 64
  %v4983 = vpop.permute.xlu0 %4982
  %4984 = vrot.lane.b32.xlu0 %v4706, 64
  %v4985 = vpop.permute.xlu0 %4984
  %4986 = vrot.lane.b32.xlu0 %v4719, 64
  %v4987 = vpop.permute.xlu0 %4986
  %4988 = vrot.lane.b32.xlu0 %v4720, 64
  %v4989 = vpop.permute.xlu0 %4988
  %4990 = vrot.lane.b32.xlu0 %v4733, 64
  %v4991 = vpop.permute.xlu0 %4990
  %4992 = vrot.lane.b32.xlu0 %v4734, 64
  %v4993 = vpop.permute.xlu0 %4992
  %4994 = vrot.lane.b32.xlu0 %v4747, 64
  %v4995 = vpop.permute.xlu0 %4994
  %4996 = vrot.lane.b32.xlu0 %v4748, 64
  %v4997 = vpop.permute.xlu0 %4996
  %4998 = vrot.lane.b32.xlu0 %v4761, 64
  %v4999 = vpop.permute.xlu0 %4998
  %5000 = vrot.lane.b32.xlu0 %v4762, 64
  %v5001 = vpop.permute.xlu0 %5000
  %5002 = vrot.lane.b32.xlu0 %v4775, 64
  %v5003 = vpop.permute.xlu0 %5002
  %5004 = vrot.lane.b32.xlu0 %v4776, 64
  %v5005 = vpop.permute.xlu0 %5004
  %5006 = vrot.lane.b32.xlu0 %v4789, 64
  %v5007 = vpop.permute.xlu0 %5006
  %5008 = vrot.lane.b32.xlu0 %v4790, 64
  %v5009 = vpop.permute.xlu0 %5008
  %5010 = vrot.lane.b32.xlu0 %v4803, 64
  %v5011 = vpop.permute.xlu0 %5010
  %5012 = vrot.lane.b32.xlu0 %v4804, 64
  %v5013 = vpop.permute.xlu0 %5012
  %5014 = vrot.lane.b32.xlu0 %v4817, 64
  %v5015 = vpop.permute.xlu0 %5014
  %5016 = vrot.lane.b32.xlu0 %v4818, 64
  %v5017 = vpop.permute.xlu0 %5016
  %5018 = vrot.lane.b32.xlu0 %v4831, 64
  %v5019 = vpop.permute.xlu0 %5018
  %5020 = vrot.lane.b32.xlu0 %v4832, 64
  %v5021 = vpop.permute.xlu0 %5020
  %5022 = vrot.lane.b32.xlu0 %v4845, 64
  %v5023 = vpop.permute.xlu0 %5022
  %5024 = vrot.lane.b32.xlu0 %v4846, 64
  %v5025 = vpop.permute.xlu0 %5024
  %5026 = vrot.lane.b32.xlu0 %v4859, 64
  %v5027 = vpop.permute.xlu0 %5026
  %5028 = vrot.lane.b32.xlu0 %v4860, 64
  %v5029 = vpop.permute.xlu0 %5028
  %5030 = vrot.lane.b32.xlu0 %v4873, 64
  %v5031 = vpop.permute.xlu0 %5030
  %5032 = vrot.lane.b32.xlu0 %v4874, 64
  %v5033 = vpop.permute.xlu0 %5032
  %5034 = vrot.lane.b32.xlu0 %v4887, 64
  %v5035 = vpop.permute.xlu0 %5034
  %5036 = vrot.lane.b32.xlu0 %v4888, 64
  %v5037 = vpop.permute.xlu0 %5036
  %5038 = vrot.lane.b32.xlu0 %v4901, 64
  %v5039 = vpop.permute.xlu0 %5038
  %5040 = vrot.lane.b32.xlu0 %v4902, 64
  %v5041 = vpop.permute.xlu0 %5040
  %5042 = vrot.lane.b32.xlu0 %v4915, 64
  %v5043 = vpop.permute.xlu0 %5042
  %5044 = vrot.lane.b32.xlu0 %v4916, 64
  %v5045 = vpop.permute.xlu0 %5044
  %v5048 = vsel %vm2804, %v4310, %v4919
  %v5050 = vsel %vm2804, %v4311, %v4921
  %v5053 = vsel %vm2804, %v4312, %v4923
  %v5055 = vsel %vm2804, %v4313, %v4925
  %v5058 = vsel %vm2804, %v4314, %v4927
  %v5060 = vsel %vm2804, %v4315, %v4929
  %v5063 = vsel %vm2804, %v4316, %v4931
  %v5065 = vsel %vm2804, %v4317, %v4933
  %v5068 = vsel %vm2804, %v4318, %v4935
  %v5070 = vsel %vm2804, %v4319, %v4937
  %v5073 = vsel %vm2804, %v4320, %v4939
  %v5075 = vsel %vm2804, %v4321, %v4941
  %v5078 = vsel %vm2804, %v4322, %v4943
  %v5080 = vsel %vm2804, %v4323, %v4945
  %v5083 = vsel %vm2804, %v4324, %v4947
  %v5085 = vsel %vm2804, %v4325, %v4949
  %v5088 = vsel %vm2804, %v4326, %v4951
  %v5090 = vsel %vm2804, %v4327, %v4953
  %v5093 = vsel %vm2804, %v4328, %v4955
  %v5095 = vsel %vm2804, %v4329, %v4957
  %v5098 = vsel %vm2804, %v4330, %v4959
  %v5100 = vsel %vm2804, %v4331, %v4961
  %v5103 = vsel %vm2804, %v4332, %v4963
  %v5105 = vsel %vm2804, %v4333, %v4965
  %v5108 = vsel %vm2804, %v4334, %v4967
  %v5110 = vsel %vm2804, %v4335, %v4969
  %v5113 = vsel %vm2804, %v4336, %v4971
  %v5115 = vsel %vm2804, %v4337, %v4973
  %v5118 = vsel %vm2804, %v4338, %v4975
  %v5120 = vsel %vm2804, %v4339, %v4977
  %v5123 = vsel %vm2804, %v4340, %v4979
  %v5125 = vsel %vm2804, %v4341, %v4981
  %v5128 = vsel %vm2804, %v4342, %v4983
  %v5130 = vsel %vm2804, %v4343, %v4985
  %v5133 = vsel %vm2804, %v4344, %v4987
  %v5135 = vsel %vm2804, %v4345, %v4989
  %v5138 = vsel %vm2804, %v4346, %v4991
  %v5140 = vsel %vm2804, %v4347, %v4993
  %v5143 = vsel %vm2804, %v4348, %v4995
  %v5145 = vsel %vm2804, %v4349, %v4997
  %v5148 = vsel %vm2804, %v4350, %v4999
  %v5150 = vsel %vm2804, %v4351, %v5001
  %v5153 = vsel %vm2804, %v4352, %v5003
  %v5155 = vsel %vm2804, %v4353, %v5005
  %v5158 = vsel %vm2804, %v4354, %v5007
  %v5160 = vsel %vm2804, %v4355, %v5009
  %v5163 = vsel %vm2804, %v4356, %v5011
  %v5165 = vsel %vm2804, %v4357, %v5013
  %v5168 = vsel %vm2804, %v4358, %v5015
  %v5170 = vsel %vm2804, %v4359, %v5017
  %v5173 = vsel %vm2804, %v4360, %v5019
  %v5175 = vsel %vm2804, %v4361, %v5021
  %v5178 = vsel %vm2804, %v4362, %v5023
  %v5180 = vsel %vm2804, %v4363, %v5025
  %v5183 = vsel %vm2804, %v4364, %v5027
  %v5185 = vsel %vm2804, %v4365, %v5029
  %v5188 = vsel %vm2804, %v4366, %v5031
  %v5190 = vsel %vm2804, %v4367, %v5033
  %v5193 = vsel %vm2804, %v4368, %v5035
  %v5195 = vsel %vm2804, %v4369, %v5037
  %v5198 = vsel %vm2804, %v4370, %v5039
  %v5200 = vsel %vm2804, %v4371, %v5041
  %v5203 = vsel %vm2804, %v4372, %v5043
  %v5205 = vsel %vm2804, %v4373, %v5045
  %v5206 = vshrl.u32 %v5048, 16
  %v5208 = vshll.u32 %v5048, 16
  %v5210 = vrot.slane %v5208, 1
  %v5211 = vor.u32 %v5206, %v5210
  %v5212 = vshll.u32 %v5050, 16
  %v5214 = vrot.slane %v5212, 1
  %v5215 = vsel %vm2355, %v5211, %v5214
  %v5216 = vshrl.u32 %v5053, 16
  %v5218 = vshll.u32 %v5053, 16
  %v5220 = vrot.slane %v5218, 1
  %v5221 = vor.u32 %v5216, %v5220
  %v5222 = vshll.u32 %v5055, 16
  %v5224 = vrot.slane %v5222, 1
  %v5225 = vsel %vm2355, %v5221, %v5224
  %v5226 = vshrl.u32 %v5058, 16
  %v5228 = vshll.u32 %v5058, 16
  %v5230 = vrot.slane %v5228, 1
  %v5231 = vor.u32 %v5226, %v5230
  %v5232 = vshll.u32 %v5060, 16
  %v5234 = vrot.slane %v5232, 1
  %v5235 = vsel %vm2355, %v5231, %v5234
  %v5236 = vshrl.u32 %v5063, 16
  %v5238 = vshll.u32 %v5063, 16
  %v5240 = vrot.slane %v5238, 1
  %v5241 = vor.u32 %v5236, %v5240
  %v5242 = vshll.u32 %v5065, 16
  %v5244 = vrot.slane %v5242, 1
  %v5245 = vsel %vm2355, %v5241, %v5244
  %v5246 = vshrl.u32 %v5068, 16
  %v5248 = vshll.u32 %v5068, 16
  %v5250 = vrot.slane %v5248, 1
  %v5251 = vor.u32 %v5246, %v5250
  %v5252 = vshll.u32 %v5070, 16
  %v5254 = vrot.slane %v5252, 1
  %v5255 = vsel %vm2355, %v5251, %v5254
  %v5256 = vshrl.u32 %v5073, 16
  %v5258 = vshll.u32 %v5073, 16
  %v5260 = vrot.slane %v5258, 1
  %v5261 = vor.u32 %v5256, %v5260
  %v5262 = vshll.u32 %v5075, 16
  %v5264 = vrot.slane %v5262, 1
  %v5265 = vsel %vm2355, %v5261, %v5264
  %v5266 = vshrl.u32 %v5078, 16
  %v5268 = vshll.u32 %v5078, 16
  %v5270 = vrot.slane %v5268, 1
  %v5271 = vor.u32 %v5266, %v5270
  %v5272 = vshll.u32 %v5080, 16
  %v5274 = vrot.slane %v5272, 1
  %v5275 = vsel %vm2355, %v5271, %v5274
  %v5276 = vshrl.u32 %v5083, 16
  %v5278 = vshll.u32 %v5083, 16
  %v5280 = vrot.slane %v5278, 1
  %v5281 = vor.u32 %v5276, %v5280
  %v5282 = vshll.u32 %v5085, 16
  %v5284 = vrot.slane %v5282, 1
  %v5285 = vsel %vm2355, %v5281, %v5284
  %v5286 = vshrl.u32 %v5088, 16
  %v5288 = vshll.u32 %v5088, 16
  %v5290 = vrot.slane %v5288, 1
  %v5291 = vor.u32 %v5286, %v5290
  %v5292 = vshll.u32 %v5090, 16
  %v5294 = vrot.slane %v5292, 1
  %v5295 = vsel %vm2355, %v5291, %v5294
  %v5296 = vshrl.u32 %v5093, 16
  %v5298 = vshll.u32 %v5093, 16
  %v5300 = vrot.slane %v5298, 1
  %v5301 = vor.u32 %v5296, %v5300
  %v5302 = vshll.u32 %v5095, 16
  %v5304 = vrot.slane %v5302, 1
  %v5305 = vsel %vm2355, %v5301, %v5304
  %v5306 = vshrl.u32 %v5098, 16
  %v5308 = vshll.u32 %v5098, 16
  %v5310 = vrot.slane %v5308, 1
  %v5311 = vor.u32 %v5306, %v5310
  %v5312 = vshll.u32 %v5100, 16
  %v5314 = vrot.slane %v5312, 1
  %v5315 = vsel %vm2355, %v5311, %v5314
  %v5316 = vshrl.u32 %v5103, 16
  %v5318 = vshll.u32 %v5103, 16
  %v5320 = vrot.slane %v5318, 1
  %v5321 = vor.u32 %v5316, %v5320
  %v5322 = vshll.u32 %v5105, 16
  %v5324 = vrot.slane %v5322, 1
  %v5325 = vsel %vm2355, %v5321, %v5324
  %v5326 = vshrl.u32 %v5108, 16
  %v5328 = vshll.u32 %v5108, 16
  %v5330 = vrot.slane %v5328, 1
  %v5331 = vor.u32 %v5326, %v5330
  %v5332 = vshll.u32 %v5110, 16
  %v5334 = vrot.slane %v5332, 1
  %v5335 = vsel %vm2355, %v5331, %v5334
  %v5336 = vshrl.u32 %v5113, 16
  %v5338 = vshll.u32 %v5113, 16
  %v5340 = vrot.slane %v5338, 1
  %v5341 = vor.u32 %v5336, %v5340
  %v5342 = vshll.u32 %v5115, 16
  %v5344 = vrot.slane %v5342, 1
  %v5345 = vsel %vm2355, %v5341, %v5344
  %v5346 = vshrl.u32 %v5118, 16
  %v5348 = vshll.u32 %v5118, 16
  %v5350 = vrot.slane %v5348, 1
  %v5351 = vor.u32 %v5346, %v5350
  %v5352 = vshll.u32 %v5120, 16
  %v5354 = vrot.slane %v5352, 1
  %v5355 = vsel %vm2355, %v5351, %v5354
  %v5356 = vshrl.u32 %v5123, 16
  %v5358 = vshll.u32 %v5123, 16
  %v5360 = vrot.slane %v5358, 1
  %v5361 = vor.u32 %v5356, %v5360
  %v5362 = vshll.u32 %v5125, 16
  %v5364 = vrot.slane %v5362, 1
  %v5365 = vsel %vm2355, %v5361, %v5364
  %v5366 = vshrl.u32 %v5128, 16
  %v5368 = vshll.u32 %v5128, 16
  %v5370 = vrot.slane %v5368, 1
  %v5371 = vor.u32 %v5366, %v5370
  %v5372 = vshll.u32 %v5130, 16
  %v5374 = vrot.slane %v5372, 1
  %v5375 = vsel %vm2355, %v5371, %v5374
  %v5376 = vshrl.u32 %v5133, 16
  %v5378 = vshll.u32 %v5133, 16
  %v5380 = vrot.slane %v5378, 1
  %v5381 = vor.u32 %v5376, %v5380
  %v5382 = vshll.u32 %v5135, 16
  %v5384 = vrot.slane %v5382, 1
  %v5385 = vsel %vm2355, %v5381, %v5384
  %v5386 = vshrl.u32 %v5138, 16
  %v5388 = vshll.u32 %v5138, 16
  %v5390 = vrot.slane %v5388, 1
  %v5391 = vor.u32 %v5386, %v5390
  %v5392 = vshll.u32 %v5140, 16
  %v5394 = vrot.slane %v5392, 1
  %v5395 = vsel %vm2355, %v5391, %v5394
  %v5396 = vshrl.u32 %v5143, 16
  %v5398 = vshll.u32 %v5143, 16
  %v5400 = vrot.slane %v5398, 1
  %v5401 = vor.u32 %v5396, %v5400
  %v5402 = vshll.u32 %v5145, 16
  %v5404 = vrot.slane %v5402, 1
  %v5405 = vsel %vm2355, %v5401, %v5404
  %v5406 = vshrl.u32 %v5148, 16
  %v5408 = vshll.u32 %v5148, 16
  %v5410 = vrot.slane %v5408, 1
  %v5411 = vor.u32 %v5406, %v5410
  %v5412 = vshll.u32 %v5150, 16
  %v5414 = vrot.slane %v5412, 1
  %v5415 = vsel %vm2355, %v5411, %v5414
  %v5416 = vshrl.u32 %v5153, 16
  %v5418 = vshll.u32 %v5153, 16
  %v5420 = vrot.slane %v5418, 1
  %v5421 = vor.u32 %v5416, %v5420
  %v5422 = vshll.u32 %v5155, 16
  %v5424 = vrot.slane %v5422, 1
  %v5425 = vsel %vm2355, %v5421, %v5424
  %v5426 = vshrl.u32 %v5158, 16
  %v5428 = vshll.u32 %v5158, 16
  %v5430 = vrot.slane %v5428, 1
  %v5431 = vor.u32 %v5426, %v5430
  %v5432 = vshll.u32 %v5160, 16
  %v5434 = vrot.slane %v5432, 1
  %v5435 = vsel %vm2355, %v5431, %v5434
  %v5436 = vshrl.u32 %v5163, 16
  %v5438 = vshll.u32 %v5163, 16
  %v5440 = vrot.slane %v5438, 1
  %v5441 = vor.u32 %v5436, %v5440
  %v5442 = vshll.u32 %v5165, 16
  %v5444 = vrot.slane %v5442, 1
  %v5445 = vsel %vm2355, %v5441, %v5444
  %v5446 = vshrl.u32 %v5168, 16
  %v5448 = vshll.u32 %v5168, 16
  %v5450 = vrot.slane %v5448, 1
  %v5451 = vor.u32 %v5446, %v5450
  %v5452 = vshll.u32 %v5170, 16
  %v5454 = vrot.slane %v5452, 1
  %v5455 = vsel %vm2355, %v5451, %v5454
  %v5456 = vshrl.u32 %v5173, 16
  %v5458 = vshll.u32 %v5173, 16
  %v5460 = vrot.slane %v5458, 1
  %v5461 = vor.u32 %v5456, %v5460
  %v5462 = vshll.u32 %v5175, 16
  %v5464 = vrot.slane %v5462, 1
  %v5465 = vsel %vm2355, %v5461, %v5464
  %v5466 = vshrl.u32 %v5178, 16
  %v5468 = vshll.u32 %v5178, 16
  %v5470 = vrot.slane %v5468, 1
  %v5471 = vor.u32 %v5466, %v5470
  %v5472 = vshll.u32 %v5180, 16
  %v5474 = vrot.slane %v5472, 1
  %v5475 = vsel %vm2355, %v5471, %v5474
  %v5476 = vshrl.u32 %v5183, 16
  %v5478 = vshll.u32 %v5183, 16
  %v5480 = vrot.slane %v5478, 1
  %v5481 = vor.u32 %v5476, %v5480
  %v5482 = vshll.u32 %v5185, 16
  %v5484 = vrot.slane %v5482, 1
  %v5485 = vsel %vm2355, %v5481, %v5484
  %v5486 = vshrl.u32 %v5188, 16
  %v5488 = vshll.u32 %v5188, 16
  %v5490 = vrot.slane %v5488, 1
  %v5491 = vor.u32 %v5486, %v5490
  %v5492 = vshll.u32 %v5190, 16
  %v5494 = vrot.slane %v5492, 1
  %v5495 = vsel %vm2355, %v5491, %v5494
  %v5496 = vshrl.u32 %v5193, 16
  %v5498 = vshll.u32 %v5193, 16
  %v5500 = vrot.slane %v5498, 1
  %v5501 = vor.u32 %v5496, %v5500
  %v5502 = vshll.u32 %v5195, 16
  %v5504 = vrot.slane %v5502, 1
  %v5505 = vsel %vm2355, %v5501, %v5504
  %v5506 = vshrl.u32 %v5198, 16
  %v5508 = vshll.u32 %v5198, 16
  %v5510 = vrot.slane %v5508, 1
  %v5511 = vor.u32 %v5506, %v5510
  %v5512 = vshll.u32 %v5200, 16
  %v5514 = vrot.slane %v5512, 1
  %v5515 = vsel %vm2355, %v5511, %v5514
  %v5516 = vshrl.u32 %v5203, 16
  %v5518 = vshll.u32 %v5203, 16
  %v5520 = vrot.slane %v5518, 1
  %v5521 = vor.u32 %v5516, %v5520
  %v5522 = vshll.u32 %v5205, 16
  %v5524 = vrot.slane %v5522, 1
  %v5525 = vsel %vm2355, %v5521, %v5524
  %5558 = vst [vmem:[#allocation3 + $0x10] sm:$0xff] %v5215
  %5559 = vst [vmem:[#allocation3 + $0x38] sm:$0xff] %v5225
  %5560 = vst [vmem:[#allocation3 + $0x60] sm:$0xff] %v5235
  %5561 = vst [vmem:[#allocation3 + $0x88] sm:$0xff] %v5245
  %5562 = vst [vmem:[#allocation3 + $0xb0] sm:$0xff] %v5255
  %5563 = vst [vmem:[#allocation3 + $0xd8] sm:$0xff] %v5265
  %5564 = vst [vmem:[#allocation3 + $0x100] sm:$0xff] %v5275
  %5565 = vst [vmem:[#allocation3 + $0x128] sm:$0xff] %v5285
  %5566 = vst [vmem:[#allocation3 + $0x150] sm:$0xff] %v5295
  %5567 = vst [vmem:[#allocation3 + $0x178] sm:$0xff] %v5305
  %5568 = vst [vmem:[#allocation3 + $0x1a0] sm:$0xff] %v5315
  %5569 = vst [vmem:[#allocation3 + $0x1c8] sm:$0xff] %v5325
  %5570 = vst [vmem:[#allocation3 + $0x1f0] sm:$0xff] %v5335
  %5571 = vst [vmem:[#allocation3 + $0x218] sm:$0xff] %v5345
  %5572 = vst [vmem:[#allocation3 + $0x240] sm:$0xff] %v5355
  %5573 = vst [vmem:[#allocation3 + $0x268] sm:$0xff] %v5365
  %5574 = vst [vmem:[#allocation3 + $0x290] sm:$0xff] %v5375
  %5575 = vst [vmem:[#allocation3 + $0x2b8] sm:$0xff] %v5385
  %5576 = vst [vmem:[#allocation3 + $0x2e0] sm:$0xff] %v5395
  %5577 = vst [vmem:[#allocation3 + $0x308] sm:$0xff] %v5405
  %5578 = vst [vmem:[#allocation3 + $0x330] sm:$0xff] %v5415
  %5579 = vst [vmem:[#allocation3 + $0x358] sm:$0xff] %v5425
  %5580 = vst [vmem:[#allocation3 + $0x380] sm:$0xff] %v5435
  %5581 = vst [vmem:[#allocation3 + $0x3a8] sm:$0xff] %v5445
  %5582 = vst [vmem:[#allocation3 + $0x3d0] sm:$0xff] %v5455
  %5583 = vst [vmem:[#allocation3 + $0x3f8] sm:$0xff] %v5465
  %5584 = vst [vmem:[#allocation3 + $0x420] sm:$0xff] %v5475
  %5585 = vst [vmem:[#allocation3 + $0x448] sm:$0xff] %v5485
  %5586 = vst [vmem:[#allocation3 + $0x470] sm:$0xff] %v5495
  %5587 = vst [vmem:[#allocation3 + $0x498] sm:$0xff] %v5505
  %5588 = vst [vmem:[#allocation3 + $0x4c0] sm:$0xff] %v5515
  %5589 = vst [vmem:[#allocation3 + $0x4e8] sm:$0xff] %v5525
  %s5590 = scalar_lea.vmem [#allocation2], 24
  %v5591 = vld [vmem:[%s5590] sm:$0xf]
  %v5592 = vld [vmem:[%s5590 + $0x4] sm:$0xf]
  %v5593 = vld [vmem:[%s5590 + $0xc] sm:$0xf]
  %v5594 = vld [vmem:[%s5590 + $0x10] sm:$0xf]
  %v5595 = vld [vmem:[%s5590 + $0x18] sm:$0xf]
  %v5596 = vld [vmem:[%s5590 + $0x1c] sm:$0xf]
  %v5597 = vld [vmem:[%s5590 + $0x24] sm:$0xf]
  %v5598 = vld [vmem:[%s5590 + $0x28] sm:$0xf]
  %v5599 = vld [vmem:[%s5590 + $0x30] sm:$0xf]
  %v5600 = vld [vmem:[%s5590 + $0x34] sm:$0xf]
  %v5601 = vld [vmem:[%s5590 + $0x3c] sm:$0xf]
  %v5602 = vld [vmem:[%s5590 + $0x40] sm:$0xf]
  %v5603 = vld [vmem:[%s5590 + $0x48] sm:$0xf]
  %v5604 = vld [vmem:[%s5590 + $0x4c] sm:$0xf]
  %v5605 = vld [vmem:[%s5590 + $0x54] sm:$0xf]
  %v5606 = vld [vmem:[%s5590 + $0x58] sm:$0xf]
  %v5607 = vld [vmem:[%s5590 + $0x60] sm:$0xf]
  %v5608 = vld [vmem:[%s5590 + $0x64] sm:$0xf]
  %v5609 = vld [vmem:[%s5590 + $0x6c] sm:$0xf]
  %v5610 = vld [vmem:[%s5590 + $0x70] sm:$0xf]
  %v5611 = vld [vmem:[%s5590 + $0x78] sm:$0xf]
  %v5612 = vld [vmem:[%s5590 + $0x7c] sm:$0xf]
  %v5613 = vld [vmem:[%s5590 + $0x84] sm:$0xf]
  %v5614 = vld [vmem:[%s5590 + $0x88] sm:$0xf]
  %v5615 = vld [vmem:[%s5590 + $0x90] sm:$0xf]
  %v5616 = vld [vmem:[%s5590 + $0x94] sm:$0xf]
  %v5617 = vld [vmem:[%s5590 + $0x9c] sm:$0xf]
  %v5618 = vld [vmem:[%s5590 + $0xa0] sm:$0xf]
  %v5619 = vld [vmem:[%s5590 + $0xa8] sm:$0xf]
  %v5620 = vld [vmem:[%s5590 + $0xac] sm:$0xf]
  %v5621 = vld [vmem:[%s5590 + $0xb4] sm:$0xf]
  %v5622 = vld [vmem:[%s5590 + $0xb8] sm:$0xf]
  %v5623 = vld [vmem:[%s5590 + $0xd8] sm:$0xf]
  %v5624 = vld [vmem:[%s5590 + $0xdc] sm:$0xf]
  %v5625 = vld [vmem:[%s5590 + $0xe4] sm:$0xf]
  %v5626 = vld [vmem:[%s5590 + $0xe8] sm:$0xf]
  %v5627 = vld [vmem:[%s5590 + $0xf0] sm:$0xf]
  %v5628 = vld [vmem:[%s5590 + $0xf4] sm:$0xf]
  %v5629 = vld [vmem:[%s5590 + $0xfc] sm:$0xf]
  %v5630 = vld [vmem:[%s5590 + $0x100] sm:$0xf]
  %v5631 = vld [vmem:[%s5590 + $0x108] sm:$0xf]
  %v5632 = vld [vmem:[%s5590 + $0x10c] sm:$0xf]
  %v5633 = vld [vmem:[%s5590 + $0x114] sm:$0xf]
  %v5634 = vld [vmem:[%s5590 + $0x118] sm:$0xf]
  %v5635 = vld [vmem:[%s5590 + $0x120] sm:$0xf]
  %v5636 = vld [vmem:[%s5590 + $0x124] sm:$0xf]
  %v5637 = vld [vmem:[%s5590 + $0x12c] sm:$0xf]
  %v5638 = vld [vmem:[%s5590 + $0x130] sm:$0xf]
  %v5639 = vld [vmem:[%s5590 + $0x138] sm:$0xf]
  %v5640 = vld [vmem:[%s5590 + $0x13c] sm:$0xf]
  %v5641 = vld [vmem:[%s5590 + $0x144] sm:$0xf]
  %v5642 = vld [vmem:[%s5590 + $0x148] sm:$0xf]
  %v5643 = vld [vmem:[%s5590 + $0x150] sm:$0xf]
  %v5644 = vld [vmem:[%s5590 + $0x154] sm:$0xf]
  %v5645 = vld [vmem:[%s5590 + $0x15c] sm:$0xf]
  %v5646 = vld [vmem:[%s5590 + $0x160] sm:$0xf]
  %v5647 = vld [vmem:[%s5590 + $0x168] sm:$0xf]
  %v5648 = vld [vmem:[%s5590 + $0x16c] sm:$0xf]
  %v5649 = vld [vmem:[%s5590 + $0x174] sm:$0xf]
  %v5650 = vld [vmem:[%s5590 + $0x178] sm:$0xf]
  %v5651 = vld [vmem:[%s5590 + $0x180] sm:$0xf]
  %v5652 = vld [vmem:[%s5590 + $0x184] sm:$0xf]
  %v5653 = vld [vmem:[%s5590 + $0x18c] sm:$0xf]
  %v5654 = vld [vmem:[%s5590 + $0x190] sm:$0xf]
  %v5655 = vld [vmem:[%s5590 + $0x8] sm:$0x1]
  %v5656 = vld [vmem:[%s5590 + $0x14] sm:$0x1]
  %v5657 = vld [vmem:[%s5590 + $0x20] sm:$0x1]
  %v5658 = vld [vmem:[%s5590 + $0x2c] sm:$0x1]
  %v5659 = vld [vmem:[%s5590 + $0x38] sm:$0x1]
  %v5660 = vld [vmem:[%s5590 + $0x44] sm:$0x1]
  %v5661 = vld [vmem:[%s5590 + $0x50] sm:$0x1]
  %v5662 = vld [vmem:[%s5590 + $0x5c] sm:$0x1]
  %v5663 = vld [vmem:[%s5590 + $0x68] sm:$0x1]
  %v5664 = vld [vmem:[%s5590 + $0x74] sm:$0x1]
  %v5665 = vld [vmem:[%s5590 + $0x80] sm:$0x1]
  %v5666 = vld [vmem:[%s5590 + $0x8c] sm:$0x1]
  %v5667 = vld [vmem:[%s5590 + $0x98] sm:$0x1]
  %v5668 = vld [vmem:[%s5590 + $0xa4] sm:$0x1]
  %v5669 = vld [vmem:[%s5590 + $0xb0] sm:$0x1]
  %v5670 = vld [vmem:[%s5590 + $0xbc] sm:$0x1]
  %v5671 = vld [vmem:[%s5590 + $0xe0] sm:$0x1]
  %v5672 = vld [vmem:[%s5590 + $0xec] sm:$0x1]
  %v5673 = vld [vmem:[%s5590 + $0xf8] sm:$0x1]
  %v5674 = vld [vmem:[%s5590 + $0x104] sm:$0x1]
  %v5675 = vld [vmem:[%s5590 + $0x110] sm:$0x1]
  %v5676 = vld [vmem:[%s5590 + $0x11c] sm:$0x1]
  %v5677 = vld [vmem:[%s5590 + $0x128] sm:$0x1]
  %v5678 = vld [vmem:[%s5590 + $0x134] sm:$0x1]
  %v5679 = vld [vmem:[%s5590 + $0x140] sm:$0x1]
  %v5680 = vld [vmem:[%s5590 + $0x14c] sm:$0x1]
  %v5681 = vld [vmem:[%s5590 + $0x158] sm:$0x1]
  %v5682 = vld [vmem:[%s5590 + $0x164] sm:$0x1]
  %v5683 = vld [vmem:[%s5590 + $0x170] sm:$0x1]
  %v5684 = vld [vmem:[%s5590 + $0x17c] sm:$0x1]
  %v5685 = vld [vmem:[%s5590 + $0x188] sm:$0x1]
  %v5686 = vld [vmem:[%s5590 + $0x194] sm:$0x1]
  %v5751 = vunpack.c.l.b16 %v5591
  %v5752 = vunpack.c.l.b16 %v5592
  %v5753 = vunpack.c.l.b16 %v5593
  %v5754 = vunpack.c.l.b16 %v5594
  %v5755 = vunpack.c.l.b16 %v5595
  %v5756 = vunpack.c.l.b16 %v5596
  %v5757 = vunpack.c.l.b16 %v5597
  %v5758 = vunpack.c.l.b16 %v5598
  %v5759 = vunpack.c.l.b16 %v5599
  %v5760 = vunpack.c.l.b16 %v5600
  %v5761 = vunpack.c.l.b16 %v5601
  %v5762 = vunpack.c.l.b16 %v5602
  %v5763 = vunpack.c.l.b16 %v5603
  %v5764 = vunpack.c.l.b16 %v5604
  %v5765 = vunpack.c.l.b16 %v5605
  %v5766 = vunpack.c.l.b16 %v5606
  %v5767 = vunpack.c.l.b16 %v5607
  %v5768 = vunpack.c.l.b16 %v5608
  %v5769 = vunpack.c.l.b16 %v5609
  %v5770 = vunpack.c.l.b16 %v5610
  %v5771 = vunpack.c.l.b16 %v5611
  %v5772 = vunpack.c.l.b16 %v5612
  %v5773 = vunpack.c.l.b16 %v5613
  %v5774 = vunpack.c.l.b16 %v5614
  %v5775 = vunpack.c.l.b16 %v5615
  %v5776 = vunpack.c.l.b16 %v5616
  %v5777 = vunpack.c.l.b16 %v5617
  %v5778 = vunpack.c.l.b16 %v5618
  %v5779 = vunpack.c.l.b16 %v5619
  %v5780 = vunpack.c.l.b16 %v5620
  %v5781 = vunpack.c.l.b16 %v5621
  %v5782 = vunpack.c.l.b16 %v5622
  %v5783 = vunpack.c.l.b16 %v5623
  %v5784 = vunpack.c.l.b16 %v5624
  %v5785 = vunpack.c.l.b16 %v5625
  %v5786 = vunpack.c.l.b16 %v5626
  %v5787 = vunpack.c.l.b16 %v5627
  %v5788 = vunpack.c.l.b16 %v5628
  %v5789 = vunpack.c.l.b16 %v5629
  %v5790 = vunpack.c.l.b16 %v5630
  %v5791 = vunpack.c.l.b16 %v5631
  %v5792 = vunpack.c.l.b16 %v5632
  %v5793 = vunpack.c.l.b16 %v5633
  %v5794 = vunpack.c.l.b16 %v5634
  %v5795 = vunpack.c.l.b16 %v5635
  %v5796 = vunpack.c.l.b16 %v5636
  %v5797 = vunpack.c.l.b16 %v5637
  %v5798 = vunpack.c.l.b16 %v5638
  %v5799 = vunpack.c.l.b16 %v5639
  %v5800 = vunpack.c.l.b16 %v5640
  %v5801 = vunpack.c.l.b16 %v5641
  %v5802 = vunpack.c.l.b16 %v5642
  %v5803 = vunpack.c.l.b16 %v5643
  %v5804 = vunpack.c.l.b16 %v5644
  %v5805 = vunpack.c.l.b16 %v5645
  %v5806 = vunpack.c.l.b16 %v5646
  %v5807 = vunpack.c.l.b16 %v5647
  %v5808 = vunpack.c.l.b16 %v5648
  %v5809 = vunpack.c.l.b16 %v5649
  %v5810 = vunpack.c.l.b16 %v5650
  %v5811 = vunpack.c.l.b16 %v5651
  %v5812 = vunpack.c.l.b16 %v5652
  %v5813 = vunpack.c.l.b16 %v5653
  %v5814 = vunpack.c.l.b16 %v5654
  %v5815 = vpack.c.b16 %v5752, %v5751
  %v5816 = vpack.c.b16 %v5754, %v5753
  %v5817 = vpack.c.b16 %v5756, %v5755
  %v5818 = vpack.c.b16 %v5758, %v5757
  %v5819 = vpack.c.b16 %v5760, %v5759
  %v5820 = vpack.c.b16 %v5762, %v5761
  %v5821 = vpack.c.b16 %v5764, %v5763
  %v5822 = vpack.c.b16 %v5766, %v5765
  %v5823 = vpack.c.b16 %v5768, %v5767
  %v5824 = vpack.c.b16 %v5770, %v5769
  %v5825 = vpack.c.b16 %v5772, %v5771
  %v5826 = vpack.c.b16 %v5774, %v5773
  %v5827 = vpack.c.b16 %v5776, %v5775
  %v5828 = vpack.c.b16 %v5778, %v5777
  %v5829 = vpack.c.b16 %v5780, %v5779
  %v5830 = vpack.c.b16 %v5782, %v5781
  %v5831 = vpack.c.b16 %v5784, %v5783
  %v5832 = vpack.c.b16 %v5786, %v5785
  %v5833 = vpack.c.b16 %v5788, %v5787
  %v5834 = vpack.c.b16 %v5790, %v5789
  %v5835 = vpack.c.b16 %v5792, %v5791
  %v5836 = vpack.c.b16 %v5794, %v5793
  %v5837 = vpack.c.b16 %v5796, %v5795
  %v5838 = vpack.c.b16 %v5798, %v5797
  %v5839 = vpack.c.b16 %v5800, %v5799
  %v5840 = vpack.c.b16 %v5802, %v5801
  %v5841 = vpack.c.b16 %v5804, %v5803
  %v5842 = vpack.c.b16 %v5806, %v5805
  %v5843 = vpack.c.b16 %v5808, %v5807
  %v5844 = vpack.c.b16 %v5810, %v5809
  %v5845 = vpack.c.b16 %v5812, %v5811
  %v5846 = vpack.c.b16 %v5814, %v5813
  %v5879 = vunpack.c.l.b16 %v5655
  %v5880 = vunpack.c.l.b16 %v5656
  %v5881 = vunpack.c.l.b16 %v5657
  %v5882 = vunpack.c.l.b16 %v5658
  %v5883 = vunpack.c.l.b16 %v5659
  %v5884 = vunpack.c.l.b16 %v5660
  %v5885 = vunpack.c.l.b16 %v5661
  %v5886 = vunpack.c.l.b16 %v5662
  %v5887 = vunpack.c.l.b16 %v5663
  %v5888 = vunpack.c.l.b16 %v5664
  %v5889 = vunpack.c.l.b16 %v5665
  %v5890 = vunpack.c.l.b16 %v5666
  %v5891 = vunpack.c.l.b16 %v5667
  %v5892 = vunpack.c.l.b16 %v5668
  %v5893 = vunpack.c.l.b16 %v5669
  %v5894 = vunpack.c.l.b16 %v5670
  %v5895 = vunpack.c.l.b16 %v5671
  %v5896 = vunpack.c.l.b16 %v5672
  %v5897 = vunpack.c.l.b16 %v5673
  %v5898 = vunpack.c.l.b16 %v5674
  %v5899 = vunpack.c.l.b16 %v5675
  %v5900 = vunpack.c.l.b16 %v5676
  %v5901 = vunpack.c.l.b16 %v5677
  %v5902 = vunpack.c.l.b16 %v5678
  %v5903 = vunpack.c.l.b16 %v5679
  %v5904 = vunpack.c.l.b16 %v5680
  %v5905 = vunpack.c.l.b16 %v5681
  %v5906 = vunpack.c.l.b16 %v5682
  %v5907 = vunpack.c.l.b16 %v5683
  %v5908 = vunpack.c.l.b16 %v5684
  %v5909 = vunpack.c.l.b16 %v5685
  %v5910 = vunpack.c.l.b16 %v5686
  %v5911 = vpack.c.b16 %v5879, %v5879
  %v5912 = vpack.c.b16 %v5880, %v5880
  %v5913 = vpack.c.b16 %v5881, %v5881
  %v5914 = vpack.c.b16 %v5882, %v5882
  %v5915 = vpack.c.b16 %v5883, %v5883
  %v5916 = vpack.c.b16 %v5884, %v5884
  %v5917 = vpack.c.b16 %v5885, %v5885
  %v5918 = vpack.c.b16 %v5886, %v5886
  %v5919 = vpack.c.b16 %v5887, %v5887
  %v5920 = vpack.c.b16 %v5888, %v5888
  %v5921 = vpack.c.b16 %v5889, %v5889
  %v5922 = vpack.c.b16 %v5890, %v5890
  %v5923 = vpack.c.b16 %v5891, %v5891
  %v5924 = vpack.c.b16 %v5892, %v5892
  %v5925 = vpack.c.b16 %v5893, %v5893
  %v5926 = vpack.c.b16 %v5894, %v5894
  %v5927 = vpack.c.b16 %v5895, %v5895
  %v5928 = vpack.c.b16 %v5896, %v5896
  %v5929 = vpack.c.b16 %v5897, %v5897
  %v5930 = vpack.c.b16 %v5898, %v5898
  %v5931 = vpack.c.b16 %v5899, %v5899
  %v5932 = vpack.c.b16 %v5900, %v5900
  %v5933 = vpack.c.b16 %v5901, %v5901
  %v5934 = vpack.c.b16 %v5902, %v5902
  %v5935 = vpack.c.b16 %v5903, %v5903
  %v5936 = vpack.c.b16 %v5904, %v5904
  %v5937 = vpack.c.b16 %v5905, %v5905
  %v5938 = vpack.c.b16 %v5906, %v5906
  %v5939 = vpack.c.b16 %v5907, %v5907
  %v5940 = vpack.c.b16 %v5908, %v5908
  %v5941 = vpack.c.b16 %v5909, %v5909
  %v5942 = vpack.c.b16 %v5910, %v5910
  %v5944 = vshrl.u32 %v5815, 16
  %v5946 = vshll.u32 %v5815, 16
  %v5948 = vrot.slane %v5946, 1
  %v5949 = vor.u32 %v5944, %v5948
  %v5951 = vshll.u32 %v5911, 16
  %v5953 = vrot.slane %v5951, 1
  %v5954 = vsel %vm2355, %v5949, %v5953
  %v5956 = vshrl.u32 %v5816, 16
  %v5958 = vshll.u32 %v5816, 16
  %v5960 = vrot.slane %v5958, 1
  %v5961 = vor.u32 %v5956, %v5960
  %v5963 = vshll.u32 %v5912, 16
  %v5965 = vrot.slane %v5963, 1
  %v5966 = vsel %vm2355, %v5961, %v5965
  %v5968 = vshrl.u32 %v5817, 16
  %v5970 = vshll.u32 %v5817, 16
  %v5972 = vrot.slane %v5970, 1
  %v5973 = vor.u32 %v5968, %v5972
  %v5975 = vshll.u32 %v5913, 16
  %v5977 = vrot.slane %v5975, 1
  %v5978 = vsel %vm2355, %v5973, %v5977
  %v5980 = vshrl.u32 %v5818, 16
  %v5982 = vshll.u32 %v5818, 16
  %v5984 = vrot.slane %v5982, 1
  %v5985 = vor.u32 %v5980, %v5984
  %v5987 = vshll.u32 %v5914, 16
  %v5989 = vrot.slane %v5987, 1
  %v5990 = vsel %vm2355, %v5985, %v5989
  %v5992 = vshrl.u32 %v5819, 16
  %v5994 = vshll.u32 %v5819, 16
  %v5996 = vrot.slane %v5994, 1
  %v5997 = vor.u32 %v5992, %v5996
  %v5999 = vshll.u32 %v5915, 16
  %v6001 = vrot.slane %v5999, 1
  %v6002 = vsel %vm2355, %v5997, %v6001
  %v6004 = vshrl.u32 %v5820, 16
  %v6006 = vshll.u32 %v5820, 16
  %v6008 = vrot.slane %v6006, 1
  %v6009 = vor.u32 %v6004, %v6008
  %v6011 = vshll.u32 %v5916, 16
  %v6013 = vrot.slane %v6011, 1
  %v6014 = vsel %vm2355, %v6009, %v6013
  %v6016 = vshrl.u32 %v5821, 16
  %v6018 = vshll.u32 %v5821, 16
  %v6020 = vrot.slane %v6018, 1
  %v6021 = vor.u32 %v6016, %v6020
  %v6023 = vshll.u32 %v5917, 16
  %v6025 = vrot.slane %v6023, 1
  %v6026 = vsel %vm2355, %v6021, %v6025
  %v6028 = vshrl.u32 %v5822, 16
  %v6030 = vshll.u32 %v5822, 16
  %v6032 = vrot.slane %v6030, 1
  %v6033 = vor.u32 %v6028, %v6032
  %v6035 = vshll.u32 %v5918, 16
  %v6037 = vrot.slane %v6035, 1
  %v6038 = vsel %vm2355, %v6033, %v6037
  %v6040 = vshrl.u32 %v5823, 16
  %v6042 = vshll.u32 %v5823, 16
  %v6044 = vrot.slane %v6042, 1
  %v6045 = vor.u32 %v6040, %v6044
  %v6047 = vshll.u32 %v5919, 16
  %v6049 = vrot.slane %v6047, 1
  %v6050 = vsel %vm2355, %v6045, %v6049
  %v6052 = vshrl.u32 %v5824, 16
  %v6054 = vshll.u32 %v5824, 16
  %v6056 = vrot.slane %v6054, 1
  %v6057 = vor.u32 %v6052, %v6056
  %v6059 = vshll.u32 %v5920, 16
  %v6061 = vrot.slane %v6059, 1
  %v6062 = vsel %vm2355, %v6057, %v6061
  %v6064 = vshrl.u32 %v5825, 16
  %v6066 = vshll.u32 %v5825, 16
  %v6068 = vrot.slane %v6066, 1
  %v6069 = vor.u32 %v6064, %v6068
  %v6071 = vshll.u32 %v5921, 16
  %v6073 = vrot.slane %v6071, 1
  %v6074 = vsel %vm2355, %v6069, %v6073
  %v6076 = vshrl.u32 %v5826, 16
  %v6078 = vshll.u32 %v5826, 16
  %v6080 = vrot.slane %v6078, 1
  %v6081 = vor.u32 %v6076, %v6080
  %v6083 = vshll.u32 %v5922, 16
  %v6085 = vrot.slane %v6083, 1
  %v6086 = vsel %vm2355, %v6081, %v6085
  %v6088 = vshrl.u32 %v5827, 16
  %v6090 = vshll.u32 %v5827, 16
  %v6092 = vrot.slane %v6090, 1
  %v6093 = vor.u32 %v6088, %v6092
  %v6095 = vshll.u32 %v5923, 16
  %v6097 = vrot.slane %v6095, 1
  %v6098 = vsel %vm2355, %v6093, %v6097
  %v6100 = vshrl.u32 %v5828, 16
  %v6102 = vshll.u32 %v5828, 16
  %v6104 = vrot.slane %v6102, 1
  %v6105 = vor.u32 %v6100, %v6104
  %v6107 = vshll.u32 %v5924, 16
  %v6109 = vrot.slane %v6107, 1
  %v6110 = vsel %vm2355, %v6105, %v6109
  %v6112 = vshrl.u32 %v5829, 16
  %v6114 = vshll.u32 %v5829, 16
  %v6116 = vrot.slane %v6114, 1
  %v6117 = vor.u32 %v6112, %v6116
  %v6119 = vshll.u32 %v5925, 16
  %v6121 = vrot.slane %v6119, 1
  %v6122 = vsel %vm2355, %v6117, %v6121
  %v6124 = vshrl.u32 %v5830, 16
  %v6126 = vshll.u32 %v5830, 16
  %v6128 = vrot.slane %v6126, 1
  %v6129 = vor.u32 %v6124, %v6128
  %v6131 = vshll.u32 %v5926, 16
  %v6133 = vrot.slane %v6131, 1
  %v6134 = vsel %vm2355, %v6129, %v6133
  %v6136 = vshrl.u32 %v5831, 16
  %v6138 = vshll.u32 %v5831, 16
  %v6140 = vrot.slane %v6138, 1
  %v6141 = vor.u32 %v6136, %v6140
  %v6143 = vshll.u32 %v5927, 16
  %v6145 = vrot.slane %v6143, 1
  %v6146 = vsel %vm2355, %v6141, %v6145
  %v6148 = vshrl.u32 %v5832, 16
  %v6150 = vshll.u32 %v5832, 16
  %v6152 = vrot.slane %v6150, 1
  %v6153 = vor.u32 %v6148, %v6152
  %v6155 = vshll.u32 %v5928, 16
  %v6157 = vrot.slane %v6155, 1
  %v6158 = vsel %vm2355, %v6153, %v6157
  %v6160 = vshrl.u32 %v5833, 16
  %v6162 = vshll.u32 %v5833, 16
  %v6164 = vrot.slane %v6162, 1
  %v6165 = vor.u32 %v6160, %v6164
  %v6167 = vshll.u32 %v5929, 16
  %v6169 = vrot.slane %v6167, 1
  %v6170 = vsel %vm2355, %v6165, %v6169
  %v6172 = vshrl.u32 %v5834, 16
  %v6174 = vshll.u32 %v5834, 16
  %v6176 = vrot.slane %v6174, 1
  %v6177 = vor.u32 %v6172, %v6176
  %v6179 = vshll.u32 %v5930, 16
  %v6181 = vrot.slane %v6179, 1
  %v6182 = vsel %vm2355, %v6177, %v6181
  %v6184 = vshrl.u32 %v5835, 16
  %v6186 = vshll.u32 %v5835, 16
  %v6188 = vrot.slane %v6186, 1
  %v6189 = vor.u32 %v6184, %v6188
  %v6191 = vshll.u32 %v5931, 16
  %v6193 = vrot.slane %v6191, 1
  %v6194 = vsel %vm2355, %v6189, %v6193
  %v6196 = vshrl.u32 %v5836, 16
  %v6198 = vshll.u32 %v5836, 16
  %v6200 = vrot.slane %v6198, 1
  %v6201 = vor.u32 %v6196, %v6200
  %v6203 = vshll.u32 %v5932, 16
  %v6205 = vrot.slane %v6203, 1
  %v6206 = vsel %vm2355, %v6201, %v6205
  %v6208 = vshrl.u32 %v5837, 16
  %v6210 = vshll.u32 %v5837, 16
  %v6212 = vrot.slane %v6210, 1
  %v6213 = vor.u32 %v6208, %v6212
  %v6215 = vshll.u32 %v5933, 16
  %v6217 = vrot.slane %v6215, 1
  %v6218 = vsel %vm2355, %v6213, %v6217
  %v6220 = vshrl.u32 %v5838, 16
  %v6222 = vshll.u32 %v5838, 16
  %v6224 = vrot.slane %v6222, 1
  %v6225 = vor.u32 %v6220, %v6224
  %v6227 = vshll.u32 %v5934, 16
  %v6229 = vrot.slane %v6227, 1
  %v6230 = vsel %vm2355, %v6225, %v6229
  %v6232 = vshrl.u32 %v5839, 16
  %v6234 = vshll.u32 %v5839, 16
  %v6236 = vrot.slane %v6234, 1
  %v6237 = vor.u32 %v6232, %v6236
  %v6239 = vshll.u32 %v5935, 16
  %v6241 = vrot.slane %v6239, 1
  %v6242 = vsel %vm2355, %v6237, %v6241
  %v6244 = vshrl.u32 %v5840, 16
  %v6246 = vshll.u32 %v5840, 16
  %v6248 = vrot.slane %v6246, 1
  %v6249 = vor.u32 %v6244, %v6248
  %v6251 = vshll.u32 %v5936, 16
  %v6253 = vrot.slane %v6251, 1
  %v6254 = vsel %vm2355, %v6249, %v6253
  %v6256 = vshrl.u32 %v5841, 16
  %v6258 = vshll.u32 %v5841, 16
  %v6260 = vrot.slane %v6258, 1
  %v6261 = vor.u32 %v6256, %v6260
  %v6263 = vshll.u32 %v5937, 16
  %v6265 = vrot.slane %v6263, 1
  %v6266 = vsel %vm2355, %v6261, %v6265
  %v6268 = vshrl.u32 %v5842, 16
  %v6270 = vshll.u32 %v5842, 16
  %v6272 = vrot.slane %v6270, 1
  %v6273 = vor.u32 %v6268, %v6272
  %v6275 = vshll.u32 %v5938, 16
  %v6277 = vrot.slane %v6275, 1
  %v6278 = vsel %vm2355, %v6273, %v6277
  %v6280 = vshrl.u32 %v5843, 16
  %v6282 = vshll.u32 %v5843, 16
  %v6284 = vrot.slane %v6282, 1
  %v6285 = vor.u32 %v6280, %v6284
  %v6287 = vshll.u32 %v5939, 16
  %v6289 = vrot.slane %v6287, 1
  %v6290 = vsel %vm2355, %v6285, %v6289
  %v6292 = vshrl.u32 %v5844, 16
  %v6294 = vshll.u32 %v5844, 16
  %v6296 = vrot.slane %v6294, 1
  %v6297 = vor.u32 %v6292, %v6296
  %v6299 = vshll.u32 %v5940, 16
  %v6301 = vrot.slane %v6299, 1
  %v6302 = vsel %vm2355, %v6297, %v6301
  %v6304 = vshrl.u32 %v5845, 16
  %v6306 = vshll.u32 %v5845, 16
  %v6308 = vrot.slane %v6306, 1
  %v6309 = vor.u32 %v6304, %v6308
  %v6311 = vshll.u32 %v5941, 16
  %v6313 = vrot.slane %v6311, 1
  %v6314 = vsel %vm2355, %v6309, %v6313
  %v6316 = vshrl.u32 %v5846, 16
  %v6318 = vshll.u32 %v5846, 16
  %v6320 = vrot.slane %v6318, 1
  %v6321 = vor.u32 %v6316, %v6320
  %v6323 = vshll.u32 %v5942, 16
  %v6325 = vrot.slane %v6323, 1
  %v6326 = vsel %vm2355, %v6321, %v6325
  %6327 = vrot.lane.b32.xlu0 %v5954, 64
  %v6328 = vpop.permute.xlu0 %6327
  %6329 = vrot.lane.b32.xlu0 %v5966, 64
  %v6330 = vpop.permute.xlu0 %6329
  %6331 = vrot.lane.b32.xlu0 %v5978, 64
  %v6332 = vpop.permute.xlu0 %6331
  %6333 = vrot.lane.b32.xlu0 %v5990, 64
  %v6334 = vpop.permute.xlu0 %6333
  %6335 = vrot.lane.b32.xlu0 %v6002, 64
  %v6336 = vpop.permute.xlu0 %6335
  %6337 = vrot.lane.b32.xlu0 %v6014, 64
  %v6338 = vpop.permute.xlu0 %6337
  %6339 = vrot.lane.b32.xlu0 %v6026, 64
  %v6340 = vpop.permute.xlu0 %6339
  %6341 = vrot.lane.b32.xlu0 %v6038, 64
  %v6342 = vpop.permute.xlu0 %6341
  %6343 = vrot.lane.b32.xlu0 %v6050, 64
  %v6344 = vpop.permute.xlu0 %6343
  %6345 = vrot.lane.b32.xlu0 %v6062, 64
  %v6346 = vpop.permute.xlu0 %6345
  %6347 = vrot.lane.b32.xlu0 %v6074, 64
  %v6348 = vpop.permute.xlu0 %6347
  %6349 = vrot.lane.b32.xlu0 %v6086, 64
  %v6350 = vpop.permute.xlu0 %6349
  %6351 = vrot.lane.b32.xlu0 %v6098, 64
  %v6352 = vpop.permute.xlu0 %6351
  %6353 = vrot.lane.b32.xlu0 %v6110, 64
  %v6354 = vpop.permute.xlu0 %6353
  %6355 = vrot.lane.b32.xlu0 %v6122, 64
  %v6356 = vpop.permute.xlu0 %6355
  %6357 = vrot.lane.b32.xlu0 %v6134, 64
  %v6358 = vpop.permute.xlu0 %6357
  %6359 = vrot.lane.b32.xlu0 %v6146, 64
  %v6360 = vpop.permute.xlu0 %6359
  %6361 = vrot.lane.b32.xlu0 %v6158, 64
  %v6362 = vpop.permute.xlu0 %6361
  %6363 = vrot.lane.b32.xlu0 %v6170, 64
  %v6364 = vpop.permute.xlu0 %6363
  %6365 = vrot.lane.b32.xlu0 %v6182, 64
  %v6366 = vpop.permute.xlu0 %6365
  %6367 = vrot.lane.b32.xlu0 %v6194, 64
  %v6368 = vpop.permute.xlu0 %6367
  %6369 = vrot.lane.b32.xlu0 %v6206, 64
  %v6370 = vpop.permute.xlu0 %6369
  %6371 = vrot.lane.b32.xlu0 %v6218, 64
  %v6372 = vpop.permute.xlu0 %6371
  %6373 = vrot.lane.b32.xlu0 %v6230, 64
  %v6374 = vpop.permute.xlu0 %6373
  %6375 = vrot.lane.b32.xlu0 %v6242, 64
  %v6376 = vpop.permute.xlu0 %6375
  %6377 = vrot.lane.b32.xlu0 %v6254, 64
  %v6378 = vpop.permute.xlu0 %6377
  %6379 = vrot.lane.b32.xlu0 %v6266, 64
  %v6380 = vpop.permute.xlu0 %6379
  %6381 = vrot.lane.b32.xlu0 %v6278, 64
  %v6382 = vpop.permute.xlu0 %6381
  %6383 = vrot.lane.b32.xlu0 %v6290, 64
  %v6384 = vpop.permute.xlu0 %6383
  %6385 = vrot.lane.b32.xlu0 %v6302, 64
  %v6386 = vpop.permute.xlu0 %6385
  %6387 = vrot.lane.b32.xlu0 %v6314, 64
  %v6388 = vpop.permute.xlu0 %6387
  %6389 = vrot.lane.b32.xlu0 %v6326, 64
  %v6390 = vpop.permute.xlu0 %6389
  %v6392 = vsel %vm2804, %v5815, %v6328
  %v6395 = vsel %vm2804, %v5816, %v6330
  %v6398 = vsel %vm2804, %v5817, %v6332
  %v6401 = vsel %vm2804, %v5818, %v6334
  %v6404 = vsel %vm2804, %v5819, %v6336
  %v6407 = vsel %vm2804, %v5820, %v6338
  %v6410 = vsel %vm2804, %v5821, %v6340
  %v6413 = vsel %vm2804, %v5822, %v6342
  %v6416 = vsel %vm2804, %v5823, %v6344
  %v6419 = vsel %vm2804, %v5824, %v6346
  %v6422 = vsel %vm2804, %v5825, %v6348
  %v6425 = vsel %vm2804, %v5826, %v6350
  %v6428 = vsel %vm2804, %v5827, %v6352
  %v6431 = vsel %vm2804, %v5828, %v6354
  %v6434 = vsel %vm2804, %v5829, %v6356
  %v6437 = vsel %vm2804, %v5830, %v6358
  %v6440 = vsel %vm2804, %v5831, %v6360
  %v6443 = vsel %vm2804, %v5832, %v6362
  %v6446 = vsel %vm2804, %v5833, %v6364
  %v6449 = vsel %vm2804, %v5834, %v6366
  %v6452 = vsel %vm2804, %v5835, %v6368
  %v6455 = vsel %vm2804, %v5836, %v6370
  %v6458 = vsel %vm2804, %v5837, %v6372
  %v6461 = vsel %vm2804, %v5838, %v6374
  %v6464 = vsel %vm2804, %v5839, %v6376
  %v6467 = vsel %vm2804, %v5840, %v6378
  %v6470 = vsel %vm2804, %v5841, %v6380
  %v6473 = vsel %vm2804, %v5842, %v6382
  %v6476 = vsel %vm2804, %v5843, %v6384
  %v6479 = vsel %vm2804, %v5844, %v6386
  %v6482 = vsel %vm2804, %v5845, %v6388
  %v6485 = vsel %vm2804, %v5846, %v6390
  %6487 = vst [vmem:[#allocation3 + $0x18] sm:$0xff] %v6392
  %6488 = vst [vmem:[#allocation3 + $0x40] sm:$0xff] %v6395
  %6489 = vst [vmem:[#allocation3 + $0x68] sm:$0xff] %v6398
  %6490 = vst [vmem:[#allocation3 + $0x90] sm:$0xff] %v6401
  %6491 = vst [vmem:[#allocation3 + $0xb8] sm:$0xff] %v6404
  %6492 = vst [vmem:[#allocation3 + $0xe0] sm:$0xff] %v6407
  %6493 = vst [vmem:[#allocation3 + $0x108] sm:$0xff] %v6410
  %6494 = vst [vmem:[#allocation3 + $0x130] sm:$0xff] %v6413
  %6495 = vst [vmem:[#allocation3 + $0x158] sm:$0xff] %v6416
  %6496 = vst [vmem:[#allocation3 + $0x180] sm:$0xff] %v6419
  %6497 = vst [vmem:[#allocation3 + $0x1a8] sm:$0xff] %v6422
  %6498 = vst [vmem:[#allocation3 + $0x1d0] sm:$0xff] %v6425
  %6499 = vst [vmem:[#allocation3 + $0x1f8] sm:$0xff] %v6428
  %6500 = vst [vmem:[#allocation3 + $0x220] sm:$0xff] %v6431
  %6501 = vst [vmem:[#allocation3 + $0x248] sm:$0xff] %v6434
  %6502 = vst [vmem:[#allocation3 + $0x270] sm:$0xff] %v6437
  %6503 = vst [vmem:[#allocation3 + $0x298] sm:$0xff] %v6440
  %6504 = vst [vmem:[#allocation3 + $0x2c0] sm:$0xff] %v6443
  %6505 = vst [vmem:[#allocation3 + $0x2e8] sm:$0xff] %v6446
  %6506 = vst [vmem:[#allocation3 + $0x310] sm:$0xff] %v6449
  %6507 = vst [vmem:[#allocation3 + $0x338] sm:$0xff] %v6452
  %6508 = vst [vmem:[#allocation3 + $0x360] sm:$0xff] %v6455
  %6509 = vst [vmem:[#allocation3 + $0x388] sm:$0xff] %v6458
  %6510 = vst [vmem:[#allocation3 + $0x3b0] sm:$0xff] %v6461
  %6511 = vst [vmem:[#allocation3 + $0x3d8] sm:$0xff] %v6464
  %6512 = vst [vmem:[#allocation3 + $0x400] sm:$0xff] %v6467
  %6513 = vst [vmem:[#allocation3 + $0x428] sm:$0xff] %v6470
  %6514 = vst [vmem:[#allocation3 + $0x450] sm:$0xff] %v6473
  %6515 = vst [vmem:[#allocation3 + $0x478] sm:$0xff] %v6476
  %6516 = vst [vmem:[#allocation3 + $0x4a0] sm:$0xff] %v6479
  %6517 = vst [vmem:[#allocation3 + $0x4c8] sm:$0xff] %v6482
  %6518 = vst [vmem:[#allocation3 + $0x4f0] sm:$0xff] %v6485
  %v6519 = vld [vmem:[%s5590] sm:$0xe]
  %v6520 = vld [vmem:[%s5590 + $0x4] sm:$0xf]
  %v6521 = vld [vmem:[%s5590 + $0x8] sm:$0x1]
  %v6522 = vld [vmem:[%s5590 + $0xc] sm:$0xe]
  %v6523 = vld [vmem:[%s5590 + $0x10] sm:$0xf]
  %v6524 = vld [vmem:[%s5590 + $0x14] sm:$0x1]
  %v6525 = vld [vmem:[%s5590 + $0x18] sm:$0xe]
  %v6526 = vld [vmem:[%s5590 + $0x1c] sm:$0xf]
  %v6527 = vld [vmem:[%s5590 + $0x20] sm:$0x1]
  %v6528 = vld [vmem:[%s5590 + $0x24] sm:$0xe]
  %v6529 = vld [vmem:[%s5590 + $0x28] sm:$0xf]
  %v6530 = vld [vmem:[%s5590 + $0x2c] sm:$0x1]
  %v6531 = vld [vmem:[%s5590 + $0x30] sm:$0xe]
  %v6532 = vld [vmem:[%s5590 + $0x34] sm:$0xf]
  %v6533 = vld [vmem:[%s5590 + $0x38] sm:$0x1]
  %v6534 = vld [vmem:[%s5590 + $0x3c] sm:$0xe]
  %v6535 = vld [vmem:[%s5590 + $0x40] sm:$0xf]
  %v6536 = vld [vmem:[%s5590 + $0x44] sm:$0x1]
  %v6537 = vld [vmem:[%s5590 + $0x48] sm:$0xe]
  %v6538 = vld [vmem:[%s5590 + $0x4c] sm:$0xf]
  %v6539 = vld [vmem:[%s5590 + $0x50] sm:$0x1]
  %v6540 = vld [vmem:[%s5590 + $0x54] sm:$0xe]
  %v6541 = vld [vmem:[%s5590 + $0x58] sm:$0xf]
  %v6542 = vld [vmem:[%s5590 + $0x5c] sm:$0x1]
  %v6543 = vld [vmem:[%s5590 + $0x60] sm:$0xe]
  %v6544 = vld [vmem:[%s5590 + $0x64] sm:$0xf]
  %v6545 = vld [vmem:[%s5590 + $0x68] sm:$0x1]
  %v6546 = vld [vmem:[%s5590 + $0x6c] sm:$0xe]
  %v6547 = vld [vmem:[%s5590 + $0x70] sm:$0xf]
  %v6548 = vld [vmem:[%s5590 + $0x74] sm:$0x1]
  %v6549 = vld [vmem:[%s5590 + $0x78] sm:$0xe]
  %v6550 = vld [vmem:[%s5590 + $0x7c] sm:$0xf]
  %v6551 = vld [vmem:[%s5590 + $0x80] sm:$0x1]
  %v6552 = vld [vmem:[%s5590 + $0x84] sm:$0xe]
  %v6553 = vld [vmem:[%s5590 + $0x88] sm:$0xf]
  %v6554 = vld [vmem:[%s5590 + $0x8c] sm:$0x1]
  %v6555 = vld [vmem:[%s5590 + $0x90] sm:$0xe]
  %v6556 = vld [vmem:[%s5590 + $0x94] sm:$0xf]
  %v6557 = vld [vmem:[%s5590 + $0x98] sm:$0x1]
  %v6558 = vld [vmem:[%s5590 + $0x9c] sm:$0xe]
  %v6559 = vld [vmem:[%s5590 + $0xa0] sm:$0xf]
  %v6560 = vld [vmem:[%s5590 + $0xa4] sm:$0x1]
  %v6561 = vld [vmem:[%s5590 + $0xa8] sm:$0xe]
  %v6562 = vld [vmem:[%s5590 + $0xac] sm:$0xf]
  %v6563 = vld [vmem:[%s5590 + $0xb0] sm:$0x1]
  %v6564 = vld [vmem:[%s5590 + $0xb4] sm:$0xe]
  %v6565 = vld [vmem:[%s5590 + $0xb8] sm:$0xf]
  %v6566 = vld [vmem:[%s5590 + $0xbc] sm:$0x1]
  %v6567 = vld [vmem:[%s5590 + $0xd8] sm:$0xe]
  %v6568 = vld [vmem:[%s5590 + $0xdc] sm:$0xf]
  %v6569 = vld [vmem:[%s5590 + $0xe0] sm:$0x1]
  %v6570 = vld [vmem:[%s5590 + $0xe4] sm:$0xe]
  %v6571 = vld [vmem:[%s5590 + $0xe8] sm:$0xf]
  %v6572 = vld [vmem:[%s5590 + $0xec] sm:$0x1]
  %v6573 = vld [vmem:[%s5590 + $0xf0] sm:$0xe]
  %v6574 = vld [vmem:[%s5590 + $0xf4] sm:$0xf]
  %v6575 = vld [vmem:[%s5590 + $0xf8] sm:$0x1]
  %v6576 = vld [vmem:[%s5590 + $0xfc] sm:$0xe]
  %v6577 = vld [vmem:[%s5590 + $0x100] sm:$0xf]
  %v6578 = vld [vmem:[%s5590 + $0x104] sm:$0x1]
  %v6579 = vld [vmem:[%s5590 + $0x108] sm:$0xe]
  %v6580 = vld [vmem:[%s5590 + $0x10c] sm:$0xf]
  %v6581 = vld [vmem:[%s5590 + $0x110] sm:$0x1]
  %v6582 = vld [vmem:[%s5590 + $0x114] sm:$0xe]
  %v6583 = vld [vmem:[%s5590 + $0x118] sm:$0xf]
  %v6584 = vld [vmem:[%s5590 + $0x11c] sm:$0x1]
  %v6585 = vld [vmem:[%s5590 + $0x120] sm:$0xe]
  %v6586 = vld [vmem:[%s5590 + $0x124] sm:$0xf]
  %v6587 = vld [vmem:[%s5590 + $0x128] sm:$0x1]
  %v6588 = vld [vmem:[%s5590 + $0x12c] sm:$0xe]
  %v6589 = vld [vmem:[%s5590 + $0x130] sm:$0xf]
  %v6590 = vld [vmem:[%s5590 + $0x134] sm:$0x1]
  %v6591 = vld [vmem:[%s5590 + $0x138] sm:$0xe]
  %v6592 = vld [vmem:[%s5590 + $0x13c] sm:$0xf]
  %v6593 = vld [vmem:[%s5590 + $0x140] sm:$0x1]
  %v6594 = vld [vmem:[%s5590 + $0x144] sm:$0xe]
  %v6595 = vld [vmem:[%s5590 + $0x148] sm:$0xf]
  %v6596 = vld [vmem:[%s5590 + $0x14c] sm:$0x1]
  %v6597 = vld [vmem:[%s5590 + $0x150] sm:$0xe]
  %v6598 = vld [vmem:[%s5590 + $0x154] sm:$0xf]
  %v6599 = vld [vmem:[%s5590 + $0x158] sm:$0x1]
  %v6600 = vld [vmem:[%s5590 + $0x15c] sm:$0xe]
  %v6601 = vld [vmem:[%s5590 + $0x160] sm:$0xf]
  %v6602 = vld [vmem:[%s5590 + $0x164] sm:$0x1]
  %v6603 = vld [vmem:[%s5590 + $0x168] sm:$0xe]
  %v6604 = vld [vmem:[%s5590 + $0x16c] sm:$0xf]
  %v6605 = vld [vmem:[%s5590 + $0x170] sm:$0x1]
  %v6606 = vld [vmem:[%s5590 + $0x174] sm:$0xe]
  %v6607 = vld [vmem:[%s5590 + $0x178] sm:$0xf]
  %v6608 = vld [vmem:[%s5590 + $0x17c] sm:$0x1]
  %v6609 = vld [vmem:[%s5590 + $0x180] sm:$0xe]
  %v6610 = vld [vmem:[%s5590 + $0x184] sm:$0xf]
  %v6611 = vld [vmem:[%s5590 + $0x188] sm:$0x1]
  %v6612 = vld [vmem:[%s5590 + $0x18c] sm:$0xe]
  %v6613 = vld [vmem:[%s5590 + $0x190] sm:$0xf]
  %v6614 = vld [vmem:[%s5590 + $0x194] sm:$0x1]
  %v6711 = vunpack.c.l.b16 %v6519
  %v6712 = vunpack.c.l.b16 %v6520
  %v6713 = vunpack.c.l.b16 %v6521
  %v6714 = vunpack.c.l.b16 %v6522
  %v6715 = vunpack.c.l.b16 %v6523
  %v6716 = vunpack.c.l.b16 %v6524
  %v6717 = vunpack.c.l.b16 %v6525
  %v6718 = vunpack.c.l.b16 %v6526
  %v6719 = vunpack.c.l.b16 %v6527
  %v6720 = vunpack.c.l.b16 %v6528
  %v6721 = vunpack.c.l.b16 %v6529
  %v6722 = vunpack.c.l.b16 %v6530
  %v6723 = vunpack.c.l.b16 %v6531
  %v6724 = vunpack.c.l.b16 %v6532
  %v6725 = vunpack.c.l.b16 %v6533
  %v6726 = vunpack.c.l.b16 %v6534
  %v6727 = vunpack.c.l.b16 %v6535
  %v6728 = vunpack.c.l.b16 %v6536
  %v6729 = vunpack.c.l.b16 %v6537
  %v6730 = vunpack.c.l.b16 %v6538
  %v6731 = vunpack.c.l.b16 %v6539
  %v6732 = vunpack.c.l.b16 %v6540
  %v6733 = vunpack.c.l.b16 %v6541
  %v6734 = vunpack.c.l.b16 %v6542
  %v6735 = vunpack.c.l.b16 %v6543
  %v6736 = vunpack.c.l.b16 %v6544
  %v6737 = vunpack.c.l.b16 %v6545
  %v6738 = vunpack.c.l.b16 %v6546
  %v6739 = vunpack.c.l.b16 %v6547
  %v6740 = vunpack.c.l.b16 %v6548
  %v6741 = vunpack.c.l.b16 %v6549
  %v6742 = vunpack.c.l.b16 %v6550
  %v6743 = vunpack.c.l.b16 %v6551
  %v6744 = vunpack.c.l.b16 %v6552
  %v6745 = vunpack.c.l.b16 %v6553
  %v6746 = vunpack.c.l.b16 %v6554
  %v6747 = vunpack.c.l.b16 %v6555
  %v6748 = vunpack.c.l.b16 %v6556
  %v6749 = vunpack.c.l.b16 %v6557
  %v6750 = vunpack.c.l.b16 %v6558
  %v6751 = vunpack.c.l.b16 %v6559
  %v6752 = vunpack.c.l.b16 %v6560
  %v6753 = vunpack.c.l.b16 %v6561
  %v6754 = vunpack.c.l.b16 %v6562
  %v6755 = vunpack.c.l.b16 %v6563
  %v6756 = vunpack.c.l.b16 %v6564
  %v6757 = vunpack.c.l.b16 %v6565
  %v6758 = vunpack.c.l.b16 %v6566
  %v6759 = vunpack.c.l.b16 %v6567
  %v6760 = vunpack.c.l.b16 %v6568
  %v6761 = vunpack.c.l.b16 %v6569
  %v6762 = vunpack.c.l.b16 %v6570
  %v6763 = vunpack.c.l.b16 %v6571
  %v6764 = vunpack.c.l.b16 %v6572
  %v6765 = vunpack.c.l.b16 %v6573
  %v6766 = vunpack.c.l.b16 %v6574
  %v6767 = vunpack.c.l.b16 %v6575
  %v6768 = vunpack.c.l.b16 %v6576
  %v6769 = vunpack.c.l.b16 %v6577
  %v6770 = vunpack.c.l.b16 %v6578
  %v6771 = vunpack.c.l.b16 %v6579
  %v6772 = vunpack.c.l.b16 %v6580
  %v6773 = vunpack.c.l.b16 %v6581
  %v6774 = vunpack.c.l.b16 %v6582
  %v6775 = vunpack.c.l.b16 %v6583
  %v6776 = vunpack.c.l.b16 %v6584
  %v6777 = vunpack.c.l.b16 %v6585
  %v6778 = vunpack.c.l.b16 %v6586
  %v6779 = vunpack.c.l.b16 %v6587
  %v6780 = vunpack.c.l.b16 %v6588
  %v6781 = vunpack.c.l.b16 %v6589
  %v6782 = vunpack.c.l.b16 %v6590
  %v6783 = vunpack.c.l.b16 %v6591
  %v6784 = vunpack.c.l.b16 %v6592
  %v6785 = vunpack.c.l.b16 %v6593
  %v6786 = vunpack.c.l.b16 %v6594
  %v6787 = vunpack.c.l.b16 %v6595
  %v6788 = vunpack.c.l.b16 %v6596
  %v6789 = vunpack.c.l.b16 %v6597
  %v6790 = vunpack.c.l.b16 %v6598
  %v6791 = vunpack.c.l.b16 %v6599
  %v6792 = vunpack.c.l.b16 %v6600
  %v6793 = vunpack.c.l.b16 %v6601
  %v6794 = vunpack.c.l.b16 %v6602
  %v6795 = vunpack.c.l.b16 %v6603
  %v6796 = vunpack.c.l.b16 %v6604
  %v6797 = vunpack.c.l.b16 %v6605
  %v6798 = vunpack.c.l.b16 %v6606
  %v6799 = vunpack.c.l.b16 %v6607
  %v6800 = vunpack.c.l.b16 %v6608
  %v6801 = vunpack.c.l.b16 %v6609
  %v6802 = vunpack.c.l.b16 %v6610
  %v6803 = vunpack.c.l.b16 %v6611
  %v6804 = vunpack.c.l.b16 %v6612
  %v6805 = vunpack.c.l.b16 %v6613
  %v6806 = vunpack.c.l.b16 %v6614
  %v6807 = vpack.c.b16 %v6712, %v6711
  %v6808 = vpack.c.b16 %v6713, %v6713
  %v6809 = vpack.c.b16 %v6715, %v6714
  %v6810 = vpack.c.b16 %v6716, %v6716
  %v6811 = vpack.c.b16 %v6718, %v6717
  %v6812 = vpack.c.b16 %v6719, %v6719
  %v6813 = vpack.c.b16 %v6721, %v6720
  %v6814 = vpack.c.b16 %v6722, %v6722
  %v6815 = vpack.c.b16 %v6724, %v6723
  %v6816 = vpack.c.b16 %v6725, %v6725
  %v6817 = vpack.c.b16 %v6727, %v6726
  %v6818 = vpack.c.b16 %v6728, %v6728
  %v6819 = vpack.c.b16 %v6730, %v6729
  %v6820 = vpack.c.b16 %v6731, %v6731
  %v6821 = vpack.c.b16 %v6733, %v6732
  %v6822 = vpack.c.b16 %v6734, %v6734
  %v6823 = vpack.c.b16 %v6736, %v6735
  %v6824 = vpack.c.b16 %v6737, %v6737
  %v6825 = vpack.c.b16 %v6739, %v6738
  %v6826 = vpack.c.b16 %v6740, %v6740
  %v6827 = vpack.c.b16 %v6742, %v6741
  %v6828 = vpack.c.b16 %v6743, %v6743
  %v6829 = vpack.c.b16 %v6745, %v6744
  %v6830 = vpack.c.b16 %v6746, %v6746
  %v6831 = vpack.c.b16 %v6748, %v6747
  %v6832 = vpack.c.b16 %v6749, %v6749
  %v6833 = vpack.c.b16 %v6751, %v6750
  %v6834 = vpack.c.b16 %v6752, %v6752
  %v6835 = vpack.c.b16 %v6754, %v6753
  %v6836 = vpack.c.b16 %v6755, %v6755
  %v6837 = vpack.c.b16 %v6757, %v6756
  %v6838 = vpack.c.b16 %v6758, %v6758
  %v6839 = vpack.c.b16 %v6760, %v6759
  %v6840 = vpack.c.b16 %v6761, %v6761
  %v6841 = vpack.c.b16 %v6763, %v6762
  %v6842 = vpack.c.b16 %v6764, %v6764
  %v6843 = vpack.c.b16 %v6766, %v6765
  %v6844 = vpack.c.b16 %v6767, %v6767
  %v6845 = vpack.c.b16 %v6769, %v6768
  %v6846 = vpack.c.b16 %v6770, %v6770
  %v6847 = vpack.c.b16 %v6772, %v6771
  %v6848 = vpack.c.b16 %v6773, %v6773
  %v6849 = vpack.c.b16 %v6775, %v6774
  %v6850 = vpack.c.b16 %v6776, %v6776
  %v6851 = vpack.c.b16 %v6778, %v6777
  %v6852 = vpack.c.b16 %v6779, %v6779
  %v6853 = vpack.c.b16 %v6781, %v6780
  %v6854 = vpack.c.b16 %v6782, %v6782
  %v6855 = vpack.c.b16 %v6784, %v6783
  %v6856 = vpack.c.b16 %v6785, %v6785
  %v6857 = vpack.c.b16 %v6787, %v6786
  %v6858 = vpack.c.b16 %v6788, %v6788
  %v6859 = vpack.c.b16 %v6790, %v6789
  %v6860 = vpack.c.b16 %v6791, %v6791
  %v6861 = vpack.c.b16 %v6793, %v6792
  %v6862 = vpack.c.b16 %v6794, %v6794
  %v6863 = vpack.c.b16 %v6796, %v6795
  %v6864 = vpack.c.b16 %v6797, %v6797
  %v6865 = vpack.c.b16 %v6799, %v6798
  %v6866 = vpack.c.b16 %v6800, %v6800
  %v6867 = vpack.c.b16 %v6802, %v6801
  %v6868 = vpack.c.b16 %v6803, %v6803
  %v6869 = vpack.c.b16 %v6805, %v6804
  %v6870 = vpack.c.b16 %v6806, %v6806
  %v6871 = vrot.slane %v6807, 1
  %v6872 = vrot.slane %v6808, 1
  %v6873 = vsel %vm3829, %v6871, %v6872
  %v6874 = vrot.slane %v6809, 1
  %v6875 = vrot.slane %v6810, 1
  %v6876 = vsel %vm3829, %v6874, %v6875
  %v6877 = vrot.slane %v6811, 1
  %v6878 = vrot.slane %v6812, 1
  %v6879 = vsel %vm3829, %v6877, %v6878
  %v6880 = vrot.slane %v6813, 1
  %v6881 = vrot.slane %v6814, 1
  %v6882 = vsel %vm3829, %v6880, %v6881
  %v6883 = vrot.slane %v6815, 1
  %v6884 = vrot.slane %v6816, 1
  %v6885 = vsel %vm3829, %v6883, %v6884
  %v6886 = vrot.slane %v6817, 1
  %v6887 = vrot.slane %v6818, 1
  %v6888 = vsel %vm3829, %v6886, %v6887
  %v6889 = vrot.slane %v6819, 1
  %v6890 = vrot.slane %v6820, 1
  %v6891 = vsel %vm3829, %v6889, %v6890
  %v6892 = vrot.slane %v6821, 1
  %v6893 = vrot.slane %v6822, 1
  %v6894 = vsel %vm3829, %v6892, %v6893
  %v6895 = vrot.slane %v6823, 1
  %v6896 = vrot.slane %v6824, 1
  %v6897 = vsel %vm3829, %v6895, %v6896
  %v6898 = vrot.slane %v6825, 1
  %v6899 = vrot.slane %v6826, 1
  %v6900 = vsel %vm3829, %v6898, %v6899
  %v6901 = vrot.slane %v6827, 1
  %v6902 = vrot.slane %v6828, 1
  %v6903 = vsel %vm3829, %v6901, %v6902
  %v6904 = vrot.slane %v6829, 1
  %v6905 = vrot.slane %v6830, 1
  %v6906 = vsel %vm3829, %v6904, %v6905
  %v6907 = vrot.slane %v6831, 1
  %v6908 = vrot.slane %v6832, 1
  %v6909 = vsel %vm3829, %v6907, %v6908
  %v6910 = vrot.slane %v6833, 1
  %v6911 = vrot.slane %v6834, 1
  %v6912 = vsel %vm3829, %v6910, %v6911
  %v6913 = vrot.slane %v6835, 1
  %v6914 = vrot.slane %v6836, 1
  %v6915 = vsel %vm3829, %v6913, %v6914
  %v6916 = vrot.slane %v6837, 1
  %v6917 = vrot.slane %v6838, 1
  %v6918 = vsel %vm3829, %v6916, %v6917
  %v6919 = vrot.slane %v6839, 1
  %v6920 = vrot.slane %v6840, 1
  %v6921 = vsel %vm3829, %v6919, %v6920
  %v6922 = vrot.slane %v6841, 1
  %v6923 = vrot.slane %v6842, 1
  %v6924 = vsel %vm3829, %v6922, %v6923
  %v6925 = vrot.slane %v6843, 1
  %v6926 = vrot.slane %v6844, 1
  %v6927 = vsel %vm3829, %v6925, %v6926
  %v6928 = vrot.slane %v6845, 1
  %v6929 = vrot.slane %v6846, 1
  %v6930 = vsel %vm3829, %v6928, %v6929
  %v6931 = vrot.slane %v6847, 1
  %v6932 = vrot.slane %v6848, 1
  %v6933 = vsel %vm3829, %v6931, %v6932
  %v6934 = vrot.slane %v6849, 1
  %v6935 = vrot.slane %v6850, 1
  %v6936 = vsel %vm3829, %v6934, %v6935
  %v6937 = vrot.slane %v6851, 1
  %v6938 = vrot.slane %v6852, 1
  %v6939 = vsel %vm3829, %v6937, %v6938
  %v6940 = vrot.slane %v6853, 1
  %v6941 = vrot.slane %v6854, 1
  %v6942 = vsel %vm3829, %v6940, %v6941
  %v6943 = vrot.slane %v6855, 1
  %v6944 = vrot.slane %v6856, 1
  %v6945 = vsel %vm3829, %v6943, %v6944
  %v6946 = vrot.slane %v6857, 1
  %v6947 = vrot.slane %v6858, 1
  %v6948 = vsel %vm3829, %v6946, %v6947
  %v6949 = vrot.slane %v6859, 1
  %v6950 = vrot.slane %v6860, 1
  %v6951 = vsel %vm3829, %v6949, %v6950
  %v6952 = vrot.slane %v6861, 1
  %v6953 = vrot.slane %v6862, 1
  %v6954 = vsel %vm3829, %v6952, %v6953
  %v6955 = vrot.slane %v6863, 1
  %v6956 = vrot.slane %v6864, 1
  %v6957 = vsel %vm3829, %v6955, %v6956
  %v6958 = vrot.slane %v6865, 1
  %v6959 = vrot.slane %v6866, 1
  %v6960 = vsel %vm3829, %v6958, %v6959
  %v6961 = vrot.slane %v6867, 1
  %v6962 = vrot.slane %v6868, 1
  %v6963 = vsel %vm3829, %v6961, %v6962
  %v6964 = vrot.slane %v6869, 1
  %v6965 = vrot.slane %v6870, 1
  %v6966 = vsel %vm3829, %v6964, %v6965
  %6999 = vst.msk [vmem:[#allocation3 + $0x20] sm:$0xff] %vm2804, %v6873
  %7000 = vst.msk [vmem:[#allocation3 + $0x48] sm:$0xff] %vm2804, %v6876
  %7001 = vst.msk [vmem:[#allocation3 + $0x70] sm:$0xff] %vm2804, %v6879
  %7002 = vst.msk [vmem:[#allocation3 + $0x98] sm:$0xff] %vm2804, %v6882
  %7003 = vst.msk [vmem:[#allocation3 + $0xc0] sm:$0xff] %vm2804, %v6885
  %7004 = vst.msk [vmem:[#allocation3 + $0xe8] sm:$0xff] %vm2804, %v6888
  %7005 = vst.msk [vmem:[#allocation3 + $0x110] sm:$0xff] %vm2804, %v6891
  %7006 = vst.msk [vmem:[#allocation3 + $0x138] sm:$0xff] %vm2804, %v6894
  %7007 = vst.msk [vmem:[#allocation3 + $0x160] sm:$0xff] %vm2804, %v6897
  %7008 = vst.msk [vmem:[#allocation3 + $0x188] sm:$0xff] %vm2804, %v6900
  %7009 = vst.msk [vmem:[#allocation3 + $0x1b0] sm:$0xff] %vm2804, %v6903
  %7010 = vst.msk [vmem:[#allocation3 + $0x1d8] sm:$0xff] %vm2804, %v6906
  %7011 = vst.msk [vmem:[#allocation3 + $0x200] sm:$0xff] %vm2804, %v6909
  %7012 = vst.msk [vmem:[#allocation3 + $0x228] sm:$0xff] %vm2804, %v6912
  %7013 = vst.msk [vmem:[#allocation3 + $0x250] sm:$0xff] %vm2804, %v6915
  %7014 = vst.msk [vmem:[#allocation3 + $0x278] sm:$0xff] %vm2804, %v6918
  %7015 = vst.msk [vmem:[#allocation3 + $0x2a0] sm:$0xff] %vm2804, %v6921
  %7016 = vst.msk [vmem:[#allocation3 + $0x2c8] sm:$0xff] %vm2804, %v6924
  %7017 = vst.msk [vmem:[#allocation3 + $0x2f0] sm:$0xff] %vm2804, %v6927
  %7018 = vst.msk [vmem:[#allocation3 + $0x318] sm:$0xff] %vm2804, %v6930
  %7019 = vst.msk [vmem:[#allocation3 + $0x340] sm:$0xff] %vm2804, %v6933
  %7020 = vst.msk [vmem:[#allocation3 + $0x368] sm:$0xff] %vm2804, %v6936
  %7021 = vst.msk [vmem:[#allocation3 + $0x390] sm:$0xff] %vm2804, %v6939
  %7022 = vst.msk [vmem:[#allocation3 + $0x3b8] sm:$0xff] %vm2804, %v6942
  %7023 = vst.msk [vmem:[#allocation3 + $0x3e0] sm:$0xff] %vm2804, %v6945
  %7024 = vst.msk [vmem:[#allocation3 + $0x408] sm:$0xff] %vm2804, %v6948
  %7025 = vst.msk [vmem:[#allocation3 + $0x430] sm:$0xff] %vm2804, %v6951
  %7026 = vst.msk [vmem:[#allocation3 + $0x458] sm:$0xff] %vm2804, %v6954
  %7027 = vst.msk [vmem:[#allocation3 + $0x480] sm:$0xff] %vm2804, %v6957
  %7028 = vst.msk [vmem:[#allocation3 + $0x4a8] sm:$0xff] %vm2804, %v6960
  %7029 = vst.msk [vmem:[#allocation3 + $0x4d0] sm:$0xff] %vm2804, %v6963
  %7030 = vst.msk [vmem:[#allocation3 + $0x4f8] sm:$0xff] %vm2804, %v6966
  %v7031 = vld [vmem:[#allocation3] sm:$0xff]
  %v7032 = vld [vmem:[#allocation3 + $0x8] sm:$0xff]
  %v7033 = vld [vmem:[#allocation3 + $0x10] sm:$0xff]
  %v7034 = vld [vmem:[#allocation3 + $0x18] sm:$0xff]
  %v7035 = vld [vmem:[#allocation3 + $0x20] sm:$0xff]
  %v7036 = vld [vmem:[#allocation3 + $0x28] sm:$0xff]
  %v7037 = vld [vmem:[#allocation3 + $0x30] sm:$0xff]
  %v7038 = vld [vmem:[#allocation3 + $0x38] sm:$0xff]
  %v7039 = vld [vmem:[#allocation3 + $0x40] sm:$0xff]
  %v7040 = vld [vmem:[#allocation3 + $0x48] sm:$0xff]
  %v7041 = vld [vmem:[#allocation3 + $0x50] sm:$0xff]
  %v7042 = vld [vmem:[#allocation3 + $0x58] sm:$0xff]
  %v7043 = vld [vmem:[#allocation3 + $0x60] sm:$0xff]
  %v7044 = vld [vmem:[#allocation3 + $0x68] sm:$0xff]
  %v7045 = vld [vmem:[#allocation3 + $0x70] sm:$0xff]
  %v7046 = vld [vmem:[#allocation3 + $0x78] sm:$0xff]
  %v7047 = vld [vmem:[#allocation3 + $0x80] sm:$0xff]
  %v7048 = vld [vmem:[#allocation3 + $0x88] sm:$0xff]
  %v7049 = vld [vmem:[#allocation3 + $0x90] sm:$0xff]
  %v7050 = vld [vmem:[#allocation3 + $0x98] sm:$0xff]
  %v7051 = vld [vmem:[#allocation3 + $0xa0] sm:$0xff]
  %v7052 = vld [vmem:[#allocation3 + $0xa8] sm:$0xff]
  %v7053 = vld [vmem:[#allocation3 + $0xb0] sm:$0xff]
  %v7054 = vld [vmem:[#allocation3 + $0xb8] sm:$0xff]
  %v7055 = vld [vmem:[#allocation3 + $0xc0] sm:$0xff]
  %v7056 = vld [vmem:[#allocation3 + $0xc8] sm:$0xff]
  %v7057 = vld [vmem:[#allocation3 + $0xd0] sm:$0xff]
  %v7058 = vld [vmem:[#allocation3 + $0xd8] sm:$0xff]
  %v7059 = vld [vmem:[#allocation3 + $0xe0] sm:$0xff]
  %v7060 = vld [vmem:[#allocation3 + $0xe8] sm:$0xff]
  %v7061 = vld [vmem:[#allocation3 + $0xf0] sm:$0xff]
  %v7062 = vld [vmem:[#allocation3 + $0xf8] sm:$0xff]
  %v7063 = vld [vmem:[#allocation3 + $0x100] sm:$0xff]
  %v7064 = vld [vmem:[#allocation3 + $0x108] sm:$0xff]
  %v7065 = vld [vmem:[#allocation3 + $0x110] sm:$0xff]
  %v7066 = vld [vmem:[#allocation3 + $0x118] sm:$0xff]
  %v7067 = vld [vmem:[#allocation3 + $0x120] sm:$0xff]
  %v7068 = vld [vmem:[#allocation3 + $0x128] sm:$0xff]
  %v7069 = vld [vmem:[#allocation3 + $0x130] sm:$0xff]
  %v7070 = vld [vmem:[#allocation3 + $0x138] sm:$0xff]
  %v7071 = vld [vmem:[#allocation3 + $0x140] sm:$0xff]
  %v7072 = vld [vmem:[#allocation3 + $0x148] sm:$0xff]
  %v7073 = vld [vmem:[#allocation3 + $0x150] sm:$0xff]
  %v7074 = vld [vmem:[#allocation3 + $0x158] sm:$0xff]
  %v7075 = vld [vmem:[#allocation3 + $0x160] sm:$0xff]
  %v7076 = vld [vmem:[#allocation3 + $0x168] sm:$0xff]
  %v7077 = vld [vmem:[#allocation3 + $0x170] sm:$0xff]
  %v7078 = vld [vmem:[#allocation3 + $0x178] sm:$0xff]
  %v7079 = vld [vmem:[#allocation3 + $0x180] sm:$0xff]
  %v7080 = vld [vmem:[#allocation3 + $0x188] sm:$0xff]
  %v7081 = vld [vmem:[#allocation3 + $0x190] sm:$0xff]
  %v7082 = vld [vmem:[#allocation3 + $0x198] sm:$0xff]
  %v7083 = vld [vmem:[#allocation3 + $0x1a0] sm:$0xff]
  %v7084 = vld [vmem:[#allocation3 + $0x1a8] sm:$0xff]
  %v7085 = vld [vmem:[#allocation3 + $0x1b0] sm:$0xff]
  %v7086 = vld [vmem:[#allocation3 + $0x1b8] sm:$0xff]
  %v7087 = vld [vmem:[#allocation3 + $0x1c0] sm:$0xff]
  %v7088 = vld [vmem:[#allocation3 + $0x1c8] sm:$0xff]
  %v7089 = vld [vmem:[#allocation3 + $0x1d0] sm:$0xff]
  %v7090 = vld [vmem:[#allocation3 + $0x1d8] sm:$0xff]
  %v7091 = vld [vmem:[#allocation3 + $0x1e0] sm:$0xff]
  %v7092 = vld [vmem:[#allocation3 + $0x1e8] sm:$0xff]
  %v7093 = vld [vmem:[#allocation3 + $0x1f0] sm:$0xff]
  %v7094 = vld [vmem:[#allocation3 + $0x1f8] sm:$0xff]
  %v7095 = vld [vmem:[#allocation3 + $0x200] sm:$0xff]
  %v7096 = vld [vmem:[#allocation3 + $0x208] sm:$0xff]
  %v7097 = vld [vmem:[#allocation3 + $0x210] sm:$0xff]
  %v7098 = vld [vmem:[#allocation3 + $0x218] sm:$0xff]
  %v7099 = vld [vmem:[#allocation3 + $0x220] sm:$0xff]
  %v7100 = vld [vmem:[#allocation3 + $0x228] sm:$0xff]
  %v7101 = vld [vmem:[#allocation3 + $0x230] sm:$0xff]
  %v7102 = vld [vmem:[#allocation3 + $0x238] sm:$0xff]
  %v7103 = vld [vmem:[#allocation3 + $0x240] sm:$0xff]
  %v7104 = vld [vmem:[#allocation3 + $0x248] sm:$0xff]
  %v7105 = vld [vmem:[#allocation3 + $0x250] sm:$0xff]
  %v7106 = vld [vmem:[#allocation3 + $0x258] sm:$0xff]
  %v7107 = vld [vmem:[#allocation3 + $0x260] sm:$0xff]
  %v7108 = vld [vmem:[#allocation3 + $0x268] sm:$0xff]
  %v7109 = vld [vmem:[#allocation3 + $0x270] sm:$0xff]
  %v7110 = vld [vmem:[#allocation3 + $0x278] sm:$0xff]
  %v7111 = vld [vmem:[#allocation3 + $0x280] sm:$0xff]
  %v7112 = vld [vmem:[#allocation3 + $0x288] sm:$0xff]
  %v7113 = vld [vmem:[#allocation3 + $0x290] sm:$0xff]
  %v7114 = vld [vmem:[#allocation3 + $0x298] sm:$0xff]
  %v7115 = vld [vmem:[#allocation3 + $0x2a0] sm:$0xff]
  %v7116 = vld [vmem:[#allocation3 + $0x2a8] sm:$0xff]
  %v7117 = vld [vmem:[#allocation3 + $0x2b0] sm:$0xff]
  %v7118 = vld [vmem:[#allocation3 + $0x2b8] sm:$0xff]
  %v7119 = vld [vmem:[#allocation3 + $0x2c0] sm:$0xff]
  %v7120 = vld [vmem:[#allocation3 + $0x2c8] sm:$0xff]
  %v7121 = vld [vmem:[#allocation3 + $0x2d0] sm:$0xff]
  %v7122 = vld [vmem:[#allocation3 + $0x2d8] sm:$0xff]
  %v7123 = vld [vmem:[#allocation3 + $0x2e0] sm:$0xff]
  %v7124 = vld [vmem:[#allocation3 + $0x2e8] sm:$0xff]
  %v7125 = vld [vmem:[#allocation3 + $0x2f0] sm:$0xff]
  %v7126 = vld [vmem:[#allocation3 + $0x2f8] sm:$0xff]
  %v7127 = vld [vmem:[#allocation3 + $0x300] sm:$0xff]
  %v7128 = vld [vmem:[#allocation3 + $0x308] sm:$0xff]
  %v7129 = vld [vmem:[#allocation3 + $0x310] sm:$0xff]
  %v7130 = vld [vmem:[#allocation3 + $0x318] sm:$0xff]
  %v7131 = vld [vmem:[#allocation3 + $0x320] sm:$0xff]
  %v7132 = vld [vmem:[#allocation3 + $0x328] sm:$0xff]
  %v7133 = vld [vmem:[#allocation3 + $0x330] sm:$0xff]
  %v7134 = vld [vmem:[#allocation3 + $0x338] sm:$0xff]
  %v7135 = vld [vmem:[#allocation3 + $0x340] sm:$0xff]
  %v7136 = vld [vmem:[#allocation3 + $0x348] sm:$0xff]
  %v7137 = vld [vmem:[#allocation3 + $0x350] sm:$0xff]
  %v7138 = vld [vmem:[#allocation3 + $0x358] sm:$0xff]
  %v7139 = vld [vmem:[#allocation3 + $0x360] sm:$0xff]
  %v7140 = vld [vmem:[#allocation3 + $0x368] sm:$0xff]
  %v7141 = vld [vmem:[#allocation3 + $0x370] sm:$0xff]
  %v7142 = vld [vmem:[#allocation3 + $0x378] sm:$0xff]
  %v7143 = vld [vmem:[#allocation3 + $0x380] sm:$0xff]
  %v7144 = vld [vmem:[#allocation3 + $0x388] sm:$0xff]
  %v7145 = vld [vmem:[#allocation3 + $0x390] sm:$0xff]
  %v7146 = vld [vmem:[#allocation3 + $0x398] sm:$0xff]
  %v7147 = vld [vmem:[#allocation3 + $0x3a0] sm:$0xff]
  %v7148 = vld [vmem:[#allocation3 + $0x3a8] sm:$0xff]
  %v7149 = vld [vmem:[#allocation3 + $0x3b0] sm:$0xff]
  %v7150 = vld [vmem:[#allocation3 + $0x3b8] sm:$0xff]
  %v7151 = vld [vmem:[#allocation3 + $0x3c0] sm:$0xff]
  %v7152 = vld [vmem:[#allocation3 + $0x3c8] sm:$0xff]
  %v7153 = vld [vmem:[#allocation3 + $0x3d0] sm:$0xff]
  %v7154 = vld [vmem:[#allocation3 + $0x3d8] sm:$0xff]
  %v7155 = vld [vmem:[#allocation3 + $0x3e0] sm:$0xff]
  %v7156 = vld [vmem:[#allocation3 + $0x3e8] sm:$0xff]
  %v7157 = vld [vmem:[#allocation3 + $0x3f0] sm:$0xff]
  %v7158 = vld [vmem:[#allocation3 + $0x3f8] sm:$0xff]
  %v7159 = vld [vmem:[#allocation3 + $0x400] sm:$0xff]
  %v7160 = vld [vmem:[#allocation3 + $0x408] sm:$0xff]
  %v7161 = vld [vmem:[#allocation3 + $0x410] sm:$0xff]
  %v7162 = vld [vmem:[#allocation3 + $0x418] sm:$0xff]
  %v7163 = vld [vmem:[#allocation3 + $0x420] sm:$0xff]
  %v7164 = vld [vmem:[#allocation3 + $0x428] sm:$0xff]
  %v7165 = vld [vmem:[#allocation3 + $0x430] sm:$0xff]
  %v7166 = vld [vmem:[#allocation3 + $0x438] sm:$0xff]
  %v7167 = vld [vmem:[#allocation3 + $0x440] sm:$0xff]
  %v7168 = vld [vmem:[#allocation3 + $0x448] sm:$0xff]
  %v7169 = vld [vmem:[#allocation3 + $0x450] sm:$0xff]
  %v7170 = vld [vmem:[#allocation3 + $0x458] sm:$0xff]
  %v7171 = vld [vmem:[#allocation3 + $0x460] sm:$0xff]
  %v7172 = vld [vmem:[#allocation3 + $0x468] sm:$0xff]
  %v7173 = vld [vmem:[#allocation3 + $0x470] sm:$0xff]
  %v7174 = vld [vmem:[#allocation3 + $0x478] sm:$0xff]
  %v7175 = vld [vmem:[#allocation3 + $0x480] sm:$0xff]
  %v7176 = vld [vmem:[#allocation3 + $0x488] sm:$0xff]
  %v7177 = vld [vmem:[#allocation3 + $0x490] sm:$0xff]
  %v7178 = vld [vmem:[#allocation3 + $0x498] sm:$0xff]
  %v7179 = vld [vmem:[#allocation3 + $0x4a0] sm:$0xff]
  %v7180 = vld [vmem:[#allocation3 + $0x4a8] sm:$0xff]
  %v7181 = vld [vmem:[#allocation3 + $0x4b0] sm:$0xff]
  %v7182 = vld [vmem:[#allocation3 + $0x4b8] sm:$0xff]
  %v7183 = vld [vmem:[#allocation3 + $0x4c0] sm:$0xff]
  %v7184 = vld [vmem:[#allocation3 + $0x4c8] sm:$0xff]
  %v7185 = vld [vmem:[#allocation3 + $0x4d0] sm:$0xff]
  %v7186 = vld [vmem:[#allocation3 + $0x4d8] sm:$0xff]
  %v7187 = vld [vmem:[#allocation3 + $0x4e0] sm:$0xff]
  %v7188 = vld [vmem:[#allocation3 + $0x4e8] sm:$0xff]
  %v7189 = vld [vmem:[#allocation3 + $0x4f0] sm:$0xff]
  %v7190 = vld [vmem:[#allocation3 + $0x4f8] sm:$0xff]
  %v7191 = vld [vmem:[%s3] sm:$0xf]
  %v7192 = vld [vmem:[%s3 + $0x4] sm:$0xf]
  %v7193 = vld [vmem:[%s3 + $0x8] sm:$0xf]
  %v7194 = vld [vmem:[%s3 + $0xc] sm:$0xf]
  %v7195 = vld [vmem:[%s3 + $0x10] sm:$0xf]
  %v7196 = vld [vmem:[%s3 + $0x14] sm:$0xf]
  %v7197 = vld [vmem:[%s3 + $0x18] sm:$0xf]
  %v7198 = vld [vmem:[%s3 + $0x1c] sm:$0xf]
  %v7199 = vld [vmem:[%s3 + $0x20] sm:$0xf]
  %v7200 = vld [vmem:[%s3 + $0x24] sm:$0xf]
  %v7201 = vld [vmem:[%s3 + $0x28] sm:$0xf]
  %v7202 = vld [vmem:[%s3 + $0x2c] sm:$0xf]
  %v7203 = vld [vmem:[%s3 + $0x30] sm:$0xf]
  %v7204 = vld [vmem:[%s3 + $0x34] sm:$0xf]
  %v7205 = vld [vmem:[%s3 + $0x38] sm:$0xf]
  %v7206 = vld [vmem:[%s3 + $0x3c] sm:$0xf]
  %v7207 = vld [vmem:[%s3 + $0x40] sm:$0xf]
  %v7208 = vld [vmem:[%s3 + $0x44] sm:$0xf]
  %v7209 = vld [vmem:[%s3 + $0x48] sm:$0xf]
  %v7210 = vld [vmem:[%s3 + $0x4c] sm:$0xf]
  %v7211 = vld [vmem:[%s3 + $0x50] sm:$0xf]
  %v7212 = vld [vmem:[%s3 + $0x54] sm:$0xf]
  %v7213 = vld [vmem:[%s3 + $0x58] sm:$0xf]
  %v7214 = vld [vmem:[%s3 + $0x5c] sm:$0xf]
  %v7215 = vld [vmem:[%s3 + $0x60] sm:$0xf]
  %v7216 = vld [vmem:[%s3 + $0x64] sm:$0xf]
  %v7217 = vld [vmem:[%s3 + $0x68] sm:$0xf]
  %v7218 = vld [vmem:[%s3 + $0x6c] sm:$0xf]
  %v7219 = vld [vmem:[%s3 + $0x70] sm:$0xf]
  %v7220 = vld [vmem:[%s3 + $0x74] sm:$0xf]
  %v7221 = vld [vmem:[%s3 + $0x78] sm:$0xf]
  %v7222 = vld [vmem:[%s3 + $0x7c] sm:$0xf]
  %v7223 = vld [vmem:[%s3 + $0x80] sm:$0xf]
  %v7224 = vld [vmem:[%s3 + $0x84] sm:$0xf]
  %v7225 = vld [vmem:[%s3 + $0x88] sm:$0xf]
  %v7226 = vld [vmem:[%s3 + $0x8c] sm:$0xf]
  %v7227 = vld [vmem:[%s3 + $0x90] sm:$0xf]
  %v7228 = vld [vmem:[%s3 + $0x94] sm:$0xf]
  %v7229 = vld [vmem:[%s3 + $0x98] sm:$0xf]
  %v7230 = vld [vmem:[%s3 + $0x9c] sm:$0xf]
  %v7231 = vld [vmem:[%s3 + $0xa0] sm:$0xf]
  %v7232 = vld [vmem:[%s3 + $0xa4] sm:$0xf]
  %v7233 = vld [vmem:[%s3 + $0xa8] sm:$0xf]
  %v7234 = vld [vmem:[%s3 + $0xac] sm:$0xf]
  %v7235 = vld [vmem:[%s3 + $0xb0] sm:$0xf]
  %v7236 = vld [vmem:[%s3 + $0xb4] sm:$0xf]
  %v7237 = vld [vmem:[%s3 + $0xb8] sm:$0xf]
  %v7238 = vld [vmem:[%s3 + $0xbc] sm:$0xf]
  %v7239 = vld [vmem:[%s3 + $0xc0] sm:$0xf]
  %v7240 = vld [vmem:[%s3 + $0xc4] sm:$0xf]
  %v7241 = vld [vmem:[%s3 + $0xc8] sm:$0xf]
  %v7242 = vld [vmem:[%s3 + $0xcc] sm:$0xf]
  %v7243 = vld [vmem:[%s3 + $0xd0] sm:$0xf]
  %v7244 = vld [vmem:[%s3 + $0xd4] sm:$0xf]
  %v7245 = vld [vmem:[%s3 + $0xd8] sm:$0xf]
  %v7246 = vld [vmem:[%s3 + $0xdc] sm:$0xf]
  %v7247 = vld [vmem:[%s3 + $0xe0] sm:$0xf]
  %v7248 = vld [vmem:[%s3 + $0xe4] sm:$0xf]
  %v7249 = vld [vmem:[%s3 + $0xe8] sm:$0xf]
  %v7250 = vld [vmem:[%s3 + $0xec] sm:$0xf]
  %v7251 = vld [vmem:[%s3 + $0xf0] sm:$0xf]
  %v7252 = vld [vmem:[%s3 + $0xf4] sm:$0xf]
  %v7253 = vld [vmem:[%s3 + $0xf8] sm:$0xf]
  %v7254 = vld [vmem:[%s3 + $0xfc] sm:$0xf]
  %v7255 = vld [vmem:[%s3 + $0x100] sm:$0xf]
  %v7256 = vld [vmem:[%s3 + $0x104] sm:$0xf]
  %v7257 = vld [vmem:[%s3 + $0x108] sm:$0xf]
  %v7258 = vld [vmem:[%s3 + $0x10c] sm:$0xf]
  %v7259 = vld [vmem:[%s3 + $0x110] sm:$0xf]
  %v7260 = vld [vmem:[%s3 + $0x114] sm:$0xf]
  %v7261 = vld [vmem:[%s3 + $0x118] sm:$0xf]
  %v7262 = vld [vmem:[%s3 + $0x11c] sm:$0xf]
  %v7263 = vld [vmem:[%s4] sm:$0x1]
  %v7265 = vlaneseq
  %v7266 = vshrl.u32 %v7265, 7
  %v7267 = vsub.s32 0, %v7266
  %v7268 = vrot.slane %v7263, %v7267
  %v7342 = vunpack.c.l.b16 %v7191
  %v7343 = vunpack.c.l.b16 %v7192
  %v7344 = vunpack.c.l.b16 %v7193
  %v7345 = vunpack.c.l.b16 %v7194
  %v7346 = vunpack.c.l.b16 %v7195
  %v7347 = vunpack.c.l.b16 %v7196
  %v7348 = vunpack.c.l.b16 %v7197
  %v7349 = vunpack.c.l.b16 %v7198
  %v7350 = vunpack.c.l.b16 %v7199
  %v7351 = vunpack.c.l.b16 %v7200
  %v7352 = vunpack.c.l.b16 %v7201
  %v7353 = vunpack.c.l.b16 %v7202
  %v7354 = vunpack.c.l.b16 %v7203
  %v7355 = vunpack.c.l.b16 %v7204
  %v7356 = vunpack.c.l.b16 %v7205
  %v7357 = vunpack.c.l.b16 %v7206
  %v7358 = vunpack.c.l.b16 %v7207
  %v7359 = vunpack.c.l.b16 %v7208
  %v7360 = vunpack.c.l.b16 %v7209
  %v7361 = vunpack.c.l.b16 %v7210
  %v7362 = vunpack.c.l.b16 %v7211
  %v7363 = vunpack.c.l.b16 %v7212
  %v7364 = vunpack.c.l.b16 %v7213
  %v7365 = vunpack.c.l.b16 %v7214
  %v7366 = vunpack.c.l.b16 %v7215
  %v7367 = vunpack.c.l.b16 %v7216
  %v7368 = vunpack.c.l.b16 %v7217
  %v7369 = vunpack.c.l.b16 %v7218
  %v7370 = vunpack.c.l.b16 %v7219
  %v7371 = vunpack.c.l.b16 %v7220
  %v7372 = vunpack.c.l.b16 %v7221
  %v7373 = vunpack.c.l.b16 %v7222
  %v7374 = vunpack.c.l.b16 %v7223
  %v7375 = vunpack.c.l.b16 %v7224
  %v7376 = vunpack.c.l.b16 %v7225
  %v7377 = vunpack.c.l.b16 %v7226
  %v7378 = vunpack.c.l.b16 %v7227
  %v7379 = vunpack.c.l.b16 %v7228
  %v7380 = vunpack.c.l.b16 %v7229
  %v7381 = vunpack.c.l.b16 %v7230
  %v7382 = vunpack.c.l.b16 %v7231
  %v7383 = vunpack.c.l.b16 %v7232
  %v7384 = vunpack.c.l.b16 %v7233
  %v7385 = vunpack.c.l.b16 %v7234
  %v7386 = vunpack.c.l.b16 %v7235
  %v7387 = vunpack.c.l.b16 %v7236
  %v7388 = vunpack.c.l.b16 %v7237
  %v7389 = vunpack.c.l.b16 %v7238
  %v7390 = vunpack.c.l.b16 %v7239
  %v7391 = vunpack.c.l.b16 %v7240
  %v7392 = vunpack.c.l.b16 %v7241
  %v7393 = vunpack.c.l.b16 %v7242
  %v7394 = vunpack.c.l.b16 %v7243
  %v7395 = vunpack.c.l.b16 %v7244
  %v7396 = vunpack.c.l.b16 %v7245
  %v7397 = vunpack.c.l.b16 %v7246
  %v7398 = vunpack.c.l.b16 %v7247
  %v7399 = vunpack.c.l.b16 %v7248
  %v7400 = vunpack.c.l.b16 %v7249
  %v7401 = vunpack.c.l.b16 %v7250
  %v7402 = vunpack.c.l.b16 %v7251
  %v7403 = vunpack.c.l.b16 %v7252
  %v7404 = vunpack.c.l.b16 %v7253
  %v7405 = vunpack.c.l.b16 %v7254
  %v7406 = vunpack.c.l.b16 %v7255
  %v7407 = vunpack.c.l.b16 %v7256
  %v7408 = vunpack.c.l.b16 %v7257
  %v7409 = vunpack.c.l.b16 %v7258
  %v7410 = vunpack.c.l.b16 %v7259
  %v7411 = vunpack.c.l.b16 %v7260
  %v7412 = vunpack.c.l.b16 %v7261
  %v7413 = vunpack.c.l.b16 %v7262
  %v7414 = vpack.c.b16 %v7343, %v7342
  %v7415 = vpack.c.b16 %v7345, %v7344
  %v7416 = vpack.c.b16 %v7347, %v7346
  %v7417 = vpack.c.b16 %v7349, %v7348
  %v7418 = vpack.c.b16 %v7351, %v7350
  %v7419 = vpack.c.b16 %v7353, %v7352
  %v7420 = vpack.c.b16 %v7355, %v7354
  %v7421 = vpack.c.b16 %v7357, %v7356
  %v7422 = vpack.c.b16 %v7359, %v7358
  %v7423 = vpack.c.b16 %v7361, %v7360
  %v7424 = vpack.c.b16 %v7363, %v7362
  %v7425 = vpack.c.b16 %v7365, %v7364
  %v7426 = vpack.c.b16 %v7367, %v7366
  %v7427 = vpack.c.b16 %v7369, %v7368
  %v7428 = vpack.c.b16 %v7371, %v7370
  %v7429 = vpack.c.b16 %v7373, %v7372
  %v7430 = vpack.c.b16 %v7375, %v7374
  %v7431 = vpack.c.b16 %v7377, %v7376
  %v7432 = vpack.c.b16 %v7379, %v7378
  %v7433 = vpack.c.b16 %v7381, %v7380
  %v7434 = vpack.c.b16 %v7383, %v7382
  %v7435 = vpack.c.b16 %v7385, %v7384
  %v7436 = vpack.c.b16 %v7387, %v7386
  %v7437 = vpack.c.b16 %v7389, %v7388
  %v7438 = vpack.c.b16 %v7391, %v7390
  %v7439 = vpack.c.b16 %v7393, %v7392
  %v7440 = vpack.c.b16 %v7395, %v7394
  %v7441 = vpack.c.b16 %v7397, %v7396
  %v7442 = vpack.c.b16 %v7399, %v7398
  %v7443 = vpack.c.b16 %v7401, %v7400
  %v7444 = vpack.c.b16 %v7403, %v7402
  %v7445 = vpack.c.b16 %v7405, %v7404
  %v7446 = vpack.c.b16 %v7407, %v7406
  %v7447 = vpack.c.b16 %v7409, %v7408
  %v7448 = vpack.c.b16 %v7411, %v7410
  %v7449 = vpack.c.b16 %v7413, %v7412
  %v7487 = vsel %vm2804, %v7035, 0
  %v7490 = vsel %vm2804, %v7040, 0
  %v7493 = vsel %vm2804, %v7045, 0
  %v7496 = vsel %vm2804, %v7050, 0
  %v7499 = vsel %vm2804, %v7055, 0
  %v7502 = vsel %vm2804, %v7060, 0
  %v7505 = vsel %vm2804, %v7065, 0
  %v7508 = vsel %vm2804, %v7070, 0
  %v7511 = vsel %vm2804, %v7075, 0
  %v7514 = vsel %vm2804, %v7080, 0
  %v7517 = vsel %vm2804, %v7085, 0
  %v7520 = vsel %vm2804, %v7090, 0
  %v7523 = vsel %vm2804, %v7095, 0
  %v7526 = vsel %vm2804, %v7100, 0
  %v7529 = vsel %vm2804, %v7105, 0
  %v7532 = vsel %vm2804, %v7110, 0
  %v7535 = vsel %vm2804, %v7115, 0
  %v7538 = vsel %vm2804, %v7120, 0
  %v7541 = vsel %vm2804, %v7125, 0
  %v7544 = vsel %vm2804, %v7130, 0
  %v7547 = vsel %vm2804, %v7135, 0
  %v7550 = vsel %vm2804, %v7140, 0
  %v7553 = vsel %vm2804, %v7145, 0
  %v7556 = vsel %vm2804, %v7150, 0
  %v7559 = vsel %vm2804, %v7155, 0
  %v7562 = vsel %vm2804, %v7160, 0
  %v7565 = vsel %vm2804, %v7165, 0
  %v7568 = vsel %vm2804, %v7170, 0
  %v7571 = vsel %vm2804, %v7175, 0
  %v7574 = vsel %vm2804, %v7180, 0
  %v7577 = vsel %vm2804, %v7185, 0
  %v7580 = vsel %vm2804, %v7190, 0
  %7582 = vmatprep.subr.bf16.mxu0 0
  %7583 = vmatpush1.bf16.msra.mxu0 %v7414
  %7584 = vmatprep.subr.bf16.mxu0 0
  %7585 = vmatpush1.bf16.msra.mxu0 %v7415
  %7586 = vmatprep.subr.bf16.mxu0 0
  %7587 = vmatpush1.bf16.msra.mxu0 %v7416
  %7588 = vmatprep.subr.bf16.mxu0 0
  %7589 = vmatpush1.bf16.msra.mxu0 %v7417
  %7590 = vmatprep.subr.bf16.mxu0 0
  %7591 = vmatpush1.bf16.msra.mxu0 %v7418
  %7592 = vmatprep.subr.bf16.mxu0 0
  %7593 = vmatpush1.bf16.msra.mxu0 %v7419
  %7594 = vmatprep.subr.bf16.mxu0 0
  %7595 = vmatpush1.bf16.msra.mxu0 %v7420
  %7596 = vmatprep.subr.bf16.mxu0 0
  %7597 = vmatpush1.bf16.msra.mxu0 %v7421
  %7598 = vmatprep.subr.bf16.mxu0 0
  %7599 = vmatpush1.bf16.msra.mxu0 %v7422
  %7600 = vmatprep.subr.bf16.mxu0 0
  %7601 = vmatpush1.bf16.msra.mxu0 %v7423
  %7602 = vmatprep.subr.bf16.mxu0 0
  %7603 = vmatpush1.bf16.msra.mxu0 %v7424
  %7604 = vmatprep.subr.bf16.mxu0 0
  %7605 = vmatpush1.bf16.msra.mxu0 %v7425
  %7606 = vmatprep.subr.bf16.mxu0 0
  %7607 = vmatpush1.bf16.msra.mxu0 %v7426
  %7608 = vmatprep.subr.bf16.mxu0 0
  %7609 = vmatpush1.bf16.msra.mxu0 %v7427
  %7610 = vmatprep.subr.bf16.mxu0 0
  %7611 = vmatpush1.bf16.msra.mxu0 %v7428
  %7612 = vmatprep.subr.bf16.mxu0 0
  %7613 = vmatpush1.bf16.msra.mxu0 %v7429
  %7614 = vmatprep.mubr.bf16.mxu0 %v7032
  %7615 = vmatmul.mubr.bf16.gmra.mrb[0].mxu0 %v7031
  %v7616 = vpop.f32.mrb[0].mxu0
  %v7617 = vadd.f32 %v7268, %v7616
  %v7618 = vpop.f32.mrb[0].mxu0
  %v7619 = vpop.f32.mrb[0].mxu0
  %v7620 = vadd.f32 %v7268, %v7619
  %v7621 = vpop.f32.mrb[0].mxu0
  %7622 = vmatprep.mubr.bf16.mxu0 %v7037
  %7623 = vmatmul.mubr.bf16.gmra.mrb[0].mxu0 %v7036
  %v7624 = vpop.f32.mrb[0].mxu0
  %v7625 = vadd.f32 %v7268, %v7624
  %v7626 = vpop.f32.mrb[0].mxu0
  %v7627 = vpop.f32.mrb[0].mxu0
  %v7628 = vadd.f32 %v7268, %v7627
  %v7629 = vpop.f32.mrb[0].mxu0
  %7630 = vmatprep.mubr.bf16.mxu0 %v7042
  %7631 = vmatmul.mubr.bf16.gmra.mrb[0].mxu0 %v7041
  %v7632 = vpop.f32.mrb[0].mxu0
  %v7633 = vadd.f32 %v7268, %v7632
  %v7634 = vpop.f32.mrb[0].mxu0
  %v7635 = vpop.f32.mrb[0].mxu0
  %v7636 = vadd.f32 %v7268, %v7635
  %v7637 = vpop.f32.mrb[0].mxu0
  %7638 = vmatprep.mubr.bf16.mxu0 %v7047
  %7639 = vmatmul.mubr.bf16.gmra.mrb[0].mxu0 %v7046
  %v7640 = vpop.f32.mrb[0].mxu0
  %v7641 = vadd.f32 %v7268, %v7640
  %v7642 = vpop.f32.mrb[0].mxu0
  %v7643 = vpop.f32.mrb[0].mxu0
  %v7644 = vadd.f32 %v7268, %v7643
  %v7645 = vpop.f32.mrb[0].mxu0
  %7646 = vmatprep.mubr.bf16.mxu0 %v7052
  %7647 = vmatmul.mubr.bf16.gmra.mrb[0].mxu0 %v7051
  %v7648 = vpop.f32.mrb[0].mxu0
  %v7649 = vadd.f32 %v7268, %v7648
  %v7650 = vpop.f32.mrb[0].mxu0
  %v7651 = vpop.f32.mrb[0].mxu0
  %v7652 = vadd.f32 %v7268, %v7651
  %v7653 = vpop.f32.mrb[0].mxu0
  %7654 = vmatprep.mubr.bf16.mxu0 %v7057
  %7655 = vmatmul.mubr.bf16.gmra.mrb[0].mxu0 %v7056
  %v7656 = vpop.f32.mrb[0].mxu0
  %v7657 = vadd.f32 %v7268, %v7656
  %v7658 = vpop.f32.mrb[0].mxu0
  %v7659 = vpop.f32.mrb[0].mxu0
  %v7660 = vadd.f32 %v7268, %v7659
  %v7661 = vpop.f32.mrb[0].mxu0
  %7662 = vmatprep.mubr.bf16.mxu0 %v7062
  %7663 = vmatmul.mubr.bf16.gmra.mrb[0].mxu0 %v7061
  %v7664 = vpop.f32.mrb[0].mxu0
  %v7665 = vadd.f32 %v7268, %v7664
  %v7666 = vpop.f32.mrb[0].mxu0
  %v7667 = vpop.f32.mrb[0].mxu0
  %v7668 = vadd.f32 %v7268, %v7667
  %v7669 = vpop.f32.mrb[0].mxu0
  %7670 = vmatprep.mubr.bf16.mxu0 %v7067
  %7671 = vmatmul.mubr.bf16.gmra.mrb[0].mxu0 %v7066
  %v7672 = vpop.f32.mrb[0].mxu0
  %v7673 = vadd.f32 %v7268, %v7672
  %v7674 = vpop.f32.mrb[0].mxu0
  %v7675 = vpop.f32.mrb[0].mxu0
  %v7676 = vadd.f32 %v7268, %v7675
  %v7677 = vpop.f32.mrb[0].mxu0
  %7678 = vmatprep.mubr.bf16.mxu0 %v7072
  %7679 = vmatmul.mubr.bf16.gmra.mrb[0].mxu0 %v7071
  %v7680 = vpop.f32.mrb[0].mxu0
  %v7681 = vadd.f32 %v7268, %v7680
  %v7682 = vpop.f32.mrb[0].mxu0
  %v7683 = vpop.f32.mrb[0].mxu0
  %v7684 = vadd.f32 %v7268, %v7683
  %v7685 = vpop.f32.mrb[0].mxu0
  %7686 = vmatprep.mubr.bf16.mxu0 %v7077
  %7687 = vmatmul.mubr.bf16.gmra.mrb[0].mxu0 %v7076
  %v7688 = vpop.f32.mrb[0].mxu0
  %v7689 = vadd.f32 %v7268, %v7688
  %v7690 = vpop.f32.mrb[0].mxu0
  %v7691 = vpop.f32.mrb[0].mxu0
  %v7692 = vadd.f32 %v7268, %v7691
  %v7693 = vpop.f32.mrb[0].mxu0
  %7694 = vmatprep.mubr.bf16.mxu0 %v7082
  %7695 = vmatmul.mubr.bf16.gmra.mrb[0].mxu0 %v7081
  %v7696 = vpop.f32.mrb[0].mxu0
  %v7697 = vadd.f32 %v7268, %v7696
  %v7698 = vpop.f32.mrb[0].mxu0
  %v7699 = vpop.f32.mrb[0].mxu0
  %v7700 = vadd.f32 %v7268, %v7699
  %v7701 = vpop.f32.mrb[0].mxu0
  %7702 = vmatprep.mubr.bf16.mxu0 %v7087
  %7703 = vmatmul.mubr.bf16.gmra.mrb[0].mxu0 %v7086
  %v7704 = vpop.f32.mrb[0].mxu0
  %v7705 = vadd.f32 %v7268, %v7704
  %v7706 = vpop.f32.mrb[0].mxu0
  %v7707 = vpop.f32.mrb[0].mxu0
  %v7708 = vadd.f32 %v7268, %v7707
  %v7709 = vpop.f32.mrb[0].mxu0
  %7710 = vmatprep.mubr.bf16.mxu0 %v7092
  %7711 = vmatmul.mubr.bf16.gmra.mrb[0].mxu0 %v7091
  %v7712 = vpop.f32.mrb[0].mxu0
  %v7713 = vadd.f32 %v7268, %v7712
  %v7714 = vpop.f32.mrb[0].mxu0
  %v7715 = vpop.f32.mrb[0].mxu0
  %v7716 = vadd.f32 %v7268, %v7715
  %v7717 = vpop.f32.mrb[0].mxu0
  %7718 = vmatprep.mubr.bf16.mxu0 %v7097
  %7719 = vmatmul.mubr.bf16.gmra.mrb[0].mxu0 %v7096
  %v7720 = vpop.f32.mrb[0].mxu0
  %v7721 = vadd.f32 %v7268, %v7720
  %v7722 = vpop.f32.mrb[0].mxu0
  %v7723 = vpop.f32.mrb[0].mxu0
  %v7724 = vadd.f32 %v7268, %v7723
  %v7725 = vpop.f32.mrb[0].mxu0
  %7726 = vmatprep.mubr.bf16.mxu0 %v7102
  %7727 = vmatmul.mubr.bf16.gmra.mrb[0].mxu0 %v7101
  %v7728 = vpop.f32.mrb[0].mxu0
  %v7729 = vadd.f32 %v7268, %v7728
  %v7730 = vpop.f32.mrb[0].mxu0
  %v7731 = vpop.f32.mrb[0].mxu0
  %v7732 = vadd.f32 %v7268, %v7731
  %v7733 = vpop.f32.mrb[0].mxu0
  %7734 = vmatprep.mubr.bf16.mxu0 %v7107
  %7735 = vmatmul.mubr.bf16.gmra.mrb[0].mxu0 %v7106
  %v7736 = vpop.f32.mrb[0].mxu0
  %v7737 = vadd.f32 %v7268, %v7736
  %v7738 = vpop.f32.mrb[0].mxu0
  %v7739 = vpop.f32.mrb[0].mxu0
  %v7740 = vadd.f32 %v7268, %v7739
  %v7741 = vpop.f32.mrb[0].mxu0
  %7742 = vmatprep.mubr.bf16.mxu0 %v7112
  %7743 = vmatmul.mubr.bf16.gmra.mrb[0].mxu0 %v7111
  %v7744 = vpop.f32.mrb[0].mxu0
  %v7745 = vadd.f32 %v7268, %v7744
  %v7746 = vpop.f32.mrb[0].mxu0
  %v7747 = vpop.f32.mrb[0].mxu0
  %v7748 = vadd.f32 %v7268, %v7747
  %v7749 = vpop.f32.mrb[0].mxu0
  %7750 = vmatprep.mubr.bf16.mxu0 %v7117
  %7751 = vmatmul.mubr.bf16.gmra.mrb[0].mxu0 %v7116
  %v7752 = vpop.f32.mrb[0].mxu0
  %v7753 = vadd.f32 %v7268, %v7752
  %v7754 = vpop.f32.mrb[0].mxu0
  %v7755 = vpop.f32.mrb[0].mxu0
  %v7756 = vadd.f32 %v7268, %v7755
  %v7757 = vpop.f32.mrb[0].mxu0
  %7758 = vmatprep.mubr.bf16.mxu0 %v7122
  %7759 = vmatmul.mubr.bf16.gmra.mrb[0].mxu0 %v7121
  %v7760 = vpop.f32.mrb[0].mxu0
  %v7761 = vadd.f32 %v7268, %v7760
  %v7762 = vpop.f32.mrb[0].mxu0
  %v7763 = vpop.f32.mrb[0].mxu0
  %v7764 = vadd.f32 %v7268, %v7763
  %v7765 = vpop.f32.mrb[0].mxu0
  %7766 = vmatprep.mubr.bf16.mxu0 %v7127
  %7767 = vmatmul.mubr.bf16.gmra.mrb[0].mxu0 %v7126
  %v7768 = vpop.f32.mrb[0].mxu0
  %v7769 = vadd.f32 %v7268, %v7768
  %v7770 = vpop.f32.mrb[0].mxu0
  %v7771 = vpop.f32.mrb[0].mxu0
  %v7772 = vadd.f32 %v7268, %v7771
  %v7773 = vpop.f32.mrb[0].mxu0
  %7774 = vmatprep.mubr.bf16.mxu0 %v7132
  %7775 = vmatmul.mubr.bf16.gmra.mrb[0].mxu0 %v7131
  %v7776 = vpop.f32.mrb[0].mxu0
  %v7777 = vadd.f32 %v7268, %v7776
  %v7778 = vpop.f32.mrb[0].mxu0
  %v7779 = vpop.f32.mrb[0].mxu0
  %v7780 = vadd.f32 %v7268, %v7779
  %v7781 = vpop.f32.mrb[0].mxu0
  %7782 = vmatprep.mubr.bf16.mxu0 %v7137
  %7783 = vmatmul.mubr.bf16.gmra.mrb[0].mxu0 %v7136
  %v7784 = vpop.f32.mrb[0].mxu0
  %v7785 = vadd.f32 %v7268, %v7784
  %v7786 = vpop.f32.mrb[0].mxu0
  %v7787 = vpop.f32.mrb[0].mxu0
  %v7788 = vadd.f32 %v7268, %v7787
  %v7789 = vpop.f32.mrb[0].mxu0
  %7790 = vmatprep.mubr.bf16.mxu0 %v7142
  %7791 = vmatmul.mubr.bf16.gmra.mrb[0].mxu0 %v7141
  %v7792 = vpop.f32.mrb[0].mxu0
  %v7793 = vadd.f32 %v7268, %v7792
  %v7794 = vpop.f32.mrb[0].mxu0
  %v7795 = vpop.f32.mrb[0].mxu0
  %v7796 = vadd.f32 %v7268, %v7795
  %v7797 = vpop.f32.mrb[0].mxu0
  %7798 = vmatprep.mubr.bf16.mxu0 %v7147
  %7799 = vmatmul.mubr.bf16.gmra.mrb[0].mxu0 %v7146
  %v7800 = vpop.f32.mrb[0].mxu0
  %v7801 = vadd.f32 %v7268, %v7800
  %v7802 = vpop.f32.mrb[0].mxu0
  %v7803 = vpop.f32.mrb[0].mxu0
  %v7804 = vadd.f32 %v7268, %v7803
  %v7805 = vpop.f32.mrb[0].mxu0
  %7806 = vmatprep.mubr.bf16.mxu0 %v7152
  %7807 = vmatmul.mubr.bf16.gmra.mrb[0].mxu0 %v7151
  %v7808 = vpop.f32.mrb[0].mxu0
  %v7809 = vadd.f32 %v7268, %v7808
  %v7810 = vpop.f32.mrb[0].mxu0
  %v7811 = vpop.f32.mrb[0].mxu0
  %v7812 = vadd.f32 %v7268, %v7811
  %v7813 = vpop.f32.mrb[0].mxu0
  %7814 = vmatprep.mubr.bf16.mxu0 %v7157
  %7815 = vmatmul.mubr.bf16.gmra.mrb[0].mxu0 %v7156
  %v7816 = vpop.f32.mrb[0].mxu0
  %v7817 = vadd.f32 %v7268, %v7816
  %v7818 = vpop.f32.mrb[0].mxu0
  %v7819 = vpop.f32.mrb[0].mxu0
  %v7820 = vadd.f32 %v7268, %v7819
  %v7821 = vpop.f32.mrb[0].mxu0
  %7822 = vmatprep.mubr.bf16.mxu0 %v7162
  %7823 = vmatmul.mubr.bf16.gmra.mrb[0].mxu0 %v7161
  %v7824 = vpop.f32.mrb[0].mxu0
  %v7825 = vadd.f32 %v7268, %v7824
  %v7826 = vpop.f32.mrb[0].mxu0
  %v7827 = vpop.f32.mrb[0].mxu0
  %v7828 = vadd.f32 %v7268, %v7827
  %v7829 = vpop.f32.mrb[0].mxu0
  %7830 = vmatprep.mubr.bf16.mxu0 %v7167
  %7831 = vmatmul.mubr.bf16.gmra.mrb[0].mxu0 %v7166
  %v7832 = vpop.f32.mrb[0].mxu0
  %v7833 = vadd.f32 %v7268, %v7832
  %v7834 = vpop.f32.mrb[0].mxu0
  %v7835 = vpop.f32.mrb[0].mxu0
  %v7836 = vadd.f32 %v7268, %v7835
  %v7837 = vpop.f32.mrb[0].mxu0
  %7838 = vmatprep.mubr.bf16.mxu0 %v7172
  %7839 = vmatmul.mubr.bf16.gmra.mrb[0].mxu0 %v7171
  %v7840 = vpop.f32.mrb[0].mxu0
  %v7841 = vadd.f32 %v7268, %v7840
  %v7842 = vpop.f32.mrb[0].mxu0
  %v7843 = vpop.f32.mrb[0].mxu0
  %v7844 = vadd.f32 %v7268, %v7843
  %v7845 = vpop.f32.mrb[0].mxu0
  %7846 = vmatprep.mubr.bf16.mxu0 %v7177
  %7847 = vmatmul.mubr.bf16.gmra.mrb[0].mxu0 %v7176
  %v7848 = vpop.f32.mrb[0].mxu0
  %v7849 = vadd.f32 %v7268, %v7848
  %v7850 = vpop.f32.mrb[0].mxu0
  %v7851 = vpop.f32.mrb[0].mxu0
  %v7852 = vadd.f32 %v7268, %v7851
  %v7853 = vpop.f32.mrb[0].mxu0
  %7854 = vmatprep.mubr.bf16.mxu0 %v7182
  %7855 = vmatmul.mubr.bf16.gmra.mrb[0].mxu0 %v7181
  %v7856 = vpop.f32.mrb[0].mxu0
  %v7857 = vadd.f32 %v7268, %v7856
  %v7858 = vpop.f32.mrb[0].mxu0
  %v7859 = vpop.f32.mrb[0].mxu0
  %v7860 = vadd.f32 %v7268, %v7859
  %v7861 = vpop.f32.mrb[0].mxu0
  %7862 = vmatprep.mubr.bf16.mxu0 %v7187
  %7863 = vmatmul.mubr.bf16.gmra.mrb[0].mxu0 %v7186
  %v7864 = vpop.f32.mrb[0].mxu0
  %v7865 = vadd.f32 %v7268, %v7864
  %v7866 = vpop.f32.mrb[0].mxu0
  %v7867 = vpop.f32.mrb[0].mxu0
  %v7868 = vadd.f32 %v7268, %v7867
  %v7869 = vpop.f32.mrb[0].mxu0
  %7870 = vdwg.mxu0
  %7871 = vmatprep.subr.bf16.mxu0 0
  %7872 = vmatpush1.bf16.msra.mxu0 %v7430
  %7873 = vmatprep.subr.bf16.mxu0 0
  %7874 = vmatpush1.bf16.msra.mxu0 %v7431
  %7875 = vmatprep.subr.bf16.mxu0 0
  %7876 = vmatpush1.bf16.msra.mxu0 %v7432
  %7877 = vmatprep.subr.bf16.mxu0 0
  %7878 = vmatpush1.bf16.msra.mxu0 %v7433
  %7879 = vmatprep.subr.bf16.mxu0 0
  %7880 = vmatpush1.bf16.msra.mxu0 %v7434
  %7881 = vmatprep.subr.bf16.mxu0 0
  %7882 = vmatpush1.bf16.msra.mxu0 %v7435
  %7883 = vmatprep.subr.bf16.mxu0 0
  %7884 = vmatpush1.bf16.msra.mxu0 %v7436
  %7885 = vmatprep.subr.bf16.mxu0 0
  %7886 = vmatpush1.bf16.msra.mxu0 %v7437
  %7887 = vmatprep.subr.bf16.mxu0 0
  %7888 = vmatpush1.bf16.msra.mxu0 %v7438
  %7889 = vmatprep.subr.bf16.mxu0 0
  %7890 = vmatpush1.bf16.msra.mxu0 %v7439
  %7891 = vmatprep.subr.bf16.mxu0 0
  %7892 = vmatpush1.bf16.msra.mxu0 %v7440
  %7893 = vmatprep.subr.bf16.mxu0 0
  %7894 = vmatpush1.bf16.msra.mxu0 %v7441
  %7895 = vmatprep.subr.bf16.mxu0 0
  %7896 = vmatpush1.bf16.msra.mxu0 %v7442
  %7897 = vmatprep.subr.bf16.mxu0 0
  %7898 = vmatpush1.bf16.msra.mxu0 %v7443
  %7899 = vmatprep.subr.bf16.mxu0 0
  %7900 = vmatpush1.bf16.msra.mxu0 %v7444
  %7901 = vmatprep.subr.bf16.mxu0 0
  %7902 = vmatpush1.bf16.msra.mxu0 %v7445
  %7903 = vmatprep.mubr.bf16.mxu0 %v7034
  %7904 = vmatmul.mubr.bf16.gmra.mrb[0].mxu0 %v7033
  %v7905 = vpop.f32.mrb[0].mxu0
  %v7906 = vadd.f32 %v7617, %v7905
  %v7907 = vpop.f32.mrb[0].mxu0
  %v7908 = vpop.f32.mrb[0].mxu0
  %v7909 = vadd.f32 %v7620, %v7908
  %v7910 = vpop.f32.mrb[0].mxu0
  %7911 = vmatprep.mubr.bf16.mxu0 %v7039
  %7912 = vmatmul.mubr.bf16.gmra.mrb[0].mxu0 %v7038
  %v7913 = vpop.f32.mrb[0].mxu0
  %v7914 = vadd.f32 %v7625, %v7913
  %v7915 = vpop.f32.mrb[0].mxu0
  %v7916 = vpop.f32.mrb[0].mxu0
  %v7917 = vadd.f32 %v7628, %v7916
  %v7918 = vpop.f32.mrb[0].mxu0
  %7919 = vmatprep.mubr.bf16.mxu0 %v7044
  %7920 = vmatmul.mubr.bf16.gmra.mrb[0].mxu0 %v7043
  %v7921 = vpop.f32.mrb[0].mxu0
  %v7922 = vadd.f32 %v7633, %v7921
  %v7923 = vpop.f32.mrb[0].mxu0
  %v7924 = vpop.f32.mrb[0].mxu0
  %v7925 = vadd.f32 %v7636, %v7924
  %v7926 = vpop.f32.mrb[0].mxu0
  %7927 = vmatprep.mubr.bf16.mxu0 %v7049
  %7928 = vmatmul.mubr.bf16.gmra.mrb[0].mxu0 %v7048
  %v7929 = vpop.f32.mrb[0].mxu0
  %v7930 = vadd.f32 %v7641, %v7929
  %v7931 = vpop.f32.mrb[0].mxu0
  %v7932 = vpop.f32.mrb[0].mxu0
  %v7933 = vadd.f32 %v7644, %v7932
  %v7934 = vpop.f32.mrb[0].mxu0
  %7935 = vmatprep.mubr.bf16.mxu0 %v7054
  %7936 = vmatmul.mubr.bf16.gmra.mrb[0].mxu0 %v7053
  %v7937 = vpop.f32.mrb[0].mxu0
  %v7938 = vadd.f32 %v7649, %v7937
  %v7939 = vpop.f32.mrb[0].mxu0
  %v7940 = vpop.f32.mrb[0].mxu0
  %v7941 = vadd.f32 %v7652, %v7940
  %v7942 = vpop.f32.mrb[0].mxu0
  %7943 = vmatprep.mubr.bf16.mxu0 %v7059
  %7944 = vmatmul.mubr.bf16.gmra.mrb[0].mxu0 %v7058
  %v7945 = vpop.f32.mrb[0].mxu0
  %v7946 = vadd.f32 %v7657, %v7945
  %v7947 = vpop.f32.mrb[0].mxu0
  %v7948 = vpop.f32.mrb[0].mxu0
  %v7949 = vadd.f32 %v7660, %v7948
  %v7950 = vpop.f32.mrb[0].mxu0
  %7951 = vmatprep.mubr.bf16.mxu0 %v7064
  %7952 = vmatmul.mubr.bf16.gmra.mrb[0].mxu0 %v7063
  %v7953 = vpop.f32.mrb[0].mxu0
  %v7954 = vadd.f32 %v7665, %v7953
  %v7955 = vpop.f32.mrb[0].mxu0
  %v7956 = vpop.f32.mrb[0].mxu0
  %v7957 = vadd.f32 %v7668, %v7956
  %v7958 = vpop.f32.mrb[0].mxu0
  %7959 = vmatprep.mubr.bf16.mxu0 %v7069
  %7960 = vmatmul.mubr.bf16.gmra.mrb[0].mxu0 %v7068
  %v7961 = vpop.f32.mrb[0].mxu0
  %v7962 = vadd.f32 %v7673, %v7961
  %v7963 = vpop.f32.mrb[0].mxu0
  %v7964 = vpop.f32.mrb[0].mxu0
  %v7965 = vadd.f32 %v7676, %v7964
  %v7966 = vpop.f32.mrb[0].mxu0
  %7967 = vmatprep.mubr.bf16.mxu0 %v7074
  %7968 = vmatmul.mubr.bf16.gmra.mrb[0].mxu0 %v7073
  %v7969 = vpop.f32.mrb[0].mxu0
  %v7970 = vadd.f32 %v7681, %v7969
  %v7971 = vpop.f32.mrb[0].mxu0
  %v7972 = vpop.f32.mrb[0].mxu0
  %v7973 = vadd.f32 %v7684, %v7972
  %v7974 = vpop.f32.mrb[0].mxu0
  %7975 = vmatprep.mubr.bf16.mxu0 %v7079
  %7976 = vmatmul.mubr.bf16.gmra.mrb[0].mxu0 %v7078
  %v7977 = vpop.f32.mrb[0].mxu0
  %v7978 = vadd.f32 %v7689, %v7977
  %v7979 = vpop.f32.mrb[0].mxu0
  %v7980 = vpop.f32.mrb[0].mxu0
  %v7981 = vadd.f32 %v7692, %v7980
  %v7982 = vpop.f32.mrb[0].mxu0
  %7983 = vmatprep.mubr.bf16.mxu0 %v7084
  %7984 = vmatmul.mubr.bf16.gmra.mrb[0].mxu0 %v7083
  %v7985 = vpop.f32.mrb[0].mxu0
  %v7986 = vadd.f32 %v7697, %v7985
  %v7987 = vpop.f32.mrb[0].mxu0
  %v7988 = vpop.f32.mrb[0].mxu0
  %v7989 = vadd.f32 %v7700, %v7988
  %v7990 = vpop.f32.mrb[0].mxu0
  %7991 = vmatprep.mubr.bf16.mxu0 %v7089
  %7992 = vmatmul.mubr.bf16.gmra.mrb[0].mxu0 %v7088
  %v7993 = vpop.f32.mrb[0].mxu0
  %v7994 = vadd.f32 %v7705, %v7993
  %v7995 = vpop.f32.mrb[0].mxu0
  %v7996 = vpop.f32.mrb[0].mxu0
  %v7997 = vadd.f32 %v7708, %v7996
  %v7998 = vpop.f32.mrb[0].mxu0
  %7999 = vmatprep.mubr.bf16.mxu0 %v7094
  %8000 = vmatmul.mubr.bf16.gmra.mrb[0].mxu0 %v7093
  %v8001 = vpop.f32.mrb[0].mxu0
  %v8002 = vadd.f32 %v7713, %v8001
  %v8003 = vpop.f32.mrb[0].mxu0
  %v8004 = vpop.f32.mrb[0].mxu0
  %v8005 = vadd.f32 %v7716, %v8004
  %v8006 = vpop.f32.mrb[0].mxu0
  %8007 = vmatprep.mubr.bf16.mxu0 %v7099
  %8008 = vmatmul.mubr.bf16.gmra.mrb[0].mxu0 %v7098
  %v8009 = vpop.f32.mrb[0].mxu0
  %v8010 = vadd.f32 %v7721, %v8009
  %v8011 = vpop.f32.mrb[0].mxu0
  %v8012 = vpop.f32.mrb[0].mxu0
  %v8013 = vadd.f32 %v7724, %v8012
  %v8014 = vpop.f32.mrb[0].mxu0
  %8015 = vmatprep.mubr.bf16.mxu0 %v7104
  %8016 = vmatmul.mubr.bf16.gmra.mrb[0].mxu0 %v7103
  %v8017 = vpop.f32.mrb[0].mxu0
  %v8018 = vadd.f32 %v7729, %v8017
  %v8019 = vpop.f32.mrb[0].mxu0
  %v8020 = vpop.f32.mrb[0].mxu0
  %v8021 = vadd.f32 %v7732, %v8020
  %v8022 = vpop.f32.mrb[0].mxu0
  %8023 = vmatprep.mubr.bf16.mxu0 %v7109
  %8024 = vmatmul.mubr.bf16.gmra.mrb[0].mxu0 %v7108
  %v8025 = vpop.f32.mrb[0].mxu0
  %v8026 = vadd.f32 %v7737, %v8025
  %v8027 = vpop.f32.mrb[0].mxu0
  %v8028 = vpop.f32.mrb[0].mxu0
  %v8029 = vadd.f32 %v7740, %v8028
  %v8030 = vpop.f32.mrb[0].mxu0
  %8031 = vmatprep.mubr.bf16.mxu0 %v7114
  %8032 = vmatmul.mubr.bf16.gmra.mrb[0].mxu0 %v7113
  %v8033 = vpop.f32.mrb[0].mxu0
  %v8034 = vadd.f32 %v7745, %v8033
  %v8035 = vpop.f32.mrb[0].mxu0
  %v8036 = vpop.f32.mrb[0].mxu0
  %v8037 = vadd.f32 %v7748, %v8036
  %v8038 = vpop.f32.mrb[0].mxu0
  %8039 = vmatprep.mubr.bf16.mxu0 %v7119
  %8040 = vmatmul.mubr.bf16.gmra.mrb[0].mxu0 %v7118
  %v8041 = vpop.f32.mrb[0].mxu0
  %v8042 = vadd.f32 %v7753, %v8041
  %v8043 = vpop.f32.mrb[0].mxu0
  %v8044 = vpop.f32.mrb[0].mxu0
  %v8045 = vadd.f32 %v7756, %v8044
  %v8046 = vpop.f32.mrb[0].mxu0
  %8047 = vmatprep.mubr.bf16.mxu0 %v7124
  %8048 = vmatmul.mubr.bf16.gmra.mrb[0].mxu0 %v7123
  %v8049 = vpop.f32.mrb[0].mxu0
  %v8050 = vadd.f32 %v7761, %v8049
  %v8051 = vpop.f32.mrb[0].mxu0
  %v8052 = vpop.f32.mrb[0].mxu0
  %v8053 = vadd.f32 %v7764, %v8052
  %v8054 = vpop.f32.mrb[0].mxu0
  %8055 = vmatprep.mubr.bf16.mxu0 %v7129
  %8056 = vmatmul.mubr.bf16.gmra.mrb[0].mxu0 %v7128
  %v8057 = vpop.f32.mrb[0].mxu0
  %v8058 = vadd.f32 %v7769, %v8057
  %v8059 = vpop.f32.mrb[0].mxu0
  %v8060 = vpop.f32.mrb[0].mxu0
  %v8061 = vadd.f32 %v7772, %v8060
  %v8062 = vpop.f32.mrb[0].mxu0
  %8063 = vmatprep.mubr.bf16.mxu0 %v7134
  %8064 = vmatmul.mubr.bf16.gmra.mrb[0].mxu0 %v7133
  %v8065 = vpop.f32.mrb[0].mxu0
  %v8066 = vadd.f32 %v7777, %v8065
  %v8067 = vpop.f32.mrb[0].mxu0
  %v8068 = vpop.f32.mrb[0].mxu0
  %v8069 = vadd.f32 %v7780, %v8068
  %v8070 = vpop.f32.mrb[0].mxu0
  %8071 = vmatprep.mubr.bf16.mxu0 %v7139
  %8072 = vmatmul.mubr.bf16.gmra.mrb[0].mxu0 %v7138
  %v8073 = vpop.f32.mrb[0].mxu0
  %v8074 = vadd.f32 %v7785, %v8073
  %v8075 = vpop.f32.mrb[0].mxu0
  %v8076 = vpop.f32.mrb[0].mxu0
  %v8077 = vadd.f32 %v7788, %v8076
  %v8078 = vpop.f32.mrb[0].mxu0
  %8079 = vmatprep.mubr.bf16.mxu0 %v7144
  %8080 = vmatmul.mubr.bf16.gmra.mrb[0].mxu0 %v7143
  %v8081 = vpop.f32.mrb[0].mxu0
  %v8082 = vadd.f32 %v7793, %v8081
  %v8083 = vpop.f32.mrb[0].mxu0
  %v8084 = vpop.f32.mrb[0].mxu0
  %v8085 = vadd.f32 %v7796, %v8084
  %v8086 = vpop.f32.mrb[0].mxu0
  %8087 = vmatprep.mubr.bf16.mxu0 %v7149
  %8088 = vmatmul.mubr.bf16.gmra.mrb[0].mxu0 %v7148
  %v8089 = vpop.f32.mrb[0].mxu0
  %v8090 = vadd.f32 %v7801, %v8089
  %v8091 = vpop.f32.mrb[0].mxu0
  %v8092 = vpop.f32.mrb[0].mxu0
  %v8093 = vadd.f32 %v7804, %v8092
  %v8094 = vpop.f32.mrb[0].mxu0
  %8095 = vmatprep.mubr.bf16.mxu0 %v7154
  %8096 = vmatmul.mubr.bf16.gmra.mrb[0].mxu0 %v7153
  %v8097 = vpop.f32.mrb[0].mxu0
  %v8098 = vadd.f32 %v7809, %v8097
  %v8099 = vpop.f32.mrb[0].mxu0
  %v8100 = vpop.f32.mrb[0].mxu0
  %v8101 = vadd.f32 %v7812, %v8100
  %v8102 = vpop.f32.mrb[0].mxu0
  %8103 = vmatprep.mubr.bf16.mxu0 %v7159
  %8104 = vmatmul.mubr.bf16.gmra.mrb[0].mxu0 %v7158
  %v8105 = vpop.f32.mrb[0].mxu0
  %v8106 = vadd.f32 %v7817, %v8105
  %v8107 = vpop.f32.mrb[0].mxu0
  %v8108 = vpop.f32.mrb[0].mxu0
  %v8109 = vadd.f32 %v7820, %v8108
  %v8110 = vpop.f32.mrb[0].mxu0
  %8111 = vmatprep.mubr.bf16.mxu0 %v7164
  %8112 = vmatmul.mubr.bf16.gmra.mrb[0].mxu0 %v7163
  %v8113 = vpop.f32.mrb[0].mxu0
  %v8114 = vadd.f32 %v7825, %v8113
  %v8115 = vpop.f32.mrb[0].mxu0
  %v8116 = vpop.f32.mrb[0].mxu0
  %v8117 = vadd.f32 %v7828, %v8116
  %v8118 = vpop.f32.mrb[0].mxu0
  %8119 = vmatprep.mubr.bf16.mxu0 %v7169
  %8120 = vmatmul.mubr.bf16.gmra.mrb[0].mxu0 %v7168
  %v8121 = vpop.f32.mrb[0].mxu0
  %v8122 = vadd.f32 %v7833, %v8121
  %v8123 = vpop.f32.mrb[0].mxu0
  %v8124 = vpop.f32.mrb[0].mxu0
  %v8125 = vadd.f32 %v7836, %v8124
  %v8126 = vpop.f32.mrb[0].mxu0
  %8127 = vmatprep.mubr.bf16.mxu0 %v7174
  %8128 = vmatmul.mubr.bf16.gmra.mrb[0].mxu0 %v7173
  %v8129 = vpop.f32.mrb[0].mxu0
  %v8130 = vadd.f32 %v7841, %v8129
  %v8131 = vpop.f32.mrb[0].mxu0
  %v8132 = vpop.f32.mrb[0].mxu0
  %v8133 = vadd.f32 %v7844, %v8132
  %v8134 = vpop.f32.mrb[0].mxu0
  %8135 = vmatprep.mubr.bf16.mxu0 %v7179
  %8136 = vmatmul.mubr.bf16.gmra.mrb[0].mxu0 %v7178
  %v8137 = vpop.f32.mrb[0].mxu0
  %v8138 = vadd.f32 %v7849, %v8137
  %v8139 = vpop.f32.mrb[0].mxu0
  %v8140 = vpop.f32.mrb[0].mxu0
  %v8141 = vadd.f32 %v7852, %v8140
  %v8142 = vpop.f32.mrb[0].mxu0
  %8143 = vmatprep.mubr.bf16.mxu0 %v7184
  %8144 = vmatmul.mubr.bf16.gmra.mrb[0].mxu0 %v7183
  %v8145 = vpop.f32.mrb[0].mxu0
  %v8146 = vadd.f32 %v7857, %v8145
  %v8147 = vpop.f32.mrb[0].mxu0
  %v8148 = vpop.f32.mrb[0].mxu0
  %v8149 = vadd.f32 %v7860, %v8148
  %v8150 = vpop.f32.mrb[0].mxu0
  %8151 = vmatprep.mubr.bf16.mxu0 %v7189
  %8152 = vmatmul.mubr.bf16.gmra.mrb[0].mxu0 %v7188
  %v8153 = vpop.f32.mrb[0].mxu0
  %v8154 = vadd.f32 %v7865, %v8153
  %v8155 = vpop.f32.mrb[0].mxu0
  %v8156 = vpop.f32.mrb[0].mxu0
  %v8157 = vadd.f32 %v7868, %v8156
  %v8158 = vpop.f32.mrb[0].mxu0
  %8159 = vdwg.mxu0
  %8160 = vmatprep.subr.bf16.mxu0 0
  %8161 = vmatpush1.bf16.msra.mxu0 %v7446
  %8162 = vmatprep.subr.bf16.mxu0 0
  %8163 = vmatpush1.bf16.msra.mxu0 %v7447
  %8164 = vmatprep.subr.bf16.mxu0 0
  %8165 = vmatpush1.bf16.msra.mxu0 %v7448
  %8166 = vmatprep.subr.bf16.mxu0 0
  %8167 = vmatpush1.bf16.msra.mxu0 %v7449
  %8168 = vmatprep.subr.bf16.mxu0 0
  %8169 = vmatpush1.bf16.msra.mxu0 0
  %8170 = vmatprep.subr.bf16.mxu0 0
  %8171 = vmatpush1.bf16.msra.mxu0 0
  %8172 = vmatprep.subr.bf16.mxu0 0
  %8173 = vmatpush1.bf16.msra.mxu0 0
  %8174 = vmatprep.subr.bf16.mxu0 0
  %8175 = vmatpush1.bf16.msra.mxu0 0
  %8176 = vmatprep.subr.bf16.mxu0 0
  %8177 = vmatpush1.bf16.msra.mxu0 0
  %8178 = vmatprep.subr.bf16.mxu0 0
  %8179 = vmatpush1.bf16.msra.mxu0 0
  %8180 = vmatprep.subr.bf16.mxu0 0
  %8181 = vmatpush1.bf16.msra.mxu0 0
  %8182 = vmatprep.subr.bf16.mxu0 0
  %8183 = vmatpush1.bf16.msra.mxu0 0
  %8184 = vmatprep.subr.bf16.mxu0 0
  %8185 = vmatpush1.bf16.msra.mxu0 0
  %8186 = vmatprep.subr.bf16.mxu0 0
  %8187 = vmatpush1.bf16.msra.mxu0 0
  %8188 = vmatprep.subr.bf16.mxu0 0
  %8189 = vmatpush1.bf16.msra.mxu0 0
  %8190 = vmatprep.subr.bf16.mxu0 0
  %8191 = vmatpush1.bf16.msra.mxu0 0
  %8192 = vmatprep.mubr.bf16.mxu0 0
  %8193 = vmatmul.mubr.bf16.gmra.mrb[0].mxu0 %v7487
  %v8194 = vpop.f32.mrb[0].mxu0
  %v8195 = vadd.f32 %v7906, %v8194
  %v8196 = vpop.f32.mrb[0].mxu0
  %v8197 = vpop.f32.mrb[0].mxu0
  %v8198 = vadd.f32 %v7909, %v8197
  %v8199 = vpop.f32.mrb[0].mxu0
  %8200 = vmatprep.mubr.bf16.mxu0 0
  %8201 = vmatmul.mubr.bf16.gmra.mrb[0].mxu0 %v7490
  %v8202 = vpop.f32.mrb[0].mxu0
  %v8203 = vadd.f32 %v7914, %v8202
  %v8204 = vpop.f32.mrb[0].mxu0
  %v8205 = vpop.f32.mrb[0].mxu0
  %v8206 = vadd.f32 %v7917, %v8205
  %v8207 = vpop.f32.mrb[0].mxu0
  %8208 = vmatprep.mubr.bf16.mxu0 0
  %8209 = vmatmul.mubr.bf16.gmra.mrb[0].mxu0 %v7493
  %v8210 = vpop.f32.mrb[0].mxu0
  %v8211 = vadd.f32 %v7922, %v8210
  %v8212 = vpop.f32.mrb[0].mxu0
  %v8213 = vpop.f32.mrb[0].mxu0
  %v8214 = vadd.f32 %v7925, %v8213
  %v8215 = vpop.f32.mrb[0].mxu0
  %8216 = vmatprep.mubr.bf16.mxu0 0
  %8217 = vmatmul.mubr.bf16.gmra.mrb[0].mxu0 %v7496
  %v8218 = vpop.f32.mrb[0].mxu0
  %v8219 = vadd.f32 %v7930, %v8218
  %v8220 = vpop.f32.mrb[0].mxu0
  %v8221 = vpop.f32.mrb[0].mxu0
  %v8222 = vadd.f32 %v7933, %v8221
  %v8223 = vpop.f32.mrb[0].mxu0
  %8224 = vmatprep.mubr.bf16.mxu0 0
  %8225 = vmatmul.mubr.bf16.gmra.mrb[0].mxu0 %v7499
  %v8226 = vpop.f32.mrb[0].mxu0
  %v8227 = vadd.f32 %v7938, %v8226
  %v8228 = vpop.f32.mrb[0].mxu0
  %v8229 = vpop.f32.mrb[0].mxu0
  %v8230 = vadd.f32 %v7941, %v8229
  %v8231 = vpop.f32.mrb[0].mxu0
  %8232 = vmatprep.mubr.bf16.mxu0 0
  %8233 = vmatmul.mubr.bf16.gmra.mrb[0].mxu0 %v7502
  %v8234 = vpop.f32.mrb[0].mxu0
  %v8235 = vadd.f32 %v7946, %v8234
  %v8236 = vpop.f32.mrb[0].mxu0
  %v8237 = vpop.f32.mrb[0].mxu0
  %v8238 = vadd.f32 %v7949, %v8237
  %v8239 = vpop.f32.mrb[0].mxu0
  %8240 = vmatprep.mubr.bf16.mxu0 0
  %8241 = vmatmul.mubr.bf16.gmra.mrb[0].mxu0 %v7505
  %v8242 = vpop.f32.mrb[0].mxu0
  %v8243 = vadd.f32 %v7954, %v8242
  %v8244 = vpop.f32.mrb[0].mxu0
  %v8245 = vpop.f32.mrb[0].mxu0
  %v8246 = vadd.f32 %v7957, %v8245
  %v8247 = vpop.f32.mrb[0].mxu0
  %8248 = vmatprep.mubr.bf16.mxu0 0
  %8249 = vmatmul.mubr.bf16.gmra.mrb[0].mxu0 %v7508
  %v8250 = vpop.f32.mrb[0].mxu0
  %v8251 = vadd.f32 %v7962, %v8250
  %v8252 = vpop.f32.mrb[0].mxu0
  %v8253 = vpop.f32.mrb[0].mxu0
  %v8254 = vadd.f32 %v7965, %v8253
  %v8255 = vpop.f32.mrb[0].mxu0
  %8256 = vmatprep.mubr.bf16.mxu0 0
  %8257 = vmatmul.mubr.bf16.gmra.mrb[0].mxu0 %v7511
  %v8258 = vpop.f32.mrb[0].mxu0
  %v8259 = vadd.f32 %v7970, %v8258
  %v8260 = vpop.f32.mrb[0].mxu0
  %v8261 = vpop.f32.mrb[0].mxu0
  %v8262 = vadd.f32 %v7973, %v8261
  %v8263 = vpop.f32.mrb[0].mxu0
  %8264 = vmatprep.mubr.bf16.mxu0 0
  %8265 = vmatmul.mubr.bf16.gmra.mrb[0].mxu0 %v7514
  %v8266 = vpop.f32.mrb[0].mxu0
  %v8267 = vadd.f32 %v7978, %v8266
  %v8268 = vpop.f32.mrb[0].mxu0
  %v8269 = vpop.f32.mrb[0].mxu0
  %v8270 = vadd.f32 %v7981, %v8269
  %v8271 = vpop.f32.mrb[0].mxu0
  %8272 = vmatprep.mubr.bf16.mxu0 0
  %8273 = vmatmul.mubr.bf16.gmra.mrb[0].mxu0 %v7517
  %v8274 = vpop.f32.mrb[0].mxu0
  %v8275 = vadd.f32 %v7986, %v8274
  %v8276 = vpop.f32.mrb[0].mxu0
  %v8277 = vpop.f32.mrb[0].mxu0
  %v8278 = vadd.f32 %v7989, %v8277
  %v8279 = vpop.f32.mrb[0].mxu0
  %8280 = vmatprep.mubr.bf16.mxu0 0
  %8281 = vmatmul.mubr.bf16.gmra.mrb[0].mxu0 %v7520
  %v8282 = vpop.f32.mrb[0].mxu0
  %v8283 = vadd.f32 %v7994, %v8282
  %v8284 = vpop.f32.mrb[0].mxu0
  %v8285 = vpop.f32.mrb[0].mxu0
  %v8286 = vadd.f32 %v7997, %v8285
  %v8287 = vpop.f32.mrb[0].mxu0
  %8288 = vmatprep.mubr.bf16.mxu0 0
  %8289 = vmatmul.mubr.bf16.gmra.mrb[0].mxu0 %v7523
  %v8290 = vpop.f32.mrb[0].mxu0
  %v8291 = vadd.f32 %v8002, %v8290
  %v8292 = vpop.f32.mrb[0].mxu0
  %v8293 = vpop.f32.mrb[0].mxu0
  %v8294 = vadd.f32 %v8005, %v8293
  %v8295 = vpop.f32.mrb[0].mxu0
  %8296 = vmatprep.mubr.bf16.mxu0 0
  %8297 = vmatmul.mubr.bf16.gmra.mrb[0].mxu0 %v7526
  %v8298 = vpop.f32.mrb[0].mxu0
  %v8299 = vadd.f32 %v8010, %v8298
  %v8300 = vpop.f32.mrb[0].mxu0
  %v8301 = vpop.f32.mrb[0].mxu0
  %v8302 = vadd.f32 %v8013, %v8301
  %v8303 = vpop.f32.mrb[0].mxu0
  %8304 = vmatprep.mubr.bf16.mxu0 0
  %8305 = vmatmul.mubr.bf16.gmra.mrb[0].mxu0 %v7529
  %v8306 = vpop.f32.mrb[0].mxu0
  %v8307 = vadd.f32 %v8018, %v8306
  %v8308 = vpop.f32.mrb[0].mxu0
  %v8309 = vpop.f32.mrb[0].mxu0
  %v8310 = vadd.f32 %v8021, %v8309
  %v8311 = vpop.f32.mrb[0].mxu0
  %8312 = vmatprep.mubr.bf16.mxu0 0
  %8313 = vmatmul.mubr.bf16.gmra.mrb[0].mxu0 %v7532
  %v8314 = vpop.f32.mrb[0].mxu0
  %v8315 = vadd.f32 %v8026, %v8314
  %v8316 = vpop.f32.mrb[0].mxu0
  %v8317 = vpop.f32.mrb[0].mxu0
  %v8318 = vadd.f32 %v8029, %v8317
  %v8319 = vpop.f32.mrb[0].mxu0
  %8320 = vmatprep.mubr.bf16.mxu0 0
  %8321 = vmatmul.mubr.bf16.gmra.mrb[0].mxu0 %v7535
  %v8322 = vpop.f32.mrb[0].mxu0
  %v8323 = vadd.f32 %v8034, %v8322
  %v8324 = vpop.f32.mrb[0].mxu0
  %v8325 = vpop.f32.mrb[0].mxu0
  %v8326 = vadd.f32 %v8037, %v8325
  %v8327 = vpop.f32.mrb[0].mxu0
  %8328 = vmatprep.mubr.bf16.mxu0 0
  %8329 = vmatmul.mubr.bf16.gmra.mrb[0].mxu0 %v7538
  %v8330 = vpop.f32.mrb[0].mxu0
  %v8331 = vadd.f32 %v8042, %v8330
  %v8332 = vpop.f32.mrb[0].mxu0
  %v8333 = vpop.f32.mrb[0].mxu0
  %v8334 = vadd.f32 %v8045, %v8333
  %v8335 = vpop.f32.mrb[0].mxu0
  %8336 = vmatprep.mubr.bf16.mxu0 0
  %8337 = vmatmul.mubr.bf16.gmra.mrb[0].mxu0 %v7541
  %v8338 = vpop.f32.mrb[0].mxu0
  %v8339 = vadd.f32 %v8050, %v8338
  %v8340 = vpop.f32.mrb[0].mxu0
  %v8341 = vpop.f32.mrb[0].mxu0
  %v8342 = vadd.f32 %v8053, %v8341
  %v8343 = vpop.f32.mrb[0].mxu0
  %8344 = vmatprep.mubr.bf16.mxu0 0
  %8345 = vmatmul.mubr.bf16.gmra.mrb[0].mxu0 %v7544
  %v8346 = vpop.f32.mrb[0].mxu0
  %v8347 = vadd.f32 %v8058, %v8346
  %v8348 = vpop.f32.mrb[0].mxu0
  %v8349 = vpop.f32.mrb[0].mxu0
  %v8350 = vadd.f32 %v8061, %v8349
  %v8351 = vpop.f32.mrb[0].mxu0
  %8352 = vmatprep.mubr.bf16.mxu0 0
  %8353 = vmatmul.mubr.bf16.gmra.mrb[0].mxu0 %v7547
  %v8354 = vpop.f32.mrb[0].mxu0
  %v8355 = vadd.f32 %v8066, %v8354
  %v8356 = vpop.f32.mrb[0].mxu0
  %v8357 = vpop.f32.mrb[0].mxu0
  %v8358 = vadd.f32 %v8069, %v8357
  %v8359 = vpop.f32.mrb[0].mxu0
  %8360 = vmatprep.mubr.bf16.mxu0 0
  %8361 = vmatmul.mubr.bf16.gmra.mrb[0].mxu0 %v7550
  %v8362 = vpop.f32.mrb[0].mxu0
  %v8363 = vadd.f32 %v8074, %v8362
  %v8364 = vpop.f32.mrb[0].mxu0
  %v8365 = vpop.f32.mrb[0].mxu0
  %v8366 = vadd.f32 %v8077, %v8365
  %v8367 = vpop.f32.mrb[0].mxu0
  %8368 = vmatprep.mubr.bf16.mxu0 0
  %8369 = vmatmul.mubr.bf16.gmra.mrb[0].mxu0 %v7553
  %v8370 = vpop.f32.mrb[0].mxu0
  %v8371 = vadd.f32 %v8082, %v8370
  %v8372 = vpop.f32.mrb[0].mxu0
  %v8373 = vpop.f32.mrb[0].mxu0
  %v8374 = vadd.f32 %v8085, %v8373
  %v8375 = vpop.f32.mrb[0].mxu0
  %8376 = vmatprep.mubr.bf16.mxu0 0
  %8377 = vmatmul.mubr.bf16.gmra.mrb[0].mxu0 %v7556
  %v8378 = vpop.f32.mrb[0].mxu0
  %v8379 = vadd.f32 %v8090, %v8378
  %v8380 = vpop.f32.mrb[0].mxu0
  %v8381 = vpop.f32.mrb[0].mxu0
  %v8382 = vadd.f32 %v8093, %v8381
  %v8383 = vpop.f32.mrb[0].mxu0
  %8384 = vmatprep.mubr.bf16.mxu0 0
  %8385 = vmatmul.mubr.bf16.gmra.mrb[0].mxu0 %v7559
  %v8386 = vpop.f32.mrb[0].mxu0
  %v8387 = vadd.f32 %v8098, %v8386
  %v8388 = vpop.f32.mrb[0].mxu0
  %v8389 = vpop.f32.mrb[0].mxu0
  %v8390 = vadd.f32 %v8101, %v8389
  %v8391 = vpop.f32.mrb[0].mxu0
  %8392 = vmatprep.mubr.bf16.mxu0 0
  %8393 = vmatmul.mubr.bf16.gmra.mrb[0].mxu0 %v7562
  %v8394 = vpop.f32.mrb[0].mxu0
  %v8395 = vadd.f32 %v8106, %v8394
  %v8396 = vpop.f32.mrb[0].mxu0
  %v8397 = vpop.f32.mrb[0].mxu0
  %v8398 = vadd.f32 %v8109, %v8397
  %v8399 = vpop.f32.mrb[0].mxu0
  %8400 = vmatprep.mubr.bf16.mxu0 0
  %8401 = vmatmul.mubr.bf16.gmra.mrb[0].mxu0 %v7565
  %v8402 = vpop.f32.mrb[0].mxu0
  %v8403 = vadd.f32 %v8114, %v8402
  %v8404 = vpop.f32.mrb[0].mxu0
  %v8405 = vpop.f32.mrb[0].mxu0
  %v8406 = vadd.f32 %v8117, %v8405
  %v8407 = vpop.f32.mrb[0].mxu0
  %8408 = vmatprep.mubr.bf16.mxu0 0
  %8409 = vmatmul.mubr.bf16.gmra.mrb[0].mxu0 %v7568
  %v8410 = vpop.f32.mrb[0].mxu0
  %v8411 = vadd.f32 %v8122, %v8410
  %v8412 = vpop.f32.mrb[0].mxu0
  %v8413 = vpop.f32.mrb[0].mxu0
  %v8414 = vadd.f32 %v8125, %v8413
  %v8415 = vpop.f32.mrb[0].mxu0
  %8416 = vmatprep.mubr.bf16.mxu0 0
  %8417 = vmatmul.mubr.bf16.gmra.mrb[0].mxu0 %v7571
  %v8418 = vpop.f32.mrb[0].mxu0
  %v8419 = vadd.f32 %v8130, %v8418
  %v8420 = vpop.f32.mrb[0].mxu0
  %v8421 = vpop.f32.mrb[0].mxu0
  %v8422 = vadd.f32 %v8133, %v8421
  %v8423 = vpop.f32.mrb[0].mxu0
  %8424 = vmatprep.mubr.bf16.mxu0 0
  %8425 = vmatmul.mubr.bf16.gmra.mrb[0].mxu0 %v7574
  %v8426 = vpop.f32.mrb[0].mxu0
  %v8427 = vadd.f32 %v8138, %v8426
  %v8428 = vpop.f32.mrb[0].mxu0
  %v8429 = vpop.f32.mrb[0].mxu0
  %v8430 = vadd.f32 %v8141, %v8429
  %v8431 = vpop.f32.mrb[0].mxu0
  %8432 = vmatprep.mubr.bf16.mxu0 0
  %8433 = vmatmul.mubr.bf16.gmra.mrb[0].mxu0 %v7577
  %v8434 = vpop.f32.mrb[0].mxu0
  %v8435 = vadd.f32 %v8146, %v8434
  %v8436 = vpop.f32.mrb[0].mxu0
  %v8437 = vpop.f32.mrb[0].mxu0
  %v8438 = vadd.f32 %v8149, %v8437
  %v8439 = vpop.f32.mrb[0].mxu0
  %8440 = vmatprep.mubr.bf16.mxu0 0
  %8441 = vmatmul.mubr.bf16.gmra.mrb[0].mxu0 %v7580
  %v8442 = vpop.f32.mrb[0].mxu0
  %v8443 = vadd.f32 %v8154, %v8442
  %v8444 = vpop.f32.mrb[0].mxu0
  %v8445 = vpop.f32.mrb[0].mxu0
  %v8446 = vadd.f32 %v8157, %v8445
  %v8447 = vpop.f32.mrb[0].mxu0
  %8448 = vdwg.mxu0
  %v8449 = vmax.f32 %v8195, 0.0
  %v8450 = vmax.f32 %v8198, 0.0
  %v8451 = vmax.f32 %v8203, 0.0
  %v8452 = vmax.f32 %v8206, 0.0
  %v8453 = vmax.f32 %v8211, 0.0
  %v8454 = vmax.f32 %v8214, 0.0
  %v8455 = vmax.f32 %v8219, 0.0
  %v8456 = vmax.f32 %v8222, 0.0
  %v8457 = vmax.f32 %v8227, 0.0
  %v8458 = vmax.f32 %v8230, 0.0
  %v8459 = vmax.f32 %v8235, 0.0
  %v8460 = vmax.f32 %v8238, 0.0
  %v8461 = vmax.f32 %v8243, 0.0
  %v8462 = vmax.f32 %v8246, 0.0
  %v8463 = vmax.f32 %v8251, 0.0
  %v8464 = vmax.f32 %v8254, 0.0
  %v8465 = vmax.f32 %v8259, 0.0
  %v8466 = vmax.f32 %v8262, 0.0
  %v8467 = vmax.f32 %v8267, 0.0
  %v8468 = vmax.f32 %v8270, 0.0
  %v8469 = vmax.f32 %v8275, 0.0
  %v8470 = vmax.f32 %v8278, 0.0
  %v8471 = vmax.f32 %v8283, 0.0
  %v8472 = vmax.f32 %v8286, 0.0
  %v8473 = vmax.f32 %v8291, 0.0
  %v8474 = vmax.f32 %v8294, 0.0
  %v8475 = vmax.f32 %v8299, 0.0
  %v8476 = vmax.f32 %v8302, 0.0
  %v8477 = vmax.f32 %v8307, 0.0
  %v8478 = vmax.f32 %v8310, 0.0
  %v8479 = vmax.f32 %v8315, 0.0
  %v8480 = vmax.f32 %v8318, 0.0
  %v8481 = vmax.f32 %v8323, 0.0
  %v8482 = vmax.f32 %v8326, 0.0
  %v8483 = vmax.f32 %v8331, 0.0
  %v8484 = vmax.f32 %v8334, 0.0
  %v8485 = vmax.f32 %v8339, 0.0
  %v8486 = vmax.f32 %v8342, 0.0
  %v8487 = vmax.f32 %v8347, 0.0
  %v8488 = vmax.f32 %v8350, 0.0
  %v8489 = vmax.f32 %v8355, 0.0
  %v8490 = vmax.f32 %v8358, 0.0
  %v8491 = vmax.f32 %v8363, 0.0
  %v8492 = vmax.f32 %v8366, 0.0
  %v8493 = vmax.f32 %v8371, 0.0
  %v8494 = vmax.f32 %v8374, 0.0
  %v8495 = vmax.f32 %v8379, 0.0
  %v8496 = vmax.f32 %v8382, 0.0
  %v8497 = vmax.f32 %v8387, 0.0
  %v8498 = vmax.f32 %v8390, 0.0
  %v8499 = vmax.f32 %v8395, 0.0
  %v8500 = vmax.f32 %v8398, 0.0
  %v8501 = vmax.f32 %v8403, 0.0
  %v8502 = vmax.f32 %v8406, 0.0
  %v8503 = vmax.f32 %v8411, 0.0
  %v8504 = vmax.f32 %v8414, 0.0
  %v8505 = vmax.f32 %v8419, 0.0
  %v8506 = vmax.f32 %v8422, 0.0
  %v8507 = vmax.f32 %v8427, 0.0
  %v8508 = vmax.f32 %v8430, 0.0
  %v8509 = vmax.f32 %v8435, 0.0
  %v8510 = vmax.f32 %v8438, 0.0
  %v8511 = vmax.f32 %v8443, 0.0
  %v8512 = vmax.f32 %v8446, 0.0
  %v8513 = vadd.f32 %v8449, %v8450
  %v8514 = vadd.f32 %v8513, %v8451
  %v8515 = vadd.f32 %v8514, %v8452
  %v8516 = vadd.f32 %v8515, %v8453
  %v8517 = vadd.f32 %v8516, %v8454
  %v8518 = vadd.f32 %v8517, %v8455
  %v8519 = vadd.f32 %v8518, %v8456
  %v8520 = vadd.f32 %v8519, %v8457
  %v8521 = vadd.f32 %v8520, %v8458
  %v8522 = vadd.f32 %v8521, %v8459
  %v8523 = vadd.f32 %v8522, %v8460
  %v8524 = vadd.f32 %v8523, %v8461
  %v8525 = vadd.f32 %v8524, %v8462
  %v8526 = vadd.f32 %v8525, %v8463
  %v8527 = vadd.f32 %v8526, %v8464
  %v8528 = vadd.f32 %v8527, %v8465
  %v8529 = vadd.f32 %v8528, %v8466
  %v8530 = vadd.f32 %v8529, %v8467
  %v8531 = vadd.f32 %v8530, %v8468
  %v8532 = vadd.f32 %v8531, %v8469
  %v8533 = vadd.f32 %v8532, %v8470
  %v8534 = vadd.f32 %v8533, %v8471
  %v8535 = vadd.f32 %v8534, %v8472
  %v8536 = vadd.f32 %v8535, %v8473
  %v8537 = vadd.f32 %v8536, %v8474
  %v8538 = vadd.f32 %v8537, %v8475
  %v8539 = vadd.f32 %v8538, %v8476
  %v8540 = vadd.f32 %v8539, %v8477
  %v8541 = vadd.f32 %v8540, %v8478
  %v8542 = vadd.f32 %v8541, %v8479
  %v8543 = vadd.f32 %v8542, %v8480
  %v8544 = vrot.slane %v8543, 4
  %v8545 = vadd.f32 %v8543, %v8544
  %v8546 = vrot.slane %v8545, 2
  %v8547 = vadd.f32 %v8545, %v8546
  %v8548 = vrot.slane %v8547, 1
  %v8549 = vadd.f32 %v8547, %v8548
  %v8550 = vadd.f32 %v8481, %v8482
  %v8551 = vadd.f32 %v8550, %v8483
  %v8552 = vadd.f32 %v8551, %v8484
  %v8553 = vadd.f32 %v8552, %v8485
  %v8554 = vadd.f32 %v8553, %v8486
  %v8555 = vadd.f32 %v8554, %v8487
  %v8556 = vadd.f32 %v8555, %v8488
  %v8557 = vadd.f32 %v8556, %v8489
  %v8558 = vadd.f32 %v8557, %v8490
  %v8559 = vadd.f32 %v8558, %v8491
  %v8560 = vadd.f32 %v8559, %v8492
  %v8561 = vadd.f32 %v8560, %v8493
  %v8562 = vadd.f32 %v8561, %v8494
  %v8563 = vadd.f32 %v8562, %v8495
  %v8564 = vadd.f32 %v8563, %v8496
  %v8565 = vadd.f32 %v8564, %v8497
  %v8566 = vadd.f32 %v8565, %v8498
  %v8567 = vadd.f32 %v8566, %v8499
  %v8568 = vadd.f32 %v8567, %v8500
  %v8569 = vadd.f32 %v8568, %v8501
  %v8570 = vadd.f32 %v8569, %v8502
  %v8571 = vadd.f32 %v8570, %v8503
  %v8572 = vadd.f32 %v8571, %v8504
  %v8573 = vadd.f32 %v8572, %v8505
  %v8574 = vadd.f32 %v8573, %v8506
  %v8575 = vadd.f32 %v8574, %v8507
  %v8576 = vadd.f32 %v8575, %v8508
  %v8577 = vadd.f32 %v8576, %v8509
  %v8578 = vadd.f32 %v8577, %v8510
  %v8579 = vadd.f32 %v8578, %v8511
  %v8580 = vadd.f32 %v8579, %v8512
  %v8581 = vrot.slane %v8580, 4
  %v8582 = vadd.f32 %v8580, %v8581
  %v8583 = vrot.slane %v8582, 2
  %v8584 = vadd.f32 %v8582, %v8583
  %v8585 = vrot.slane %v8584, 1
  %v8586 = vadd.f32 %v8584, %v8585
  %v8587 = vmul.f32 %v8549, 0.00390625
  %v8588 = vmul.f32 %v8586, 0.00390625
  %v8589 = vpack.c.bf16 %v8587, %v8587
  %v8590 = vpack.c.bf16 %v8588, %v8588
  %v8591 = vld [vmem:[%s5] sm:$0xff]
  %v8592 = vld [vmem:[%s5 + $0x8] sm:$0xff]
  %v8593 = vld [vmem:[%s5 + $0x10] sm:$0xff]
  %v8594 = vld [vmem:[%s5 + $0x18] sm:$0xff]
  %v8595 = vld [vmem:[%s5 + $0x20] sm:$0xff]
  %v8596 = vld [vmem:[%s5 + $0x28] sm:$0xff]
  %v8597 = vld [vmem:[%s5 + $0x30] sm:$0xff]
  %v8598 = vld [vmem:[%s5 + $0x38] sm:$0xff]
  %v8599 = vld [vmem:[%s5 + $0x40] sm:$0xff]
  %v8600 = vld [vmem:[%s5 + $0x48] sm:$0xff]
  %v8601 = vld [vmem:[%s5 + $0x50] sm:$0xff]
  %v8602 = vld [vmem:[%s5 + $0x58] sm:$0xff]
  %v8603 = vld [vmem:[%s5 + $0x60] sm:$0xff]
  %v8604 = vld [vmem:[%s5 + $0x68] sm:$0xff]
  %v8605 = vld [vmem:[%s5 + $0x70] sm:$0xff]
  %v8606 = vld [vmem:[%s5 + $0x78] sm:$0xff]
  %v8607 = vld [vmem:[%s6] sm:$0x3]
  %v8609 = vlaneseq
  %v8610 = vshrl.u32 %v8609, 7
  %v8611 = vsub.s32 0, %v8610
  %v8612 = vrot.slane %v8607, %v8611
  %v8613 = vlaneseq
  %v8614 = vshrl.u32 %v8613, 7
  %v8615 = vsub.s32 1, %v8614
  %v8616 = vrot.slane %v8607, %v8615
  %v8621 = vunpack.c.l.b16 %v8589
  %v8622 = vunpack.c.l.b16 %v8590
  %vm8623 = vcmask 1041409
  %v8624 = vsel %vm8623, %v8622, %v8621
  %v8625 = vpack.c.b16 %v8624, %v8624
  %v8643 = vunpack.c.l.b16 %v8591
  %v8644 = vunpack.c.h.b16 %v8591
  %v8645 = vunpack.c.l.b16 %v8592
  %v8646 = vunpack.c.h.b16 %v8592
  %v8647 = vunpack.c.l.b16 %v8593
  %v8648 = vunpack.c.h.b16 %v8593
  %v8649 = vunpack.c.l.b16 %v8594
  %v8650 = vunpack.c.h.b16 %v8594
  %v8651 = vunpack.c.l.b16 %v8595
  %v8652 = vunpack.c.h.b16 %v8595
  %v8653 = vunpack.c.l.b16 %v8596
  %v8654 = vunpack.c.h.b16 %v8596
  %v8655 = vunpack.c.l.b16 %v8597
  %v8656 = vunpack.c.h.b16 %v8597
  %v8657 = vunpack.c.l.b16 %v8598
  %v8658 = vunpack.c.h.b16 %v8598
  %v8659 = vunpack.c.l.b16 %v8599
  %v8660 = vunpack.c.h.b16 %v8599
  %v8661 = vunpack.c.l.b16 %v8600
  %v8662 = vunpack.c.h.b16 %v8600
  %v8663 = vunpack.c.l.b16 %v8601
  %v8664 = vunpack.c.h.b16 %v8601
  %v8665 = vunpack.c.l.b16 %v8602
  %v8666 = vunpack.c.h.b16 %v8602
  %v8667 = vunpack.c.l.b16 %v8603
  %v8668 = vunpack.c.h.b16 %v8603
  %v8669 = vunpack.c.l.b16 %v8604
  %v8670 = vunpack.c.h.b16 %v8604
  %v8671 = vunpack.c.l.b16 %v8605
  %v8672 = vunpack.c.h.b16 %v8605
  %v8673 = vunpack.c.l.b16 %v8606
  %v8674 = vunpack.c.h.b16 %v8606
  %v8675 = vpack.c.b16 %v8645, %v8643
  %v8676 = vpack.c.b16 %v8646, %v8644
  %v8677 = vpack.c.b16 %v8649, %v8647
  %v8678 = vpack.c.b16 %v8650, %v8648
  %v8679 = vpack.c.b16 %v8653, %v8651
  %v8680 = vpack.c.b16 %v8654, %v8652
  %v8681 = vpack.c.b16 %v8657, %v8655
  %v8682 = vpack.c.b16 %v8658, %v8656
  %v8683 = vpack.c.b16 %v8661, %v8659
  %v8684 = vpack.c.b16 %v8662, %v8660
  %v8685 = vpack.c.b16 %v8665, %v8663
  %v8686 = vpack.c.b16 %v8666, %v8664
  %v8687 = vpack.c.b16 %v8669, %v8667
  %v8688 = vpack.c.b16 %v8670, %v8668
  %v8689 = vpack.c.b16 %v8673, %v8671
  %v8690 = vpack.c.b16 %v8674, %v8672
  %8707 = vmatprep.subr.bf16.mxu0 %v8676
  %8708 = vmatpush1.bf16.msra.mxu0 %v8675
  %8709 = vmatprep.subr.bf16.mxu0 %v8678
  %8710 = vmatpush1.bf16.msra.mxu0 %v8677
  %8711 = vmatprep.subr.bf16.mxu0 %v8680
  %8712 = vmatpush1.bf16.msra.mxu0 %v8679
  %8713 = vmatprep.subr.bf16.mxu0 %v8682
  %8714 = vmatpush1.bf16.msra.mxu0 %v8681
  %8715 = vmatprep.subr.bf16.mxu0 %v8684
  %8716 = vmatpush1.bf16.msra.mxu0 %v8683
  %8717 = vmatprep.subr.bf16.mxu0 %v8686
  %8718 = vmatpush1.bf16.msra.mxu0 %v8685
  %8719 = vmatprep.subr.bf16.mxu0 %v8688
  %8720 = vmatpush1.bf16.msra.mxu0 %v8687
  %8721 = vmatprep.subr.bf16.mxu0 %v8690
  %8722 = vmatpush1.bf16.msra.mxu0 %v8689
  %8723 = vmatprep.subr.bf16.mxu0 0
  %8724 = vmatpush1.bf16.msra.mxu0 0
  %8725 = vmatprep.subr.bf16.mxu0 0
  %8726 = vmatpush1.bf16.msra.mxu0 0
  %8727 = vmatprep.subr.bf16.mxu0 0
  %8728 = vmatpush1.bf16.msra.mxu0 0
  %8729 = vmatprep.subr.bf16.mxu0 0
  %8730 = vmatpush1.bf16.msra.mxu0 0
  %8731 = vmatprep.subr.bf16.mxu0 0
  %8732 = vmatpush1.bf16.msra.mxu0 0
  %8733 = vmatprep.subr.bf16.mxu0 0
  %8734 = vmatpush1.bf16.msra.mxu0 0
  %8735 = vmatprep.subr.bf16.mxu0 0
  %8736 = vmatpush1.bf16.msra.mxu0 0
  %8737 = vmatprep.subr.bf16.mxu0 0
  %8738 = vmatpush1.bf16.msra.mxu0 0
  %8739 = vmatprep.mubr.bf16.mxu0 0
  %8740 = vmatmul.mubr.bf16.gmra.mrb[0].mxu0 %v8625
  %v8741 = vpop.f32.mrb[0].mxu0
  %v8742 = vadd.f32 %v8612, %v8741
  %v8743 = vpop.f32.mrb[0].mxu0
  %v8744 = vadd.f32 %v8616, %v8743
  %v8745 = vpop.f32.mrb[0].mxu0
  %v8746 = vpop.f32.mrb[0].mxu0
  %8747 = vdwg.mxu0
  %v8748 = vmax.f32 %v8742, 0.0
  %v8749 = vmax.f32 %v8744, 0.0
  %v8750 = vpack.c.bf16 %v8748, %v8748
  %v8751 = vpack.c.bf16 %v8749, %v8749
  %v8752 = vld [vmem:[%s7] sm:$0xff]
  %v8753 = vld [vmem:[%s7 + $0x8] sm:$0xff]
  %v8754 = vld [vmem:[%s7 + $0x10] sm:$0xff]
  %v8755 = vld [vmem:[%s7 + $0x18] sm:$0xff]
  %v8756 = vld [vmem:[%s7 + $0x20] sm:$0xff]
  %v8757 = vld [vmem:[%s7 + $0x28] sm:$0xff]
  %v8758 = vld [vmem:[%s7 + $0x30] sm:$0xff]
  %v8759 = vld [vmem:[%s7 + $0x38] sm:$0xff]
  %v8760 = vld [vmem:[%s7 + $0x40] sm:$0xff]
  %v8761 = vld [vmem:[%s7 + $0x48] sm:$0xff]
  %v8762 = vld [vmem:[%s7 + $0x50] sm:$0xff]
  %v8763 = vld [vmem:[%s7 + $0x58] sm:$0xff]
  %v8764 = vld [vmem:[%s7 + $0x60] sm:$0xff]
  %v8765 = vld [vmem:[%s7 + $0x68] sm:$0xff]
  %v8766 = vld [vmem:[%s7 + $0x70] sm:$0xff]
  %v8767 = vld [vmem:[%s7 + $0x78] sm:$0xff]
  %v8768 = vld [vmem:[%s7 + $0x80] sm:$0xff]
  %v8769 = vld [vmem:[%s7 + $0x88] sm:$0xff]
  %v8770 = vld [vmem:[%s7 + $0x90] sm:$0xff]
  %v8771 = vld [vmem:[%s7 + $0x98] sm:$0xff]
  %v8772 = vld [vmem:[%s7 + $0xa0] sm:$0xff]
  %v8773 = vld [vmem:[%s7 + $0xa8] sm:$0xff]
  %v8774 = vld [vmem:[%s7 + $0xb0] sm:$0xff]
  %v8775 = vld [vmem:[%s7 + $0xb8] sm:$0xff]
  %v8776 = vld [vmem:[%s7 + $0xc0] sm:$0xff]
  %v8777 = vld [vmem:[%s7 + $0xc8] sm:$0xff]
  %v8778 = vld [vmem:[%s7 + $0xd0] sm:$0xff]
  %v8779 = vld [vmem:[%s7 + $0xd8] sm:$0xff]
  %v8780 = vld [vmem:[%s7 + $0xe0] sm:$0xff]
  %v8781 = vld [vmem:[%s7 + $0xe8] sm:$0xff]
  %v8782 = vld [vmem:[%s7 + $0xf0] sm:$0xff]
  %v8783 = vld [vmem:[%s7 + $0xf8] sm:$0xff]
  %v8784 = vld [vmem:[%s8] sm:$0x3]
  %v8786 = vlaneseq
  %v8787 = vshrl.u32 %v8786, 7
  %v8788 = vsub.s32 0, %v8787
  %v8789 = vrot.slane %v8784, %v8788
  %v8790 = vlaneseq
  %v8791 = vshrl.u32 %v8790, 7
  %v8792 = vsub.s32 1, %v8791
  %v8793 = vrot.slane %v8784, %v8792
  %v8828 = vunpack.c.l.b16 %v8752
  %v8829 = vunpack.c.h.b16 %v8752
  %v8830 = vunpack.c.l.b16 %v8753
  %v8831 = vunpack.c.h.b16 %v8753
  %v8832 = vunpack.c.l.b16 %v8754
  %v8833 = vunpack.c.h.b16 %v8754
  %v8834 = vunpack.c.l.b16 %v8755
  %v8835 = vunpack.c.h.b16 %v8755
  %v8836 = vunpack.c.l.b16 %v8756
  %v8837 = vunpack.c.h.b16 %v8756
  %v8838 = vunpack.c.l.b16 %v8757
  %v8839 = vunpack.c.h.b16 %v8757
  %v8840 = vunpack.c.l.b16 %v8758
  %v8841 = vunpack.c.h.b16 %v8758
  %v8842 = vunpack.c.l.b16 %v8759
  %v8843 = vunpack.c.h.b16 %v8759
  %v8844 = vunpack.c.l.b16 %v8760
  %v8845 = vunpack.c.h.b16 %v8760
  %v8846 = vunpack.c.l.b16 %v8761
  %v8847 = vunpack.c.h.b16 %v8761
  %v8848 = vunpack.c.l.b16 %v8762
  %v8849 = vunpack.c.h.b16 %v8762
  %v8850 = vunpack.c.l.b16 %v8763
  %v8851 = vunpack.c.h.b16 %v8763
  %v8852 = vunpack.c.l.b16 %v8764
  %v8853 = vunpack.c.h.b16 %v8764
  %v8854 = vunpack.c.l.b16 %v8765
  %v8855 = vunpack.c.h.b16 %v8765
  %v8856 = vunpack.c.l.b16 %v8766
  %v8857 = vunpack.c.h.b16 %v8766
  %v8858 = vunpack.c.l.b16 %v8767
  %v8859 = vunpack.c.h.b16 %v8767
  %v8860 = vunpack.c.l.b16 %v8768
  %v8861 = vunpack.c.h.b16 %v8768
  %v8862 = vunpack.c.l.b16 %v8769
  %v8863 = vunpack.c.h.b16 %v8769
  %v8864 = vunpack.c.l.b16 %v8770
  %v8865 = vunpack.c.h.b16 %v8770
  %v8866 = vunpack.c.l.b16 %v8771
  %v8867 = vunpack.c.h.b16 %v8771
  %v8868 = vunpack.c.l.b16 %v8772
  %v8869 = vunpack.c.h.b16 %v8772
  %v8870 = vunpack.c.l.b16 %v8773
  %v8871 = vunpack.c.h.b16 %v8773
  %v8872 = vunpack.c.l.b16 %v8774
  %v8873 = vunpack.c.h.b16 %v8774
  %v8874 = vunpack.c.l.b16 %v8775
  %v8875 = vunpack.c.h.b16 %v8775
  %v8876 = vunpack.c.l.b16 %v8776
  %v8877 = vunpack.c.h.b16 %v8776
  %v8878 = vunpack.c.l.b16 %v8777
  %v8879 = vunpack.c.h.b16 %v8777
  %v8880 = vunpack.c.l.b16 %v8778
  %v8881 = vunpack.c.h.b16 %v8778
  %v8882 = vunpack.c.l.b16 %v8779
  %v8883 = vunpack.c.h.b16 %v8779
  %v8884 = vunpack.c.l.b16 %v8780
  %v8885 = vunpack.c.h.b16 %v8780
  %v8886 = vunpack.c.l.b16 %v8781
  %v8887 = vunpack.c.h.b16 %v8781
  %v8888 = vunpack.c.l.b16 %v8782
  %v8889 = vunpack.c.h.b16 %v8782
  %v8890 = vunpack.c.l.b16 %v8783
  %v8891 = vunpack.c.h.b16 %v8783
  %v8892 = vpack.c.b16 %v8830, %v8828
  %v8893 = vpack.c.b16 %v8831, %v8829
  %v8894 = vpack.c.b16 %v8834, %v8832
  %v8895 = vpack.c.b16 %v8835, %v8833
  %v8896 = vpack.c.b16 %v8838, %v8836
  %v8897 = vpack.c.b16 %v8839, %v8837
  %v8898 = vpack.c.b16 %v8842, %v8840
  %v8899 = vpack.c.b16 %v8843, %v8841
  %v8900 = vpack.c.b16 %v8846, %v8844
  %v8901 = vpack.c.b16 %v8847, %v8845
  %v8902 = vpack.c.b16 %v8850, %v8848
  %v8903 = vpack.c.b16 %v8851, %v8849
  %v8904 = vpack.c.b16 %v8854, %v8852
  %v8905 = vpack.c.b16 %v8855, %v8853
  %v8906 = vpack.c.b16 %v8858, %v8856
  %v8907 = vpack.c.b16 %v8859, %v8857
  %v8908 = vpack.c.b16 %v8862, %v8860
  %v8909 = vpack.c.b16 %v8863, %v8861
  %v8910 = vpack.c.b16 %v8866, %v8864
  %v8911 = vpack.c.b16 %v8867, %v8865
  %v8912 = vpack.c.b16 %v8870, %v8868
  %v8913 = vpack.c.b16 %v8871, %v8869
  %v8914 = vpack.c.b16 %v8874, %v8872
  %v8915 = vpack.c.b16 %v8875, %v8873
  %v8916 = vpack.c.b16 %v8878, %v8876
  %v8917 = vpack.c.b16 %v8879, %v8877
  %v8918 = vpack.c.b16 %v8882, %v8880
  %v8919 = vpack.c.b16 %v8883, %v8881
  %v8920 = vpack.c.b16 %v8886, %v8884
  %v8921 = vpack.c.b16 %v8887, %v8885
  %v8922 = vpack.c.b16 %v8890, %v8888
  %v8923 = vpack.c.b16 %v8891, %v8889
  %8956 = vmatprep.subr.bf16.mxu0 %v8893
  %8957 = vmatpush1.bf16.msra.mxu0 %v8892
  %8958 = vmatprep.subr.bf16.mxu0 %v8895
  %8959 = vmatpush1.bf16.msra.mxu0 %v8894
  %8960 = vmatprep.subr.bf16.mxu0 %v8897
  %8961 = vmatpush1.bf16.msra.mxu0 %v8896
  %8962 = vmatprep.subr.bf16.mxu0 %v8899
  %8963 = vmatpush1.bf16.msra.mxu0 %v8898
  %8964 = vmatprep.subr.bf16.mxu0 %v8901
  %8965 = vmatpush1.bf16.msra.mxu0 %v8900
  %8966 = vmatprep.subr.bf16.mxu0 %v8903
  %8967 = vmatpush1.bf16.msra.mxu0 %v8902
  %8968 = vmatprep.subr.bf16.mxu0 %v8905
  %8969 = vmatpush1.bf16.msra.mxu0 %v8904
  %8970 = vmatprep.subr.bf16.mxu0 %v8907
  %8971 = vmatpush1.bf16.msra.mxu0 %v8906
  %8972 = vmatprep.subr.bf16.mxu0 %v8909
  %8973 = vmatpush1.bf16.msra.mxu0 %v8908
  %8974 = vmatprep.subr.bf16.mxu0 %v8911
  %8975 = vmatpush1.bf16.msra.mxu0 %v8910
  %8976 = vmatprep.subr.bf16.mxu0 %v8913
  %8977 = vmatpush1.bf16.msra.mxu0 %v8912
  %8978 = vmatprep.subr.bf16.mxu0 %v8915
  %8979 = vmatpush1.bf16.msra.mxu0 %v8914
  %8980 = vmatprep.subr.bf16.mxu0 %v8917
  %8981 = vmatpush1.bf16.msra.mxu0 %v8916
  %8982 = vmatprep.subr.bf16.mxu0 %v8919
  %8983 = vmatpush1.bf16.msra.mxu0 %v8918
  %8984 = vmatprep.subr.bf16.mxu0 %v8921
  %8985 = vmatpush1.bf16.msra.mxu0 %v8920
  %8986 = vmatprep.subr.bf16.mxu0 %v8923
  %8987 = vmatpush1.bf16.msra.mxu0 %v8922
  %8988 = vmatprep.mubr.bf16.mxu0 %v8751
  %8989 = vmatmul.mubr.bf16.gmra.mrb[0].mxu0 %v8750
  %v8990 = vpop.f32.mrb[0].mxu0
  %v8991 = vadd.f32 %v8789, %v8990
  %v8992 = vpop.f32.mrb[0].mxu0
  %v8993 = vadd.f32 %v8793, %v8992
  %v8994 = vpop.f32.mrb[0].mxu0
  %v8995 = vpop.f32.mrb[0].mxu0
  %8996 = vdwg.mxu0
  %v8999 = vcombine.low %v8991, %v8993
  %v9001 = vunpack.c.l.s4 1966171168
  %v9002 = vunpack.c.0.s8 %v9001
  %v9003 = vlaneseq
  %v9004 = vshrl.u32 %v9003, 7
  %v9005 = vsub.s32 %v9002, %v9004
  %v9006 = vrot.slane %v8999, %v9005
  %v9007 = vcombine.high %v9006, %v9006
  %v9009 = vunpack.c.l.s4 1966171168
  %v9010 = vunpack.c.0.s8 %v9009
  %v9011 = vlaneseq
  %v9012 = vshrl.u32 %v9011, 7
  %v9013 = vsub.s32 %v9010, %v9012
  %v9014 = vrot.slane %v9006, %v9013
  %v9016 = vunpack.c.l.s4 1966171168
  %v9017 = vunpack.c.0.s8 %v9016
  %v9018 = vlaneseq
  %v9019 = vshrl.u32 %v9018, 7
  %v9020 = vsub.s32 %v9017, %v9019
  %v9021 = vrot.slane %v9007, %v9020
  %v9024 = vlaneseq
  %vm9025 = vcmp.ge.s32.totalorder %v9024, 0
  %vm9026 = vcmp.lt.s32.totalorder %v9024, 256
  %vm9027 = vmand %vm9025, %vm9026
  %9028 = vst.msk [vmem:[%s9] sm:$0x3] %vm9027, %v9014
  %9029 = vst.msk [vmem:[%s9 + $0x2] sm:$0x3] %vm9027, %v9021
  // Predicated region
  $region38: #{custom_net_forward.1} parent=0 // pred_check
    _
  $region39: #{custom_net_forward.1} parent=0 // pred_check_branch
    %9031 = sbr.rel (0) target = $region41
  $region40: #{custom_net_forward.1} parent=0 // pred_region
    _
  $region41: #{custom_net_forward.1} parent=0 // pred_fallthru
    _
  // Predicated region
  $region42: #{custom_net_forward.1} parent=0 // pred_check
    _
  $region43: #{custom_net_forward.1} parent=0 // pred_check_branch
    %9033 = sbr.rel (0) target = $region45
  $region44: #{custom_net_forward.1} parent=0 // pred_region
    _
  $region45: #{custom_net_forward.1} parent=0 // pred_fallthru
    _

</llo_original>
